<compile_context>
chip_gen: v7x
topology: tpu7x:2x2x1
jax: 0.10.0
libtpu: 0.0.40
codegen_flags: <defaults>
</compile_context>

<pallas_src>
import jax
import jax.numpy as jnp
from jax import lax
from jax.experimental import pallas as pl
from jax.experimental.pallas import tpu as pltpu

NEURON_CDECAY = 1.0 / 2.0
NEURON_VDECAY = 3.0 / 4.0
NEG_THRESHOLD = -0.2
POS_THRESHOLD = 0.2


def _round_up(x, m):
    return (x + m - 1) // m * m


def _num_tensorcores_per_chip():
    # v7x has 2 TensorCores per chip; v5e/v6e have 1.  Best-effort detection.
    try:
        kind = jax.devices()[0].device_kind.lower()
        if "v7" in kind:
            return 2
    except Exception:
        pass
    return 1


def _vmem_capacity_bytes():
    try:
        return int(pltpu.get_tpu_info().vmem_capacity_bytes)
    except Exception:
        return 64 * 1024 * 1024  # conservative: v7x physical VMEM


def _make_kernel(num_layers, t_chunk, num_chunks, spike_ts, unroll, has_tail):
    """num_layers = hidden_num + 1 (includes the output population layer)."""

    def kernel(*refs):
        x_ref = refs[0]                            # (t_chunk, bt, in_pad) bf16, time-major
        wb_refs = refs[1: 1 + 2 * num_layers]      # w0, b0, w1, b1, ...
        out_ref = refs[1 + 2 * num_layers]         # (bt, out_pad) f32 resident accumulator
        state_refs = refs[2 + 2 * num_layers:]     # 3 per layer: current, volt, spike

        tc = pl.program_id(1)  # time-chunk index: innermost, sequential ("arbitrary")

        @pl.when(tc == 0)
        def _init():
            for r in state_refs:
                r[...] = jnp.zeros_like(r)
            out_ref[...] = jnp.zeros_like(out_ref)

        # Loop-invariant parameter loads hoisted out of the time loop.
        # Biases stay (1, N): Mosaic broadcasts (1,N)+(M,N) as a cheap sublane
        # broadcast (~1 vreg/layer) instead of a materialized (bt, N) tile.
        ws = [wb_refs[2 * l][...] for l in range(num_layers)]        # bf16 (fan_in, fan_out)
        bs = [wb_refs[2 * l + 1][...] for l in range(num_layers)]    # f32 (1, fan_out)

        def step(i):
            layer_in = x_ref[i]                    # bf16 spikes {-1,0,+1} (exact)
            s = None
            for l in range(num_layers):
                c_ref = state_refs[3 * l]
                v_ref = state_refs[3 * l + 1]
                s_ref = state_refs[3 * l + 2]
                syn = jnp.dot(layer_in, ws[l], preferred_element_type=jnp.float32) + bs[l]
                c = c_ref[...] * NEURON_CDECAY + syn
                # reset = spike * POS_THRESHOLD (exact: NEG == -POS, spike in {-1,0,+1})
                v = v_ref[...] * NEURON_VDECAY + c - s_ref[...] * POS_THRESHOLD
                s = (v >= POS_THRESHOLD).astype(jnp.float32) - (
                    v <= NEG_THRESHOLD
                ).astype(jnp.float32)
                # RMW state through VMEM scratch -> bounded vreg live set per timestep.
                c_ref[...] = c
                v_ref[...] = v
                s_ref[...] = s
                layer_in = s.astype(jnp.bfloat16)
            out_ref[...] = out_ref[...] + s        # accumulate output-population spikes

        def body(i, carry):
            if has_tail:
                # masked tail chunk: only real timesteps update state / accumulator
                @pl.when(tc * t_chunk + i < spike_ts)
                def _():
                    step(i)
            else:
                step(i)
            return carry

        lax.fori_loop(0, t_chunk, body, 0, unroll=unroll)

        @pl.when(tc == num_chunks - 1)
        def _finalize():
            out_ref[...] = out_ref[...] * (1.0 / float(spike_ts))

    return kernel


def spike_mlp_forward(
    in_pop_spikes,
    params,
    hidden_sizes,
    out_pop_dim,
    spike_ts,
    *,
    max_time_chunk=32,
    max_batch_tile=64,   # kernel is VALU/ld-st bound, not MXU bound: sweep {32,64,128}
):
    """in_pop_spikes: (batch, in_pop_dim, spike_ts) float32 — same layout as torch."""
    batch, in_pop_dim, ts = in_pop_spikes.shape
    assert ts == spike_ts
    num_layers = len(hidden_sizes) + 1

    # --- feature dims -> x128 lanes (lane-dense MXU / output stores) ---
    in_pad = _round_up(in_pop_dim, 128)
    dims = list(hidden_sizes) + [out_pop_dim]
    dims_pad = [_round_up(d, 128) for d in dims]
    out_pad = dims_pad[-1]

    # --- batch tiling: 16-row multiples (bf16 sublane tile); pad batch UP to a
    # multiple of the tile; on v7x ensure >=2 tiles so the parallel axis spans
    # both TensorCores. ---
    bt = min(_round_up(batch, 16), _round_up(max_batch_tile, 16))
    if _num_tensorcores_per_chip() >= 2 and _round_up(batch, bt) // bt < 2 and bt >= 32:
        bt = _round_up(bt // 2, 16)
    batch_pad = _round_up(batch, bt)
    num_batch_tiles = batch_pad // bt

    # --- time chunking: fixed chunk + masked tail (bounded unroll regardless of
    # spike_ts factorization) ---
    t_chunk = min(spike_ts, max_time_chunk)
    num_chunks = (spike_ts + t_chunk - 1) // t_chunk
    t_total = num_chunks * t_chunk
    has_tail = t_total != spike_ts
    unroll = min(t_chunk, 8)

    # --- time-major, padded, bf16 input (spikes exact in bf16) ---
    x_tm = jnp.transpose(in_pop_spikes, (2, 0, 1)).astype(jnp.float32)
    x_tm = jnp.pad(
        x_tm,
        ((0, t_total - spike_ts), (0, batch_pad - batch), (0, in_pad - in_pop_dim)),
    ).astype(jnp.bfloat16)

    # --- padded params: weights bf16 (MXU operands), biases f32 (1, N) ---
    # TODO(synk): keep weights f32 if bit-exact parity with an fp32 torch module
    # near the +/-0.2 thresholds is required (costs 2x weight VMEM).
    fan_ins = [in_pad] + dims_pad[:-1]
    flat_params = []
    for l, (w, b) in enumerate(params):
        w = jnp.asarray(w, jnp.float32)
        b = jnp.asarray(b, jnp.float32).reshape(-1)
        wp = (
            jnp.zeros((fan_ins[l], dims_pad[l]), jnp.float32)
            .at[: w.shape[0], : w.shape[1]]
            .set(w)
        )
        bp = jnp.zeros((1, dims_pad[l]), jnp.float32).at[0, : b.shape[0]].set(b)
        flat_params.append(wp.astype(jnp.bfloat16))
        flat_params.append(bp)

    kernel = _make_kernel(num_layers, t_chunk, num_chunks, spike_ts, unroll, has_tail)

    scratch_shapes = []
    for d in dims_pad:
        scratch_shapes += [pltpu.VMEM((bt, d), jnp.float32)] * 3  # current, volt, spike

    def build_and_run(single_buffer_params):
        in_specs = [pl.BlockSpec((t_chunk, bt, in_pad), lambda b, t: (t, b, 0))]
        for p in flat_params:
            if single_buffer_params:
                # constant index map -> DMA'd once; single-buffer to halve its VMEM
                in_specs.append(
                    pl.BlockSpec(p.shape, lambda b, t: (0, 0),
                                 pipeline_mode=pl.Buffered(1))
                )
            else:
                in_specs.append(pl.BlockSpec(p.shape, lambda b, t: (0, 0)))
        out_specs = pl.BlockSpec((bt, out_pad), lambda b, t: (b, 0))

        # VMEM budget: 2x bf16 input block + (1|2)x params + 2x f32 output block
        # + f32 state scratch, with headroom, clamped to 85% of physical VMEM.
        param_bufs = 1 if single_buffer_params else 2
        est = (
            2 * t_chunk * bt * in_pad * 2
            + param_bufs * sum(int(p.size) * p.dtype.itemsize for p in flat_params)
            + 2 * bt * out_pad * 4
            + sum(3 * bt * d * 4 for d in dims_pad)
        )
        vmem_limit = max(int(1.5 * est), 16 * 1024 * 1024)
        vmem_limit = min(vmem_limit, int(0.85 * _vmem_capacity_bytes()))

        fn = pl.pallas_call(
            kernel,
            out_shape=jax.ShapeDtypeStruct((batch_pad, out_pad), jnp.float32),
            grid_spec=pltpu.PrefetchScalarGridSpec(
                num_scalar_prefetch=0,
                # (batch-tile, time-chunk): time MUST stay last / "arbitrary"
                # (sequential recurrence + per-tile scratch reset at tc==0).
                grid=(num_batch_tiles, num_chunks),
                in_specs=in_specs,
                out_specs=out_specs,
                scratch_shapes=scratch_shapes,
            ),
            compiler_params=pltpu.CompilerParams(
                dimension_semantics=("parallel", "arbitrary"),
                vmem_limit_bytes=vmem_limit,
            ),
        )
        return fn(x_tm, *flat_params)

    try:
        out = build_and_run(single_buffer_params=True)
    except Exception:
        # pl.Buffered(1) not supported by this jax version -> fall back to the
        # default double-buffered parameter windows (identical semantics).
        out = build_and_run(single_buffer_params=False)

    return out[:batch, :out_pop_dim]


def spike_mlp_reference(in_pop_spikes, params_bf16, hidden_sizes, out_pop_dim, spike_ts):
    """Pure-JAX reference mirroring the torch forward (nested-where form).
    Uses the same bf16-rounded weights / bf16 spike activations (f32 accumulation)
    as the kernel so the comparison is apples-to-apples."""
    batch = in_pop_spikes.shape[0]
    dims = list(hidden_sizes) + [out_pop_dim]
    states = [[jnp.zeros((batch, d), jnp.float32) for _ in range(3)] for d in dims]
    out_act = jnp.zeros((batch, out_pop_dim), jnp.float32)
    for step in range(spike_ts):
        layer_in = in_pop_spikes[:, :, step].astype(jnp.bfloat16)
        for li, (w, b) in enumerate(params_bf16):
            c, v, s = states[li]
            cur = c * NEURON_CDECAY + (
                jnp.dot(layer_in, w, preferred_element_type=jnp.float32)
                + b.reshape(1, -1).astype(jnp.float32)
            )
            reset = jnp.where(
                s == 1.0, POS_THRESHOLD, jnp.where(s == -1.0, NEG_THRESHOLD, 0.0)
            )
            v = v * NEURON_VDECAY + cur - reset
            s = jnp.where(
                v >= POS_THRESHOLD, 1.0, jnp.where(v <= NEG_THRESHOLD, -1.0, 0.0)
            ).astype(jnp.float32)
            states[li] = [cur, v, s]
            layer_in = s.astype(jnp.bfloat16)
        out_act = out_act + states[-1][2]
    return out_act / float(spike_ts)


def init_params(key, in_pop_dim, hidden_sizes, out_pop_dim):
    """Deterministic Linear params; torch Linear init U(-1/sqrt(fan_in), 1/sqrt(fan_in)).
    Stored as (fan_in, fan_out) so the kernel does x @ W (== x @ W_torch.T)."""
    dims = [in_pop_dim] + list(hidden_sizes) + [out_pop_dim]
    params = []
    for i in range(len(dims) - 1):
        fan_in, fan_out = dims[i], dims[i + 1]
        key, kw, kb = jax.random.split(key, 3)
        bound = 1.0 / (fan_in ** 0.5)
        w = jax.random.uniform(kw, (fan_in, fan_out), jnp.float32, -bound, bound)
        b = jax.random.uniform(kb, (fan_out,), jnp.float32, -bound, bound)
        params.append((w, b))
    return params


if __name__ == "__main__":
    # Small shapes consistent with the module's forward.
    batch = 2
    in_pop_dim = 32
    hidden_sizes = [32, 32]
    out_pop_dim = 32
    spike_ts = 8

    key = jax.random.PRNGKey(0)
    key, k_in = jax.random.split(key)
    # input population spikes in {-1, 0, +1}
    in_pop_spikes = jax.random.randint(
        k_in, (batch, in_pop_dim, spike_ts), -1, 2
    ).astype(jnp.float32)

    params = init_params(key, in_pop_dim, hidden_sizes, out_pop_dim)

    out = spike_mlp_forward(in_pop_spikes, params, hidden_sizes, out_pop_dim, spike_ts)
    out = jax.block_until_ready(out)

    # reference consumes the SAME bf16-rounded weights the kernel uses
    params_bf16 = [(w.astype(jnp.bfloat16), b) for (w, b) in params]
    ref = spike_mlp_reference(in_pop_spikes, params_bf16, hidden_sizes, out_pop_dim, spike_ts)

    assert out.shape == (batch, out_pop_dim)
    assert jnp.allclose(out, ref, atol=1e-4, rtol=1e-4), "mismatch vs pure-JAX reference"

    print("KERNEL_OK")
</pallas_src>

<mosaic_0001>
module attributes {stable_mosaic.version = 11 : i64} {
  func.func @kernel(%arg0: i32, %arg1: i32, %arg2: memref<8x16x128xbf16, #tpu.memory_space<vmem>>, %arg3: memref<128x128xbf16, #tpu.memory_space<vmem>>, %arg4: memref<1x128xf32, #tpu.memory_space<vmem>>, %arg5: memref<128x128xbf16, #tpu.memory_space<vmem>>, %arg6: memref<1x128xf32, #tpu.memory_space<vmem>>, %arg7: memref<128x128xbf16, #tpu.memory_space<vmem>>, %arg8: memref<1x128xf32, #tpu.memory_space<vmem>>, %arg9: memref<16x128xf32, #tpu.memory_space<vmem>>, %arg10: memref<16x128xf32, #tpu.memory_space<vmem>>, %arg11: memref<16x128xf32, #tpu.memory_space<vmem>>, %arg12: memref<16x128xf32, #tpu.memory_space<vmem>>, %arg13: memref<16x128xf32, #tpu.memory_space<vmem>>, %arg14: memref<16x128xf32, #tpu.memory_space<vmem>>, %arg15: memref<16x128xf32, #tpu.memory_space<vmem>>, %arg16: memref<16x128xf32, #tpu.memory_space<vmem>>, %arg17: memref<16x128xf32, #tpu.memory_space<vmem>>, %arg18: memref<16x128xf32, #tpu.memory_space<vmem>>) attributes {dimension_semantics = [#tpu.dimension_semantics<parallel>, #tpu.dimension_semantics<arbitrary>], iteration_bounds = array<i64: 1, 1>, scalar_prefetch = 0 : i64, scratch_operands = 9 : i64, tpu.core_type = #tpu.core_type<tc>, window_params = [{transform_indices = @transform_0, window_bounds = array<i64: 8, 16, 128>}, {pipeline_mode = #tpu.pipeline_mode<synchronous>, transform_indices = @transform_1, window_bounds = array<i64: 128, 128>}, {pipeline_mode = #tpu.pipeline_mode<synchronous>, transform_indices = @transform_2, window_bounds = array<i64: 1, 128>}, {pipeline_mode = #tpu.pipeline_mode<synchronous>, transform_indices = @transform_3, window_bounds = array<i64: 128, 128>}, {pipeline_mode = #tpu.pipeline_mode<synchronous>, transform_indices = @transform_4, window_bounds = array<i64: 1, 128>}, {pipeline_mode = #tpu.pipeline_mode<synchronous>, transform_indices = @transform_5, window_bounds = array<i64: 128, 128>}, {pipeline_mode = #tpu.pipeline_mode<synchronous>, transform_indices = @transform_6, window_bounds = array<i64: 1, 128>}, {transform_indices = @transform_7, window_bounds = array<i64: 16, 128>}]} {
    %c0_i32 = arith.constant 0 : i32
    %0 = arith.cmpi eq, %arg1, %c0_i32 : i32
    %1 = arith.extui %0 : i1 to i32
    %c0_i32_0 = arith.constant 0 : i32
    %2 = arith.cmpi ne, %1, %c0_i32_0 : i32
    scf.if %2 {
      %cst_494 = arith.constant 0.000000e+00 : f32
      %724 = vector.broadcast %cst_494 : f32 to vector<16x128xf32>
      %c0_495 = arith.constant 0 : index
      %c0_496 = arith.constant 0 : index
      %725 = vector.load %arg10[%c0_495, %c0_496] : memref<16x128xf32, #tpu.memory_space<vmem>>, vector<16x128xf32>
      tpu.vector_store %arg10[%c0_495, %c0_496], %724 {strides = array<i32>} : memref<16x128xf32, #tpu.memory_space<vmem>>, vector<16x128xf32>,
      %cst_497 = arith.constant 0.000000e+00 : f32
      %726 = vector.broadcast %cst_497 : f32 to vector<16x128xf32>
      %c0_498 = arith.constant 0 : index
      %c0_499 = arith.constant 0 : index
      %727 = vector.load %arg11[%c0_498, %c0_499] : memref<16x128xf32, #tpu.memory_space<vmem>>, vector<16x128xf32>
      tpu.vector_store %arg11[%c0_498, %c0_499], %726 {strides = array<i32>} : memref<16x128xf32, #tpu.memory_space<vmem>>, vector<16x128xf32>,
      %cst_500 = arith.constant 0.000000e+00 : f32
      %728 = vector.broadcast %cst_500 : f32 to vector<16x128xf32>
      %c0_501 = arith.constant 0 : index
      %c0_502 = arith.constant 0 : index
      %729 = vector.load %arg12[%c0_501, %c0_502] : memref<16x128xf32, #tpu.memory_space<vmem>>, vector<16x128xf32>
      tpu.vector_store %arg12[%c0_501, %c0_502], %728 {strides = array<i32>} : memref<16x128xf32, #tpu.memory_space<vmem>>, vector<16x128xf32>,
      %cst_503 = arith.constant 0.000000e+00 : f32
      %730 = vector.broadcast %cst_503 : f32 to vector<16x128xf32>
      %c0_504 = arith.constant 0 : index
      %c0_505 = arith.constant 0 : index
      %731 = vector.load %arg13[%c0_504, %c0_505] : memref<16x128xf32, #tpu.memory_space<vmem>>, vector<16x128xf32>
      tpu.vector_store %arg13[%c0_504, %c0_505], %730 {strides = array<i32>} : memref<16x128xf32, #tpu.memory_space<vmem>>, vector<16x128xf32>,
      %cst_506 = arith.constant 0.000000e+00 : f32
      %732 = vector.broadcast %cst_506 : f32 to vector<16x128xf32>
      %c0_507 = arith.constant 0 : index
      %c0_508 = arith.constant 0 : index
      %733 = vector.load %arg14[%c0_507, %c0_508] : memref<16x128xf32, #tpu.memory_space<vmem>>, vector<16x128xf32>
      tpu.vector_store %arg14[%c0_507, %c0_508], %732 {strides = array<i32>} : memref<16x128xf32, #tpu.memory_space<vmem>>, vector<16x128xf32>,
      %cst_509 = arith.constant 0.000000e+00 : f32
      %734 = vector.broadcast %cst_509 : f32 to vector<16x128xf32>
      %c0_510 = arith.constant 0 : index
      %c0_511 = arith.constant 0 : index
      %735 = vector.load %arg15[%c0_510, %c0_511] : memref<16x128xf32, #tpu.memory_space<vmem>>, vector<16x128xf32>
      tpu.vector_store %arg15[%c0_510, %c0_511], %734 {strides = array<i32>} : memref<16x128xf32, #tpu.memory_space<vmem>>, vector<16x128xf32>,
      %cst_512 = arith.constant 0.000000e+00 : f32
      %736 = vector.broadcast %cst_512 : f32 to vector<16x128xf32>
      %c0_513 = arith.constant 0 : index
      %c0_514 = arith.constant 0 : index
      %737 = vector.load %arg16[%c0_513, %c0_514] : memref<16x128xf32, #tpu.memory_space<vmem>>, vector<16x128xf32>
      tpu.vector_store %arg16[%c0_513, %c0_514], %736 {strides = array<i32>} : memref<16x128xf32, #tpu.memory_space<vmem>>, vector<16x128xf32>,
      %cst_515 = arith.constant 0.000000e+00 : f32
      %738 = vector.broadcast %cst_515 : f32 to vector<16x128xf32>
      %c0_516 = arith.constant 0 : index
      %c0_517 = arith.constant 0 : index
      %739 = vector.load %arg17[%c0_516, %c0_517] : memref<16x128xf32, #tpu.memory_space<vmem>>, vector<16x128xf32>
      tpu.vector_store %arg17[%c0_516, %c0_517], %738 {strides = array<i32>} : memref<16x128xf32, #tpu.memory_space<vmem>>, vector<16x128xf32>,
      %cst_518 = arith.constant 0.000000e+00 : f32
      %740 = vector.broadcast %cst_518 : f32 to vector<16x128xf32>
      %c0_519 = arith.constant 0 : index
      %c0_520 = arith.constant 0 : index
      %741 = vector.load %arg18[%c0_519, %c0_520] : memref<16x128xf32, #tpu.memory_space<vmem>>, vector<16x128xf32>
      tpu.vector_store %arg18[%c0_519, %c0_520], %740 {strides = array<i32>} : memref<16x128xf32, #tpu.memory_space<vmem>>, vector<16x128xf32>,
      %cst_521 = arith.constant 0.000000e+00 : f32
      %742 = vector.broadcast %cst_521 : f32 to vector<16x128xf32>
      %c0_522 = arith.constant 0 : index
      %c0_523 = arith.constant 0 : index
      %743 = vector.load %arg9[%c0_522, %c0_523] : memref<16x128xf32, #tpu.memory_space<vmem>>, vector<16x128xf32>
      tpu.vector_store %arg9[%c0_522, %c0_523], %742 {strides = array<i32>} : memref<16x128xf32, #tpu.memory_space<vmem>>, vector<16x128xf32>,
    } else {
    }
    %c0 = arith.constant 0 : index
    %c0_1 = arith.constant 0 : index
    %3 = vector.load %arg3[%c0, %c0_1] : memref<128x128xbf16, #tpu.memory_space<vmem>>, vector<128x128xbf16>
    %c0_2 = arith.constant 0 : index
    %c0_3 = arith.constant 0 : index
    %4 = vector.load %arg5[%c0_2, %c0_3] : memref<128x128xbf16, #tpu.memory_space<vmem>>, vector<128x128xbf16>
    %c0_4 = arith.constant 0 : index
    %c0_5 = arith.constant 0 : index
    %5 = vector.load %arg7[%c0_4, %c0_5] : memref<128x128xbf16, #tpu.memory_space<vmem>>, vector<128x128xbf16>
    %c0_6 = arith.constant 0 : index
    %c0_7 = arith.constant 0 : index
    %6 = vector.load %arg4[%c0_6, %c0_7] : memref<1x128xf32, #tpu.memory_space<vmem>>, vector<1x128xf32>
    %c0_8 = arith.constant 0 : index
    %c0_9 = arith.constant 0 : index
    %7 = vector.load %arg6[%c0_8, %c0_9] : memref<1x128xf32, #tpu.memory_space<vmem>>, vector<1x128xf32>
    %c0_10 = arith.constant 0 : index
    %c0_11 = arith.constant 0 : index
    %8 = vector.load %arg8[%c0_10, %c0_11] : memref<1x128xf32, #tpu.memory_space<vmem>>, vector<1x128xf32>
    %c0_i32_12 = arith.constant 0 : i32
    %9 = arith.index_cast %c0_i32_12 : i32 to index
    %c0_13 = arith.constant 0 : index
    %c0_14 = arith.constant 0 : index
    %10 = vector.load %arg2[%9, %c0_13, %c0_14] : memref<8x16x128xbf16, #tpu.memory_space<vmem>>, vector<1x16x128xbf16>
    %11 = vector.shape_cast %10 : vector<1x16x128xbf16> to vector<16x128xbf16>
    %cst = arith.constant dense<0.000000e+00> : vector<16x128xf32>
    %12 = tpu.matmul %11, %3, %cst {dimension_numbers = #tpu.dot_dimension_numbers<[1], [0], [0], [1], [0, 0, 1, 1], [], []>} : vector<16x128xbf16>, vector<128x128xbf16>, vector<16x128xf32> -> vector<16x128xf32>
    %13 = vector.broadcast %6 : vector<1x128xf32> to vector<16x128xf32>
    %14 = arith.addf %12, %13 : vector<16x128xf32>
    %c0_15 = arith.constant 0 : index
    %c0_16 = arith.constant 0 : index
    %15 = vector.load %arg10[%c0_15, %c0_16] : memref<16x128xf32, #tpu.memory_space<vmem>>, vector<16x128xf32>
    %cst_17 = arith.constant 5.000000e-01 : f32
    %16 = vector.broadcast %cst_17 : f32 to vector<16x128xf32>
    %17 = arith.mulf %15, %16 : vector<16x128xf32>
    %18 = arith.addf %17, %14 : vector<16x128xf32>
    %c0_18 = arith.constant 0 : index
    %c0_19 = arith.constant 0 : index
    %19 = vector.load %arg11[%c0_18, %c0_19] : memref<16x128xf32, #tpu.memory_space<vmem>>, vector<16x128xf32>
    %cst_20 = arith.constant 7.500000e-01 : f32
    %20 = vector.broadcast %cst_20 : f32 to vector<16x128xf32>
    %21 = arith.mulf %19, %20 : vector<16x128xf32>
    %22 = arith.addf %21, %18 : vector<16x128xf32>
    %c0_21 = arith.constant 0 : index
    %c0_22 = arith.constant 0 : index
    %23 = vector.load %arg12[%c0_21, %c0_22] : memref<16x128xf32, #tpu.memory_space<vmem>>, vector<16x128xf32>
    %cst_23 = arith.constant 2.000000e-01 : f32
    %24 = vector.broadcast %cst_23 : f32 to vector<16x128xf32>
    %25 = arith.mulf %23, %24 : vector<16x128xf32>
    %26 = arith.subf %22, %25 : vector<16x128xf32>
    %cst_24 = arith.constant 2.000000e-01 : f32
    %27 = vector.broadcast %cst_24 : f32 to vector<16x128xf32>
    %28 = arith.cmpf oge, %26, %27 : vector<16x128xf32>
    %29 = arith.extui %28 : vector<16x128xi1> to vector<16x128xi32>
    %30 = arith.sitofp %29 : vector<16x128xi32> to vector<16x128xf32>
    %cst_25 = arith.constant -2.000000e-01 : f32
    %31 = vector.broadcast %cst_25 : f32 to vector<16x128xf32>
    %32 = arith.cmpf ole, %26, %31 : vector<16x128xf32>
    %33 = arith.extui %32 : vector<16x128xi1> to vector<16x128xi32>
    %34 = arith.sitofp %33 : vector<16x128xi32> to vector<16x128xf32>
    %35 = arith.subf %30, %34 : vector<16x128xf32>
    %c0_26 = arith.constant 0 : index
    %c0_27 = arith.constant 0 : index
    %36 = vector.load %arg10[%c0_26, %c0_27] : memref<16x128xf32, #tpu.memory_space<vmem>>, vector<16x128xf32>
    tpu.vector_store %arg10[%c0_26, %c0_27], %18 {strides = array<i32>} : memref<16x128xf32, #tpu.memory_space<vmem>>, vector<16x128xf32>,
    %c0_28 = arith.constant 0 : index
    %c0_29 = arith.constant 0 : index
    %37 = vector.load %arg11[%c0_28, %c0_29] : memref<16x128xf32, #tpu.memory_space<vmem>>, vector<16x128xf32>
    tpu.vector_store %arg11[%c0_28, %c0_29], %26 {strides = array<i32>} : memref<16x128xf32, #tpu.memory_space<vmem>>, vector<16x128xf32>,
    %c0_30 = arith.constant 0 : index
    %c0_31 = arith.constant 0 : index
    %38 = vector.load %arg12[%c0_30, %c0_31] : memref<16x128xf32, #tpu.memory_space<vmem>>, vector<16x128xf32>
    tpu.vector_store %arg12[%c0_30, %c0_31], %35 {strides = array<i32>} : memref<16x128xf32, #tpu.memory_space<vmem>>, vector<16x128xf32>,
    %39 = arith.truncf %35 : vector<16x128xf32> to vector<16x128xbf16>
    %cst_32 = arith.constant dense<0.000000e+00> : vector<16x128xf32>
    %40 = tpu.matmul %39, %4, %cst_32 {dimension_numbers = #tpu.dot_dimension_numbers<[1], [0], [0], [1], [0, 0, 1, 1], [], []>} : vector<16x128xbf16>, vector<128x128xbf16>, vector<16x128xf32> -> vector<16x128xf32>
    %41 = vector.broadcast %7 : vector<1x128xf32> to vector<16x128xf32>
    %42 = arith.addf %40, %41 : vector<16x128xf32>
    %c0_33 = arith.constant 0 : index
    %c0_34 = arith.constant 0 : index
    %43 = vector.load %arg13[%c0_33, %c0_34] : memref<16x128xf32, #tpu.memory_space<vmem>>, vector<16x128xf32>
    %cst_35 = arith.constant 5.000000e-01 : f32
    %44 = vector.broadcast %cst_35 : f32 to vector<16x128xf32>
    %45 = arith.mulf %43, %44 : vector<16x128xf32>
    %46 = arith.addf %45, %42 : vector<16x128xf32>
    %c0_36 = arith.constant 0 : index
    %c0_37 = arith.constant 0 : index
    %47 = vector.load %arg14[%c0_36, %c0_37] : memref<16x128xf32, #tpu.memory_space<vmem>>, vector<16x128xf32>
    %cst_38 = arith.constant 7.500000e-01 : f32
    %48 = vector.broadcast %cst_38 : f32 to vector<16x128xf32>
    %49 = arith.mulf %47, %48 : vector<16x128xf32>
    %50 = arith.addf %49, %46 : vector<16x128xf32>
    %c0_39 = arith.constant 0 : index
    %c0_40 = arith.constant 0 : index
    %51 = vector.load %arg15[%c0_39, %c0_40] : memref<16x128xf32, #tpu.memory_space<vmem>>, vector<16x128xf32>
    %cst_41 = arith.constant 2.000000e-01 : f32
    %52 = vector.broadcast %cst_41 : f32 to vector<16x128xf32>
    %53 = arith.mulf %51, %52 : vector<16x128xf32>
    %54 = arith.subf %50, %53 : vector<16x128xf32>
    %cst_42 = arith.constant 2.000000e-01 : f32
    %55 = vector.broadcast %cst_42 : f32 to vector<16x128xf32>
    %56 = arith.cmpf oge, %54, %55 : vector<16x128xf32>
    %57 = arith.extui %56 : vector<16x128xi1> to vector<16x128xi32>
    %58 = arith.sitofp %57 : vector<16x128xi32> to vector<16x128xf32>
    %cst_43 = arith.constant -2.000000e-01 : f32
    %59 = vector.broadcast %cst_43 : f32 to vector<16x128xf32>
    %60 = arith.cmpf ole, %54, %59 : vector<16x128xf32>
    %61 = arith.extui %60 : vector<16x128xi1> to vector<16x128xi32>
    %62 = arith.sitofp %61 : vector<16x128xi32> to vector<16x128xf32>
    %63 = arith.subf %58, %62 : vector<16x128xf32>
    %c0_44 = arith.constant 0 : index
    %c0_45 = arith.constant 0 : index
    %64 = vector.load %arg13[%c0_44, %c0_45] : memref<16x128xf32, #tpu.memory_space<vmem>>, vector<16x128xf32>
    tpu.vector_store %arg13[%c0_44, %c0_45], %46 {strides = array<i32>} : memref<16x128xf32, #tpu.memory_space<vmem>>, vector<16x128xf32>,
    %c0_46 = arith.constant 0 : index
    %c0_47 = arith.constant 0 : index
    %65 = vector.load %arg14[%c0_46, %c0_47] : memref<16x128xf32, #tpu.memory_space<vmem>>, vector<16x128xf32>
    tpu.vector_store %arg14[%c0_46, %c0_47], %54 {strides = array<i32>} : memref<16x128xf32, #tpu.memory_space<vmem>>, vector<16x128xf32>,
    %c0_48 = arith.constant 0 : index
    %c0_49 = arith.constant 0 : index
    %66 = vector.load %arg15[%c0_48, %c0_49] : memref<16x128xf32, #tpu.memory_space<vmem>>, vector<16x128xf32>
    tpu.vector_store %arg15[%c0_48, %c0_49], %63 {strides = array<i32>} : memref<16x128xf32, #tpu.memory_space<vmem>>, vector<16x128xf32>,
    %67 = arith.truncf %63 : vector<16x128xf32> to vector<16x128xbf16>
    %cst_50 = arith.constant dense<0.000000e+00> : vector<16x128xf32>
    %68 = tpu.matmul %67, %5, %cst_50 {dimension_numbers = #tpu.dot_dimension_numbers<[1], [0], [0], [1], [0, 0, 1, 1], [], []>} : vector<16x128xbf16>, vector<128x128xbf16>, vector<16x128xf32> -> vector<16x128xf32>
    %69 = vector.broadcast %8 : vector<1x128xf32> to vector<16x128xf32>
    %70 = arith.addf %68, %69 : vector<16x128xf32>
    %c0_51 = arith.constant 0 : index
    %c0_52 = arith.constant 0 : index
    %71 = vector.load %arg16[%c0_51, %c0_52] : memref<16x128xf32, #tpu.memory_space<vmem>>, vector<16x128xf32>
    %cst_53 = arith.constant 5.000000e-01 : f32
    %72 = vector.broadcast %cst_53 : f32 to vector<16x128xf32>
    %73 = arith.mulf %71, %72 : vector<16x128xf32>
    %74 = arith.addf %73, %70 : vector<16x128xf32>
    %c0_54 = arith.constant 0 : index
    %c0_55 = arith.constant 0 : index
    %75 = vector.load %arg17[%c0_54, %c0_55] : memref<16x128xf32, #tpu.memory_space<vmem>>, vector<16x128xf32>
    %cst_56 = arith.constant 7.500000e-01 : f32
    %76 = vector.broadcast %cst_56 : f32 to vector<16x128xf32>
    %77 = arith.mulf %75, %76 : vector<16x128xf32>
    %78 = arith.addf %77, %74 : vector<16x128xf32>
    %c0_57 = arith.constant 0 : index
    %c0_58 = arith.constant 0 : index
    %79 = vector.load %arg18[%c0_57, %c0_58] : memref<16x128xf32, #tpu.memory_space<vmem>>, vector<16x128xf32>
    %cst_59 = arith.constant 2.000000e-01 : f32
    %80 = vector.broadcast %cst_59 : f32 to vector<16x128xf32>
    %81 = arith.mulf %79, %80 : vector<16x128xf32>
    %82 = arith.subf %78, %81 : vector<16x128xf32>
    %cst_60 = arith.constant 2.000000e-01 : f32
    %83 = vector.broadcast %cst_60 : f32 to vector<16x128xf32>
    %84 = arith.cmpf oge, %82, %83 : vector<16x128xf32>
    %85 = arith.extui %84 : vector<16x128xi1> to vector<16x128xi32>
    %86 = arith.sitofp %85 : vector<16x128xi32> to vector<16x128xf32>
    %cst_61 = arith.constant -2.000000e-01 : f32
    %87 = vector.broadcast %cst_61 : f32 to vector<16x128xf32>
    %88 = arith.cmpf ole, %82, %87 : vector<16x128xf32>
    %89 = arith.extui %88 : vector<16x128xi1> to vector<16x128xi32>
    %90 = arith.sitofp %89 : vector<16x128xi32> to vector<16x128xf32>
    %91 = arith.subf %86, %90 : vector<16x128xf32>
    %c0_62 = arith.constant 0 : index
    %c0_63 = arith.constant 0 : index
    %92 = vector.load %arg16[%c0_62, %c0_63] : memref<16x128xf32, #tpu.memory_space<vmem>>, vector<16x128xf32>
    tpu.vector_store %arg16[%c0_62, %c0_63], %74 {strides = array<i32>} : memref<16x128xf32, #tpu.memory_space<vmem>>, vector<16x128xf32>,
    %c0_64 = arith.constant 0 : index
    %c0_65 = arith.constant 0 : index
    %93 = vector.load %arg17[%c0_64, %c0_65] : memref<16x128xf32, #tpu.memory_space<vmem>>, vector<16x128xf32>
    tpu.vector_store %arg17[%c0_64, %c0_65], %82 {strides = array<i32>} : memref<16x128xf32, #tpu.memory_space<vmem>>, vector<16x128xf32>,
    %c0_66 = arith.constant 0 : index
    %c0_67 = arith.constant 0 : index
    %94 = vector.load %arg18[%c0_66, %c0_67] : memref<16x128xf32, #tpu.memory_space<vmem>>, vector<16x128xf32>
    tpu.vector_store %arg18[%c0_66, %c0_67], %91 {strides = array<i32>} : memref<16x128xf32, #tpu.memory_space<vmem>>, vector<16x128xf32>,
    %c0_68 = arith.constant 0 : index
    %c0_69 = arith.constant 0 : index
    %95 = vector.load %arg9[%c0_68, %c0_69] : memref<16x128xf32, #tpu.memory_space<vmem>>, vector<16x128xf32>
    %96 = arith.addf %95, %91 : vector<16x128xf32>
    %c0_70 = arith.constant 0 : index
    %c0_71 = arith.constant 0 : index
    %97 = vector.load %arg9[%c0_70, %c0_71] : memref<16x128xf32, #tpu.memory_space<vmem>>, vector<16x128xf32>
    tpu.vector_store %arg9[%c0_70, %c0_71], %96 {strides = array<i32>} : memref<16x128xf32, #tpu.memory_space<vmem>>, vector<16x128xf32>,
    %c1_i32 = arith.constant 1 : i32
    %98 = arith.index_cast %c1_i32 : i32 to index
    %c0_72 = arith.constant 0 : index
    %c0_73 = arith.constant 0 : index
    %99 = vector.load %arg2[%98, %c0_72, %c0_73] : memref<8x16x128xbf16, #tpu.memory_space<vmem>>, vector<1x16x128xbf16>
    %100 = vector.shape_cast %99 : vector<1x16x128xbf16> to vector<16x128xbf16>
    %cst_74 = arith.constant dense<0.000000e+00> : vector<16x128xf32>
    %101 = tpu.matmul %100, %3, %cst_74 {dimension_numbers = #tpu.dot_dimension_numbers<[1], [0], [0], [1], [0, 0, 1, 1], [], []>} : vector<16x128xbf16>, vector<128x128xbf16>, vector<16x128xf32> -> vector<16x128xf32>
    %102 = vector.broadcast %6 : vector<1x128xf32> to vector<16x128xf32>
    %103 = arith.addf %101, %102 : vector<16x128xf32>
    %c0_75 = arith.constant 0 : index
    %c0_76 = arith.constant 0 : index
    %104 = vector.load %arg10[%c0_75, %c0_76] : memref<16x128xf32, #tpu.memory_space<vmem>>, vector<16x128xf32>
    %cst_77 = arith.constant 5.000000e-01 : f32
    %105 = vector.broadcast %cst_77 : f32 to vector<16x128xf32>
    %106 = arith.mulf %104, %105 : vector<16x128xf32>
    %107 = arith.addf %106, %103 : vector<16x128xf32>
    %c0_78 = arith.constant 0 : index
    %c0_79 = arith.constant 0 : index
    %108 = vector.load %arg11[%c0_78, %c0_79] : memref<16x128xf32, #tpu.memory_space<vmem>>, vector<16x128xf32>
    %cst_80 = arith.constant 7.500000e-01 : f32
    %109 = vector.broadcast %cst_80 : f32 to vector<16x128xf32>
    %110 = arith.mulf %108, %109 : vector<16x128xf32>
    %111 = arith.addf %110, %107 : vector<16x128xf32>
    %c0_81 = arith.constant 0 : index
    %c0_82 = arith.constant 0 : index
    %112 = vector.load %arg12[%c0_81, %c0_82] : memref<16x128xf32, #tpu.memory_space<vmem>>, vector<16x128xf32>
    %cst_83 = arith.constant 2.000000e-01 : f32
    %113 = vector.broadcast %cst_83 : f32 to vector<16x128xf32>
    %114 = arith.mulf %112, %113 : vector<16x128xf32>
    %115 = arith.subf %111, %114 : vector<16x128xf32>
    %cst_84 = arith.constant 2.000000e-01 : f32
    %116 = vector.broadcast %cst_84 : f32 to vector<16x128xf32>
    %117 = arith.cmpf oge, %115, %116 : vector<16x128xf32>
    %118 = arith.extui %117 : vector<16x128xi1> to vector<16x128xi32>
    %119 = arith.sitofp %118 : vector<16x128xi32> to vector<16x128xf32>
    %cst_85 = arith.constant -2.000000e-01 : f32
    %120 = vector.broadcast %cst_85 : f32 to vector<16x128xf32>
    %121 = arith.cmpf ole, %115, %120 : vector<16x128xf32>
    %122 = arith.extui %121 : vector<16x128xi1> to vector<16x128xi32>
    %123 = arith.sitofp %122 : vector<16x128xi32> to vector<16x128xf32>
    %124 = arith.subf %119, %123 : vector<16x128xf32>
    %c0_86 = arith.constant 0 : index
    %c0_87 = arith.constant 0 : index
    %125 = vector.load %arg10[%c0_86, %c0_87] : memref<16x128xf32, #tpu.memory_space<vmem>>, vector<16x128xf32>
    tpu.vector_store %arg10[%c0_86, %c0_87], %107 {strides = array<i32>} : memref<16x128xf32, #tpu.memory_space<vmem>>, vector<16x128xf32>,
    %c0_88 = arith.constant 0 : index
    %c0_89 = arith.constant 0 : index
    %126 = vector.load %arg11[%c0_88, %c0_89] : memref<16x128xf32, #tpu.memory_space<vmem>>, vector<16x128xf32>
    tpu.vector_store %arg11[%c0_88, %c0_89], %115 {strides = array<i32>} : memref<16x128xf32, #tpu.memory_space<vmem>>, vector<16x128xf32>,
    %c0_90 = arith.constant 0 : index
    %c0_91 = arith.constant 0 : index
    %127 = vector.load %arg12[%c0_90, %c0_91] : memref<16x128xf32, #tpu.memory_space<vmem>>, vector<16x128xf32>
    tpu.vector_store %arg12[%c0_90, %c0_91], %124 {strides = array<i32>} : memref<16x128xf32, #tpu.memory_space<vmem>>, vector<16x128xf32>,
    %128 = arith.truncf %124 : vector<16x128xf32> to vector<16x128xbf16>
    %cst_92 = arith.constant dense<0.000000e+00> : vector<16x128xf32>
    %129 = tpu.matmul %128, %4, %cst_92 {dimension_numbers = #tpu.dot_dimension_numbers<[1], [0], [0], [1], [0, 0, 1, 1], [], []>} : vector<16x128xbf16>, vector<128x128xbf16>, vector<16x128xf32> -> vector<16x128xf32>
    %130 = vector.broadcast %7 : vector<1x128xf32> to vector<16x128xf32>
    %131 = arith.addf %129, %130 : vector<16x128xf32>
    %c0_93 = arith.constant 0 : index
    %c0_94 = arith.constant 0 : index
    %132 = vector.load %arg13[%c0_93, %c0_94] : memref<16x128xf32, #tpu.memory_space<vmem>>, vector<16x128xf32>
    %cst_95 = arith.constant 5.000000e-01 : f32
    %133 = vector.broadcast %cst_95 : f32 to vector<16x128xf32>
    %134 = arith.mulf %132, %133 : vector<16x128xf32>
    %135 = arith.addf %134, %131 : vector<16x128xf32>
    %c0_96 = arith.constant 0 : index
    %c0_97 = arith.constant 0 : index
    %136 = vector.load %arg14[%c0_96, %c0_97] : memref<16x128xf32, #tpu.memory_space<vmem>>, vector<16x128xf32>
    %cst_98 = arith.constant 7.500000e-01 : f32
    %137 = vector.broadcast %cst_98 : f32 to vector<16x128xf32>
    %138 = arith.mulf %136, %137 : vector<16x128xf32>
    %139 = arith.addf %138, %135 : vector<16x128xf32>
    %c0_99 = arith.constant 0 : index
    %c0_100 = arith.constant 0 : index
    %140 = vector.load %arg15[%c0_99, %c0_100] : memref<16x128xf32, #tpu.memory_space<vmem>>, vector<16x128xf32>
    %cst_101 = arith.constant 2.000000e-01 : f32
    %141 = vector.broadcast %cst_101 : f32 to vector<16x128xf32>
    %142 = arith.mulf %140, %141 : vector<16x128xf32>
    %143 = arith.subf %139, %142 : vector<16x128xf32>
    %cst_102 = arith.constant 2.000000e-01 : f32
    %144 = vector.broadcast %cst_102 : f32 to vector<16x128xf32>
    %145 = arith.cmpf oge, %143, %144 : vector<16x128xf32>
    %146 = arith.extui %145 : vector<16x128xi1> to vector<16x128xi32>
    %147 = arith.sitofp %146 : vector<16x128xi32> to vector<16x128xf32>
    %cst_103 = arith.constant -2.000000e-01 : f32
    %148 = vector.broadcast %cst_103 : f32 to vector<16x128xf32>
    %149 = arith.cmpf ole, %143, %148 : vector<16x128xf32>
    %150 = arith.extui %149 : vector<16x128xi1> to vector<16x128xi32>
    %151 = arith.sitofp %150 : vector<16x128xi32> to vector<16x128xf32>
    %152 = arith.subf %147, %151 : vector<16x128xf32>
    %c0_104 = arith.constant 0 : index
    %c0_105 = arith.constant 0 : index
    %153 = vector.load %arg13[%c0_104, %c0_105] : memref<16x128xf32, #tpu.memory_space<vmem>>, vector<16x128xf32>
    tpu.vector_store %arg13[%c0_104, %c0_105], %135 {strides = array<i32>} : memref<16x128xf32, #tpu.memory_space<vmem>>, vector<16x128xf32>,
    %c0_106 = arith.constant 0 : index
    %c0_107 = arith.constant 0 : index
    %154 = vector.load %arg14[%c0_106, %c0_107] : memref<16x128xf32, #tpu.memory_space<vmem>>, vector<16x128xf32>
    tpu.vector_store %arg14[%c0_106, %c0_107], %143 {strides = array<i32>} : memref<16x128xf32, #tpu.memory_space<vmem>>, vector<16x128xf32>,
    %c0_108 = arith.constant 0 : index
    %c0_109 = arith.constant 0 : index
    %155 = vector.load %arg15[%c0_108, %c0_109] : memref<16x128xf32, #tpu.memory_space<vmem>>, vector<16x128xf32>
    tpu.vector_store %arg15[%c0_108, %c0_109], %152 {strides = array<i32>} : memref<16x128xf32, #tpu.memory_space<vmem>>, vector<16x128xf32>,
    %156 = arith.truncf %152 : vector<16x128xf32> to vector<16x128xbf16>
    %cst_110 = arith.constant dense<0.000000e+00> : vector<16x128xf32>
    %157 = tpu.matmul %156, %5, %cst_110 {dimension_numbers = #tpu.dot_dimension_numbers<[1], [0], [0], [1], [0, 0, 1, 1], [], []>} : vector<16x128xbf16>, vector<128x128xbf16>, vector<16x128xf32> -> vector<16x128xf32>
    %158 = vector.broadcast %8 : vector<1x128xf32> to vector<16x128xf32>
    %159 = arith.addf %157, %158 : vector<16x128xf32>
    %c0_111 = arith.constant 0 : index
    %c0_112 = arith.constant 0 : index
    %160 = vector.load %arg16[%c0_111, %c0_112] : memref<16x128xf32, #tpu.memory_space<vmem>>, vector<16x128xf32>
    %cst_113 = arith.constant 5.000000e-01 : f32
    %161 = vector.broadcast %cst_113 : f32 to vector<16x128xf32>
    %162 = arith.mulf %160, %161 : vector<16x128xf32>
    %163 = arith.addf %162, %159 : vector<16x128xf32>
    %c0_114 = arith.constant 0 : index
    %c0_115 = arith.constant 0 : index
    %164 = vector.load %arg17[%c0_114, %c0_115] : memref<16x128xf32, #tpu.memory_space<vmem>>, vector<16x128xf32>
    %cst_116 = arith.constant 7.500000e-01 : f32
    %165 = vector.broadcast %cst_116 : f32 to vector<16x128xf32>
    %166 = arith.mulf %164, %165 : vector<16x128xf32>
    %167 = arith.addf %166, %163 : vector<16x128xf32>
    %c0_117 = arith.constant 0 : index
    %c0_118 = arith.constant 0 : index
    %168 = vector.load %arg18[%c0_117, %c0_118] : memref<16x128xf32, #tpu.memory_space<vmem>>, vector<16x128xf32>
    %cst_119 = arith.constant 2.000000e-01 : f32
    %169 = vector.broadcast %cst_119 : f32 to vector<16x128xf32>
    %170 = arith.mulf %168, %169 : vector<16x128xf32>
    %171 = arith.subf %167, %170 : vector<16x128xf32>
    %cst_120 = arith.constant 2.000000e-01 : f32
    %172 = vector.broadcast %cst_120 : f32 to vector<16x128xf32>
    %173 = arith.cmpf oge, %171, %172 : vector<16x128xf32>
    %174 = arith.extui %173 : vector<16x128xi1> to vector<16x128xi32>
    %175 = arith.sitofp %174 : vector<16x128xi32> to vector<16x128xf32>
    %cst_121 = arith.constant -2.000000e-01 : f32
    %176 = vector.broadcast %cst_121 : f32 to vector<16x128xf32>
    %177 = arith.cmpf ole, %171, %176 : vector<16x128xf32>
    %178 = arith.extui %177 : vector<16x128xi1> to vector<16x128xi32>
    %179 = arith.sitofp %178 : vector<16x128xi32> to vector<16x128xf32>
    %180 = arith.subf %175, %179 : vector<16x128xf32>
    %c0_122 = arith.constant 0 : index
    %c0_123 = arith.constant 0 : index
    %181 = vector.load %arg16[%c0_122, %c0_123] : memref<16x128xf32, #tpu.memory_space<vmem>>, vector<16x128xf32>
    tpu.vector_store %arg16[%c0_122, %c0_123], %163 {strides = array<i32>} : memref<16x128xf32, #tpu.memory_space<vmem>>, vector<16x128xf32>,
    %c0_124 = arith.constant 0 : index
    %c0_125 = arith.constant 0 : index
    %182 = vector.load %arg17[%c0_124, %c0_125] : memref<16x128xf32, #tpu.memory_space<vmem>>, vector<16x128xf32>
    tpu.vector_store %arg17[%c0_124, %c0_125], %171 {strides = array<i32>} : memref<16x128xf32, #tpu.memory_space<vmem>>, vector<16x128xf32>,
    %c0_126 = arith.constant 0 : index
    %c0_127 = arith.constant 0 : index
    %183 = vector.load %arg18[%c0_126, %c0_127] : memref<16x128xf32, #tpu.memory_space<vmem>>, vector<16x128xf32>
    tpu.vector_store %arg18[%c0_126, %c0_127], %180 {strides = array<i32>} : memref<16x128xf32, #tpu.memory_space<vmem>>, vector<16x128xf32>,
    %c0_128 = arith.constant 0 : index
    %c0_129 = arith.constant 0 : index
    %184 = vector.load %arg9[%c0_128, %c0_129] : memref<16x128xf32, #tpu.memory_space<vmem>>, vector<16x128xf32>
    %185 = arith.addf %184, %180 : vector<16x128xf32>
    %c0_130 = arith.constant 0 : index
    %c0_131 = arith.constant 0 : index
    %186 = vector.load %arg9[%c0_130, %c0_131] : memref<16x128xf32, #tpu.memory_space<vmem>>, vector<16x128xf32>
    tpu.vector_store %arg9[%c0_130, %c0_131], %185 {strides = array<i32>} : memref<16x128xf32, #tpu.memory_space<vmem>>, vector<16x128xf32>,
    %c2_i32 = arith.constant 2 : i32
    %187 = arith.index_cast %c2_i32 : i32 to index
    %c0_132 = arith.constant 0 : index
    %c0_133 = arith.constant 0 : index
    %188 = vector.load %arg2[%187, %c0_132, %c0_133] : memref<8x16x128xbf16, #tpu.memory_space<vmem>>, vector<1x16x128xbf16>
    %189 = vector.shape_cast %188 : vector<1x16x128xbf16> to vector<16x128xbf16>
    %cst_134 = arith.constant dense<0.000000e+00> : vector<16x128xf32>
    %190 = tpu.matmul %189, %3, %cst_134 {dimension_numbers = #tpu.dot_dimension_numbers<[1], [0], [0], [1], [0, 0, 1, 1], [], []>} : vector<16x128xbf16>, vector<128x128xbf16>, vector<16x128xf32> -> vector<16x128xf32>
    %191 = vector.broadcast %6 : vector<1x128xf32> to vector<16x128xf32>
    %192 = arith.addf %190, %191 : vector<16x128xf32>
    %c0_135 = arith.constant 0 : index
    %c0_136 = arith.constant 0 : index
    %193 = vector.load %arg10[%c0_135, %c0_136] : memref<16x128xf32, #tpu.memory_space<vmem>>, vector<16x128xf32>
    %cst_137 = arith.constant 5.000000e-01 : f32
    %194 = vector.broadcast %cst_137 : f32 to vector<16x128xf32>
    %195 = arith.mulf %193, %194 : vector<16x128xf32>
    %196 = arith.addf %195, %192 : vector<16x128xf32>
    %c0_138 = arith.constant 0 : index
    %c0_139 = arith.constant 0 : index
    %197 = vector.load %arg11[%c0_138, %c0_139] : memref<16x128xf32, #tpu.memory_space<vmem>>, vector<16x128xf32>
    %cst_140 = arith.constant 7.500000e-01 : f32
    %198 = vector.broadcast %cst_140 : f32 to vector<16x128xf32>
    %199 = arith.mulf %197, %198 : vector<16x128xf32>
    %200 = arith.addf %199, %196 : vector<16x128xf32>
    %c0_141 = arith.constant 0 : index
    %c0_142 = arith.constant 0 : index
    %201 = vector.load %arg12[%c0_141, %c0_142] : memref<16x128xf32, #tpu.memory_space<vmem>>, vector<16x128xf32>
    %cst_143 = arith.constant 2.000000e-01 : f32
    %202 = vector.broadcast %cst_143 : f32 to vector<16x128xf32>
    %203 = arith.mulf %201, %202 : vector<16x128xf32>
    %204 = arith.subf %200, %203 : vector<16x128xf32>
    %cst_144 = arith.constant 2.000000e-01 : f32
    %205 = vector.broadcast %cst_144 : f32 to vector<16x128xf32>
    %206 = arith.cmpf oge, %204, %205 : vector<16x128xf32>
    %207 = arith.extui %206 : vector<16x128xi1> to vector<16x128xi32>
    %208 = arith.sitofp %207 : vector<16x128xi32> to vector<16x128xf32>
    %cst_145 = arith.constant -2.000000e-01 : f32
    %209 = vector.broadcast %cst_145 : f32 to vector<16x128xf32>
    %210 = arith.cmpf ole, %204, %209 : vector<16x128xf32>
    %211 = arith.extui %210 : vector<16x128xi1> to vector<16x128xi32>
    %212 = arith.sitofp %211 : vector<16x128xi32> to vector<16x128xf32>
    %213 = arith.subf %208, %212 : vector<16x128xf32>
    %c0_146 = arith.constant 0 : index
    %c0_147 = arith.constant 0 : index
    %214 = vector.load %arg10[%c0_146, %c0_147] : memref<16x128xf32, #tpu.memory_space<vmem>>, vector<16x128xf32>
    tpu.vector_store %arg10[%c0_146, %c0_147], %196 {strides = array<i32>} : memref<16x128xf32, #tpu.memory_space<vmem>>, vector<16x128xf32>,
    %c0_148 = arith.constant 0 : index
    %c0_149 = arith.constant 0 : index
    %215 = vector.load %arg11[%c0_148, %c0_149] : memref<16x128xf32, #tpu.memory_space<vmem>>, vector<16x128xf32>
    tpu.vector_store %arg11[%c0_148, %c0_149], %204 {strides = array<i32>} : memref<16x128xf32, #tpu.memory_space<vmem>>, vector<16x128xf32>,
    %c0_150 = arith.constant 0 : index
    %c0_151 = arith.constant 0 : index
    %216 = vector.load %arg12[%c0_150, %c0_151] : memref<16x128xf32, #tpu.memory_space<vmem>>, vector<16x128xf32>
    tpu.vector_store %arg12[%c0_150, %c0_151], %213 {strides = array<i32>} : memref<16x128xf32, #tpu.memory_space<vmem>>, vector<16x128xf32>,
    %217 = arith.truncf %213 : vector<16x128xf32> to vector<16x128xbf16>
    %cst_152 = arith.constant dense<0.000000e+00> : vector<16x128xf32>
    %218 = tpu.matmul %217, %4, %cst_152 {dimension_numbers = #tpu.dot_dimension_numbers<[1], [0], [0], [1], [0, 0, 1, 1], [], []>} : vector<16x128xbf16>, vector<128x128xbf16>, vector<16x128xf32> -> vector<16x128xf32>
    %219 = vector.broadcast %7 : vector<1x128xf32> to vector<16x128xf32>
    %220 = arith.addf %218, %219 : vector<16x128xf32>
    %c0_153 = arith.constant 0 : index
    %c0_154 = arith.constant 0 : index
    %221 = vector.load %arg13[%c0_153, %c0_154] : memref<16x128xf32, #tpu.memory_space<vmem>>, vector<16x128xf32>
    %cst_155 = arith.constant 5.000000e-01 : f32
    %222 = vector.broadcast %cst_155 : f32 to vector<16x128xf32>
    %223 = arith.mulf %221, %222 : vector<16x128xf32>
    %224 = arith.addf %223, %220 : vector<16x128xf32>
    %c0_156 = arith.constant 0 : index
    %c0_157 = arith.constant 0 : index
    %225 = vector.load %arg14[%c0_156, %c0_157] : memref<16x128xf32, #tpu.memory_space<vmem>>, vector<16x128xf32>
    %cst_158 = arith.constant 7.500000e-01 : f32
    %226 = vector.broadcast %cst_158 : f32 to vector<16x128xf32>
    %227 = arith.mulf %225, %226 : vector<16x128xf32>
    %228 = arith.addf %227, %224 : vector<16x128xf32>
    %c0_159 = arith.constant 0 : index
    %c0_160 = arith.constant 0 : index
    %229 = vector.load %arg15[%c0_159, %c0_160] : memref<16x128xf32, #tpu.memory_space<vmem>>, vector<16x128xf32>
    %cst_161 = arith.constant 2.000000e-01 : f32
    %230 = vector.broadcast %cst_161 : f32 to vector<16x128xf32>
    %231 = arith.mulf %229, %230 : vector<16x128xf32>
    %232 = arith.subf %228, %231 : vector<16x128xf32>
    %cst_162 = arith.constant 2.000000e-01 : f32
    %233 = vector.broadcast %cst_162 : f32 to vector<16x128xf32>
    %234 = arith.cmpf oge, %232, %233 : vector<16x128xf32>
    %235 = arith.extui %234 : vector<16x128xi1> to vector<16x128xi32>
    %236 = arith.sitofp %235 : vector<16x128xi32> to vector<16x128xf32>
    %cst_163 = arith.constant -2.000000e-01 : f32
    %237 = vector.broadcast %cst_163 : f32 to vector<16x128xf32>
    %238 = arith.cmpf ole, %232, %237 : vector<16x128xf32>
    %239 = arith.extui %238 : vector<16x128xi1> to vector<16x128xi32>
    %240 = arith.sitofp %239 : vector<16x128xi32> to vector<16x128xf32>
    %241 = arith.subf %236, %240 : vector<16x128xf32>
    %c0_164 = arith.constant 0 : index
    %c0_165 = arith.constant 0 : index
    %242 = vector.load %arg13[%c0_164, %c0_165] : memref<16x128xf32, #tpu.memory_space<vmem>>, vector<16x128xf32>
    tpu.vector_store %arg13[%c0_164, %c0_165], %224 {strides = array<i32>} : memref<16x128xf32, #tpu.memory_space<vmem>>, vector<16x128xf32>,
    %c0_166 = arith.constant 0 : index
    %c0_167 = arith.constant 0 : index
    %243 = vector.load %arg14[%c0_166, %c0_167] : memref<16x128xf32, #tpu.memory_space<vmem>>, vector<16x128xf32>
    tpu.vector_store %arg14[%c0_166, %c0_167], %232 {strides = array<i32>} : memref<16x128xf32, #tpu.memory_space<vmem>>, vector<16x128xf32>,
    %c0_168 = arith.constant 0 : index
    %c0_169 = arith.constant 0 : index
    %244 = vector.load %arg15[%c0_168, %c0_169] : memref<16x128xf32, #tpu.memory_space<vmem>>, vector<16x128xf32>
    tpu.vector_store %arg15[%c0_168, %c0_169], %241 {strides = array<i32>} : memref<16x128xf32, #tpu.memory_space<vmem>>, vector<16x128xf32>,
    %245 = arith.truncf %241 : vector<16x128xf32> to vector<16x128xbf16>
    %cst_170 = arith.constant dense<0.000000e+00> : vector<16x128xf32>
    %246 = tpu.matmul %245, %5, %cst_170 {dimension_numbers = #tpu.dot_dimension_numbers<[1], [0], [0], [1], [0, 0, 1, 1], [], []>} : vector<16x128xbf16>, vector<128x128xbf16>, vector<16x128xf32> -> vector<16x128xf32>
    %247 = vector.broadcast %8 : vector<1x128xf32> to vector<16x128xf32>
    %248 = arith.addf %246, %247 : vector<16x128xf32>
    %c0_171 = arith.constant 0 : index
    %c0_172 = arith.constant 0 : index
    %249 = vector.load %arg16[%c0_171, %c0_172] : memref<16x128xf32, #tpu.memory_space<vmem>>, vector<16x128xf32>
    %cst_173 = arith.constant 5.000000e-01 : f32
    %250 = vector.broadcast %cst_173 : f32 to vector<16x128xf32>
    %251 = arith.mulf %249, %250 : vector<16x128xf32>
    %252 = arith.addf %251, %248 : vector<16x128xf32>
    %c0_174 = arith.constant 0 : index
    %c0_175 = arith.constant 0 : index
    %253 = vector.load %arg17[%c0_174, %c0_175] : memref<16x128xf32, #tpu.memory_space<vmem>>, vector<16x128xf32>
    %cst_176 = arith.constant 7.500000e-01 : f32
    %254 = vector.broadcast %cst_176 : f32 to vector<16x128xf32>
    %255 = arith.mulf %253, %254 : vector<16x128xf32>
    %256 = arith.addf %255, %252 : vector<16x128xf32>
    %c0_177 = arith.constant 0 : index
    %c0_178 = arith.constant 0 : index
    %257 = vector.load %arg18[%c0_177, %c0_178] : memref<16x128xf32, #tpu.memory_space<vmem>>, vector<16x128xf32>
    %cst_179 = arith.constant 2.000000e-01 : f32
    %258 = vector.broadcast %cst_179 : f32 to vector<16x128xf32>
    %259 = arith.mulf %257, %258 : vector<16x128xf32>
    %260 = arith.subf %256, %259 : vector<16x128xf32>
    %cst_180 = arith.constant 2.000000e-01 : f32
    %261 = vector.broadcast %cst_180 : f32 to vector<16x128xf32>
    %262 = arith.cmpf oge, %260, %261 : vector<16x128xf32>
    %263 = arith.extui %262 : vector<16x128xi1> to vector<16x128xi32>
    %264 = arith.sitofp %263 : vector<16x128xi32> to vector<16x128xf32>
    %cst_181 = arith.constant -2.000000e-01 : f32
    %265 = vector.broadcast %cst_181 : f32 to vector<16x128xf32>
    %266 = arith.cmpf ole, %260, %265 : vector<16x128xf32>
    %267 = arith.extui %266 : vector<16x128xi1> to vector<16x128xi32>
    %268 = arith.sitofp %267 : vector<16x128xi32> to vector<16x128xf32>
    %269 = arith.subf %264, %268 : vector<16x128xf32>
    %c0_182 = arith.constant 0 : index
    %c0_183 = arith.constant 0 : index
    %270 = vector.load %arg16[%c0_182, %c0_183] : memref<16x128xf32, #tpu.memory_space<vmem>>, vector<16x128xf32>
    tpu.vector_store %arg16[%c0_182, %c0_183], %252 {strides = array<i32>} : memref<16x128xf32, #tpu.memory_space<vmem>>, vector<16x128xf32>,
    %c0_184 = arith.constant 0 : index
    %c0_185 = arith.constant 0 : index
    %271 = vector.load %arg17[%c0_184, %c0_185] : memref<16x128xf32, #tpu.memory_space<vmem>>, vector<16x128xf32>
    tpu.vector_store %arg17[%c0_184, %c0_185], %260 {strides = array<i32>} : memref<16x128xf32, #tpu.memory_space<vmem>>, vector<16x128xf32>,
    %c0_186 = arith.constant 0 : index
    %c0_187 = arith.constant 0 : index
    %272 = vector.load %arg18[%c0_186, %c0_187] : memref<16x128xf32, #tpu.memory_space<vmem>>, vector<16x128xf32>
    tpu.vector_store %arg18[%c0_186, %c0_187], %269 {strides = array<i32>} : memref<16x128xf32, #tpu.memory_space<vmem>>, vector<16x128xf32>,
    %c0_188 = arith.constant 0 : index
    %c0_189 = arith.constant 0 : index
    %273 = vector.load %arg9[%c0_188, %c0_189] : memref<16x128xf32, #tpu.memory_space<vmem>>, vector<16x128xf32>
    %274 = arith.addf %273, %269 : vector<16x128xf32>
    %c0_190 = arith.constant 0 : index
    %c0_191 = arith.constant 0 : index
    %275 = vector.load %arg9[%c0_190, %c0_191] : memref<16x128xf32, #tpu.memory_space<vmem>>, vector<16x128xf32>
    tpu.vector_store %arg9[%c0_190, %c0_191], %274 {strides = array<i32>} : memref<16x128xf32, #tpu.memory_space<vmem>>, vector<16x128xf32>,
    %c3_i32 = arith.constant 3 : i32
    %276 = arith.index_cast %c3_i32 : i32 to index
    %c0_192 = arith.constant 0 : index
    %c0_193 = arith.constant 0 : index
    %277 = vector.load %arg2[%276, %c0_192, %c0_193] : memref<8x16x128xbf16, #tpu.memory_space<vmem>>, vector<1x16x128xbf16>
    %278 = vector.shape_cast %277 : vector<1x16x128xbf16> to vector<16x128xbf16>
    %cst_194 = arith.constant dense<0.000000e+00> : vector<16x128xf32>
    %279 = tpu.matmul %278, %3, %cst_194 {dimension_numbers = #tpu.dot_dimension_numbers<[1], [0], [0], [1], [0, 0, 1, 1], [], []>} : vector<16x128xbf16>, vector<128x128xbf16>, vector<16x128xf32> -> vector<16x128xf32>
    %280 = vector.broadcast %6 : vector<1x128xf32> to vector<16x128xf32>
    %281 = arith.addf %279, %280 : vector<16x128xf32>
    %c0_195 = arith.constant 0 : index
    %c0_196 = arith.constant 0 : index
    %282 = vector.load %arg10[%c0_195, %c0_196] : memref<16x128xf32, #tpu.memory_space<vmem>>, vector<16x128xf32>
    %cst_197 = arith.constant 5.000000e-01 : f32
    %283 = vector.broadcast %cst_197 : f32 to vector<16x128xf32>
    %284 = arith.mulf %282, %283 : vector<16x128xf32>
    %285 = arith.addf %284, %281 : vector<16x128xf32>
    %c0_198 = arith.constant 0 : index
    %c0_199 = arith.constant 0 : index
    %286 = vector.load %arg11[%c0_198, %c0_199] : memref<16x128xf32, #tpu.memory_space<vmem>>, vector<16x128xf32>
    %cst_200 = arith.constant 7.500000e-01 : f32
    %287 = vector.broadcast %cst_200 : f32 to vector<16x128xf32>
    %288 = arith.mulf %286, %287 : vector<16x128xf32>
    %289 = arith.addf %288, %285 : vector<16x128xf32>
    %c0_201 = arith.constant 0 : index
    %c0_202 = arith.constant 0 : index
    %290 = vector.load %arg12[%c0_201, %c0_202] : memref<16x128xf32, #tpu.memory_space<vmem>>, vector<16x128xf32>
    %cst_203 = arith.constant 2.000000e-01 : f32
    %291 = vector.broadcast %cst_203 : f32 to vector<16x128xf32>
    %292 = arith.mulf %290, %291 : vector<16x128xf32>
    %293 = arith.subf %289, %292 : vector<16x128xf32>
    %cst_204 = arith.constant 2.000000e-01 : f32
    %294 = vector.broadcast %cst_204 : f32 to vector<16x128xf32>
    %295 = arith.cmpf oge, %293, %294 : vector<16x128xf32>
    %296 = arith.extui %295 : vector<16x128xi1> to vector<16x128xi32>
    %297 = arith.sitofp %296 : vector<16x128xi32> to vector<16x128xf32>
    %cst_205 = arith.constant -2.000000e-01 : f32
    %298 = vector.broadcast %cst_205 : f32 to vector<16x128xf32>
    %299 = arith.cmpf ole, %293, %298 : vector<16x128xf32>
    %300 = arith.extui %299 : vector<16x128xi1> to vector<16x128xi32>
    %301 = arith.sitofp %300 : vector<16x128xi32> to vector<16x128xf32>
    %302 = arith.subf %297, %301 : vector<16x128xf32>
    %c0_206 = arith.constant 0 : index
    %c0_207 = arith.constant 0 : index
    %303 = vector.load %arg10[%c0_206, %c0_207] : memref<16x128xf32, #tpu.memory_space<vmem>>, vector<16x128xf32>
    tpu.vector_store %arg10[%c0_206, %c0_207], %285 {strides = array<i32>} : memref<16x128xf32, #tpu.memory_space<vmem>>, vector<16x128xf32>,
    %c0_208 = arith.constant 0 : index
    %c0_209 = arith.constant 0 : index
    %304 = vector.load %arg11[%c0_208, %c0_209] : memref<16x128xf32, #tpu.memory_space<vmem>>, vector<16x128xf32>
    tpu.vector_store %arg11[%c0_208, %c0_209], %293 {strides = array<i32>} : memref<16x128xf32, #tpu.memory_space<vmem>>, vector<16x128xf32>,
    %c0_210 = arith.constant 0 : index
    %c0_211 = arith.constant 0 : index
    %305 = vector.load %arg12[%c0_210, %c0_211] : memref<16x128xf32, #tpu.memory_space<vmem>>, vector<16x128xf32>
    tpu.vector_store %arg12[%c0_210, %c0_211], %302 {strides = array<i32>} : memref<16x128xf32, #tpu.memory_space<vmem>>, vector<16x128xf32>,
    %306 = arith.truncf %302 : vector<16x128xf32> to vector<16x128xbf16>
    %cst_212 = arith.constant dense<0.000000e+00> : vector<16x128xf32>
    %307 = tpu.matmul %306, %4, %cst_212 {dimension_numbers = #tpu.dot_dimension_numbers<[1], [0], [0], [1], [0, 0, 1, 1], [], []>} : vector<16x128xbf16>, vector<128x128xbf16>, vector<16x128xf32> -> vector<16x128xf32>
    %308 = vector.broadcast %7 : vector<1x128xf32> to vector<16x128xf32>
    %309 = arith.addf %307, %308 : vector<16x128xf32>
    %c0_213 = arith.constant 0 : index
    %c0_214 = arith.constant 0 : index
    %310 = vector.load %arg13[%c0_213, %c0_214] : memref<16x128xf32, #tpu.memory_space<vmem>>, vector<16x128xf32>
    %cst_215 = arith.constant 5.000000e-01 : f32
    %311 = vector.broadcast %cst_215 : f32 to vector<16x128xf32>
    %312 = arith.mulf %310, %311 : vector<16x128xf32>
    %313 = arith.addf %312, %309 : vector<16x128xf32>
    %c0_216 = arith.constant 0 : index
    %c0_217 = arith.constant 0 : index
    %314 = vector.load %arg14[%c0_216, %c0_217] : memref<16x128xf32, #tpu.memory_space<vmem>>, vector<16x128xf32>
    %cst_218 = arith.constant 7.500000e-01 : f32
    %315 = vector.broadcast %cst_218 : f32 to vector<16x128xf32>
    %316 = arith.mulf %314, %315 : vector<16x128xf32>
    %317 = arith.addf %316, %313 : vector<16x128xf32>
    %c0_219 = arith.constant 0 : index
    %c0_220 = arith.constant 0 : index
    %318 = vector.load %arg15[%c0_219, %c0_220] : memref<16x128xf32, #tpu.memory_space<vmem>>, vector<16x128xf32>
    %cst_221 = arith.constant 2.000000e-01 : f32
    %319 = vector.broadcast %cst_221 : f32 to vector<16x128xf32>
    %320 = arith.mulf %318, %319 : vector<16x128xf32>
    %321 = arith.subf %317, %320 : vector<16x128xf32>
    %cst_222 = arith.constant 2.000000e-01 : f32
    %322 = vector.broadcast %cst_222 : f32 to vector<16x128xf32>
    %323 = arith.cmpf oge, %321, %322 : vector<16x128xf32>
    %324 = arith.extui %323 : vector<16x128xi1> to vector<16x128xi32>
    %325 = arith.sitofp %324 : vector<16x128xi32> to vector<16x128xf32>
    %cst_223 = arith.constant -2.000000e-01 : f32
    %326 = vector.broadcast %cst_223 : f32 to vector<16x128xf32>
    %327 = arith.cmpf ole, %321, %326 : vector<16x128xf32>
    %328 = arith.extui %327 : vector<16x128xi1> to vector<16x128xi32>
    %329 = arith.sitofp %328 : vector<16x128xi32> to vector<16x128xf32>
    %330 = arith.subf %325, %329 : vector<16x128xf32>
    %c0_224 = arith.constant 0 : index
    %c0_225 = arith.constant 0 : index
    %331 = vector.load %arg13[%c0_224, %c0_225] : memref<16x128xf32, #tpu.memory_space<vmem>>, vector<16x128xf32>
    tpu.vector_store %arg13[%c0_224, %c0_225], %313 {strides = array<i32>} : memref<16x128xf32, #tpu.memory_space<vmem>>, vector<16x128xf32>,
    %c0_226 = arith.constant 0 : index
    %c0_227 = arith.constant 0 : index
    %332 = vector.load %arg14[%c0_226, %c0_227] : memref<16x128xf32, #tpu.memory_space<vmem>>, vector<16x128xf32>
    tpu.vector_store %arg14[%c0_226, %c0_227], %321 {strides = array<i32>} : memref<16x128xf32, #tpu.memory_space<vmem>>, vector<16x128xf32>,
    %c0_228 = arith.constant 0 : index
    %c0_229 = arith.constant 0 : index
    %333 = vector.load %arg15[%c0_228, %c0_229] : memref<16x128xf32, #tpu.memory_space<vmem>>, vector<16x128xf32>
    tpu.vector_store %arg15[%c0_228, %c0_229], %330 {strides = array<i32>} : memref<16x128xf32, #tpu.memory_space<vmem>>, vector<16x128xf32>,
    %334 = arith.truncf %330 : vector<16x128xf32> to vector<16x128xbf16>
    %cst_230 = arith.constant dense<0.000000e+00> : vector<16x128xf32>
    %335 = tpu.matmul %334, %5, %cst_230 {dimension_numbers = #tpu.dot_dimension_numbers<[1], [0], [0], [1], [0, 0, 1, 1], [], []>} : vector<16x128xbf16>, vector<128x128xbf16>, vector<16x128xf32> -> vector<16x128xf32>
    %336 = vector.broadcast %8 : vector<1x128xf32> to vector<16x128xf32>
    %337 = arith.addf %335, %336 : vector<16x128xf32>
    %c0_231 = arith.constant 0 : index
    %c0_232 = arith.constant 0 : index
    %338 = vector.load %arg16[%c0_231, %c0_232] : memref<16x128xf32, #tpu.memory_space<vmem>>, vector<16x128xf32>
    %cst_233 = arith.constant 5.000000e-01 : f32
    %339 = vector.broadcast %cst_233 : f32 to vector<16x128xf32>
    %340 = arith.mulf %338, %339 : vector<16x128xf32>
    %341 = arith.addf %340, %337 : vector<16x128xf32>
    %c0_234 = arith.constant 0 : index
    %c0_235 = arith.constant 0 : index
    %342 = vector.load %arg17[%c0_234, %c0_235] : memref<16x128xf32, #tpu.memory_space<vmem>>, vector<16x128xf32>
    %cst_236 = arith.constant 7.500000e-01 : f32
    %343 = vector.broadcast %cst_236 : f32 to vector<16x128xf32>
    %344 = arith.mulf %342, %343 : vector<16x128xf32>
    %345 = arith.addf %344, %341 : vector<16x128xf32>
    %c0_237 = arith.constant 0 : index
    %c0_238 = arith.constant 0 : index
    %346 = vector.load %arg18[%c0_237, %c0_238] : memref<16x128xf32, #tpu.memory_space<vmem>>, vector<16x128xf32>
    %cst_239 = arith.constant 2.000000e-01 : f32
    %347 = vector.broadcast %cst_239 : f32 to vector<16x128xf32>
    %348 = arith.mulf %346, %347 : vector<16x128xf32>
    %349 = arith.subf %345, %348 : vector<16x128xf32>
    %cst_240 = arith.constant 2.000000e-01 : f32
    %350 = vector.broadcast %cst_240 : f32 to vector<16x128xf32>
    %351 = arith.cmpf oge, %349, %350 : vector<16x128xf32>
    %352 = arith.extui %351 : vector<16x128xi1> to vector<16x128xi32>
    %353 = arith.sitofp %352 : vector<16x128xi32> to vector<16x128xf32>
    %cst_241 = arith.constant -2.000000e-01 : f32
    %354 = vector.broadcast %cst_241 : f32 to vector<16x128xf32>
    %355 = arith.cmpf ole, %349, %354 : vector<16x128xf32>
    %356 = arith.extui %355 : vector<16x128xi1> to vector<16x128xi32>
    %357 = arith.sitofp %356 : vector<16x128xi32> to vector<16x128xf32>
    %358 = arith.subf %353, %357 : vector<16x128xf32>
    %c0_242 = arith.constant 0 : index
    %c0_243 = arith.constant 0 : index
    %359 = vector.load %arg16[%c0_242, %c0_243] : memref<16x128xf32, #tpu.memory_space<vmem>>, vector<16x128xf32>
    tpu.vector_store %arg16[%c0_242, %c0_243], %341 {strides = array<i32>} : memref<16x128xf32, #tpu.memory_space<vmem>>, vector<16x128xf32>,
    %c0_244 = arith.constant 0 : index
    %c0_245 = arith.constant 0 : index
    %360 = vector.load %arg17[%c0_244, %c0_245] : memref<16x128xf32, #tpu.memory_space<vmem>>, vector<16x128xf32>
    tpu.vector_store %arg17[%c0_244, %c0_245], %349 {strides = array<i32>} : memref<16x128xf32, #tpu.memory_space<vmem>>, vector<16x128xf32>,
    %c0_246 = arith.constant 0 : index
    %c0_247 = arith.constant 0 : index
    %361 = vector.load %arg18[%c0_246, %c0_247] : memref<16x128xf32, #tpu.memory_space<vmem>>, vector<16x128xf32>
    tpu.vector_store %arg18[%c0_246, %c0_247], %358 {strides = array<i32>} : memref<16x128xf32, #tpu.memory_space<vmem>>, vector<16x128xf32>,
    %c0_248 = arith.constant 0 : index
    %c0_249 = arith.constant 0 : index
    %362 = vector.load %arg9[%c0_248, %c0_249] : memref<16x128xf32, #tpu.memory_space<vmem>>, vector<16x128xf32>
    %363 = arith.addf %362, %358 : vector<16x128xf32>
    %c0_250 = arith.constant 0 : index
    %c0_251 = arith.constant 0 : index
    %364 = vector.load %arg9[%c0_250, %c0_251] : memref<16x128xf32, #tpu.memory_space<vmem>>, vector<16x128xf32>
    tpu.vector_store %arg9[%c0_250, %c0_251], %363 {strides = array<i32>} : memref<16x128xf32, #tpu.memory_space<vmem>>, vector<16x128xf32>,
    %c4_i32 = arith.constant 4 : i32
    %365 = arith.index_cast %c4_i32 : i32 to index
    %c0_252 = arith.constant 0 : index
    %c0_253 = arith.constant 0 : index
    %366 = vector.load %arg2[%365, %c0_252, %c0_253] : memref<8x16x128xbf16, #tpu.memory_space<vmem>>, vector<1x16x128xbf16>
    %367 = vector.shape_cast %366 : vector<1x16x128xbf16> to vector<16x128xbf16>
    %cst_254 = arith.constant dense<0.000000e+00> : vector<16x128xf32>
    %368 = tpu.matmul %367, %3, %cst_254 {dimension_numbers = #tpu.dot_dimension_numbers<[1], [0], [0], [1], [0, 0, 1, 1], [], []>} : vector<16x128xbf16>, vector<128x128xbf16>, vector<16x128xf32> -> vector<16x128xf32>
    %369 = vector.broadcast %6 : vector<1x128xf32> to vector<16x128xf32>
    %370 = arith.addf %368, %369 : vector<16x128xf32>
    %c0_255 = arith.constant 0 : index
    %c0_256 = arith.constant 0 : index
    %371 = vector.load %arg10[%c0_255, %c0_256] : memref<16x128xf32, #tpu.memory_space<vmem>>, vector<16x128xf32>
    %cst_257 = arith.constant 5.000000e-01 : f32
    %372 = vector.broadcast %cst_257 : f32 to vector<16x128xf32>
    %373 = arith.mulf %371, %372 : vector<16x128xf32>
    %374 = arith.addf %373, %370 : vector<16x128xf32>
    %c0_258 = arith.constant 0 : index
    %c0_259 = arith.constant 0 : index
    %375 = vector.load %arg11[%c0_258, %c0_259] : memref<16x128xf32, #tpu.memory_space<vmem>>, vector<16x128xf32>
    %cst_260 = arith.constant 7.500000e-01 : f32
    %376 = vector.broadcast %cst_260 : f32 to vector<16x128xf32>
    %377 = arith.mulf %375, %376 : vector<16x128xf32>
    %378 = arith.addf %377, %374 : vector<16x128xf32>
    %c0_261 = arith.constant 0 : index
    %c0_262 = arith.constant 0 : index
    %379 = vector.load %arg12[%c0_261, %c0_262] : memref<16x128xf32, #tpu.memory_space<vmem>>, vector<16x128xf32>
    %cst_263 = arith.constant 2.000000e-01 : f32
    %380 = vector.broadcast %cst_263 : f32 to vector<16x128xf32>
    %381 = arith.mulf %379, %380 : vector<16x128xf32>
    %382 = arith.subf %378, %381 : vector<16x128xf32>
    %cst_264 = arith.constant 2.000000e-01 : f32
    %383 = vector.broadcast %cst_264 : f32 to vector<16x128xf32>
    %384 = arith.cmpf oge, %382, %383 : vector<16x128xf32>
    %385 = arith.extui %384 : vector<16x128xi1> to vector<16x128xi32>
    %386 = arith.sitofp %385 : vector<16x128xi32> to vector<16x128xf32>
    %cst_265 = arith.constant -2.000000e-01 : f32
    %387 = vector.broadcast %cst_265 : f32 to vector<16x128xf32>
    %388 = arith.cmpf ole, %382, %387 : vector<16x128xf32>
    %389 = arith.extui %388 : vector<16x128xi1> to vector<16x128xi32>
    %390 = arith.sitofp %389 : vector<16x128xi32> to vector<16x128xf32>
    %391 = arith.subf %386, %390 : vector<16x128xf32>
    %c0_266 = arith.constant 0 : index
    %c0_267 = arith.constant 0 : index
    %392 = vector.load %arg10[%c0_266, %c0_267] : memref<16x128xf32, #tpu.memory_space<vmem>>, vector<16x128xf32>
    tpu.vector_store %arg10[%c0_266, %c0_267], %374 {strides = array<i32>} : memref<16x128xf32, #tpu.memory_space<vmem>>, vector<16x128xf32>,
    %c0_268 = arith.constant 0 : index
    %c0_269 = arith.constant 0 : index
    %393 = vector.load %arg11[%c0_268, %c0_269] : memref<16x128xf32, #tpu.memory_space<vmem>>, vector<16x128xf32>
    tpu.vector_store %arg11[%c0_268, %c0_269], %382 {strides = array<i32>} : memref<16x128xf32, #tpu.memory_space<vmem>>, vector<16x128xf32>,
    %c0_270 = arith.constant 0 : index
    %c0_271 = arith.constant 0 : index
    %394 = vector.load %arg12[%c0_270, %c0_271] : memref<16x128xf32, #tpu.memory_space<vmem>>, vector<16x128xf32>
    tpu.vector_store %arg12[%c0_270, %c0_271], %391 {strides = array<i32>} : memref<16x128xf32, #tpu.memory_space<vmem>>, vector<16x128xf32>,
    %395 = arith.truncf %391 : vector<16x128xf32> to vector<16x128xbf16>
    %cst_272 = arith.constant dense<0.000000e+00> : vector<16x128xf32>
    %396 = tpu.matmul %395, %4, %cst_272 {dimension_numbers = #tpu.dot_dimension_numbers<[1], [0], [0], [1], [0, 0, 1, 1], [], []>} : vector<16x128xbf16>, vector<128x128xbf16>, vector<16x128xf32> -> vector<16x128xf32>
    %397 = vector.broadcast %7 : vector<1x128xf32> to vector<16x128xf32>
    %398 = arith.addf %396, %397 : vector<16x128xf32>
    %c0_273 = arith.constant 0 : index
    %c0_274 = arith.constant 0 : index
    %399 = vector.load %arg13[%c0_273, %c0_274] : memref<16x128xf32, #tpu.memory_space<vmem>>, vector<16x128xf32>
    %cst_275 = arith.constant 5.000000e-01 : f32
    %400 = vector.broadcast %cst_275 : f32 to vector<16x128xf32>
    %401 = arith.mulf %399, %400 : vector<16x128xf32>
    %402 = arith.addf %401, %398 : vector<16x128xf32>
    %c0_276 = arith.constant 0 : index
    %c0_277 = arith.constant 0 : index
    %403 = vector.load %arg14[%c0_276, %c0_277] : memref<16x128xf32, #tpu.memory_space<vmem>>, vector<16x128xf32>
    %cst_278 = arith.constant 7.500000e-01 : f32
    %404 = vector.broadcast %cst_278 : f32 to vector<16x128xf32>
    %405 = arith.mulf %403, %404 : vector<16x128xf32>
    %406 = arith.addf %405, %402 : vector<16x128xf32>
    %c0_279 = arith.constant 0 : index
    %c0_280 = arith.constant 0 : index
    %407 = vector.load %arg15[%c0_279, %c0_280] : memref<16x128xf32, #tpu.memory_space<vmem>>, vector<16x128xf32>
    %cst_281 = arith.constant 2.000000e-01 : f32
    %408 = vector.broadcast %cst_281 : f32 to vector<16x128xf32>
    %409 = arith.mulf %407, %408 : vector<16x128xf32>
    %410 = arith.subf %406, %409 : vector<16x128xf32>
    %cst_282 = arith.constant 2.000000e-01 : f32
    %411 = vector.broadcast %cst_282 : f32 to vector<16x128xf32>
    %412 = arith.cmpf oge, %410, %411 : vector<16x128xf32>
    %413 = arith.extui %412 : vector<16x128xi1> to vector<16x128xi32>
    %414 = arith.sitofp %413 : vector<16x128xi32> to vector<16x128xf32>
    %cst_283 = arith.constant -2.000000e-01 : f32
    %415 = vector.broadcast %cst_283 : f32 to vector<16x128xf32>
    %416 = arith.cmpf ole, %410, %415 : vector<16x128xf32>
    %417 = arith.extui %416 : vector<16x128xi1> to vector<16x128xi32>
    %418 = arith.sitofp %417 : vector<16x128xi32> to vector<16x128xf32>
    %419 = arith.subf %414, %418 : vector<16x128xf32>
    %c0_284 = arith.constant 0 : index
    %c0_285 = arith.constant 0 : index
    %420 = vector.load %arg13[%c0_284, %c0_285] : memref<16x128xf32, #tpu.memory_space<vmem>>, vector<16x128xf32>
    tpu.vector_store %arg13[%c0_284, %c0_285], %402 {strides = array<i32>} : memref<16x128xf32, #tpu.memory_space<vmem>>, vector<16x128xf32>,
    %c0_286 = arith.constant 0 : index
    %c0_287 = arith.constant 0 : index
    %421 = vector.load %arg14[%c0_286, %c0_287] : memref<16x128xf32, #tpu.memory_space<vmem>>, vector<16x128xf32>
    tpu.vector_store %arg14[%c0_286, %c0_287], %410 {strides = array<i32>} : memref<16x128xf32, #tpu.memory_space<vmem>>, vector<16x128xf32>,
    %c0_288 = arith.constant 0 : index
    %c0_289 = arith.constant 0 : index
    %422 = vector.load %arg15[%c0_288, %c0_289] : memref<16x128xf32, #tpu.memory_space<vmem>>, vector<16x128xf32>
    tpu.vector_store %arg15[%c0_288, %c0_289], %419 {strides = array<i32>} : memref<16x128xf32, #tpu.memory_space<vmem>>, vector<16x128xf32>,
    %423 = arith.truncf %419 : vector<16x128xf32> to vector<16x128xbf16>
    %cst_290 = arith.constant dense<0.000000e+00> : vector<16x128xf32>
    %424 = tpu.matmul %423, %5, %cst_290 {dimension_numbers = #tpu.dot_dimension_numbers<[1], [0], [0], [1], [0, 0, 1, 1], [], []>} : vector<16x128xbf16>, vector<128x128xbf16>, vector<16x128xf32> -> vector<16x128xf32>
    %425 = vector.broadcast %8 : vector<1x128xf32> to vector<16x128xf32>
    %426 = arith.addf %424, %425 : vector<16x128xf32>
    %c0_291 = arith.constant 0 : index
    %c0_292 = arith.constant 0 : index
    %427 = vector.load %arg16[%c0_291, %c0_292] : memref<16x128xf32, #tpu.memory_space<vmem>>, vector<16x128xf32>
    %cst_293 = arith.constant 5.000000e-01 : f32
    %428 = vector.broadcast %cst_293 : f32 to vector<16x128xf32>
    %429 = arith.mulf %427, %428 : vector<16x128xf32>
    %430 = arith.addf %429, %426 : vector<16x128xf32>
    %c0_294 = arith.constant 0 : index
    %c0_295 = arith.constant 0 : index
    %431 = vector.load %arg17[%c0_294, %c0_295] : memref<16x128xf32, #tpu.memory_space<vmem>>, vector<16x128xf32>
    %cst_296 = arith.constant 7.500000e-01 : f32
    %432 = vector.broadcast %cst_296 : f32 to vector<16x128xf32>
    %433 = arith.mulf %431, %432 : vector<16x128xf32>
    %434 = arith.addf %433, %430 : vector<16x128xf32>
    %c0_297 = arith.constant 0 : index
    %c0_298 = arith.constant 0 : index
    %435 = vector.load %arg18[%c0_297, %c0_298] : memref<16x128xf32, #tpu.memory_space<vmem>>, vector<16x128xf32>
    %cst_299 = arith.constant 2.000000e-01 : f32
    %436 = vector.broadcast %cst_299 : f32 to vector<16x128xf32>
    %437 = arith.mulf %435, %436 : vector<16x128xf32>
    %438 = arith.subf %434, %437 : vector<16x128xf32>
    %cst_300 = arith.constant 2.000000e-01 : f32
    %439 = vector.broadcast %cst_300 : f32 to vector<16x128xf32>
    %440 = arith.cmpf oge, %438, %439 : vector<16x128xf32>
    %441 = arith.extui %440 : vector<16x128xi1> to vector<16x128xi32>
    %442 = arith.sitofp %441 : vector<16x128xi32> to vector<16x128xf32>
    %cst_301 = arith.constant -2.000000e-01 : f32
    %443 = vector.broadcast %cst_301 : f32 to vector<16x128xf32>
    %444 = arith.cmpf ole, %438, %443 : vector<16x128xf32>
    %445 = arith.extui %444 : vector<16x128xi1> to vector<16x128xi32>
    %446 = arith.sitofp %445 : vector<16x128xi32> to vector<16x128xf32>
    %447 = arith.subf %442, %446 : vector<16x128xf32>
    %c0_302 = arith.constant 0 : index
    %c0_303 = arith.constant 0 : index
    %448 = vector.load %arg16[%c0_302, %c0_303] : memref<16x128xf32, #tpu.memory_space<vmem>>, vector<16x128xf32>
    tpu.vector_store %arg16[%c0_302, %c0_303], %430 {strides = array<i32>} : memref<16x128xf32, #tpu.memory_space<vmem>>, vector<16x128xf32>,
    %c0_304 = arith.constant 0 : index
    %c0_305 = arith.constant 0 : index
    %449 = vector.load %arg17[%c0_304, %c0_305] : memref<16x128xf32, #tpu.memory_space<vmem>>, vector<16x128xf32>
    tpu.vector_store %arg17[%c0_304, %c0_305], %438 {strides = array<i32>} : memref<16x128xf32, #tpu.memory_space<vmem>>, vector<16x128xf32>,
    %c0_306 = arith.constant 0 : index
    %c0_307 = arith.constant 0 : index
    %450 = vector.load %arg18[%c0_306, %c0_307] : memref<16x128xf32, #tpu.memory_space<vmem>>, vector<16x128xf32>
    tpu.vector_store %arg18[%c0_306, %c0_307], %447 {strides = array<i32>} : memref<16x128xf32, #tpu.memory_space<vmem>>, vector<16x128xf32>,
    %c0_308 = arith.constant 0 : index
    %c0_309 = arith.constant 0 : index
    %451 = vector.load %arg9[%c0_308, %c0_309] : memref<16x128xf32, #tpu.memory_space<vmem>>, vector<16x128xf32>
    %452 = arith.addf %451, %447 : vector<16x128xf32>
    %c0_310 = arith.constant 0 : index
    %c0_311 = arith.constant 0 : index
    %453 = vector.load %arg9[%c0_310, %c0_311] : memref<16x128xf32, #tpu.memory_space<vmem>>, vector<16x128xf32>
    tpu.vector_store %arg9[%c0_310, %c0_311], %452 {strides = array<i32>} : memref<16x128xf32, #tpu.memory_space<vmem>>, vector<16x128xf32>,
    %c5_i32 = arith.constant 5 : i32
    %454 = arith.index_cast %c5_i32 : i32 to index
    %c0_312 = arith.constant 0 : index
    %c0_313 = arith.constant 0 : index
    %455 = vector.load %arg2[%454, %c0_312, %c0_313] : memref<8x16x128xbf16, #tpu.memory_space<vmem>>, vector<1x16x128xbf16>
    %456 = vector.shape_cast %455 : vector<1x16x128xbf16> to vector<16x128xbf16>
    %cst_314 = arith.constant dense<0.000000e+00> : vector<16x128xf32>
    %457 = tpu.matmul %456, %3, %cst_314 {dimension_numbers = #tpu.dot_dimension_numbers<[1], [0], [0], [1], [0, 0, 1, 1], [], []>} : vector<16x128xbf16>, vector<128x128xbf16>, vector<16x128xf32> -> vector<16x128xf32>
    %458 = vector.broadcast %6 : vector<1x128xf32> to vector<16x128xf32>
    %459 = arith.addf %457, %458 : vector<16x128xf32>
    %c0_315 = arith.constant 0 : index
    %c0_316 = arith.constant 0 : index
    %460 = vector.load %arg10[%c0_315, %c0_316] : memref<16x128xf32, #tpu.memory_space<vmem>>, vector<16x128xf32>
    %cst_317 = arith.constant 5.000000e-01 : f32
    %461 = vector.broadcast %cst_317 : f32 to vector<16x128xf32>
    %462 = arith.mulf %460, %461 : vector<16x128xf32>
    %463 = arith.addf %462, %459 : vector<16x128xf32>
    %c0_318 = arith.constant 0 : index
    %c0_319 = arith.constant 0 : index
    %464 = vector.load %arg11[%c0_318, %c0_319] : memref<16x128xf32, #tpu.memory_space<vmem>>, vector<16x128xf32>
    %cst_320 = arith.constant 7.500000e-01 : f32
    %465 = vector.broadcast %cst_320 : f32 to vector<16x128xf32>
    %466 = arith.mulf %464, %465 : vector<16x128xf32>
    %467 = arith.addf %466, %463 : vector<16x128xf32>
    %c0_321 = arith.constant 0 : index
    %c0_322 = arith.constant 0 : index
    %468 = vector.load %arg12[%c0_321, %c0_322] : memref<16x128xf32, #tpu.memory_space<vmem>>, vector<16x128xf32>
    %cst_323 = arith.constant 2.000000e-01 : f32
    %469 = vector.broadcast %cst_323 : f32 to vector<16x128xf32>
    %470 = arith.mulf %468, %469 : vector<16x128xf32>
    %471 = arith.subf %467, %470 : vector<16x128xf32>
    %cst_324 = arith.constant 2.000000e-01 : f32
    %472 = vector.broadcast %cst_324 : f32 to vector<16x128xf32>
    %473 = arith.cmpf oge, %471, %472 : vector<16x128xf32>
    %474 = arith.extui %473 : vector<16x128xi1> to vector<16x128xi32>
    %475 = arith.sitofp %474 : vector<16x128xi32> to vector<16x128xf32>
    %cst_325 = arith.constant -2.000000e-01 : f32
    %476 = vector.broadcast %cst_325 : f32 to vector<16x128xf32>
    %477 = arith.cmpf ole, %471, %476 : vector<16x128xf32>
    %478 = arith.extui %477 : vector<16x128xi1> to vector<16x128xi32>
    %479 = arith.sitofp %478 : vector<16x128xi32> to vector<16x128xf32>
    %480 = arith.subf %475, %479 : vector<16x128xf32>
    %c0_326 = arith.constant 0 : index
    %c0_327 = arith.constant 0 : index
    %481 = vector.load %arg10[%c0_326, %c0_327] : memref<16x128xf32, #tpu.memory_space<vmem>>, vector<16x128xf32>
    tpu.vector_store %arg10[%c0_326, %c0_327], %463 {strides = array<i32>} : memref<16x128xf32, #tpu.memory_space<vmem>>, vector<16x128xf32>,
    %c0_328 = arith.constant 0 : index
    %c0_329 = arith.constant 0 : index
    %482 = vector.load %arg11[%c0_328, %c0_329] : memref<16x128xf32, #tpu.memory_space<vmem>>, vector<16x128xf32>
    tpu.vector_store %arg11[%c0_328, %c0_329], %471 {strides = array<i32>} : memref<16x128xf32, #tpu.memory_space<vmem>>, vector<16x128xf32>,
    %c0_330 = arith.constant 0 : index
    %c0_331 = arith.constant 0 : index
    %483 = vector.load %arg12[%c0_330, %c0_331] : memref<16x128xf32, #tpu.memory_space<vmem>>, vector<16x128xf32>
    tpu.vector_store %arg12[%c0_330, %c0_331], %480 {strides = array<i32>} : memref<16x128xf32, #tpu.memory_space<vmem>>, vector<16x128xf32>,
    %484 = arith.truncf %480 : vector<16x128xf32> to vector<16x128xbf16>
    %cst_332 = arith.constant dense<0.000000e+00> : vector<16x128xf32>
    %485 = tpu.matmul %484, %4, %cst_332 {dimension_numbers = #tpu.dot_dimension_numbers<[1], [0], [0], [1], [0, 0, 1, 1], [], []>} : vector<16x128xbf16>, vector<128x128xbf16>, vector<16x128xf32> -> vector<16x128xf32>
    %486 = vector.broadcast %7 : vector<1x128xf32> to vector<16x128xf32>
    %487 = arith.addf %485, %486 : vector<16x128xf32>
    %c0_333 = arith.constant 0 : index
    %c0_334 = arith.constant 0 : index
    %488 = vector.load %arg13[%c0_333, %c0_334] : memref<16x128xf32, #tpu.memory_space<vmem>>, vector<16x128xf32>
    %cst_335 = arith.constant 5.000000e-01 : f32
    %489 = vector.broadcast %cst_335 : f32 to vector<16x128xf32>
    %490 = arith.mulf %488, %489 : vector<16x128xf32>
    %491 = arith.addf %490, %487 : vector<16x128xf32>
    %c0_336 = arith.constant 0 : index
    %c0_337 = arith.constant 0 : index
    %492 = vector.load %arg14[%c0_336, %c0_337] : memref<16x128xf32, #tpu.memory_space<vmem>>, vector<16x128xf32>
    %cst_338 = arith.constant 7.500000e-01 : f32
    %493 = vector.broadcast %cst_338 : f32 to vector<16x128xf32>
    %494 = arith.mulf %492, %493 : vector<16x128xf32>
    %495 = arith.addf %494, %491 : vector<16x128xf32>
    %c0_339 = arith.constant 0 : index
    %c0_340 = arith.constant 0 : index
    %496 = vector.load %arg15[%c0_339, %c0_340] : memref<16x128xf32, #tpu.memory_space<vmem>>, vector<16x128xf32>
    %cst_341 = arith.constant 2.000000e-01 : f32
    %497 = vector.broadcast %cst_341 : f32 to vector<16x128xf32>
    %498 = arith.mulf %496, %497 : vector<16x128xf32>
    %499 = arith.subf %495, %498 : vector<16x128xf32>
    %cst_342 = arith.constant 2.000000e-01 : f32
    %500 = vector.broadcast %cst_342 : f32 to vector<16x128xf32>
    %501 = arith.cmpf oge, %499, %500 : vector<16x128xf32>
    %502 = arith.extui %501 : vector<16x128xi1> to vector<16x128xi32>
    %503 = arith.sitofp %502 : vector<16x128xi32> to vector<16x128xf32>
    %cst_343 = arith.constant -2.000000e-01 : f32
    %504 = vector.broadcast %cst_343 : f32 to vector<16x128xf32>
    %505 = arith.cmpf ole, %499, %504 : vector<16x128xf32>
    %506 = arith.extui %505 : vector<16x128xi1> to vector<16x128xi32>
    %507 = arith.sitofp %506 : vector<16x128xi32> to vector<16x128xf32>
    %508 = arith.subf %503, %507 : vector<16x128xf32>
    %c0_344 = arith.constant 0 : index
    %c0_345 = arith.constant 0 : index
    %509 = vector.load %arg13[%c0_344, %c0_345] : memref<16x128xf32, #tpu.memory_space<vmem>>, vector<16x128xf32>
    tpu.vector_store %arg13[%c0_344, %c0_345], %491 {strides = array<i32>} : memref<16x128xf32, #tpu.memory_space<vmem>>, vector<16x128xf32>,
    %c0_346 = arith.constant 0 : index
    %c0_347 = arith.constant 0 : index
    %510 = vector.load %arg14[%c0_346, %c0_347] : memref<16x128xf32, #tpu.memory_space<vmem>>, vector<16x128xf32>
    tpu.vector_store %arg14[%c0_346, %c0_347], %499 {strides = array<i32>} : memref<16x128xf32, #tpu.memory_space<vmem>>, vector<16x128xf32>,
    %c0_348 = arith.constant 0 : index
    %c0_349 = arith.constant 0 : index
    %511 = vector.load %arg15[%c0_348, %c0_349] : memref<16x128xf32, #tpu.memory_space<vmem>>, vector<16x128xf32>
    tpu.vector_store %arg15[%c0_348, %c0_349], %508 {strides = array<i32>} : memref<16x128xf32, #tpu.memory_space<vmem>>, vector<16x128xf32>,
    %512 = arith.truncf %508 : vector<16x128xf32> to vector<16x128xbf16>
    %cst_350 = arith.constant dense<0.000000e+00> : vector<16x128xf32>
    %513 = tpu.matmul %512, %5, %cst_350 {dimension_numbers = #tpu.dot_dimension_numbers<[1], [0], [0], [1], [0, 0, 1, 1], [], []>} : vector<16x128xbf16>, vector<128x128xbf16>, vector<16x128xf32> -> vector<16x128xf32>
    %514 = vector.broadcast %8 : vector<1x128xf32> to vector<16x128xf32>
    %515 = arith.addf %513, %514 : vector<16x128xf32>
    %c0_351 = arith.constant 0 : index
    %c0_352 = arith.constant 0 : index
    %516 = vector.load %arg16[%c0_351, %c0_352] : memref<16x128xf32, #tpu.memory_space<vmem>>, vector<16x128xf32>
    %cst_353 = arith.constant 5.000000e-01 : f32
    %517 = vector.broadcast %cst_353 : f32 to vector<16x128xf32>
    %518 = arith.mulf %516, %517 : vector<16x128xf32>
    %519 = arith.addf %518, %515 : vector<16x128xf32>
    %c0_354 = arith.constant 0 : index
    %c0_355 = arith.constant 0 : index
    %520 = vector.load %arg17[%c0_354, %c0_355] : memref<16x128xf32, #tpu.memory_space<vmem>>, vector<16x128xf32>
    %cst_356 = arith.constant 7.500000e-01 : f32
    %521 = vector.broadcast %cst_356 : f32 to vector<16x128xf32>
    %522 = arith.mulf %520, %521 : vector<16x128xf32>
    %523 = arith.addf %522, %519 : vector<16x128xf32>
    %c0_357 = arith.constant 0 : index
    %c0_358 = arith.constant 0 : index
    %524 = vector.load %arg18[%c0_357, %c0_358] : memref<16x128xf32, #tpu.memory_space<vmem>>, vector<16x128xf32>
    %cst_359 = arith.constant 2.000000e-01 : f32
    %525 = vector.broadcast %cst_359 : f32 to vector<16x128xf32>
    %526 = arith.mulf %524, %525 : vector<16x128xf32>
    %527 = arith.subf %523, %526 : vector<16x128xf32>
    %cst_360 = arith.constant 2.000000e-01 : f32
    %528 = vector.broadcast %cst_360 : f32 to vector<16x128xf32>
    %529 = arith.cmpf oge, %527, %528 : vector<16x128xf32>
    %530 = arith.extui %529 : vector<16x128xi1> to vector<16x128xi32>
    %531 = arith.sitofp %530 : vector<16x128xi32> to vector<16x128xf32>
    %cst_361 = arith.constant -2.000000e-01 : f32
    %532 = vector.broadcast %cst_361 : f32 to vector<16x128xf32>
    %533 = arith.cmpf ole, %527, %532 : vector<16x128xf32>
    %534 = arith.extui %533 : vector<16x128xi1> to vector<16x128xi32>
    %535 = arith.sitofp %534 : vector<16x128xi32> to vector<16x128xf32>
    %536 = arith.subf %531, %535 : vector<16x128xf32>
    %c0_362 = arith.constant 0 : index
    %c0_363 = arith.constant 0 : index
    %537 = vector.load %arg16[%c0_362, %c0_363] : memref<16x128xf32, #tpu.memory_space<vmem>>, vector<16x128xf32>
    tpu.vector_store %arg16[%c0_362, %c0_363], %519 {strides = array<i32>} : memref<16x128xf32, #tpu.memory_space<vmem>>, vector<16x128xf32>,
    %c0_364 = arith.constant 0 : index
    %c0_365 = arith.constant 0 : index
    %538 = vector.load %arg17[%c0_364, %c0_365] : memref<16x128xf32, #tpu.memory_space<vmem>>, vector<16x128xf32>
    tpu.vector_store %arg17[%c0_364, %c0_365], %527 {strides = array<i32>} : memref<16x128xf32, #tpu.memory_space<vmem>>, vector<16x128xf32>,
    %c0_366 = arith.constant 0 : index
    %c0_367 = arith.constant 0 : index
    %539 = vector.load %arg18[%c0_366, %c0_367] : memref<16x128xf32, #tpu.memory_space<vmem>>, vector<16x128xf32>
    tpu.vector_store %arg18[%c0_366, %c0_367], %536 {strides = array<i32>} : memref<16x128xf32, #tpu.memory_space<vmem>>, vector<16x128xf32>,
    %c0_368 = arith.constant 0 : index
    %c0_369 = arith.constant 0 : index
    %540 = vector.load %arg9[%c0_368, %c0_369] : memref<16x128xf32, #tpu.memory_space<vmem>>, vector<16x128xf32>
    %541 = arith.addf %540, %536 : vector<16x128xf32>
    %c0_370 = arith.constant 0 : index
    %c0_371 = arith.constant 0 : index
    %542 = vector.load %arg9[%c0_370, %c0_371] : memref<16x128xf32, #tpu.memory_space<vmem>>, vector<16x128xf32>
    tpu.vector_store %arg9[%c0_370, %c0_371], %541 {strides = array<i32>} : memref<16x128xf32, #tpu.memory_space<vmem>>, vector<16x128xf32>,
    %c6_i32 = arith.constant 6 : i32
    %543 = arith.index_cast %c6_i32 : i32 to index
    %c0_372 = arith.constant 0 : index
    %c0_373 = arith.constant 0 : index
    %544 = vector.load %arg2[%543, %c0_372, %c0_373] : memref<8x16x128xbf16, #tpu.memory_space<vmem>>, vector<1x16x128xbf16>
    %545 = vector.shape_cast %544 : vector<1x16x128xbf16> to vector<16x128xbf16>
    %cst_374 = arith.constant dense<0.000000e+00> : vector<16x128xf32>
    %546 = tpu.matmul %545, %3, %cst_374 {dimension_numbers = #tpu.dot_dimension_numbers<[1], [0], [0], [1], [0, 0, 1, 1], [], []>} : vector<16x128xbf16>, vector<128x128xbf16>, vector<16x128xf32> -> vector<16x128xf32>
    %547 = vector.broadcast %6 : vector<1x128xf32> to vector<16x128xf32>
    %548 = arith.addf %546, %547 : vector<16x128xf32>
    %c0_375 = arith.constant 0 : index
    %c0_376 = arith.constant 0 : index
    %549 = vector.load %arg10[%c0_375, %c0_376] : memref<16x128xf32, #tpu.memory_space<vmem>>, vector<16x128xf32>
    %cst_377 = arith.constant 5.000000e-01 : f32
    %550 = vector.broadcast %cst_377 : f32 to vector<16x128xf32>
    %551 = arith.mulf %549, %550 : vector<16x128xf32>
    %552 = arith.addf %551, %548 : vector<16x128xf32>
    %c0_378 = arith.constant 0 : index
    %c0_379 = arith.constant 0 : index
    %553 = vector.load %arg11[%c0_378, %c0_379] : memref<16x128xf32, #tpu.memory_space<vmem>>, vector<16x128xf32>
    %cst_380 = arith.constant 7.500000e-01 : f32
    %554 = vector.broadcast %cst_380 : f32 to vector<16x128xf32>
    %555 = arith.mulf %553, %554 : vector<16x128xf32>
    %556 = arith.addf %555, %552 : vector<16x128xf32>
    %c0_381 = arith.constant 0 : index
    %c0_382 = arith.constant 0 : index
    %557 = vector.load %arg12[%c0_381, %c0_382] : memref<16x128xf32, #tpu.memory_space<vmem>>, vector<16x128xf32>
    %cst_383 = arith.constant 2.000000e-01 : f32
    %558 = vector.broadcast %cst_383 : f32 to vector<16x128xf32>
    %559 = arith.mulf %557, %558 : vector<16x128xf32>
    %560 = arith.subf %556, %559 : vector<16x128xf32>
    %cst_384 = arith.constant 2.000000e-01 : f32
    %561 = vector.broadcast %cst_384 : f32 to vector<16x128xf32>
    %562 = arith.cmpf oge, %560, %561 : vector<16x128xf32>
    %563 = arith.extui %562 : vector<16x128xi1> to vector<16x128xi32>
    %564 = arith.sitofp %563 : vector<16x128xi32> to vector<16x128xf32>
    %cst_385 = arith.constant -2.000000e-01 : f32
    %565 = vector.broadcast %cst_385 : f32 to vector<16x128xf32>
    %566 = arith.cmpf ole, %560, %565 : vector<16x128xf32>
    %567 = arith.extui %566 : vector<16x128xi1> to vector<16x128xi32>
    %568 = arith.sitofp %567 : vector<16x128xi32> to vector<16x128xf32>
    %569 = arith.subf %564, %568 : vector<16x128xf32>
    %c0_386 = arith.constant 0 : index
    %c0_387 = arith.constant 0 : index
    %570 = vector.load %arg10[%c0_386, %c0_387] : memref<16x128xf32, #tpu.memory_space<vmem>>, vector<16x128xf32>
    tpu.vector_store %arg10[%c0_386, %c0_387], %552 {strides = array<i32>} : memref<16x128xf32, #tpu.memory_space<vmem>>, vector<16x128xf32>,
    %c0_388 = arith.constant 0 : index
    %c0_389 = arith.constant 0 : index
    %571 = vector.load %arg11[%c0_388, %c0_389] : memref<16x128xf32, #tpu.memory_space<vmem>>, vector<16x128xf32>
    tpu.vector_store %arg11[%c0_388, %c0_389], %560 {strides = array<i32>} : memref<16x128xf32, #tpu.memory_space<vmem>>, vector<16x128xf32>,
    %c0_390 = arith.constant 0 : index
    %c0_391 = arith.constant 0 : index
    %572 = vector.load %arg12[%c0_390, %c0_391] : memref<16x128xf32, #tpu.memory_space<vmem>>, vector<16x128xf32>
    tpu.vector_store %arg12[%c0_390, %c0_391], %569 {strides = array<i32>} : memref<16x128xf32, #tpu.memory_space<vmem>>, vector<16x128xf32>,
    %573 = arith.truncf %569 : vector<16x128xf32> to vector<16x128xbf16>
    %cst_392 = arith.constant dense<0.000000e+00> : vector<16x128xf32>
    %574 = tpu.matmul %573, %4, %cst_392 {dimension_numbers = #tpu.dot_dimension_numbers<[1], [0], [0], [1], [0, 0, 1, 1], [], []>} : vector<16x128xbf16>, vector<128x128xbf16>, vector<16x128xf32> -> vector<16x128xf32>
    %575 = vector.broadcast %7 : vector<1x128xf32> to vector<16x128xf32>
    %576 = arith.addf %574, %575 : vector<16x128xf32>
    %c0_393 = arith.constant 0 : index
    %c0_394 = arith.constant 0 : index
    %577 = vector.load %arg13[%c0_393, %c0_394] : memref<16x128xf32, #tpu.memory_space<vmem>>, vector<16x128xf32>
    %cst_395 = arith.constant 5.000000e-01 : f32
    %578 = vector.broadcast %cst_395 : f32 to vector<16x128xf32>
    %579 = arith.mulf %577, %578 : vector<16x128xf32>
    %580 = arith.addf %579, %576 : vector<16x128xf32>
    %c0_396 = arith.constant 0 : index
    %c0_397 = arith.constant 0 : index
    %581 = vector.load %arg14[%c0_396, %c0_397] : memref<16x128xf32, #tpu.memory_space<vmem>>, vector<16x128xf32>
    %cst_398 = arith.constant 7.500000e-01 : f32
    %582 = vector.broadcast %cst_398 : f32 to vector<16x128xf32>
    %583 = arith.mulf %581, %582 : vector<16x128xf32>
    %584 = arith.addf %583, %580 : vector<16x128xf32>
    %c0_399 = arith.constant 0 : index
    %c0_400 = arith.constant 0 : index
    %585 = vector.load %arg15[%c0_399, %c0_400] : memref<16x128xf32, #tpu.memory_space<vmem>>, vector<16x128xf32>
    %cst_401 = arith.constant 2.000000e-01 : f32
    %586 = vector.broadcast %cst_401 : f32 to vector<16x128xf32>
    %587 = arith.mulf %585, %586 : vector<16x128xf32>
    %588 = arith.subf %584, %587 : vector<16x128xf32>
    %cst_402 = arith.constant 2.000000e-01 : f32
    %589 = vector.broadcast %cst_402 : f32 to vector<16x128xf32>
    %590 = arith.cmpf oge, %588, %589 : vector<16x128xf32>
    %591 = arith.extui %590 : vector<16x128xi1> to vector<16x128xi32>
    %592 = arith.sitofp %591 : vector<16x128xi32> to vector<16x128xf32>
    %cst_403 = arith.constant -2.000000e-01 : f32
    %593 = vector.broadcast %cst_403 : f32 to vector<16x128xf32>
    %594 = arith.cmpf ole, %588, %593 : vector<16x128xf32>
    %595 = arith.extui %594 : vector<16x128xi1> to vector<16x128xi32>
    %596 = arith.sitofp %595 : vector<16x128xi32> to vector<16x128xf32>
    %597 = arith.subf %592, %596 : vector<16x128xf32>
    %c0_404 = arith.constant 0 : index
    %c0_405 = arith.constant 0 : index
    %598 = vector.load %arg13[%c0_404, %c0_405] : memref<16x128xf32, #tpu.memory_space<vmem>>, vector<16x128xf32>
    tpu.vector_store %arg13[%c0_404, %c0_405], %580 {strides = array<i32>} : memref<16x128xf32, #tpu.memory_space<vmem>>, vector<16x128xf32>,
    %c0_406 = arith.constant 0 : index
    %c0_407 = arith.constant 0 : index
    %599 = vector.load %arg14[%c0_406, %c0_407] : memref<16x128xf32, #tpu.memory_space<vmem>>, vector<16x128xf32>
    tpu.vector_store %arg14[%c0_406, %c0_407], %588 {strides = array<i32>} : memref<16x128xf32, #tpu.memory_space<vmem>>, vector<16x128xf32>,
    %c0_408 = arith.constant 0 : index
    %c0_409 = arith.constant 0 : index
    %600 = vector.load %arg15[%c0_408, %c0_409] : memref<16x128xf32, #tpu.memory_space<vmem>>, vector<16x128xf32>
    tpu.vector_store %arg15[%c0_408, %c0_409], %597 {strides = array<i32>} : memref<16x128xf32, #tpu.memory_space<vmem>>, vector<16x128xf32>,
    %601 = arith.truncf %597 : vector<16x128xf32> to vector<16x128xbf16>
    %cst_410 = arith.constant dense<0.000000e+00> : vector<16x128xf32>
    %602 = tpu.matmul %601, %5, %cst_410 {dimension_numbers = #tpu.dot_dimension_numbers<[1], [0], [0], [1], [0, 0, 1, 1], [], []>} : vector<16x128xbf16>, vector<128x128xbf16>, vector<16x128xf32> -> vector<16x128xf32>
    %603 = vector.broadcast %8 : vector<1x128xf32> to vector<16x128xf32>
    %604 = arith.addf %602, %603 : vector<16x128xf32>
    %c0_411 = arith.constant 0 : index
    %c0_412 = arith.constant 0 : index
    %605 = vector.load %arg16[%c0_411, %c0_412] : memref<16x128xf32, #tpu.memory_space<vmem>>, vector<16x128xf32>
    %cst_413 = arith.constant 5.000000e-01 : f32
    %606 = vector.broadcast %cst_413 : f32 to vector<16x128xf32>
    %607 = arith.mulf %605, %606 : vector<16x128xf32>
    %608 = arith.addf %607, %604 : vector<16x128xf32>
    %c0_414 = arith.constant 0 : index
    %c0_415 = arith.constant 0 : index
    %609 = vector.load %arg17[%c0_414, %c0_415] : memref<16x128xf32, #tpu.memory_space<vmem>>, vector<16x128xf32>
    %cst_416 = arith.constant 7.500000e-01 : f32
    %610 = vector.broadcast %cst_416 : f32 to vector<16x128xf32>
    %611 = arith.mulf %609, %610 : vector<16x128xf32>
    %612 = arith.addf %611, %608 : vector<16x128xf32>
    %c0_417 = arith.constant 0 : index
    %c0_418 = arith.constant 0 : index
    %613 = vector.load %arg18[%c0_417, %c0_418] : memref<16x128xf32, #tpu.memory_space<vmem>>, vector<16x128xf32>
    %cst_419 = arith.constant 2.000000e-01 : f32
    %614 = vector.broadcast %cst_419 : f32 to vector<16x128xf32>
    %615 = arith.mulf %613, %614 : vector<16x128xf32>
    %616 = arith.subf %612, %615 : vector<16x128xf32>
    %cst_420 = arith.constant 2.000000e-01 : f32
    %617 = vector.broadcast %cst_420 : f32 to vector<16x128xf32>
    %618 = arith.cmpf oge, %616, %617 : vector<16x128xf32>
    %619 = arith.extui %618 : vector<16x128xi1> to vector<16x128xi32>
    %620 = arith.sitofp %619 : vector<16x128xi32> to vector<16x128xf32>
    %cst_421 = arith.constant -2.000000e-01 : f32
    %621 = vector.broadcast %cst_421 : f32 to vector<16x128xf32>
    %622 = arith.cmpf ole, %616, %621 : vector<16x128xf32>
    %623 = arith.extui %622 : vector<16x128xi1> to vector<16x128xi32>
    %624 = arith.sitofp %623 : vector<16x128xi32> to vector<16x128xf32>
    %625 = arith.subf %620, %624 : vector<16x128xf32>
    %c0_422 = arith.constant 0 : index
    %c0_423 = arith.constant 0 : index
    %626 = vector.load %arg16[%c0_422, %c0_423] : memref<16x128xf32, #tpu.memory_space<vmem>>, vector<16x128xf32>
    tpu.vector_store %arg16[%c0_422, %c0_423], %608 {strides = array<i32>} : memref<16x128xf32, #tpu.memory_space<vmem>>, vector<16x128xf32>,
    %c0_424 = arith.constant 0 : index
    %c0_425 = arith.constant 0 : index
    %627 = vector.load %arg17[%c0_424, %c0_425] : memref<16x128xf32, #tpu.memory_space<vmem>>, vector<16x128xf32>
    tpu.vector_store %arg17[%c0_424, %c0_425], %616 {strides = array<i32>} : memref<16x128xf32, #tpu.memory_space<vmem>>, vector<16x128xf32>,
    %c0_426 = arith.constant 0 : index
    %c0_427 = arith.constant 0 : index
    %628 = vector.load %arg18[%c0_426, %c0_427] : memref<16x128xf32, #tpu.memory_space<vmem>>, vector<16x128xf32>
    tpu.vector_store %arg18[%c0_426, %c0_427], %625 {strides = array<i32>} : memref<16x128xf32, #tpu.memory_space<vmem>>, vector<16x128xf32>,
    %c0_428 = arith.constant 0 : index
    %c0_429 = arith.constant 0 : index
    %629 = vector.load %arg9[%c0_428, %c0_429] : memref<16x128xf32, #tpu.memory_space<vmem>>, vector<16x128xf32>
    %630 = arith.addf %629, %625 : vector<16x128xf32>
    %c0_430 = arith.constant 0 : index
    %c0_431 = arith.constant 0 : index
    %631 = vector.load %arg9[%c0_430, %c0_431] : memref<16x128xf32, #tpu.memory_space<vmem>>, vector<16x128xf32>
    tpu.vector_store %arg9[%c0_430, %c0_431], %630 {strides = array<i32>} : memref<16x128xf32, #tpu.memory_space<vmem>>, vector<16x128xf32>,
    %c7_i32 = arith.constant 7 : i32
    %632 = arith.index_cast %c7_i32 : i32 to index
    %c0_432 = arith.constant 0 : index
    %c0_433 = arith.constant 0 : index
    %633 = vector.load %arg2[%632, %c0_432, %c0_433] : memref<8x16x128xbf16, #tpu.memory_space<vmem>>, vector<1x16x128xbf16>
    %634 = vector.shape_cast %633 : vector<1x16x128xbf16> to vector<16x128xbf16>
    %cst_434 = arith.constant dense<0.000000e+00> : vector<16x128xf32>
    %635 = tpu.matmul %634, %3, %cst_434 {dimension_numbers = #tpu.dot_dimension_numbers<[1], [0], [0], [1], [0, 0, 1, 1], [], []>} : vector<16x128xbf16>, vector<128x128xbf16>, vector<16x128xf32> -> vector<16x128xf32>
    %636 = vector.broadcast %6 : vector<1x128xf32> to vector<16x128xf32>
    %637 = arith.addf %635, %636 : vector<16x128xf32>
    %c0_435 = arith.constant 0 : index
    %c0_436 = arith.constant 0 : index
    %638 = vector.load %arg10[%c0_435, %c0_436] : memref<16x128xf32, #tpu.memory_space<vmem>>, vector<16x128xf32>
    %cst_437 = arith.constant 5.000000e-01 : f32
    %639 = vector.broadcast %cst_437 : f32 to vector<16x128xf32>
    %640 = arith.mulf %638, %639 : vector<16x128xf32>
    %641 = arith.addf %640, %637 : vector<16x128xf32>
    %c0_438 = arith.constant 0 : index
    %c0_439 = arith.constant 0 : index
    %642 = vector.load %arg11[%c0_438, %c0_439] : memref<16x128xf32, #tpu.memory_space<vmem>>, vector<16x128xf32>
    %cst_440 = arith.constant 7.500000e-01 : f32
    %643 = vector.broadcast %cst_440 : f32 to vector<16x128xf32>
    %644 = arith.mulf %642, %643 : vector<16x128xf32>
    %645 = arith.addf %644, %641 : vector<16x128xf32>
    %c0_441 = arith.constant 0 : index
    %c0_442 = arith.constant 0 : index
    %646 = vector.load %arg12[%c0_441, %c0_442] : memref<16x128xf32, #tpu.memory_space<vmem>>, vector<16x128xf32>
    %cst_443 = arith.constant 2.000000e-01 : f32
    %647 = vector.broadcast %cst_443 : f32 to vector<16x128xf32>
    %648 = arith.mulf %646, %647 : vector<16x128xf32>
    %649 = arith.subf %645, %648 : vector<16x128xf32>
    %cst_444 = arith.constant 2.000000e-01 : f32
    %650 = vector.broadcast %cst_444 : f32 to vector<16x128xf32>
    %651 = arith.cmpf oge, %649, %650 : vector<16x128xf32>
    %652 = arith.extui %651 : vector<16x128xi1> to vector<16x128xi32>
    %653 = arith.sitofp %652 : vector<16x128xi32> to vector<16x128xf32>
    %cst_445 = arith.constant -2.000000e-01 : f32
    %654 = vector.broadcast %cst_445 : f32 to vector<16x128xf32>
    %655 = arith.cmpf ole, %649, %654 : vector<16x128xf32>
    %656 = arith.extui %655 : vector<16x128xi1> to vector<16x128xi32>
    %657 = arith.sitofp %656 : vector<16x128xi32> to vector<16x128xf32>
    %658 = arith.subf %653, %657 : vector<16x128xf32>
    %c0_446 = arith.constant 0 : index
    %c0_447 = arith.constant 0 : index
    %659 = vector.load %arg10[%c0_446, %c0_447] : memref<16x128xf32, #tpu.memory_space<vmem>>, vector<16x128xf32>
    tpu.vector_store %arg10[%c0_446, %c0_447], %641 {strides = array<i32>} : memref<16x128xf32, #tpu.memory_space<vmem>>, vector<16x128xf32>,
    %c0_448 = arith.constant 0 : index
    %c0_449 = arith.constant 0 : index
    %660 = vector.load %arg11[%c0_448, %c0_449] : memref<16x128xf32, #tpu.memory_space<vmem>>, vector<16x128xf32>
    tpu.vector_store %arg11[%c0_448, %c0_449], %649 {strides = array<i32>} : memref<16x128xf32, #tpu.memory_space<vmem>>, vector<16x128xf32>,
    %c0_450 = arith.constant 0 : index
    %c0_451 = arith.constant 0 : index
    %661 = vector.load %arg12[%c0_450, %c0_451] : memref<16x128xf32, #tpu.memory_space<vmem>>, vector<16x128xf32>
    tpu.vector_store %arg12[%c0_450, %c0_451], %658 {strides = array<i32>} : memref<16x128xf32, #tpu.memory_space<vmem>>, vector<16x128xf32>,
    %662 = arith.truncf %658 : vector<16x128xf32> to vector<16x128xbf16>
    %cst_452 = arith.constant dense<0.000000e+00> : vector<16x128xf32>
    %663 = tpu.matmul %662, %4, %cst_452 {dimension_numbers = #tpu.dot_dimension_numbers<[1], [0], [0], [1], [0, 0, 1, 1], [], []>} : vector<16x128xbf16>, vector<128x128xbf16>, vector<16x128xf32> -> vector<16x128xf32>
    %664 = vector.broadcast %7 : vector<1x128xf32> to vector<16x128xf32>
    %665 = arith.addf %663, %664 : vector<16x128xf32>
    %c0_453 = arith.constant 0 : index
    %c0_454 = arith.constant 0 : index
    %666 = vector.load %arg13[%c0_453, %c0_454] : memref<16x128xf32, #tpu.memory_space<vmem>>, vector<16x128xf32>
    %cst_455 = arith.constant 5.000000e-01 : f32
    %667 = vector.broadcast %cst_455 : f32 to vector<16x128xf32>
    %668 = arith.mulf %666, %667 : vector<16x128xf32>
    %669 = arith.addf %668, %665 : vector<16x128xf32>
    %c0_456 = arith.constant 0 : index
    %c0_457 = arith.constant 0 : index
    %670 = vector.load %arg14[%c0_456, %c0_457] : memref<16x128xf32, #tpu.memory_space<vmem>>, vector<16x128xf32>
    %cst_458 = arith.constant 7.500000e-01 : f32
    %671 = vector.broadcast %cst_458 : f32 to vector<16x128xf32>
    %672 = arith.mulf %670, %671 : vector<16x128xf32>
    %673 = arith.addf %672, %669 : vector<16x128xf32>
    %c0_459 = arith.constant 0 : index
    %c0_460 = arith.constant 0 : index
    %674 = vector.load %arg15[%c0_459, %c0_460] : memref<16x128xf32, #tpu.memory_space<vmem>>, vector<16x128xf32>
    %cst_461 = arith.constant 2.000000e-01 : f32
    %675 = vector.broadcast %cst_461 : f32 to vector<16x128xf32>
    %676 = arith.mulf %674, %675 : vector<16x128xf32>
    %677 = arith.subf %673, %676 : vector<16x128xf32>
    %cst_462 = arith.constant 2.000000e-01 : f32
    %678 = vector.broadcast %cst_462 : f32 to vector<16x128xf32>
    %679 = arith.cmpf oge, %677, %678 : vector<16x128xf32>
    %680 = arith.extui %679 : vector<16x128xi1> to vector<16x128xi32>
    %681 = arith.sitofp %680 : vector<16x128xi32> to vector<16x128xf32>
    %cst_463 = arith.constant -2.000000e-01 : f32
    %682 = vector.broadcast %cst_463 : f32 to vector<16x128xf32>
    %683 = arith.cmpf ole, %677, %682 : vector<16x128xf32>
    %684 = arith.extui %683 : vector<16x128xi1> to vector<16x128xi32>
    %685 = arith.sitofp %684 : vector<16x128xi32> to vector<16x128xf32>
    %686 = arith.subf %681, %685 : vector<16x128xf32>
    %c0_464 = arith.constant 0 : index
    %c0_465 = arith.constant 0 : index
    %687 = vector.load %arg13[%c0_464, %c0_465] : memref<16x128xf32, #tpu.memory_space<vmem>>, vector<16x128xf32>
    tpu.vector_store %arg13[%c0_464, %c0_465], %669 {strides = array<i32>} : memref<16x128xf32, #tpu.memory_space<vmem>>, vector<16x128xf32>,
    %c0_466 = arith.constant 0 : index
    %c0_467 = arith.constant 0 : index
    %688 = vector.load %arg14[%c0_466, %c0_467] : memref<16x128xf32, #tpu.memory_space<vmem>>, vector<16x128xf32>
    tpu.vector_store %arg14[%c0_466, %c0_467], %677 {strides = array<i32>} : memref<16x128xf32, #tpu.memory_space<vmem>>, vector<16x128xf32>,
    %c0_468 = arith.constant 0 : index
    %c0_469 = arith.constant 0 : index
    %689 = vector.load %arg15[%c0_468, %c0_469] : memref<16x128xf32, #tpu.memory_space<vmem>>, vector<16x128xf32>
    tpu.vector_store %arg15[%c0_468, %c0_469], %686 {strides = array<i32>} : memref<16x128xf32, #tpu.memory_space<vmem>>, vector<16x128xf32>,
    %690 = arith.truncf %686 : vector<16x128xf32> to vector<16x128xbf16>
    %cst_470 = arith.constant dense<0.000000e+00> : vector<16x128xf32>
    %691 = tpu.matmul %690, %5, %cst_470 {dimension_numbers = #tpu.dot_dimension_numbers<[1], [0], [0], [1], [0, 0, 1, 1], [], []>} : vector<16x128xbf16>, vector<128x128xbf16>, vector<16x128xf32> -> vector<16x128xf32>
    %692 = vector.broadcast %8 : vector<1x128xf32> to vector<16x128xf32>
    %693 = arith.addf %691, %692 : vector<16x128xf32>
    %c0_471 = arith.constant 0 : index
    %c0_472 = arith.constant 0 : index
    %694 = vector.load %arg16[%c0_471, %c0_472] : memref<16x128xf32, #tpu.memory_space<vmem>>, vector<16x128xf32>
    %cst_473 = arith.constant 5.000000e-01 : f32
    %695 = vector.broadcast %cst_473 : f32 to vector<16x128xf32>
    %696 = arith.mulf %694, %695 : vector<16x128xf32>
    %697 = arith.addf %696, %693 : vector<16x128xf32>
    %c0_474 = arith.constant 0 : index
    %c0_475 = arith.constant 0 : index
    %698 = vector.load %arg17[%c0_474, %c0_475] : memref<16x128xf32, #tpu.memory_space<vmem>>, vector<16x128xf32>
    %cst_476 = arith.constant 7.500000e-01 : f32
    %699 = vector.broadcast %cst_476 : f32 to vector<16x128xf32>
    %700 = arith.mulf %698, %699 : vector<16x128xf32>
    %701 = arith.addf %700, %697 : vector<16x128xf32>
    %c0_477 = arith.constant 0 : index
    %c0_478 = arith.constant 0 : index
    %702 = vector.load %arg18[%c0_477, %c0_478] : memref<16x128xf32, #tpu.memory_space<vmem>>, vector<16x128xf32>
    %cst_479 = arith.constant 2.000000e-01 : f32
    %703 = vector.broadcast %cst_479 : f32 to vector<16x128xf32>
    %704 = arith.mulf %702, %703 : vector<16x128xf32>
    %705 = arith.subf %701, %704 : vector<16x128xf32>
    %cst_480 = arith.constant 2.000000e-01 : f32
    %706 = vector.broadcast %cst_480 : f32 to vector<16x128xf32>
    %707 = arith.cmpf oge, %705, %706 : vector<16x128xf32>
    %708 = arith.extui %707 : vector<16x128xi1> to vector<16x128xi32>
    %709 = arith.sitofp %708 : vector<16x128xi32> to vector<16x128xf32>
    %cst_481 = arith.constant -2.000000e-01 : f32
    %710 = vector.broadcast %cst_481 : f32 to vector<16x128xf32>
    %711 = arith.cmpf ole, %705, %710 : vector<16x128xf32>
    %712 = arith.extui %711 : vector<16x128xi1> to vector<16x128xi32>
    %713 = arith.sitofp %712 : vector<16x128xi32> to vector<16x128xf32>
    %714 = arith.subf %709, %713 : vector<16x128xf32>
    %c0_482 = arith.constant 0 : index
    %c0_483 = arith.constant 0 : index
    %715 = vector.load %arg16[%c0_482, %c0_483] : memref<16x128xf32, #tpu.memory_space<vmem>>, vector<16x128xf32>
    tpu.vector_store %arg16[%c0_482, %c0_483], %697 {strides = array<i32>} : memref<16x128xf32, #tpu.memory_space<vmem>>, vector<16x128xf32>,
    %c0_484 = arith.constant 0 : index
    %c0_485 = arith.constant 0 : index
    %716 = vector.load %arg17[%c0_484, %c0_485] : memref<16x128xf32, #tpu.memory_space<vmem>>, vector<16x128xf32>
    tpu.vector_store %arg17[%c0_484, %c0_485], %705 {strides = array<i32>} : memref<16x128xf32, #tpu.memory_space<vmem>>, vector<16x128xf32>,
    %c0_486 = arith.constant 0 : index
    %c0_487 = arith.constant 0 : index
    %717 = vector.load %arg18[%c0_486, %c0_487] : memref<16x128xf32, #tpu.memory_space<vmem>>, vector<16x128xf32>
    tpu.vector_store %arg18[%c0_486, %c0_487], %714 {strides = array<i32>} : memref<16x128xf32, #tpu.memory_space<vmem>>, vector<16x128xf32>,
    %c0_488 = arith.constant 0 : index
    %c0_489 = arith.constant 0 : index
    %718 = vector.load %arg9[%c0_488, %c0_489] : memref<16x128xf32, #tpu.memory_space<vmem>>, vector<16x128xf32>
    %719 = arith.addf %718, %714 : vector<16x128xf32>
    %c0_490 = arith.constant 0 : index
    %c0_491 = arith.constant 0 : index
    %720 = vector.load %arg9[%c0_490, %c0_491] : memref<16x128xf32, #tpu.memory_space<vmem>>, vector<16x128xf32>
    tpu.vector_store %arg9[%c0_490, %c0_491], %719 {strides = array<i32>} : memref<16x128xf32, #tpu.memory_space<vmem>>, vector<16x128xf32>,
    %c8_i32 = arith.constant 8 : i32
    %c0_i32_492 = arith.constant 0 : i32
    %721 = arith.cmpi eq, %arg1, %c0_i32_492 : i32
    %722 = arith.extui %721 : i1 to i32
    %c0_i32_493 = arith.constant 0 : i32
    %723 = arith.cmpi ne, %722, %c0_i32_493 : i32
    scf.if %723 {
      %c0_494 = arith.constant 0 : index
      %c0_495 = arith.constant 0 : index
      %724 = vector.load %arg9[%c0_494, %c0_495] : memref<16x128xf32, #tpu.memory_space<vmem>>, vector<16x128xf32>
      %cst_496 = arith.constant 1.250000e-01 : f32
      %725 = vector.broadcast %cst_496 : f32 to vector<16x128xf32>
      %726 = arith.mulf %724, %725 : vector<16x128xf32>
      %c0_497 = arith.constant 0 : index
      %c0_498 = arith.constant 0 : index
      %727 = vector.load %arg9[%c0_497, %c0_498] : memref<16x128xf32, #tpu.memory_space<vmem>>, vector<16x128xf32>
      tpu.vector_store %arg9[%c0_497, %c0_498], %726 {strides = array<i32>} : memref<16x128xf32, #tpu.memory_space<vmem>>, vector<16x128xf32>,
    } else {
    }
    return
  }
  func.func @transform_0(%arg0: i32, %arg1: i32) -> (i32, i32, i32) {
    %c0_i32 = arith.constant 0 : i32
    %c0_i32_0 = arith.constant 0 : i32
    return %arg1, %arg0, %c0_i32 : i32, i32, i32
  }
  func.func @transform_1(%arg0: i32, %arg1: i32) -> (i32, i32) {
    %c0_i32 = arith.constant 0 : i32
    %c0_i32_0 = arith.constant 0 : i32
    %c0_i32_1 = arith.constant 0 : i32
    return %c0_i32, %c0_i32_0 : i32, i32
  }
  func.func @transform_2(%arg0: i32, %arg1: i32) -> (i32, i32) {
    %c0_i32 = arith.constant 0 : i32
    %c0_i32_0 = arith.constant 0 : i32
    %c0_i32_1 = arith.constant 0 : i32
    return %c0_i32, %c0_i32_0 : i32, i32
  }
  func.func @transform_3(%arg0: i32, %arg1: i32) -> (i32, i32) {
    %c0_i32 = arith.constant 0 : i32
    %c0_i32_0 = arith.constant 0 : i32
    %c0_i32_1 = arith.constant 0 : i32
    return %c0_i32, %c0_i32_0 : i32, i32
  }
  func.func @transform_4(%arg0: i32, %arg1: i32) -> (i32, i32) {
    %c0_i32 = arith.constant 0 : i32
    %c0_i32_0 = arith.constant 0 : i32
    %c0_i32_1 = arith.constant 0 : i32
    return %c0_i32, %c0_i32_0 : i32, i32
  }
  func.func @transform_5(%arg0: i32, %arg1: i32) -> (i32, i32) {
    %c0_i32 = arith.constant 0 : i32
    %c0_i32_0 = arith.constant 0 : i32
    %c0_i32_1 = arith.constant 0 : i32
    return %c0_i32, %c0_i32_0 : i32, i32
  }
  func.func @transform_6(%arg0: i32, %arg1: i32) -> (i32, i32) {
    %c0_i32 = arith.constant 0 : i32
    %c0_i32_0 = arith.constant 0 : i32
    %c0_i32_1 = arith.constant 0 : i32
    return %c0_i32, %c0_i32_0 : i32, i32
  }
  func.func @transform_7(%arg0: i32, %arg1: i32) -> (i32, i32) {
    %c0_i32 = arith.constant 0 : i32
    %c0_i32_0 = arith.constant 0 : i32
    return %arg0, %c0_i32 : i32, i32
  }
}

module attributes {stable_mosaic.version = 11 : i64} {
  func.func @kernel(%arg0: i32, %arg1: i32, %arg2: memref<8x16x128xbf16, #tpu.memory_space<vmem>>, %arg3: memref<128x128xbf16, #tpu.memory_space<vmem>>, %arg4: memref<1x128xf32, #tpu.memory_space<vmem>>, %arg5: memref<128x128xbf16, #tpu.memory_space<vmem>>, %arg6: memref<1x128xf32, #tpu.memory_space<vmem>>, %arg7: memref<128x128xbf16, #tpu.memory_space<vmem>>, %arg8: memref<1x128xf32, #tpu.memory_space<vmem>>, %arg9: memref<16x128xf32, #tpu.memory_space<vmem>>, %arg10: memref<16x128xf32, #tpu.memory_space<vmem>>, %arg11: memref<16x128xf32, #tpu.memory_space<vmem>>, %arg12: memref<16x128xf32, #tpu.memory_space<vmem>>, %arg13: memref<16x128xf32, #tpu.memory_space<vmem>>, %arg14: memref<16x128xf32, #tpu.memory_space<vmem>>, %arg15: memref<16x128xf32, #tpu.memory_space<vmem>>, %arg16: memref<16x128xf32, #tpu.memory_space<vmem>>, %arg17: memref<16x128xf32, #tpu.memory_space<vmem>>, %arg18: memref<16x128xf32, #tpu.memory_space<vmem>>) attributes {dimension_semantics = [#tpu.dimension_semantics<parallel>, #tpu.dimension_semantics<arbitrary>], iteration_bounds = array<i64: 1, 1>, scalar_prefetch = 0 : i64, scratch_operands = 9 : i64, tpu.core_type = #tpu.core_type<tc>, window_params = [{transform_indices = @transform_0, window_bounds = array<i64: 8, 16, 128>}, {pipeline_mode = #tpu.pipeline_mode<synchronous>, transform_indices = @transform_1, window_bounds = array<i64: 128, 128>}, {pipeline_mode = #tpu.pipeline_mode<synchronous>, transform_indices = @transform_2, window_bounds = array<i64: 1, 128>}, {pipeline_mode = #tpu.pipeline_mode<synchronous>, transform_indices = @transform_3, window_bounds = array<i64: 128, 128>}, {pipeline_mode = #tpu.pipeline_mode<synchronous>, transform_indices = @transform_4, window_bounds = array<i64: 1, 128>}, {pipeline_mode = #tpu.pipeline_mode<synchronous>, transform_indices = @transform_5, window_bounds = array<i64: 128, 128>}, {pipeline_mode = #tpu.pipeline_mode<synchronous>, transform_indices = @transform_6, window_bounds = array<i64: 1, 128>}, {transform_indices = @transform_7, window_bounds = array<i64: 16, 128>}]} {
    %c0_i32 = arith.constant 0 : i32
    %0 = arith.cmpi eq, %arg1, %c0_i32 : i32
    %1 = arith.extui %0 : i1 to i32
    %c0_i32_0 = arith.constant 0 : i32
    %2 = arith.cmpi ne, %1, %c0_i32_0 : i32
    scf.if %2 {
      %cst_494 = arith.constant 0.000000e+00 : f32
      %724 = vector.broadcast %cst_494 : f32 to vector<16x128xf32>
      %c0_495 = arith.constant 0 : index
      %c0_496 = arith.constant 0 : index
      %725 = vector.load %arg10[%c0_495, %c0_496] : memref<16x128xf32, #tpu.memory_space<vmem>>, vector<16x128xf32>
      tpu.vector_store %arg10[%c0_495, %c0_496], %724 {strides = array<i32>} : memref<16x128xf32, #tpu.memory_space<vmem>>, vector<16x128xf32>,
      %cst_497 = arith.constant 0.000000e+00 : f32
      %726 = vector.broadcast %cst_497 : f32 to vector<16x128xf32>
      %c0_498 = arith.constant 0 : index
      %c0_499 = arith.constant 0 : index
      %727 = vector.load %arg11[%c0_498, %c0_499] : memref<16x128xf32, #tpu.memory_space<vmem>>, vector<16x128xf32>
      tpu.vector_store %arg11[%c0_498, %c0_499], %726 {strides = array<i32>} : memref<16x128xf32, #tpu.memory_space<vmem>>, vector<16x128xf32>,
      %cst_500 = arith.constant 0.000000e+00 : f32
      %728 = vector.broadcast %cst_500 : f32 to vector<16x128xf32>
      %c0_501 = arith.constant 0 : index
      %c0_502 = arith.constant 0 : index
      %729 = vector.load %arg12[%c0_501, %c0_502] : memref<16x128xf32, #tpu.memory_space<vmem>>, vector<16x128xf32>
      tpu.vector_store %arg12[%c0_501, %c0_502], %728 {strides = array<i32>} : memref<16x128xf32, #tpu.memory_space<vmem>>, vector<16x128xf32>,
      %cst_503 = arith.constant 0.000000e+00 : f32
      %730 = vector.broadcast %cst_503 : f32 to vector<16x128xf32>
      %c0_504 = arith.constant 0 : index
      %c0_505 = arith.constant 0 : index
      %731 = vector.load %arg13[%c0_504, %c0_505] : memref<16x128xf32, #tpu.memory_space<vmem>>, vector<16x128xf32>
      tpu.vector_store %arg13[%c0_504, %c0_505], %730 {strides = array<i32>} : memref<16x128xf32, #tpu.memory_space<vmem>>, vector<16x128xf32>,
      %cst_506 = arith.constant 0.000000e+00 : f32
      %732 = vector.broadcast %cst_506 : f32 to vector<16x128xf32>
      %c0_507 = arith.constant 0 : index
      %c0_508 = arith.constant 0 : index
      %733 = vector.load %arg14[%c0_507, %c0_508] : memref<16x128xf32, #tpu.memory_space<vmem>>, vector<16x128xf32>
      tpu.vector_store %arg14[%c0_507, %c0_508], %732 {strides = array<i32>} : memref<16x128xf32, #tpu.memory_space<vmem>>, vector<16x128xf32>,
      %cst_509 = arith.constant 0.000000e+00 : f32
      %734 = vector.broadcast %cst_509 : f32 to vector<16x128xf32>
      %c0_510 = arith.constant 0 : index
      %c0_511 = arith.constant 0 : index
      %735 = vector.load %arg15[%c0_510, %c0_511] : memref<16x128xf32, #tpu.memory_space<vmem>>, vector<16x128xf32>
      tpu.vector_store %arg15[%c0_510, %c0_511], %734 {strides = array<i32>} : memref<16x128xf32, #tpu.memory_space<vmem>>, vector<16x128xf32>,
      %cst_512 = arith.constant 0.000000e+00 : f32
      %736 = vector.broadcast %cst_512 : f32 to vector<16x128xf32>
      %c0_513 = arith.constant 0 : index
      %c0_514 = arith.constant 0 : index
      %737 = vector.load %arg16[%c0_513, %c0_514] : memref<16x128xf32, #tpu.memory_space<vmem>>, vector<16x128xf32>
      tpu.vector_store %arg16[%c0_513, %c0_514], %736 {strides = array<i32>} : memref<16x128xf32, #tpu.memory_space<vmem>>, vector<16x128xf32>,
      %cst_515 = arith.constant 0.000000e+00 : f32
      %738 = vector.broadcast %cst_515 : f32 to vector<16x128xf32>
      %c0_516 = arith.constant 0 : index
      %c0_517 = arith.constant 0 : index
      %739 = vector.load %arg17[%c0_516, %c0_517] : memref<16x128xf32, #tpu.memory_space<vmem>>, vector<16x128xf32>
      tpu.vector_store %arg17[%c0_516, %c0_517], %738 {strides = array<i32>} : memref<16x128xf32, #tpu.memory_space<vmem>>, vector<16x128xf32>,
      %cst_518 = arith.constant 0.000000e+00 : f32
      %740 = vector.broadcast %cst_518 : f32 to vector<16x128xf32>
      %c0_519 = arith.constant 0 : index
      %c0_520 = arith.constant 0 : index
      %741 = vector.load %arg18[%c0_519, %c0_520] : memref<16x128xf32, #tpu.memory_space<vmem>>, vector<16x128xf32>
      tpu.vector_store %arg18[%c0_519, %c0_520], %740 {strides = array<i32>} : memref<16x128xf32, #tpu.memory_space<vmem>>, vector<16x128xf32>,
      %cst_521 = arith.constant 0.000000e+00 : f32
      %742 = vector.broadcast %cst_521 : f32 to vector<16x128xf32>
      %c0_522 = arith.constant 0 : index
      %c0_523 = arith.constant 0 : index
      %743 = vector.load %arg9[%c0_522, %c0_523] : memref<16x128xf32, #tpu.memory_space<vmem>>, vector<16x128xf32>
      tpu.vector_store %arg9[%c0_522, %c0_523], %742 {strides = array<i32>} : memref<16x128xf32, #tpu.memory_space<vmem>>, vector<16x128xf32>,
    } else {
    }
    %c0 = arith.constant 0 : index
    %c0_1 = arith.constant 0 : index
    %3 = vector.load %arg3[%c0, %c0_1] : memref<128x128xbf16, #tpu.memory_space<vmem>>, vector<128x128xbf16>
    %c0_2 = arith.constant 0 : index
    %c0_3 = arith.constant 0 : index
    %4 = vector.load %arg5[%c0_2, %c0_3] : memref<128x128xbf16, #tpu.memory_space<vmem>>, vector<128x128xbf16>
    %c0_4 = arith.constant 0 : index
    %c0_5 = arith.constant 0 : index
    %5 = vector.load %arg7[%c0_4, %c0_5] : memref<128x128xbf16, #tpu.memory_space<vmem>>, vector<128x128xbf16>
    %c0_6 = arith.constant 0 : index
    %c0_7 = arith.constant 0 : index
    %6 = vector.load %arg4[%c0_6, %c0_7] : memref<1x128xf32, #tpu.memory_space<vmem>>, vector<1x128xf32>
    %c0_8 = arith.constant 0 : index
    %c0_9 = arith.constant 0 : index
    %7 = vector.load %arg6[%c0_8, %c0_9] : memref<1x128xf32, #tpu.memory_space<vmem>>, vector<1x128xf32>
    %c0_10 = arith.constant 0 : index
    %c0_11 = arith.constant 0 : index
    %8 = vector.load %arg8[%c0_10, %c0_11] : memref<1x128xf32, #tpu.memory_space<vmem>>, vector<1x128xf32>
    %c0_i32_12 = arith.constant 0 : i32
    %9 = arith.index_cast %c0_i32_12 : i32 to index
    %c0_13 = arith.constant 0 : index
    %c0_14 = arith.constant 0 : index
    %10 = vector.load %arg2[%9, %c0_13, %c0_14] : memref<8x16x128xbf16, #tpu.memory_space<vmem>>, vector<1x16x128xbf16>
    %11 = vector.shape_cast %10 : vector<1x16x128xbf16> to vector<16x128xbf16>
    %cst = arith.constant dense<0.000000e+00> : vector<16x128xf32>
    %12 = tpu.matmul %11, %3, %cst {dimension_numbers = #tpu.dot_dimension_numbers<[1], [0], [0], [1], [0, 0, 1, 1], [], []>} : vector<16x128xbf16>, vector<128x128xbf16>, vector<16x128xf32> -> vector<16x128xf32>
    %13 = vector.broadcast %6 : vector<1x128xf32> to vector<16x128xf32>
    %14 = arith.addf %12, %13 : vector<16x128xf32>
    %c0_15 = arith.constant 0 : index
    %c0_16 = arith.constant 0 : index
    %15 = vector.load %arg10[%c0_15, %c0_16] : memref<16x128xf32, #tpu.memory_space<vmem>>, vector<16x128xf32>
    %cst_17 = arith.constant 5.000000e-01 : f32
    %16 = vector.broadcast %cst_17 : f32 to vector<16x128xf32>
    %17 = arith.mulf %15, %16 : vector<16x128xf32>
    %18 = arith.addf %17, %14 : vector<16x128xf32>
    %c0_18 = arith.constant 0 : index
    %c0_19 = arith.constant 0 : index
    %19 = vector.load %arg11[%c0_18, %c0_19] : memref<16x128xf32, #tpu.memory_space<vmem>>, vector<16x128xf32>
    %cst_20 = arith.constant 7.500000e-01 : f32
    %20 = vector.broadcast %cst_20 : f32 to vector<16x128xf32>
    %21 = arith.mulf %19, %20 : vector<16x128xf32>
    %22 = arith.addf %21, %18 : vector<16x128xf32>
    %c0_21 = arith.constant 0 : index
    %c0_22 = arith.constant 0 : index
    %23 = vector.load %arg12[%c0_21, %c0_22] : memref<16x128xf32, #tpu.memory_space<vmem>>, vector<16x128xf32>
    %cst_23 = arith.constant 2.000000e-01 : f32
    %24 = vector.broadcast %cst_23 : f32 to vector<16x128xf32>
    %25 = arith.mulf %23, %24 : vector<16x128xf32>
    %26 = arith.subf %22, %25 : vector<16x128xf32>
    %cst_24 = arith.constant 2.000000e-01 : f32
    %27 = vector.broadcast %cst_24 : f32 to vector<16x128xf32>
    %28 = arith.cmpf oge, %26, %27 : vector<16x128xf32>
    %29 = arith.extui %28 : vector<16x128xi1> to vector<16x128xi32>
    %30 = arith.sitofp %29 : vector<16x128xi32> to vector<16x128xf32>
    %cst_25 = arith.constant -2.000000e-01 : f32
    %31 = vector.broadcast %cst_25 : f32 to vector<16x128xf32>
    %32 = arith.cmpf ole, %26, %31 : vector<16x128xf32>
    %33 = arith.extui %32 : vector<16x128xi1> to vector<16x128xi32>
    %34 = arith.sitofp %33 : vector<16x128xi32> to vector<16x128xf32>
    %35 = arith.subf %30, %34 : vector<16x128xf32>
    %c0_26 = arith.constant 0 : index
    %c0_27 = arith.constant 0 : index
    %36 = vector.load %arg10[%c0_26, %c0_27] : memref<16x128xf32, #tpu.memory_space<vmem>>, vector<16x128xf32>
    tpu.vector_store %arg10[%c0_26, %c0_27], %18 {strides = array<i32>} : memref<16x128xf32, #tpu.memory_space<vmem>>, vector<16x128xf32>,
    %c0_28 = arith.constant 0 : index
    %c0_29 = arith.constant 0 : index
    %37 = vector.load %arg11[%c0_28, %c0_29] : memref<16x128xf32, #tpu.memory_space<vmem>>, vector<16x128xf32>
    tpu.vector_store %arg11[%c0_28, %c0_29], %26 {strides = array<i32>} : memref<16x128xf32, #tpu.memory_space<vmem>>, vector<16x128xf32>,
    %c0_30 = arith.constant 0 : index
    %c0_31 = arith.constant 0 : index
    %38 = vector.load %arg12[%c0_30, %c0_31] : memref<16x128xf32, #tpu.memory_space<vmem>>, vector<16x128xf32>
    tpu.vector_store %arg12[%c0_30, %c0_31], %35 {strides = array<i32>} : memref<16x128xf32, #tpu.memory_space<vmem>>, vector<16x128xf32>,
    %39 = arith.truncf %35 : vector<16x128xf32> to vector<16x128xbf16>
    %cst_32 = arith.constant dense<0.000000e+00> : vector<16x128xf32>
    %40 = tpu.matmul %39, %4, %cst_32 {dimension_numbers = #tpu.dot_dimension_numbers<[1], [0], [0], [1], [0, 0, 1, 1], [], []>} : vector<16x128xbf16>, vector<128x128xbf16>, vector<16x128xf32> -> vector<16x128xf32>
    %41 = vector.broadcast %7 : vector<1x128xf32> to vector<16x128xf32>
    %42 = arith.addf %40, %41 : vector<16x128xf32>
    %c0_33 = arith.constant 0 : index
    %c0_34 = arith.constant 0 : index
    %43 = vector.load %arg13[%c0_33, %c0_34] : memref<16x128xf32, #tpu.memory_space<vmem>>, vector<16x128xf32>
    %cst_35 = arith.constant 5.000000e-01 : f32
    %44 = vector.broadcast %cst_35 : f32 to vector<16x128xf32>
    %45 = arith.mulf %43, %44 : vector<16x128xf32>
    %46 = arith.addf %45, %42 : vector<16x128xf32>
    %c0_36 = arith.constant 0 : index
    %c0_37 = arith.constant 0 : index
    %47 = vector.load %arg14[%c0_36, %c0_37] : memref<16x128xf32, #tpu.memory_space<vmem>>, vector<16x128xf32>
    %cst_38 = arith.constant 7.500000e-01 : f32
    %48 = vector.broadcast %cst_38 : f32 to vector<16x128xf32>
    %49 = arith.mulf %47, %48 : vector<16x128xf32>
    %50 = arith.addf %49, %46 : vector<16x128xf32>
    %c0_39 = arith.constant 0 : index
    %c0_40 = arith.constant 0 : index
    %51 = vector.load %arg15[%c0_39, %c0_40] : memref<16x128xf32, #tpu.memory_space<vmem>>, vector<16x128xf32>
    %cst_41 = arith.constant 2.000000e-01 : f32
    %52 = vector.broadcast %cst_41 : f32 to vector<16x128xf32>
    %53 = arith.mulf %51, %52 : vector<16x128xf32>
    %54 = arith.subf %50, %53 : vector<16x128xf32>
    %cst_42 = arith.constant 2.000000e-01 : f32
    %55 = vector.broadcast %cst_42 : f32 to vector<16x128xf32>
    %56 = arith.cmpf oge, %54, %55 : vector<16x128xf32>
    %57 = arith.extui %56 : vector<16x128xi1> to vector<16x128xi32>
    %58 = arith.sitofp %57 : vector<16x128xi32> to vector<16x128xf32>
    %cst_43 = arith.constant -2.000000e-01 : f32
    %59 = vector.broadcast %cst_43 : f32 to vector<16x128xf32>
    %60 = arith.cmpf ole, %54, %59 : vector<16x128xf32>
    %61 = arith.extui %60 : vector<16x128xi1> to vector<16x128xi32>
    %62 = arith.sitofp %61 : vector<16x128xi32> to vector<16x128xf32>
    %63 = arith.subf %58, %62 : vector<16x128xf32>
    %c0_44 = arith.constant 0 : index
    %c0_45 = arith.constant 0 : index
    %64 = vector.load %arg13[%c0_44, %c0_45] : memref<16x128xf32, #tpu.memory_space<vmem>>, vector<16x128xf32>
    tpu.vector_store %arg13[%c0_44, %c0_45], %46 {strides = array<i32>} : memref<16x128xf32, #tpu.memory_space<vmem>>, vector<16x128xf32>,
    %c0_46 = arith.constant 0 : index
    %c0_47 = arith.constant 0 : index
    %65 = vector.load %arg14[%c0_46, %c0_47] : memref<16x128xf32, #tpu.memory_space<vmem>>, vector<16x128xf32>
    tpu.vector_store %arg14[%c0_46, %c0_47], %54 {strides = array<i32>} : memref<16x128xf32, #tpu.memory_space<vmem>>, vector<16x128xf32>,
    %c0_48 = arith.constant 0 : index
    %c0_49 = arith.constant 0 : index
    %66 = vector.load %arg15[%c0_48, %c0_49] : memref<16x128xf32, #tpu.memory_space<vmem>>, vector<16x128xf32>
    tpu.vector_store %arg15[%c0_48, %c0_49], %63 {strides = array<i32>} : memref<16x128xf32, #tpu.memory_space<vmem>>, vector<16x128xf32>,
    %67 = arith.truncf %63 : vector<16x128xf32> to vector<16x128xbf16>
    %cst_50 = arith.constant dense<0.000000e+00> : vector<16x128xf32>
    %68 = tpu.matmul %67, %5, %cst_50 {dimension_numbers = #tpu.dot_dimension_numbers<[1], [0], [0], [1], [0, 0, 1, 1], [], []>} : vector<16x128xbf16>, vector<128x128xbf16>, vector<16x128xf32> -> vector<16x128xf32>
    %69 = vector.broadcast %8 : vector<1x128xf32> to vector<16x128xf32>
    %70 = arith.addf %68, %69 : vector<16x128xf32>
    %c0_51 = arith.constant 0 : index
    %c0_52 = arith.constant 0 : index
    %71 = vector.load %arg16[%c0_51, %c0_52] : memref<16x128xf32, #tpu.memory_space<vmem>>, vector<16x128xf32>
    %cst_53 = arith.constant 5.000000e-01 : f32
    %72 = vector.broadcast %cst_53 : f32 to vector<16x128xf32>
    %73 = arith.mulf %71, %72 : vector<16x128xf32>
    %74 = arith.addf %73, %70 : vector<16x128xf32>
    %c0_54 = arith.constant 0 : index
    %c0_55 = arith.constant 0 : index
    %75 = vector.load %arg17[%c0_54, %c0_55] : memref<16x128xf32, #tpu.memory_space<vmem>>, vector<16x128xf32>
    %cst_56 = arith.constant 7.500000e-01 : f32
    %76 = vector.broadcast %cst_56 : f32 to vector<16x128xf32>
    %77 = arith.mulf %75, %76 : vector<16x128xf32>
    %78 = arith.addf %77, %74 : vector<16x128xf32>
    %c0_57 = arith.constant 0 : index
    %c0_58 = arith.constant 0 : index
    %79 = vector.load %arg18[%c0_57, %c0_58] : memref<16x128xf32, #tpu.memory_space<vmem>>, vector<16x128xf32>
    %cst_59 = arith.constant 2.000000e-01 : f32
    %80 = vector.broadcast %cst_59 : f32 to vector<16x128xf32>
    %81 = arith.mulf %79, %80 : vector<16x128xf32>
    %82 = arith.subf %78, %81 : vector<16x128xf32>
    %cst_60 = arith.constant 2.000000e-01 : f32
    %83 = vector.broadcast %cst_60 : f32 to vector<16x128xf32>
    %84 = arith.cmpf oge, %82, %83 : vector<16x128xf32>
    %85 = arith.extui %84 : vector<16x128xi1> to vector<16x128xi32>
    %86 = arith.sitofp %85 : vector<16x128xi32> to vector<16x128xf32>
    %cst_61 = arith.constant -2.000000e-01 : f32
    %87 = vector.broadcast %cst_61 : f32 to vector<16x128xf32>
    %88 = arith.cmpf ole, %82, %87 : vector<16x128xf32>
    %89 = arith.extui %88 : vector<16x128xi1> to vector<16x128xi32>
    %90 = arith.sitofp %89 : vector<16x128xi32> to vector<16x128xf32>
    %91 = arith.subf %86, %90 : vector<16x128xf32>
    %c0_62 = arith.constant 0 : index
    %c0_63 = arith.constant 0 : index
    %92 = vector.load %arg16[%c0_62, %c0_63] : memref<16x128xf32, #tpu.memory_space<vmem>>, vector<16x128xf32>
    tpu.vector_store %arg16[%c0_62, %c0_63], %74 {strides = array<i32>} : memref<16x128xf32, #tpu.memory_space<vmem>>, vector<16x128xf32>,
    %c0_64 = arith.constant 0 : index
    %c0_65 = arith.constant 0 : index
    %93 = vector.load %arg17[%c0_64, %c0_65] : memref<16x128xf32, #tpu.memory_space<vmem>>, vector<16x128xf32>
    tpu.vector_store %arg17[%c0_64, %c0_65], %82 {strides = array<i32>} : memref<16x128xf32, #tpu.memory_space<vmem>>, vector<16x128xf32>,
    %c0_66 = arith.constant 0 : index
    %c0_67 = arith.constant 0 : index
    %94 = vector.load %arg18[%c0_66, %c0_67] : memref<16x128xf32, #tpu.memory_space<vmem>>, vector<16x128xf32>
    tpu.vector_store %arg18[%c0_66, %c0_67], %91 {strides = array<i32>} : memref<16x128xf32, #tpu.memory_space<vmem>>, vector<16x128xf32>,
    %c0_68 = arith.constant 0 : index
    %c0_69 = arith.constant 0 : index
    %95 = vector.load %arg9[%c0_68, %c0_69] : memref<16x128xf32, #tpu.memory_space<vmem>>, vector<16x128xf32>
    %96 = arith.addf %95, %91 : vector<16x128xf32>
    %c0_70 = arith.constant 0 : index
    %c0_71 = arith.constant 0 : index
    %97 = vector.load %arg9[%c0_70, %c0_71] : memref<16x128xf32, #tpu.memory_space<vmem>>, vector<16x128xf32>
    tpu.vector_store %arg9[%c0_70, %c0_71], %96 {strides = array<i32>} : memref<16x128xf32, #tpu.memory_space<vmem>>, vector<16x128xf32>,
    %c1_i32 = arith.constant 1 : i32
    %98 = arith.index_cast %c1_i32 : i32 to index
    %c0_72 = arith.constant 0 : index
    %c0_73 = arith.constant 0 : index
    %99 = vector.load %arg2[%98, %c0_72, %c0_73] : memref<8x16x128xbf16, #tpu.memory_space<vmem>>, vector<1x16x128xbf16>
    %100 = vector.shape_cast %99 : vector<1x16x128xbf16> to vector<16x128xbf16>
    %cst_74 = arith.constant dense<0.000000e+00> : vector<16x128xf32>
    %101 = tpu.matmul %100, %3, %cst_74 {dimension_numbers = #tpu.dot_dimension_numbers<[1], [0], [0], [1], [0, 0, 1, 1], [], []>} : vector<16x128xbf16>, vector<128x128xbf16>, vector<16x128xf32> -> vector<16x128xf32>
    %102 = vector.broadcast %6 : vector<1x128xf32> to vector<16x128xf32>
    %103 = arith.addf %101, %102 : vector<16x128xf32>
    %c0_75 = arith.constant 0 : index
    %c0_76 = arith.constant 0 : index
    %104 = vector.load %arg10[%c0_75, %c0_76] : memref<16x128xf32, #tpu.memory_space<vmem>>, vector<16x128xf32>
    %cst_77 = arith.constant 5.000000e-01 : f32
    %105 = vector.broadcast %cst_77 : f32 to vector<16x128xf32>
    %106 = arith.mulf %104, %105 : vector<16x128xf32>
    %107 = arith.addf %106, %103 : vector<16x128xf32>
    %c0_78 = arith.constant 0 : index
    %c0_79 = arith.constant 0 : index
    %108 = vector.load %arg11[%c0_78, %c0_79] : memref<16x128xf32, #tpu.memory_space<vmem>>, vector<16x128xf32>
    %cst_80 = arith.constant 7.500000e-01 : f32
    %109 = vector.broadcast %cst_80 : f32 to vector<16x128xf32>
    %110 = arith.mulf %108, %109 : vector<16x128xf32>
    %111 = arith.addf %110, %107 : vector<16x128xf32>
    %c0_81 = arith.constant 0 : index
    %c0_82 = arith.constant 0 : index
    %112 = vector.load %arg12[%c0_81, %c0_82] : memref<16x128xf32, #tpu.memory_space<vmem>>, vector<16x128xf32>
    %cst_83 = arith.constant 2.000000e-01 : f32
    %113 = vector.broadcast %cst_83 : f32 to vector<16x128xf32>
    %114 = arith.mulf %112, %113 : vector<16x128xf32>
    %115 = arith.subf %111, %114 : vector<16x128xf32>
    %cst_84 = arith.constant 2.000000e-01 : f32
    %116 = vector.broadcast %cst_84 : f32 to vector<16x128xf32>
    %117 = arith.cmpf oge, %115, %116 : vector<16x128xf32>
    %118 = arith.extui %117 : vector<16x128xi1> to vector<16x128xi32>
    %119 = arith.sitofp %118 : vector<16x128xi32> to vector<16x128xf32>
    %cst_85 = arith.constant -2.000000e-01 : f32
    %120 = vector.broadcast %cst_85 : f32 to vector<16x128xf32>
    %121 = arith.cmpf ole, %115, %120 : vector<16x128xf32>
    %122 = arith.extui %121 : vector<16x128xi1> to vector<16x128xi32>
    %123 = arith.sitofp %122 : vector<16x128xi32> to vector<16x128xf32>
    %124 = arith.subf %119, %123 : vector<16x128xf32>
    %c0_86 = arith.constant 0 : index
    %c0_87 = arith.constant 0 : index
    %125 = vector.load %arg10[%c0_86, %c0_87] : memref<16x128xf32, #tpu.memory_space<vmem>>, vector<16x128xf32>
    tpu.vector_store %arg10[%c0_86, %c0_87], %107 {strides = array<i32>} : memref<16x128xf32, #tpu.memory_space<vmem>>, vector<16x128xf32>,
    %c0_88 = arith.constant 0 : index
    %c0_89 = arith.constant 0 : index
    %126 = vector.load %arg11[%c0_88, %c0_89] : memref<16x128xf32, #tpu.memory_space<vmem>>, vector<16x128xf32>
    tpu.vector_store %arg11[%c0_88, %c0_89], %115 {strides = array<i32>} : memref<16x128xf32, #tpu.memory_space<vmem>>, vector<16x128xf32>,
    %c0_90 = arith.constant 0 : index
    %c0_91 = arith.constant 0 : index
    %127 = vector.load %arg12[%c0_90, %c0_91] : memref<16x128xf32, #tpu.memory_space<vmem>>, vector<16x128xf32>
    tpu.vector_store %arg12[%c0_90, %c0_91], %124 {strides = array<i32>} : memref<16x128xf32, #tpu.memory_space<vmem>>, vector<16x128xf32>,
    %128 = arith.truncf %124 : vector<16x128xf32> to vector<16x128xbf16>
    %cst_92 = arith.constant dense<0.000000e+00> : vector<16x128xf32>
    %129 = tpu.matmul %128, %4, %cst_92 {dimension_numbers = #tpu.dot_dimension_numbers<[1], [0], [0], [1], [0, 0, 1, 1], [], []>} : vector<16x128xbf16>, vector<128x128xbf16>, vector<16x128xf32> -> vector<16x128xf32>
    %130 = vector.broadcast %7 : vector<1x128xf32> to vector<16x128xf32>
    %131 = arith.addf %129, %130 : vector<16x128xf32>
    %c0_93 = arith.constant 0 : index
    %c0_94 = arith.constant 0 : index
    %132 = vector.load %arg13[%c0_93, %c0_94] : memref<16x128xf32, #tpu.memory_space<vmem>>, vector<16x128xf32>
    %cst_95 = arith.constant 5.000000e-01 : f32
    %133 = vector.broadcast %cst_95 : f32 to vector<16x128xf32>
    %134 = arith.mulf %132, %133 : vector<16x128xf32>
    %135 = arith.addf %134, %131 : vector<16x128xf32>
    %c0_96 = arith.constant 0 : index
    %c0_97 = arith.constant 0 : index
    %136 = vector.load %arg14[%c0_96, %c0_97] : memref<16x128xf32, #tpu.memory_space<vmem>>, vector<16x128xf32>
    %cst_98 = arith.constant 7.500000e-01 : f32
    %137 = vector.broadcast %cst_98 : f32 to vector<16x128xf32>
    %138 = arith.mulf %136, %137 : vector<16x128xf32>
    %139 = arith.addf %138, %135 : vector<16x128xf32>
    %c0_99 = arith.constant 0 : index
    %c0_100 = arith.constant 0 : index
    %140 = vector.load %arg15[%c0_99, %c0_100] : memref<16x128xf32, #tpu.memory_space<vmem>>, vector<16x128xf32>
    %cst_101 = arith.constant 2.000000e-01 : f32
    %141 = vector.broadcast %cst_101 : f32 to vector<16x128xf32>
    %142 = arith.mulf %140, %141 : vector<16x128xf32>
    %143 = arith.subf %139, %142 : vector<16x128xf32>
    %cst_102 = arith.constant 2.000000e-01 : f32
    %144 = vector.broadcast %cst_102 : f32 to vector<16x128xf32>
    %145 = arith.cmpf oge, %143, %144 : vector<16x128xf32>
    %146 = arith.extui %145 : vector<16x128xi1> to vector<16x128xi32>
    %147 = arith.sitofp %146 : vector<16x128xi32> to vector<16x128xf32>
    %cst_103 = arith.constant -2.000000e-01 : f32
    %148 = vector.broadcast %cst_103 : f32 to vector<16x128xf32>
    %149 = arith.cmpf ole, %143, %148 : vector<16x128xf32>
    %150 = arith.extui %149 : vector<16x128xi1> to vector<16x128xi32>
    %151 = arith.sitofp %150 : vector<16x128xi32> to vector<16x128xf32>
    %152 = arith.subf %147, %151 : vector<16x128xf32>
    %c0_104 = arith.constant 0 : index
    %c0_105 = arith.constant 0 : index
    %153 = vector.load %arg13[%c0_104, %c0_105] : memref<16x128xf32, #tpu.memory_space<vmem>>, vector<16x128xf32>
    tpu.vector_store %arg13[%c0_104, %c0_105], %135 {strides = array<i32>} : memref<16x128xf32, #tpu.memory_space<vmem>>, vector<16x128xf32>,
    %c0_106 = arith.constant 0 : index
    %c0_107 = arith.constant 0 : index
    %154 = vector.load %arg14[%c0_106, %c0_107] : memref<16x128xf32, #tpu.memory_space<vmem>>, vector<16x128xf32>
    tpu.vector_store %arg14[%c0_106, %c0_107], %143 {strides = array<i32>} : memref<16x128xf32, #tpu.memory_space<vmem>>, vector<16x128xf32>,
    %c0_108 = arith.constant 0 : index
    %c0_109 = arith.constant 0 : index
    %155 = vector.load %arg15[%c0_108, %c0_109] : memref<16x128xf32, #tpu.memory_space<vmem>>, vector<16x128xf32>
    tpu.vector_store %arg15[%c0_108, %c0_109], %152 {strides = array<i32>} : memref<16x128xf32, #tpu.memory_space<vmem>>, vector<16x128xf32>,
    %156 = arith.truncf %152 : vector<16x128xf32> to vector<16x128xbf16>
    %cst_110 = arith.constant dense<0.000000e+00> : vector<16x128xf32>
    %157 = tpu.matmul %156, %5, %cst_110 {dimension_numbers = #tpu.dot_dimension_numbers<[1], [0], [0], [1], [0, 0, 1, 1], [], []>} : vector<16x128xbf16>, vector<128x128xbf16>, vector<16x128xf32> -> vector<16x128xf32>
    %158 = vector.broadcast %8 : vector<1x128xf32> to vector<16x128xf32>
    %159 = arith.addf %157, %158 : vector<16x128xf32>
    %c0_111 = arith.constant 0 : index
    %c0_112 = arith.constant 0 : index
    %160 = vector.load %arg16[%c0_111, %c0_112] : memref<16x128xf32, #tpu.memory_space<vmem>>, vector<16x128xf32>
    %cst_113 = arith.constant 5.000000e-01 : f32
    %161 = vector.broadcast %cst_113 : f32 to vector<16x128xf32>
    %162 = arith.mulf %160, %161 : vector<16x128xf32>
    %163 = arith.addf %162, %159 : vector<16x128xf32>
    %c0_114 = arith.constant 0 : index
    %c0_115 = arith.constant 0 : index
    %164 = vector.load %arg17[%c0_114, %c0_115] : memref<16x128xf32, #tpu.memory_space<vmem>>, vector<16x128xf32>
    %cst_116 = arith.constant 7.500000e-01 : f32
    %165 = vector.broadcast %cst_116 : f32 to vector<16x128xf32>
    %166 = arith.mulf %164, %165 : vector<16x128xf32>
    %167 = arith.addf %166, %163 : vector<16x128xf32>
    %c0_117 = arith.constant 0 : index
    %c0_118 = arith.constant 0 : index
    %168 = vector.load %arg18[%c0_117, %c0_118] : memref<16x128xf32, #tpu.memory_space<vmem>>, vector<16x128xf32>
    %cst_119 = arith.constant 2.000000e-01 : f32
    %169 = vector.broadcast %cst_119 : f32 to vector<16x128xf32>
    %170 = arith.mulf %168, %169 : vector<16x128xf32>
    %171 = arith.subf %167, %170 : vector<16x128xf32>
    %cst_120 = arith.constant 2.000000e-01 : f32
    %172 = vector.broadcast %cst_120 : f32 to vector<16x128xf32>
    %173 = arith.cmpf oge, %171, %172 : vector<16x128xf32>
    %174 = arith.extui %173 : vector<16x128xi1> to vector<16x128xi32>
    %175 = arith.sitofp %174 : vector<16x128xi32> to vector<16x128xf32>
    %cst_121 = arith.constant -2.000000e-01 : f32
    %176 = vector.broadcast %cst_121 : f32 to vector<16x128xf32>
    %177 = arith.cmpf ole, %171, %176 : vector<16x128xf32>
    %178 = arith.extui %177 : vector<16x128xi1> to vector<16x128xi32>
    %179 = arith.sitofp %178 : vector<16x128xi32> to vector<16x128xf32>
    %180 = arith.subf %175, %179 : vector<16x128xf32>
    %c0_122 = arith.constant 0 : index
    %c0_123 = arith.constant 0 : index
    %181 = vector.load %arg16[%c0_122, %c0_123] : memref<16x128xf32, #tpu.memory_space<vmem>>, vector<16x128xf32>
    tpu.vector_store %arg16[%c0_122, %c0_123], %163 {strides = array<i32>} : memref<16x128xf32, #tpu.memory_space<vmem>>, vector<16x128xf32>,
    %c0_124 = arith.constant 0 : index
    %c0_125 = arith.constant 0 : index
    %182 = vector.load %arg17[%c0_124, %c0_125] : memref<16x128xf32, #tpu.memory_space<vmem>>, vector<16x128xf32>
    tpu.vector_store %arg17[%c0_124, %c0_125], %171 {strides = array<i32>} : memref<16x128xf32, #tpu.memory_space<vmem>>, vector<16x128xf32>,
    %c0_126 = arith.constant 0 : index
    %c0_127 = arith.constant 0 : index
    %183 = vector.load %arg18[%c0_126, %c0_127] : memref<16x128xf32, #tpu.memory_space<vmem>>, vector<16x128xf32>
    tpu.vector_store %arg18[%c0_126, %c0_127], %180 {strides = array<i32>} : memref<16x128xf32, #tpu.memory_space<vmem>>, vector<16x128xf32>,
    %c0_128 = arith.constant 0 : index
    %c0_129 = arith.constant 0 : index
    %184 = vector.load %arg9[%c0_128, %c0_129] : memref<16x128xf32, #tpu.memory_space<vmem>>, vector<16x128xf32>
    %185 = arith.addf %184, %180 : vector<16x128xf32>
    %c0_130 = arith.constant 0 : index
    %c0_131 = arith.constant 0 : index
    %186 = vector.load %arg9[%c0_130, %c0_131] : memref<16x128xf32, #tpu.memory_space<vmem>>, vector<16x128xf32>
    tpu.vector_store %arg9[%c0_130, %c0_131], %185 {strides = array<i32>} : memref<16x128xf32, #tpu.memory_space<vmem>>, vector<16x128xf32>,
    %c2_i32 = arith.constant 2 : i32
    %187 = arith.index_cast %c2_i32 : i32 to index
    %c0_132 = arith.constant 0 : index
    %c0_133 = arith.constant 0 : index
    %188 = vector.load %arg2[%187, %c0_132, %c0_133] : memref<8x16x128xbf16, #tpu.memory_space<vmem>>, vector<1x16x128xbf16>
    %189 = vector.shape_cast %188 : vector<1x16x128xbf16> to vector<16x128xbf16>
    %cst_134 = arith.constant dense<0.000000e+00> : vector<16x128xf32>
    %190 = tpu.matmul %189, %3, %cst_134 {dimension_numbers = #tpu.dot_dimension_numbers<[1], [0], [0], [1], [0, 0, 1, 1], [], []>} : vector<16x128xbf16>, vector<128x128xbf16>, vector<16x128xf32> -> vector<16x128xf32>
    %191 = vector.broadcast %6 : vector<1x128xf32> to vector<16x128xf32>
    %192 = arith.addf %190, %191 : vector<16x128xf32>
    %c0_135 = arith.constant 0 : index
    %c0_136 = arith.constant 0 : index
    %193 = vector.load %arg10[%c0_135, %c0_136] : memref<16x128xf32, #tpu.memory_space<vmem>>, vector<16x128xf32>
    %cst_137 = arith.constant 5.000000e-01 : f32
    %194 = vector.broadcast %cst_137 : f32 to vector<16x128xf32>
    %195 = arith.mulf %193, %194 : vector<16x128xf32>
    %196 = arith.addf %195, %192 : vector<16x128xf32>
    %c0_138 = arith.constant 0 : index
    %c0_139 = arith.constant 0 : index
    %197 = vector.load %arg11[%c0_138, %c0_139] : memref<16x128xf32, #tpu.memory_space<vmem>>, vector<16x128xf32>
    %cst_140 = arith.constant 7.500000e-01 : f32
    %198 = vector.broadcast %cst_140 : f32 to vector<16x128xf32>
    %199 = arith.mulf %197, %198 : vector<16x128xf32>
    %200 = arith.addf %199, %196 : vector<16x128xf32>
    %c0_141 = arith.constant 0 : index
    %c0_142 = arith.constant 0 : index
    %201 = vector.load %arg12[%c0_141, %c0_142] : memref<16x128xf32, #tpu.memory_space<vmem>>, vector<16x128xf32>
    %cst_143 = arith.constant 2.000000e-01 : f32
    %202 = vector.broadcast %cst_143 : f32 to vector<16x128xf32>
    %203 = arith.mulf %201, %202 : vector<16x128xf32>
    %204 = arith.subf %200, %203 : vector<16x128xf32>
    %cst_144 = arith.constant 2.000000e-01 : f32
    %205 = vector.broadcast %cst_144 : f32 to vector<16x128xf32>
    %206 = arith.cmpf oge, %204, %205 : vector<16x128xf32>
    %207 = arith.extui %206 : vector<16x128xi1> to vector<16x128xi32>
    %208 = arith.sitofp %207 : vector<16x128xi32> to vector<16x128xf32>
    %cst_145 = arith.constant -2.000000e-01 : f32
    %209 = vector.broadcast %cst_145 : f32 to vector<16x128xf32>
    %210 = arith.cmpf ole, %204, %209 : vector<16x128xf32>
    %211 = arith.extui %210 : vector<16x128xi1> to vector<16x128xi32>
    %212 = arith.sitofp %211 : vector<16x128xi32> to vector<16x128xf32>
    %213 = arith.subf %208, %212 : vector<16x128xf32>
    %c0_146 = arith.constant 0 : index
    %c0_147 = arith.constant 0 : index
    %214 = vector.load %arg10[%c0_146, %c0_147] : memref<16x128xf32, #tpu.memory_space<vmem>>, vector<16x128xf32>
    tpu.vector_store %arg10[%c0_146, %c0_147], %196 {strides = array<i32>} : memref<16x128xf32, #tpu.memory_space<vmem>>, vector<16x128xf32>,
    %c0_148 = arith.constant 0 : index
    %c0_149 = arith.constant 0 : index
    %215 = vector.load %arg11[%c0_148, %c0_149] : memref<16x128xf32, #tpu.memory_space<vmem>>, vector<16x128xf32>
    tpu.vector_store %arg11[%c0_148, %c0_149], %204 {strides = array<i32>} : memref<16x128xf32, #tpu.memory_space<vmem>>, vector<16x128xf32>,
    %c0_150 = arith.constant 0 : index
    %c0_151 = arith.constant 0 : index
    %216 = vector.load %arg12[%c0_150, %c0_151] : memref<16x128xf32, #tpu.memory_space<vmem>>, vector<16x128xf32>
    tpu.vector_store %arg12[%c0_150, %c0_151], %213 {strides = array<i32>} : memref<16x128xf32, #tpu.memory_space<vmem>>, vector<16x128xf32>,
    %217 = arith.truncf %213 : vector<16x128xf32> to vector<16x128xbf16>
    %cst_152 = arith.constant dense<0.000000e+00> : vector<16x128xf32>
    %218 = tpu.matmul %217, %4, %cst_152 {dimension_numbers = #tpu.dot_dimension_numbers<[1], [0], [0], [1], [0, 0, 1, 1], [], []>} : vector<16x128xbf16>, vector<128x128xbf16>, vector<16x128xf32> -> vector<16x128xf32>
    %219 = vector.broadcast %7 : vector<1x128xf32> to vector<16x128xf32>
    %220 = arith.addf %218, %219 : vector<16x128xf32>
    %c0_153 = arith.constant 0 : index
    %c0_154 = arith.constant 0 : index
    %221 = vector.load %arg13[%c0_153, %c0_154] : memref<16x128xf32, #tpu.memory_space<vmem>>, vector<16x128xf32>
    %cst_155 = arith.constant 5.000000e-01 : f32
    %222 = vector.broadcast %cst_155 : f32 to vector<16x128xf32>
    %223 = arith.mulf %221, %222 : vector<16x128xf32>
    %224 = arith.addf %223, %220 : vector<16x128xf32>
    %c0_156 = arith.constant 0 : index
    %c0_157 = arith.constant 0 : index
    %225 = vector.load %arg14[%c0_156, %c0_157] : memref<16x128xf32, #tpu.memory_space<vmem>>, vector<16x128xf32>
    %cst_158 = arith.constant 7.500000e-01 : f32
    %226 = vector.broadcast %cst_158 : f32 to vector<16x128xf32>
    %227 = arith.mulf %225, %226 : vector<16x128xf32>
    %228 = arith.addf %227, %224 : vector<16x128xf32>
    %c0_159 = arith.constant 0 : index
    %c0_160 = arith.constant 0 : index
    %229 = vector.load %arg15[%c0_159, %c0_160] : memref<16x128xf32, #tpu.memory_space<vmem>>, vector<16x128xf32>
    %cst_161 = arith.constant 2.000000e-01 : f32
    %230 = vector.broadcast %cst_161 : f32 to vector<16x128xf32>
    %231 = arith.mulf %229, %230 : vector<16x128xf32>
    %232 = arith.subf %228, %231 : vector<16x128xf32>
    %cst_162 = arith.constant 2.000000e-01 : f32
    %233 = vector.broadcast %cst_162 : f32 to vector<16x128xf32>
    %234 = arith.cmpf oge, %232, %233 : vector<16x128xf32>
    %235 = arith.extui %234 : vector<16x128xi1> to vector<16x128xi32>
    %236 = arith.sitofp %235 : vector<16x128xi32> to vector<16x128xf32>
    %cst_163 = arith.constant -2.000000e-01 : f32
    %237 = vector.broadcast %cst_163 : f32 to vector<16x128xf32>
    %238 = arith.cmpf ole, %232, %237 : vector<16x128xf32>
    %239 = arith.extui %238 : vector<16x128xi1> to vector<16x128xi32>
    %240 = arith.sitofp %239 : vector<16x128xi32> to vector<16x128xf32>
    %241 = arith.subf %236, %240 : vector<16x128xf32>
    %c0_164 = arith.constant 0 : index
    %c0_165 = arith.constant 0 : index
    %242 = vector.load %arg13[%c0_164, %c0_165] : memref<16x128xf32, #tpu.memory_space<vmem>>, vector<16x128xf32>
    tpu.vector_store %arg13[%c0_164, %c0_165], %224 {strides = array<i32>} : memref<16x128xf32, #tpu.memory_space<vmem>>, vector<16x128xf32>,
    %c0_166 = arith.constant 0 : index
    %c0_167 = arith.constant 0 : index
    %243 = vector.load %arg14[%c0_166, %c0_167] : memref<16x128xf32, #tpu.memory_space<vmem>>, vector<16x128xf32>
    tpu.vector_store %arg14[%c0_166, %c0_167], %232 {strides = array<i32>} : memref<16x128xf32, #tpu.memory_space<vmem>>, vector<16x128xf32>,
    %c0_168 = arith.constant 0 : index
    %c0_169 = arith.constant 0 : index
    %244 = vector.load %arg15[%c0_168, %c0_169] : memref<16x128xf32, #tpu.memory_space<vmem>>, vector<16x128xf32>
    tpu.vector_store %arg15[%c0_168, %c0_169], %241 {strides = array<i32>} : memref<16x128xf32, #tpu.memory_space<vmem>>, vector<16x128xf32>,
    %245 = arith.truncf %241 : vector<16x128xf32> to vector<16x128xbf16>
    %cst_170 = arith.constant dense<0.000000e+00> : vector<16x128xf32>
    %246 = tpu.matmul %245, %5, %cst_170 {dimension_numbers = #tpu.dot_dimension_numbers<[1], [0], [0], [1], [0, 0, 1, 1], [], []>} : vector<16x128xbf16>, vector<128x128xbf16>, vector<16x128xf32> -> vector<16x128xf32>
    %247 = vector.broadcast %8 : vector<1x128xf32> to vector<16x128xf32>
    %248 = arith.addf %246, %247 : vector<16x128xf32>
    %c0_171 = arith.constant 0 : index
    %c0_172 = arith.constant 0 : index
    %249 = vector.load %arg16[%c0_171, %c0_172] : memref<16x128xf32, #tpu.memory_space<vmem>>, vector<16x128xf32>
    %cst_173 = arith.constant 5.000000e-01 : f32
    %250 = vector.broadcast %cst_173 : f32 to vector<16x128xf32>
    %251 = arith.mulf %249, %250 : vector<16x128xf32>
    %252 = arith.addf %251, %248 : vector<16x128xf32>
    %c0_174 = arith.constant 0 : index
    %c0_175 = arith.constant 0 : index
    %253 = vector.load %arg17[%c0_174, %c0_175] : memref<16x128xf32, #tpu.memory_space<vmem>>, vector<16x128xf32>
    %cst_176 = arith.constant 7.500000e-01 : f32
    %254 = vector.broadcast %cst_176 : f32 to vector<16x128xf32>
    %255 = arith.mulf %253, %254 : vector<16x128xf32>
    %256 = arith.addf %255, %252 : vector<16x128xf32>
    %c0_177 = arith.constant 0 : index
    %c0_178 = arith.constant 0 : index
    %257 = vector.load %arg18[%c0_177, %c0_178] : memref<16x128xf32, #tpu.memory_space<vmem>>, vector<16x128xf32>
    %cst_179 = arith.constant 2.000000e-01 : f32
    %258 = vector.broadcast %cst_179 : f32 to vector<16x128xf32>
    %259 = arith.mulf %257, %258 : vector<16x128xf32>
    %260 = arith.subf %256, %259 : vector<16x128xf32>
    %cst_180 = arith.constant 2.000000e-01 : f32
    %261 = vector.broadcast %cst_180 : f32 to vector<16x128xf32>
    %262 = arith.cmpf oge, %260, %261 : vector<16x128xf32>
    %263 = arith.extui %262 : vector<16x128xi1> to vector<16x128xi32>
    %264 = arith.sitofp %263 : vector<16x128xi32> to vector<16x128xf32>
    %cst_181 = arith.constant -2.000000e-01 : f32
    %265 = vector.broadcast %cst_181 : f32 to vector<16x128xf32>
    %266 = arith.cmpf ole, %260, %265 : vector<16x128xf32>
    %267 = arith.extui %266 : vector<16x128xi1> to vector<16x128xi32>
    %268 = arith.sitofp %267 : vector<16x128xi32> to vector<16x128xf32>
    %269 = arith.subf %264, %268 : vector<16x128xf32>
    %c0_182 = arith.constant 0 : index
    %c0_183 = arith.constant 0 : index
    %270 = vector.load %arg16[%c0_182, %c0_183] : memref<16x128xf32, #tpu.memory_space<vmem>>, vector<16x128xf32>
    tpu.vector_store %arg16[%c0_182, %c0_183], %252 {strides = array<i32>} : memref<16x128xf32, #tpu.memory_space<vmem>>, vector<16x128xf32>,
    %c0_184 = arith.constant 0 : index
    %c0_185 = arith.constant 0 : index
    %271 = vector.load %arg17[%c0_184, %c0_185] : memref<16x128xf32, #tpu.memory_space<vmem>>, vector<16x128xf32>
    tpu.vector_store %arg17[%c0_184, %c0_185], %260 {strides = array<i32>} : memref<16x128xf32, #tpu.memory_space<vmem>>, vector<16x128xf32>,
    %c0_186 = arith.constant 0 : index
    %c0_187 = arith.constant 0 : index
    %272 = vector.load %arg18[%c0_186, %c0_187] : memref<16x128xf32, #tpu.memory_space<vmem>>, vector<16x128xf32>
    tpu.vector_store %arg18[%c0_186, %c0_187], %269 {strides = array<i32>} : memref<16x128xf32, #tpu.memory_space<vmem>>, vector<16x128xf32>,
    %c0_188 = arith.constant 0 : index
    %c0_189 = arith.constant 0 : index
    %273 = vector.load %arg9[%c0_188, %c0_189] : memref<16x128xf32, #tpu.memory_space<vmem>>, vector<16x128xf32>
    %274 = arith.addf %273, %269 : vector<16x128xf32>
    %c0_190 = arith.constant 0 : index
    %c0_191 = arith.constant 0 : index
    %275 = vector.load %arg9[%c0_190, %c0_191] : memref<16x128xf32, #tpu.memory_space<vmem>>, vector<16x128xf32>
    tpu.vector_store %arg9[%c0_190, %c0_191], %274 {strides = array<i32>} : memref<16x128xf32, #tpu.memory_space<vmem>>, vector<16x128xf32>,
    %c3_i32 = arith.constant 3 : i32
    %276 = arith.index_cast %c3_i32 : i32 to index
    %c0_192 = arith.constant 0 : index
    %c0_193 = arith.constant 0 : index
    %277 = vector.load %arg2[%276, %c0_192, %c0_193] : memref<8x16x128xbf16, #tpu.memory_space<vmem>>, vector<1x16x128xbf16>
    %278 = vector.shape_cast %277 : vector<1x16x128xbf16> to vector<16x128xbf16>
    %cst_194 = arith.constant dense<0.000000e+00> : vector<16x128xf32>
    %279 = tpu.matmul %278, %3, %cst_194 {dimension_numbers = #tpu.dot_dimension_numbers<[1], [0], [0], [1], [0, 0, 1, 1], [], []>} : vector<16x128xbf16>, vector<128x128xbf16>, vector<16x128xf32> -> vector<16x128xf32>
    %280 = vector.broadcast %6 : vector<1x128xf32> to vector<16x128xf32>
    %281 = arith.addf %279, %280 : vector<16x128xf32>
    %c0_195 = arith.constant 0 : index
    %c0_196 = arith.constant 0 : index
    %282 = vector.load %arg10[%c0_195, %c0_196] : memref<16x128xf32, #tpu.memory_space<vmem>>, vector<16x128xf32>
    %cst_197 = arith.constant 5.000000e-01 : f32
    %283 = vector.broadcast %cst_197 : f32 to vector<16x128xf32>
    %284 = arith.mulf %282, %283 : vector<16x128xf32>
    %285 = arith.addf %284, %281 : vector<16x128xf32>
    %c0_198 = arith.constant 0 : index
    %c0_199 = arith.constant 0 : index
    %286 = vector.load %arg11[%c0_198, %c0_199] : memref<16x128xf32, #tpu.memory_space<vmem>>, vector<16x128xf32>
    %cst_200 = arith.constant 7.500000e-01 : f32
    %287 = vector.broadcast %cst_200 : f32 to vector<16x128xf32>
    %288 = arith.mulf %286, %287 : vector<16x128xf32>
    %289 = arith.addf %288, %285 : vector<16x128xf32>
    %c0_201 = arith.constant 0 : index
    %c0_202 = arith.constant 0 : index
    %290 = vector.load %arg12[%c0_201, %c0_202] : memref<16x128xf32, #tpu.memory_space<vmem>>, vector<16x128xf32>
    %cst_203 = arith.constant 2.000000e-01 : f32
    %291 = vector.broadcast %cst_203 : f32 to vector<16x128xf32>
    %292 = arith.mulf %290, %291 : vector<16x128xf32>
    %293 = arith.subf %289, %292 : vector<16x128xf32>
    %cst_204 = arith.constant 2.000000e-01 : f32
    %294 = vector.broadcast %cst_204 : f32 to vector<16x128xf32>
    %295 = arith.cmpf oge, %293, %294 : vector<16x128xf32>
    %296 = arith.extui %295 : vector<16x128xi1> to vector<16x128xi32>
    %297 = arith.sitofp %296 : vector<16x128xi32> to vector<16x128xf32>
    %cst_205 = arith.constant -2.000000e-01 : f32
    %298 = vector.broadcast %cst_205 : f32 to vector<16x128xf32>
    %299 = arith.cmpf ole, %293, %298 : vector<16x128xf32>
    %300 = arith.extui %299 : vector<16x128xi1> to vector<16x128xi32>
    %301 = arith.sitofp %300 : vector<16x128xi32> to vector<16x128xf32>
    %302 = arith.subf %297, %301 : vector<16x128xf32>
    %c0_206 = arith.constant 0 : index
    %c0_207 = arith.constant 0 : index
    %303 = vector.load %arg10[%c0_206, %c0_207] : memref<16x128xf32, #tpu.memory_space<vmem>>, vector<16x128xf32>
    tpu.vector_store %arg10[%c0_206, %c0_207], %285 {strides = array<i32>} : memref<16x128xf32, #tpu.memory_space<vmem>>, vector<16x128xf32>,
    %c0_208 = arith.constant 0 : index
    %c0_209 = arith.constant 0 : index
    %304 = vector.load %arg11[%c0_208, %c0_209] : memref<16x128xf32, #tpu.memory_space<vmem>>, vector<16x128xf32>
    tpu.vector_store %arg11[%c0_208, %c0_209], %293 {strides = array<i32>} : memref<16x128xf32, #tpu.memory_space<vmem>>, vector<16x128xf32>,
    %c0_210 = arith.constant 0 : index
    %c0_211 = arith.constant 0 : index
    %305 = vector.load %arg12[%c0_210, %c0_211] : memref<16x128xf32, #tpu.memory_space<vmem>>, vector<16x128xf32>
    tpu.vector_store %arg12[%c0_210, %c0_211], %302 {strides = array<i32>} : memref<16x128xf32, #tpu.memory_space<vmem>>, vector<16x128xf32>,
    %306 = arith.truncf %302 : vector<16x128xf32> to vector<16x128xbf16>
    %cst_212 = arith.constant dense<0.000000e+00> : vector<16x128xf32>
    %307 = tpu.matmul %306, %4, %cst_212 {dimension_numbers = #tpu.dot_dimension_numbers<[1], [0], [0], [1], [0, 0, 1, 1], [], []>} : vector<16x128xbf16>, vector<128x128xbf16>, vector<16x128xf32> -> vector<16x128xf32>
    %308 = vector.broadcast %7 : vector<1x128xf32> to vector<16x128xf32>
    %309 = arith.addf %307, %308 : vector<16x128xf32>
    %c0_213 = arith.constant 0 : index
    %c0_214 = arith.constant 0 : index
    %310 = vector.load %arg13[%c0_213, %c0_214] : memref<16x128xf32, #tpu.memory_space<vmem>>, vector<16x128xf32>
    %cst_215 = arith.constant 5.000000e-01 : f32
    %311 = vector.broadcast %cst_215 : f32 to vector<16x128xf32>
    %312 = arith.mulf %310, %311 : vector<16x128xf32>
    %313 = arith.addf %312, %309 : vector<16x128xf32>
    %c0_216 = arith.constant 0 : index
    %c0_217 = arith.constant 0 : index
    %314 = vector.load %arg14[%c0_216, %c0_217] : memref<16x128xf32, #tpu.memory_space<vmem>>, vector<16x128xf32>
    %cst_218 = arith.constant 7.500000e-01 : f32
    %315 = vector.broadcast %cst_218 : f32 to vector<16x128xf32>
    %316 = arith.mulf %314, %315 : vector<16x128xf32>
    %317 = arith.addf %316, %313 : vector<16x128xf32>
    %c0_219 = arith.constant 0 : index
    %c0_220 = arith.constant 0 : index
    %318 = vector.load %arg15[%c0_219, %c0_220] : memref<16x128xf32, #tpu.memory_space<vmem>>, vector<16x128xf32>
    %cst_221 = arith.constant 2.000000e-01 : f32
    %319 = vector.broadcast %cst_221 : f32 to vector<16x128xf32>
    %320 = arith.mulf %318, %319 : vector<16x128xf32>
    %321 = arith.subf %317, %320 : vector<16x128xf32>
    %cst_222 = arith.constant 2.000000e-01 : f32
    %322 = vector.broadcast %cst_222 : f32 to vector<16x128xf32>
    %323 = arith.cmpf oge, %321, %322 : vector<16x128xf32>
    %324 = arith.extui %323 : vector<16x128xi1> to vector<16x128xi32>
    %325 = arith.sitofp %324 : vector<16x128xi32> to vector<16x128xf32>
    %cst_223 = arith.constant -2.000000e-01 : f32
    %326 = vector.broadcast %cst_223 : f32 to vector<16x128xf32>
    %327 = arith.cmpf ole, %321, %326 : vector<16x128xf32>
    %328 = arith.extui %327 : vector<16x128xi1> to vector<16x128xi32>
    %329 = arith.sitofp %328 : vector<16x128xi32> to vector<16x128xf32>
    %330 = arith.subf %325, %329 : vector<16x128xf32>
    %c0_224 = arith.constant 0 : index
    %c0_225 = arith.constant 0 : index
    %331 = vector.load %arg13[%c0_224, %c0_225] : memref<16x128xf32, #tpu.memory_space<vmem>>, vector<16x128xf32>
    tpu.vector_store %arg13[%c0_224, %c0_225], %313 {strides = array<i32>} : memref<16x128xf32, #tpu.memory_space<vmem>>, vector<16x128xf32>,
    %c0_226 = arith.constant 0 : index
    %c0_227 = arith.constant 0 : index
    %332 = vector.load %arg14[%c0_226, %c0_227] : memref<16x128xf32, #tpu.memory_space<vmem>>, vector<16x128xf32>
    tpu.vector_store %arg14[%c0_226, %c0_227], %321 {strides = array<i32>} : memref<16x128xf32, #tpu.memory_space<vmem>>, vector<16x128xf32>,
    %c0_228 = arith.constant 0 : index
    %c0_229 = arith.constant 0 : index
    %333 = vector.load %arg15[%c0_228, %c0_229] : memref<16x128xf32, #tpu.memory_space<vmem>>, vector<16x128xf32>
    tpu.vector_store %arg15[%c0_228, %c0_229], %330 {strides = array<i32>} : memref<16x128xf32, #tpu.memory_space<vmem>>, vector<16x128xf32>,
    %334 = arith.truncf %330 : vector<16x128xf32> to vector<16x128xbf16>
    %cst_230 = arith.constant dense<0.000000e+00> : vector<16x128xf32>
    %335 = tpu.matmul %334, %5, %cst_230 {dimension_numbers = #tpu.dot_dimension_numbers<[1], [0], [0], [1], [0, 0, 1, 1], [], []>} : vector<16x128xbf16>, vector<128x128xbf16>, vector<16x128xf32> -> vector<16x128xf32>
    %336 = vector.broadcast %8 : vector<1x128xf32> to vector<16x128xf32>
    %337 = arith.addf %335, %336 : vector<16x128xf32>
    %c0_231 = arith.constant 0 : index
    %c0_232 = arith.constant 0 : index
    %338 = vector.load %arg16[%c0_231, %c0_232] : memref<16x128xf32, #tpu.memory_space<vmem>>, vector<16x128xf32>
    %cst_233 = arith.constant 5.000000e-01 : f32
    %339 = vector.broadcast %cst_233 : f32 to vector<16x128xf32>
    %340 = arith.mulf %338, %339 : vector<16x128xf32>
    %341 = arith.addf %340, %337 : vector<16x128xf32>
    %c0_234 = arith.constant 0 : index
    %c0_235 = arith.constant 0 : index
    %342 = vector.load %arg17[%c0_234, %c0_235] : memref<16x128xf32, #tpu.memory_space<vmem>>, vector<16x128xf32>
    %cst_236 = arith.constant 7.500000e-01 : f32
    %343 = vector.broadcast %cst_236 : f32 to vector<16x128xf32>
    %344 = arith.mulf %342, %343 : vector<16x128xf32>
    %345 = arith.addf %344, %341 : vector<16x128xf32>
    %c0_237 = arith.constant 0 : index
    %c0_238 = arith.constant 0 : index
    %346 = vector.load %arg18[%c0_237, %c0_238] : memref<16x128xf32, #tpu.memory_space<vmem>>, vector<16x128xf32>
    %cst_239 = arith.constant 2.000000e-01 : f32
    %347 = vector.broadcast %cst_239 : f32 to vector<16x128xf32>
    %348 = arith.mulf %346, %347 : vector<16x128xf32>
    %349 = arith.subf %345, %348 : vector<16x128xf32>
    %cst_240 = arith.constant 2.000000e-01 : f32
    %350 = vector.broadcast %cst_240 : f32 to vector<16x128xf32>
    %351 = arith.cmpf oge, %349, %350 : vector<16x128xf32>
    %352 = arith.extui %351 : vector<16x128xi1> to vector<16x128xi32>
    %353 = arith.sitofp %352 : vector<16x128xi32> to vector<16x128xf32>
    %cst_241 = arith.constant -2.000000e-01 : f32
    %354 = vector.broadcast %cst_241 : f32 to vector<16x128xf32>
    %355 = arith.cmpf ole, %349, %354 : vector<16x128xf32>
    %356 = arith.extui %355 : vector<16x128xi1> to vector<16x128xi32>
    %357 = arith.sitofp %356 : vector<16x128xi32> to vector<16x128xf32>
    %358 = arith.subf %353, %357 : vector<16x128xf32>
    %c0_242 = arith.constant 0 : index
    %c0_243 = arith.constant 0 : index
    %359 = vector.load %arg16[%c0_242, %c0_243] : memref<16x128xf32, #tpu.memory_space<vmem>>, vector<16x128xf32>
    tpu.vector_store %arg16[%c0_242, %c0_243], %341 {strides = array<i32>} : memref<16x128xf32, #tpu.memory_space<vmem>>, vector<16x128xf32>,
    %c0_244 = arith.constant 0 : index
    %c0_245 = arith.constant 0 : index
    %360 = vector.load %arg17[%c0_244, %c0_245] : memref<16x128xf32, #tpu.memory_space<vmem>>, vector<16x128xf32>
    tpu.vector_store %arg17[%c0_244, %c0_245], %349 {strides = array<i32>} : memref<16x128xf32, #tpu.memory_space<vmem>>, vector<16x128xf32>,
    %c0_246 = arith.constant 0 : index
    %c0_247 = arith.constant 0 : index
    %361 = vector.load %arg18[%c0_246, %c0_247] : memref<16x128xf32, #tpu.memory_space<vmem>>, vector<16x128xf32>
    tpu.vector_store %arg18[%c0_246, %c0_247], %358 {strides = array<i32>} : memref<16x128xf32, #tpu.memory_space<vmem>>, vector<16x128xf32>,
    %c0_248 = arith.constant 0 : index
    %c0_249 = arith.constant 0 : index
    %362 = vector.load %arg9[%c0_248, %c0_249] : memref<16x128xf32, #tpu.memory_space<vmem>>, vector<16x128xf32>
    %363 = arith.addf %362, %358 : vector<16x128xf32>
    %c0_250 = arith.constant 0 : index
    %c0_251 = arith.constant 0 : index
    %364 = vector.load %arg9[%c0_250, %c0_251] : memref<16x128xf32, #tpu.memory_space<vmem>>, vector<16x128xf32>
    tpu.vector_store %arg9[%c0_250, %c0_251], %363 {strides = array<i32>} : memref<16x128xf32, #tpu.memory_space<vmem>>, vector<16x128xf32>,
    %c4_i32 = arith.constant 4 : i32
    %365 = arith.index_cast %c4_i32 : i32 to index
    %c0_252 = arith.constant 0 : index
    %c0_253 = arith.constant 0 : index
    %366 = vector.load %arg2[%365, %c0_252, %c0_253] : memref<8x16x128xbf16, #tpu.memory_space<vmem>>, vector<1x16x128xbf16>
    %367 = vector.shape_cast %366 : vector<1x16x128xbf16> to vector<16x128xbf16>
    %cst_254 = arith.constant dense<0.000000e+00> : vector<16x128xf32>
    %368 = tpu.matmul %367, %3, %cst_254 {dimension_numbers = #tpu.dot_dimension_numbers<[1], [0], [0], [1], [0, 0, 1, 1], [], []>} : vector<16x128xbf16>, vector<128x128xbf16>, vector<16x128xf32> -> vector<16x128xf32>
    %369 = vector.broadcast %6 : vector<1x128xf32> to vector<16x128xf32>
    %370 = arith.addf %368, %369 : vector<16x128xf32>
    %c0_255 = arith.constant 0 : index
    %c0_256 = arith.constant 0 : index
    %371 = vector.load %arg10[%c0_255, %c0_256] : memref<16x128xf32, #tpu.memory_space<vmem>>, vector<16x128xf32>
    %cst_257 = arith.constant 5.000000e-01 : f32
    %372 = vector.broadcast %cst_257 : f32 to vector<16x128xf32>
    %373 = arith.mulf %371, %372 : vector<16x128xf32>
    %374 = arith.addf %373, %370 : vector<16x128xf32>
    %c0_258 = arith.constant 0 : index
    %c0_259 = arith.constant 0 : index
    %375 = vector.load %arg11[%c0_258, %c0_259] : memref<16x128xf32, #tpu.memory_space<vmem>>, vector<16x128xf32>
    %cst_260 = arith.constant 7.500000e-01 : f32
    %376 = vector.broadcast %cst_260 : f32 to vector<16x128xf32>
    %377 = arith.mulf %375, %376 : vector<16x128xf32>
    %378 = arith.addf %377, %374 : vector<16x128xf32>
    %c0_261 = arith.constant 0 : index
    %c0_262 = arith.constant 0 : index
    %379 = vector.load %arg12[%c0_261, %c0_262] : memref<16x128xf32, #tpu.memory_space<vmem>>, vector<16x128xf32>
    %cst_263 = arith.constant 2.000000e-01 : f32
    %380 = vector.broadcast %cst_263 : f32 to vector<16x128xf32>
    %381 = arith.mulf %379, %380 : vector<16x128xf32>
    %382 = arith.subf %378, %381 : vector<16x128xf32>
    %cst_264 = arith.constant 2.000000e-01 : f32
    %383 = vector.broadcast %cst_264 : f32 to vector<16x128xf32>
    %384 = arith.cmpf oge, %382, %383 : vector<16x128xf32>
    %385 = arith.extui %384 : vector<16x128xi1> to vector<16x128xi32>
    %386 = arith.sitofp %385 : vector<16x128xi32> to vector<16x128xf32>
    %cst_265 = arith.constant -2.000000e-01 : f32
    %387 = vector.broadcast %cst_265 : f32 to vector<16x128xf32>
    %388 = arith.cmpf ole, %382, %387 : vector<16x128xf32>
    %389 = arith.extui %388 : vector<16x128xi1> to vector<16x128xi32>
    %390 = arith.sitofp %389 : vector<16x128xi32> to vector<16x128xf32>
    %391 = arith.subf %386, %390 : vector<16x128xf32>
    %c0_266 = arith.constant 0 : index
    %c0_267 = arith.constant 0 : index
    %392 = vector.load %arg10[%c0_266, %c0_267] : memref<16x128xf32, #tpu.memory_space<vmem>>, vector<16x128xf32>
    tpu.vector_store %arg10[%c0_266, %c0_267], %374 {strides = array<i32>} : memref<16x128xf32, #tpu.memory_space<vmem>>, vector<16x128xf32>,
    %c0_268 = arith.constant 0 : index
    %c0_269 = arith.constant 0 : index
    %393 = vector.load %arg11[%c0_268, %c0_269] : memref<16x128xf32, #tpu.memory_space<vmem>>, vector<16x128xf32>
    tpu.vector_store %arg11[%c0_268, %c0_269], %382 {strides = array<i32>} : memref<16x128xf32, #tpu.memory_space<vmem>>, vector<16x128xf32>,
    %c0_270 = arith.constant 0 : index
    %c0_271 = arith.constant 0 : index
    %394 = vector.load %arg12[%c0_270, %c0_271] : memref<16x128xf32, #tpu.memory_space<vmem>>, vector<16x128xf32>
    tpu.vector_store %arg12[%c0_270, %c0_271], %391 {strides = array<i32>} : memref<16x128xf32, #tpu.memory_space<vmem>>, vector<16x128xf32>,
    %395 = arith.truncf %391 : vector<16x128xf32> to vector<16x128xbf16>
    %cst_272 = arith.constant dense<0.000000e+00> : vector<16x128xf32>
    %396 = tpu.matmul %395, %4, %cst_272 {dimension_numbers = #tpu.dot_dimension_numbers<[1], [0], [0], [1], [0, 0, 1, 1], [], []>} : vector<16x128xbf16>, vector<128x128xbf16>, vector<16x128xf32> -> vector<16x128xf32>
    %397 = vector.broadcast %7 : vector<1x128xf32> to vector<16x128xf32>
    %398 = arith.addf %396, %397 : vector<16x128xf32>
    %c0_273 = arith.constant 0 : index
    %c0_274 = arith.constant 0 : index
    %399 = vector.load %arg13[%c0_273, %c0_274] : memref<16x128xf32, #tpu.memory_space<vmem>>, vector<16x128xf32>
    %cst_275 = arith.constant 5.000000e-01 : f32
    %400 = vector.broadcast %cst_275 : f32 to vector<16x128xf32>
    %401 = arith.mulf %399, %400 : vector<16x128xf32>
    %402 = arith.addf %401, %398 : vector<16x128xf32>
    %c0_276 = arith.constant 0 : index
    %c0_277 = arith.constant 0 : index
    %403 = vector.load %arg14[%c0_276, %c0_277] : memref<16x128xf32, #tpu.memory_space<vmem>>, vector<16x128xf32>
    %cst_278 = arith.constant 7.500000e-01 : f32
    %404 = vector.broadcast %cst_278 : f32 to vector<16x128xf32>
    %405 = arith.mulf %403, %404 : vector<16x128xf32>
    %406 = arith.addf %405, %402 : vector<16x128xf32>
    %c0_279 = arith.constant 0 : index
    %c0_280 = arith.constant 0 : index
    %407 = vector.load %arg15[%c0_279, %c0_280] : memref<16x128xf32, #tpu.memory_space<vmem>>, vector<16x128xf32>
    %cst_281 = arith.constant 2.000000e-01 : f32
    %408 = vector.broadcast %cst_281 : f32 to vector<16x128xf32>
    %409 = arith.mulf %407, %408 : vector<16x128xf32>
    %410 = arith.subf %406, %409 : vector<16x128xf32>
    %cst_282 = arith.constant 2.000000e-01 : f32
    %411 = vector.broadcast %cst_282 : f32 to vector<16x128xf32>
    %412 = arith.cmpf oge, %410, %411 : vector<16x128xf32>
    %413 = arith.extui %412 : vector<16x128xi1> to vector<16x128xi32>
    %414 = arith.sitofp %413 : vector<16x128xi32> to vector<16x128xf32>
    %cst_283 = arith.constant -2.000000e-01 : f32
    %415 = vector.broadcast %cst_283 : f32 to vector<16x128xf32>
    %416 = arith.cmpf ole, %410, %415 : vector<16x128xf32>
    %417 = arith.extui %416 : vector<16x128xi1> to vector<16x128xi32>
    %418 = arith.sitofp %417 : vector<16x128xi32> to vector<16x128xf32>
    %419 = arith.subf %414, %418 : vector<16x128xf32>
    %c0_284 = arith.constant 0 : index
    %c0_285 = arith.constant 0 : index
    %420 = vector.load %arg13[%c0_284, %c0_285] : memref<16x128xf32, #tpu.memory_space<vmem>>, vector<16x128xf32>
    tpu.vector_store %arg13[%c0_284, %c0_285], %402 {strides = array<i32>} : memref<16x128xf32, #tpu.memory_space<vmem>>, vector<16x128xf32>,
    %c0_286 = arith.constant 0 : index
    %c0_287 = arith.constant 0 : index
    %421 = vector.load %arg14[%c0_286, %c0_287] : memref<16x128xf32, #tpu.memory_space<vmem>>, vector<16x128xf32>
    tpu.vector_store %arg14[%c0_286, %c0_287], %410 {strides = array<i32>} : memref<16x128xf32, #tpu.memory_space<vmem>>, vector<16x128xf32>,
    %c0_288 = arith.constant 0 : index
    %c0_289 = arith.constant 0 : index
    %422 = vector.load %arg15[%c0_288, %c0_289] : memref<16x128xf32, #tpu.memory_space<vmem>>, vector<16x128xf32>
    tpu.vector_store %arg15[%c0_288, %c0_289], %419 {strides = array<i32>} : memref<16x128xf32, #tpu.memory_space<vmem>>, vector<16x128xf32>,
    %423 = arith.truncf %419 : vector<16x128xf32> to vector<16x128xbf16>
    %cst_290 = arith.constant dense<0.000000e+00> : vector<16x128xf32>
    %424 = tpu.matmul %423, %5, %cst_290 {dimension_numbers = #tpu.dot_dimension_numbers<[1], [0], [0], [1], [0, 0, 1, 1], [], []>} : vector<16x128xbf16>, vector<128x128xbf16>, vector<16x128xf32> -> vector<16x128xf32>
    %425 = vector.broadcast %8 : vector<1x128xf32> to vector<16x128xf32>
    %426 = arith.addf %424, %425 : vector<16x128xf32>
    %c0_291 = arith.constant 0 : index
    %c0_292 = arith.constant 0 : index
    %427 = vector.load %arg16[%c0_291, %c0_292] : memref<16x128xf32, #tpu.memory_space<vmem>>, vector<16x128xf32>
    %cst_293 = arith.constant 5.000000e-01 : f32
    %428 = vector.broadcast %cst_293 : f32 to vector<16x128xf32>
    %429 = arith.mulf %427, %428 : vector<16x128xf32>
    %430 = arith.addf %429, %426 : vector<16x128xf32>
    %c0_294 = arith.constant 0 : index
    %c0_295 = arith.constant 0 : index
    %431 = vector.load %arg17[%c0_294, %c0_295] : memref<16x128xf32, #tpu.memory_space<vmem>>, vector<16x128xf32>
    %cst_296 = arith.constant 7.500000e-01 : f32
    %432 = vector.broadcast %cst_296 : f32 to vector<16x128xf32>
    %433 = arith.mulf %431, %432 : vector<16x128xf32>
    %434 = arith.addf %433, %430 : vector<16x128xf32>
    %c0_297 = arith.constant 0 : index
    %c0_298 = arith.constant 0 : index
    %435 = vector.load %arg18[%c0_297, %c0_298] : memref<16x128xf32, #tpu.memory_space<vmem>>, vector<16x128xf32>
    %cst_299 = arith.constant 2.000000e-01 : f32
    %436 = vector.broadcast %cst_299 : f32 to vector<16x128xf32>
    %437 = arith.mulf %435, %436 : vector<16x128xf32>
    %438 = arith.subf %434, %437 : vector<16x128xf32>
    %cst_300 = arith.constant 2.000000e-01 : f32
    %439 = vector.broadcast %cst_300 : f32 to vector<16x128xf32>
    %440 = arith.cmpf oge, %438, %439 : vector<16x128xf32>
    %441 = arith.extui %440 : vector<16x128xi1> to vector<16x128xi32>
    %442 = arith.sitofp %441 : vector<16x128xi32> to vector<16x128xf32>
    %cst_301 = arith.constant -2.000000e-01 : f32
    %443 = vector.broadcast %cst_301 : f32 to vector<16x128xf32>
    %444 = arith.cmpf ole, %438, %443 : vector<16x128xf32>
    %445 = arith.extui %444 : vector<16x128xi1> to vector<16x128xi32>
    %446 = arith.sitofp %445 : vector<16x128xi32> to vector<16x128xf32>
    %447 = arith.subf %442, %446 : vector<16x128xf32>
    %c0_302 = arith.constant 0 : index
    %c0_303 = arith.constant 0 : index
    %448 = vector.load %arg16[%c0_302, %c0_303] : memref<16x128xf32, #tpu.memory_space<vmem>>, vector<16x128xf32>
    tpu.vector_store %arg16[%c0_302, %c0_303], %430 {strides = array<i32>} : memref<16x128xf32, #tpu.memory_space<vmem>>, vector<16x128xf32>,
    %c0_304 = arith.constant 0 : index
    %c0_305 = arith.constant 0 : index
    %449 = vector.load %arg17[%c0_304, %c0_305] : memref<16x128xf32, #tpu.memory_space<vmem>>, vector<16x128xf32>
    tpu.vector_store %arg17[%c0_304, %c0_305], %438 {strides = array<i32>} : memref<16x128xf32, #tpu.memory_space<vmem>>, vector<16x128xf32>,
    %c0_306 = arith.constant 0 : index
    %c0_307 = arith.constant 0 : index
    %450 = vector.load %arg18[%c0_306, %c0_307] : memref<16x128xf32, #tpu.memory_space<vmem>>, vector<16x128xf32>
    tpu.vector_store %arg18[%c0_306, %c0_307], %447 {strides = array<i32>} : memref<16x128xf32, #tpu.memory_space<vmem>>, vector<16x128xf32>,
    %c0_308 = arith.constant 0 : index
    %c0_309 = arith.constant 0 : index
    %451 = vector.load %arg9[%c0_308, %c0_309] : memref<16x128xf32, #tpu.memory_space<vmem>>, vector<16x128xf32>
    %452 = arith.addf %451, %447 : vector<16x128xf32>
    %c0_310 = arith.constant 0 : index
    %c0_311 = arith.constant 0 : index
    %453 = vector.load %arg9[%c0_310, %c0_311] : memref<16x128xf32, #tpu.memory_space<vmem>>, vector<16x128xf32>
    tpu.vector_store %arg9[%c0_310, %c0_311], %452 {strides = array<i32>} : memref<16x128xf32, #tpu.memory_space<vmem>>, vector<16x128xf32>,
    %c5_i32 = arith.constant 5 : i32
    %454 = arith.index_cast %c5_i32 : i32 to index
    %c0_312 = arith.constant 0 : index
    %c0_313 = arith.constant 0 : index
    %455 = vector.load %arg2[%454, %c0_312, %c0_313] : memref<8x16x128xbf16, #tpu.memory_space<vmem>>, vector<1x16x128xbf16>
    %456 = vector.shape_cast %455 : vector<1x16x128xbf16> to vector<16x128xbf16>
    %cst_314 = arith.constant dense<0.000000e+00> : vector<16x128xf32>
    %457 = tpu.matmul %456, %3, %cst_314 {dimension_numbers = #tpu.dot_dimension_numbers<[1], [0], [0], [1], [0, 0, 1, 1], [], []>} : vector<16x128xbf16>, vector<128x128xbf16>, vector<16x128xf32> -> vector<16x128xf32>
    %458 = vector.broadcast %6 : vector<1x128xf32> to vector<16x128xf32>
    %459 = arith.addf %457, %458 : vector<16x128xf32>
    %c0_315 = arith.constant 0 : index
    %c0_316 = arith.constant 0 : index
    %460 = vector.load %arg10[%c0_315, %c0_316] : memref<16x128xf32, #tpu.memory_space<vmem>>, vector<16x128xf32>
    %cst_317 = arith.constant 5.000000e-01 : f32
    %461 = vector.broadcast %cst_317 : f32 to vector<16x128xf32>
    %462 = arith.mulf %460, %461 : vector<16x128xf32>
    %463 = arith.addf %462, %459 : vector<16x128xf32>
    %c0_318 = arith.constant 0 : index
    %c0_319 = arith.constant 0 : index
    %464 = vector.load %arg11[%c0_318, %c0_319] : memref<16x128xf32, #tpu.memory_space<vmem>>, vector<16x128xf32>
    %cst_320 = arith.constant 7.500000e-01 : f32
    %465 = vector.broadcast %cst_320 : f32 to vector<16x128xf32>
    %466 = arith.mulf %464, %465 : vector<16x128xf32>
    %467 = arith.addf %466, %463 : vector<16x128xf32>
    %c0_321 = arith.constant 0 : index
    %c0_322 = arith.constant 0 : index
    %468 = vector.load %arg12[%c0_321, %c0_322] : memref<16x128xf32, #tpu.memory_space<vmem>>, vector<16x128xf32>
    %cst_323 = arith.constant 2.000000e-01 : f32
    %469 = vector.broadcast %cst_323 : f32 to vector<16x128xf32>
    %470 = arith.mulf %468, %469 : vector<16x128xf32>
    %471 = arith.subf %467, %470 : vector<16x128xf32>
    %cst_324 = arith.constant 2.000000e-01 : f32
    %472 = vector.broadcast %cst_324 : f32 to vector<16x128xf32>
    %473 = arith.cmpf oge, %471, %472 : vector<16x128xf32>
    %474 = arith.extui %473 : vector<16x128xi1> to vector<16x128xi32>
    %475 = arith.sitofp %474 : vector<16x128xi32> to vector<16x128xf32>
    %cst_325 = arith.constant -2.000000e-01 : f32
    %476 = vector.broadcast %cst_325 : f32 to vector<16x128xf32>
    %477 = arith.cmpf ole, %471, %476 : vector<16x128xf32>
    %478 = arith.extui %477 : vector<16x128xi1> to vector<16x128xi32>
    %479 = arith.sitofp %478 : vector<16x128xi32> to vector<16x128xf32>
    %480 = arith.subf %475, %479 : vector<16x128xf32>
    %c0_326 = arith.constant 0 : index
    %c0_327 = arith.constant 0 : index
    %481 = vector.load %arg10[%c0_326, %c0_327] : memref<16x128xf32, #tpu.memory_space<vmem>>, vector<16x128xf32>
    tpu.vector_store %arg10[%c0_326, %c0_327], %463 {strides = array<i32>} : memref<16x128xf32, #tpu.memory_space<vmem>>, vector<16x128xf32>,
    %c0_328 = arith.constant 0 : index
    %c0_329 = arith.constant 0 : index
    %482 = vector.load %arg11[%c0_328, %c0_329] : memref<16x128xf32, #tpu.memory_space<vmem>>, vector<16x128xf32>
    tpu.vector_store %arg11[%c0_328, %c0_329], %471 {strides = array<i32>} : memref<16x128xf32, #tpu.memory_space<vmem>>, vector<16x128xf32>,
    %c0_330 = arith.constant 0 : index
    %c0_331 = arith.constant 0 : index
    %483 = vector.load %arg12[%c0_330, %c0_331] : memref<16x128xf32, #tpu.memory_space<vmem>>, vector<16x128xf32>
    tpu.vector_store %arg12[%c0_330, %c0_331], %480 {strides = array<i32>} : memref<16x128xf32, #tpu.memory_space<vmem>>, vector<16x128xf32>,
    %484 = arith.truncf %480 : vector<16x128xf32> to vector<16x128xbf16>
    %cst_332 = arith.constant dense<0.000000e+00> : vector<16x128xf32>
    %485 = tpu.matmul %484, %4, %cst_332 {dimension_numbers = #tpu.dot_dimension_numbers<[1], [0], [0], [1], [0, 0, 1, 1], [], []>} : vector<16x128xbf16>, vector<128x128xbf16>, vector<16x128xf32> -> vector<16x128xf32>
    %486 = vector.broadcast %7 : vector<1x128xf32> to vector<16x128xf32>
    %487 = arith.addf %485, %486 : vector<16x128xf32>
    %c0_333 = arith.constant 0 : index
    %c0_334 = arith.constant 0 : index
    %488 = vector.load %arg13[%c0_333, %c0_334] : memref<16x128xf32, #tpu.memory_space<vmem>>, vector<16x128xf32>
    %cst_335 = arith.constant 5.000000e-01 : f32
    %489 = vector.broadcast %cst_335 : f32 to vector<16x128xf32>
    %490 = arith.mulf %488, %489 : vector<16x128xf32>
    %491 = arith.addf %490, %487 : vector<16x128xf32>
    %c0_336 = arith.constant 0 : index
    %c0_337 = arith.constant 0 : index
    %492 = vector.load %arg14[%c0_336, %c0_337] : memref<16x128xf32, #tpu.memory_space<vmem>>, vector<16x128xf32>
    %cst_338 = arith.constant 7.500000e-01 : f32
    %493 = vector.broadcast %cst_338 : f32 to vector<16x128xf32>
    %494 = arith.mulf %492, %493 : vector<16x128xf32>
    %495 = arith.addf %494, %491 : vector<16x128xf32>
    %c0_339 = arith.constant 0 : index
    %c0_340 = arith.constant 0 : index
    %496 = vector.load %arg15[%c0_339, %c0_340] : memref<16x128xf32, #tpu.memory_space<vmem>>, vector<16x128xf32>
    %cst_341 = arith.constant 2.000000e-01 : f32
    %497 = vector.broadcast %cst_341 : f32 to vector<16x128xf32>
    %498 = arith.mulf %496, %497 : vector<16x128xf32>
    %499 = arith.subf %495, %498 : vector<16x128xf32>
    %cst_342 = arith.constant 2.000000e-01 : f32
    %500 = vector.broadcast %cst_342 : f32 to vector<16x128xf32>
    %501 = arith.cmpf oge, %499, %500 : vector<16x128xf32>
    %502 = arith.extui %501 : vector<16x128xi1> to vector<16x128xi32>
    %503 = arith.sitofp %502 : vector<16x128xi32> to vector<16x128xf32>
    %cst_343 = arith.constant -2.000000e-01 : f32
    %504 = vector.broadcast %cst_343 : f32 to vector<16x128xf32>
    %505 = arith.cmpf ole, %499, %504 : vector<16x128xf32>
    %506 = arith.extui %505 : vector<16x128xi1> to vector<16x128xi32>
    %507 = arith.sitofp %506 : vector<16x128xi32> to vector<16x128xf32>
    %508 = arith.subf %503, %507 : vector<16x128xf32>
    %c0_344 = arith.constant 0 : index
    %c0_345 = arith.constant 0 : index
    %509 = vector.load %arg13[%c0_344, %c0_345] : memref<16x128xf32, #tpu.memory_space<vmem>>, vector<16x128xf32>
    tpu.vector_store %arg13[%c0_344, %c0_345], %491 {strides = array<i32>} : memref<16x128xf32, #tpu.memory_space<vmem>>, vector<16x128xf32>,
    %c0_346 = arith.constant 0 : index
    %c0_347 = arith.constant 0 : index
    %510 = vector.load %arg14[%c0_346, %c0_347] : memref<16x128xf32, #tpu.memory_space<vmem>>, vector<16x128xf32>
    tpu.vector_store %arg14[%c0_346, %c0_347], %499 {strides = array<i32>} : memref<16x128xf32, #tpu.memory_space<vmem>>, vector<16x128xf32>,
    %c0_348 = arith.constant 0 : index
    %c0_349 = arith.constant 0 : index
    %511 = vector.load %arg15[%c0_348, %c0_349] : memref<16x128xf32, #tpu.memory_space<vmem>>, vector<16x128xf32>
    tpu.vector_store %arg15[%c0_348, %c0_349], %508 {strides = array<i32>} : memref<16x128xf32, #tpu.memory_space<vmem>>, vector<16x128xf32>,
    %512 = arith.truncf %508 : vector<16x128xf32> to vector<16x128xbf16>
    %cst_350 = arith.constant dense<0.000000e+00> : vector<16x128xf32>
    %513 = tpu.matmul %512, %5, %cst_350 {dimension_numbers = #tpu.dot_dimension_numbers<[1], [0], [0], [1], [0, 0, 1, 1], [], []>} : vector<16x128xbf16>, vector<128x128xbf16>, vector<16x128xf32> -> vector<16x128xf32>
    %514 = vector.broadcast %8 : vector<1x128xf32> to vector<16x128xf32>
    %515 = arith.addf %513, %514 : vector<16x128xf32>
    %c0_351 = arith.constant 0 : index
    %c0_352 = arith.constant 0 : index
    %516 = vector.load %arg16[%c0_351, %c0_352] : memref<16x128xf32, #tpu.memory_space<vmem>>, vector<16x128xf32>
    %cst_353 = arith.constant 5.000000e-01 : f32
    %517 = vector.broadcast %cst_353 : f32 to vector<16x128xf32>
    %518 = arith.mulf %516, %517 : vector<16x128xf32>
    %519 = arith.addf %518, %515 : vector<16x128xf32>
    %c0_354 = arith.constant 0 : index
    %c0_355 = arith.constant 0 : index
    %520 = vector.load %arg17[%c0_354, %c0_355] : memref<16x128xf32, #tpu.memory_space<vmem>>, vector<16x128xf32>
    %cst_356 = arith.constant 7.500000e-01 : f32
    %521 = vector.broadcast %cst_356 : f32 to vector<16x128xf32>
    %522 = arith.mulf %520, %521 : vector<16x128xf32>
    %523 = arith.addf %522, %519 : vector<16x128xf32>
    %c0_357 = arith.constant 0 : index
    %c0_358 = arith.constant 0 : index
    %524 = vector.load %arg18[%c0_357, %c0_358] : memref<16x128xf32, #tpu.memory_space<vmem>>, vector<16x128xf32>
    %cst_359 = arith.constant 2.000000e-01 : f32
    %525 = vector.broadcast %cst_359 : f32 to vector<16x128xf32>
    %526 = arith.mulf %524, %525 : vector<16x128xf32>
    %527 = arith.subf %523, %526 : vector<16x128xf32>
    %cst_360 = arith.constant 2.000000e-01 : f32
    %528 = vector.broadcast %cst_360 : f32 to vector<16x128xf32>
    %529 = arith.cmpf oge, %527, %528 : vector<16x128xf32>
    %530 = arith.extui %529 : vector<16x128xi1> to vector<16x128xi32>
    %531 = arith.sitofp %530 : vector<16x128xi32> to vector<16x128xf32>
    %cst_361 = arith.constant -2.000000e-01 : f32
    %532 = vector.broadcast %cst_361 : f32 to vector<16x128xf32>
    %533 = arith.cmpf ole, %527, %532 : vector<16x128xf32>
    %534 = arith.extui %533 : vector<16x128xi1> to vector<16x128xi32>
    %535 = arith.sitofp %534 : vector<16x128xi32> to vector<16x128xf32>
    %536 = arith.subf %531, %535 : vector<16x128xf32>
    %c0_362 = arith.constant 0 : index
    %c0_363 = arith.constant 0 : index
    %537 = vector.load %arg16[%c0_362, %c0_363] : memref<16x128xf32, #tpu.memory_space<vmem>>, vector<16x128xf32>
    tpu.vector_store %arg16[%c0_362, %c0_363], %519 {strides = array<i32>} : memref<16x128xf32, #tpu.memory_space<vmem>>, vector<16x128xf32>,
    %c0_364 = arith.constant 0 : index
    %c0_365 = arith.constant 0 : index
    %538 = vector.load %arg17[%c0_364, %c0_365] : memref<16x128xf32, #tpu.memory_space<vmem>>, vector<16x128xf32>
    tpu.vector_store %arg17[%c0_364, %c0_365], %527 {strides = array<i32>} : memref<16x128xf32, #tpu.memory_space<vmem>>, vector<16x128xf32>,
    %c0_366 = arith.constant 0 : index
    %c0_367 = arith.constant 0 : index
    %539 = vector.load %arg18[%c0_366, %c0_367] : memref<16x128xf32, #tpu.memory_space<vmem>>, vector<16x128xf32>
    tpu.vector_store %arg18[%c0_366, %c0_367], %536 {strides = array<i32>} : memref<16x128xf32, #tpu.memory_space<vmem>>, vector<16x128xf32>,
    %c0_368 = arith.constant 0 : index
    %c0_369 = arith.constant 0 : index
    %540 = vector.load %arg9[%c0_368, %c0_369] : memref<16x128xf32, #tpu.memory_space<vmem>>, vector<16x128xf32>
    %541 = arith.addf %540, %536 : vector<16x128xf32>
    %c0_370 = arith.constant 0 : index
    %c0_371 = arith.constant 0 : index
    %542 = vector.load %arg9[%c0_370, %c0_371] : memref<16x128xf32, #tpu.memory_space<vmem>>, vector<16x128xf32>
    tpu.vector_store %arg9[%c0_370, %c0_371], %541 {strides = array<i32>} : memref<16x128xf32, #tpu.memory_space<vmem>>, vector<16x128xf32>,
    %c6_i32 = arith.constant 6 : i32
    %543 = arith.index_cast %c6_i32 : i32 to index
    %c0_372 = arith.constant 0 : index
    %c0_373 = arith.constant 0 : index
    %544 = vector.load %arg2[%543, %c0_372, %c0_373] : memref<8x16x128xbf16, #tpu.memory_space<vmem>>, vector<1x16x128xbf16>
    %545 = vector.shape_cast %544 : vector<1x16x128xbf16> to vector<16x128xbf16>
    %cst_374 = arith.constant dense<0.000000e+00> : vector<16x128xf32>
    %546 = tpu.matmul %545, %3, %cst_374 {dimension_numbers = #tpu.dot_dimension_numbers<[1], [0], [0], [1], [0, 0, 1, 1], [], []>} : vector<16x128xbf16>, vector<128x128xbf16>, vector<16x128xf32> -> vector<16x128xf32>
    %547 = vector.broadcast %6 : vector<1x128xf32> to vector<16x128xf32>
    %548 = arith.addf %546, %547 : vector<16x128xf32>
    %c0_375 = arith.constant 0 : index
    %c0_376 = arith.constant 0 : index
    %549 = vector.load %arg10[%c0_375, %c0_376] : memref<16x128xf32, #tpu.memory_space<vmem>>, vector<16x128xf32>
    %cst_377 = arith.constant 5.000000e-01 : f32
    %550 = vector.broadcast %cst_377 : f32 to vector<16x128xf32>
    %551 = arith.mulf %549, %550 : vector<16x128xf32>
    %552 = arith.addf %551, %548 : vector<16x128xf32>
    %c0_378 = arith.constant 0 : index
    %c0_379 = arith.constant 0 : index
    %553 = vector.load %arg11[%c0_378, %c0_379] : memref<16x128xf32, #tpu.memory_space<vmem>>, vector<16x128xf32>
    %cst_380 = arith.constant 7.500000e-01 : f32
    %554 = vector.broadcast %cst_380 : f32 to vector<16x128xf32>
    %555 = arith.mulf %553, %554 : vector<16x128xf32>
    %556 = arith.addf %555, %552 : vector<16x128xf32>
    %c0_381 = arith.constant 0 : index
    %c0_382 = arith.constant 0 : index
    %557 = vector.load %arg12[%c0_381, %c0_382] : memref<16x128xf32, #tpu.memory_space<vmem>>, vector<16x128xf32>
    %cst_383 = arith.constant 2.000000e-01 : f32
    %558 = vector.broadcast %cst_383 : f32 to vector<16x128xf32>
    %559 = arith.mulf %557, %558 : vector<16x128xf32>
    %560 = arith.subf %556, %559 : vector<16x128xf32>
    %cst_384 = arith.constant 2.000000e-01 : f32
    %561 = vector.broadcast %cst_384 : f32 to vector<16x128xf32>
    %562 = arith.cmpf oge, %560, %561 : vector<16x128xf32>
    %563 = arith.extui %562 : vector<16x128xi1> to vector<16x128xi32>
    %564 = arith.sitofp %563 : vector<16x128xi32> to vector<16x128xf32>
    %cst_385 = arith.constant -2.000000e-01 : f32
    %565 = vector.broadcast %cst_385 : f32 to vector<16x128xf32>
    %566 = arith.cmpf ole, %560, %565 : vector<16x128xf32>
    %567 = arith.extui %566 : vector<16x128xi1> to vector<16x128xi32>
    %568 = arith.sitofp %567 : vector<16x128xi32> to vector<16x128xf32>
    %569 = arith.subf %564, %568 : vector<16x128xf32>
    %c0_386 = arith.constant 0 : index
    %c0_387 = arith.constant 0 : index
    %570 = vector.load %arg10[%c0_386, %c0_387] : memref<16x128xf32, #tpu.memory_space<vmem>>, vector<16x128xf32>
    tpu.vector_store %arg10[%c0_386, %c0_387], %552 {strides = array<i32>} : memref<16x128xf32, #tpu.memory_space<vmem>>, vector<16x128xf32>,
    %c0_388 = arith.constant 0 : index
    %c0_389 = arith.constant 0 : index
    %571 = vector.load %arg11[%c0_388, %c0_389] : memref<16x128xf32, #tpu.memory_space<vmem>>, vector<16x128xf32>
    tpu.vector_store %arg11[%c0_388, %c0_389], %560 {strides = array<i32>} : memref<16x128xf32, #tpu.memory_space<vmem>>, vector<16x128xf32>,
    %c0_390 = arith.constant 0 : index
    %c0_391 = arith.constant 0 : index
    %572 = vector.load %arg12[%c0_390, %c0_391] : memref<16x128xf32, #tpu.memory_space<vmem>>, vector<16x128xf32>
    tpu.vector_store %arg12[%c0_390, %c0_391], %569 {strides = array<i32>} : memref<16x128xf32, #tpu.memory_space<vmem>>, vector<16x128xf32>,
    %573 = arith.truncf %569 : vector<16x128xf32> to vector<16x128xbf16>
    %cst_392 = arith.constant dense<0.000000e+00> : vector<16x128xf32>
    %574 = tpu.matmul %573, %4, %cst_392 {dimension_numbers = #tpu.dot_dimension_numbers<[1], [0], [0], [1], [0, 0, 1, 1], [], []>} : vector<16x128xbf16>, vector<128x128xbf16>, vector<16x128xf32> -> vector<16x128xf32>
    %575 = vector.broadcast %7 : vector<1x128xf32> to vector<16x128xf32>
    %576 = arith.addf %574, %575 : vector<16x128xf32>
    %c0_393 = arith.constant 0 : index
    %c0_394 = arith.constant 0 : index
    %577 = vector.load %arg13[%c0_393, %c0_394] : memref<16x128xf32, #tpu.memory_space<vmem>>, vector<16x128xf32>
    %cst_395 = arith.constant 5.000000e-01 : f32
    %578 = vector.broadcast %cst_395 : f32 to vector<16x128xf32>
    %579 = arith.mulf %577, %578 : vector<16x128xf32>
    %580 = arith.addf %579, %576 : vector<16x128xf32>
    %c0_396 = arith.constant 0 : index
    %c0_397 = arith.constant 0 : index
    %581 = vector.load %arg14[%c0_396, %c0_397] : memref<16x128xf32, #tpu.memory_space<vmem>>, vector<16x128xf32>
    %cst_398 = arith.constant 7.500000e-01 : f32
    %582 = vector.broadcast %cst_398 : f32 to vector<16x128xf32>
    %583 = arith.mulf %581, %582 : vector<16x128xf32>
    %584 = arith.addf %583, %580 : vector<16x128xf32>
    %c0_399 = arith.constant 0 : index
    %c0_400 = arith.constant 0 : index
    %585 = vector.load %arg15[%c0_399, %c0_400] : memref<16x128xf32, #tpu.memory_space<vmem>>, vector<16x128xf32>
    %cst_401 = arith.constant 2.000000e-01 : f32
    %586 = vector.broadcast %cst_401 : f32 to vector<16x128xf32>
    %587 = arith.mulf %585, %586 : vector<16x128xf32>
    %588 = arith.subf %584, %587 : vector<16x128xf32>
    %cst_402 = arith.constant 2.000000e-01 : f32
    %589 = vector.broadcast %cst_402 : f32 to vector<16x128xf32>
    %590 = arith.cmpf oge, %588, %589 : vector<16x128xf32>
    %591 = arith.extui %590 : vector<16x128xi1> to vector<16x128xi32>
    %592 = arith.sitofp %591 : vector<16x128xi32> to vector<16x128xf32>
    %cst_403 = arith.constant -2.000000e-01 : f32
    %593 = vector.broadcast %cst_403 : f32 to vector<16x128xf32>
    %594 = arith.cmpf ole, %588, %593 : vector<16x128xf32>
    %595 = arith.extui %594 : vector<16x128xi1> to vector<16x128xi32>
    %596 = arith.sitofp %595 : vector<16x128xi32> to vector<16x128xf32>
    %597 = arith.subf %592, %596 : vector<16x128xf32>
    %c0_404 = arith.constant 0 : index
    %c0_405 = arith.constant 0 : index
    %598 = vector.load %arg13[%c0_404, %c0_405] : memref<16x128xf32, #tpu.memory_space<vmem>>, vector<16x128xf32>
    tpu.vector_store %arg13[%c0_404, %c0_405], %580 {strides = array<i32>} : memref<16x128xf32, #tpu.memory_space<vmem>>, vector<16x128xf32>,
    %c0_406 = arith.constant 0 : index
    %c0_407 = arith.constant 0 : index
    %599 = vector.load %arg14[%c0_406, %c0_407] : memref<16x128xf32, #tpu.memory_space<vmem>>, vector<16x128xf32>
    tpu.vector_store %arg14[%c0_406, %c0_407], %588 {strides = array<i32>} : memref<16x128xf32, #tpu.memory_space<vmem>>, vector<16x128xf32>,
    %c0_408 = arith.constant 0 : index
    %c0_409 = arith.constant 0 : index
    %600 = vector.load %arg15[%c0_408, %c0_409] : memref<16x128xf32, #tpu.memory_space<vmem>>, vector<16x128xf32>
    tpu.vector_store %arg15[%c0_408, %c0_409], %597 {strides = array<i32>} : memref<16x128xf32, #tpu.memory_space<vmem>>, vector<16x128xf32>,
    %601 = arith.truncf %597 : vector<16x128xf32> to vector<16x128xbf16>
    %cst_410 = arith.constant dense<0.000000e+00> : vector<16x128xf32>
    %602 = tpu.matmul %601, %5, %cst_410 {dimension_numbers = #tpu.dot_dimension_numbers<[1], [0], [0], [1], [0, 0, 1, 1], [], []>} : vector<16x128xbf16>, vector<128x128xbf16>, vector<16x128xf32> -> vector<16x128xf32>
    %603 = vector.broadcast %8 : vector<1x128xf32> to vector<16x128xf32>
    %604 = arith.addf %602, %603 : vector<16x128xf32>
    %c0_411 = arith.constant 0 : index
    %c0_412 = arith.constant 0 : index
    %605 = vector.load %arg16[%c0_411, %c0_412] : memref<16x128xf32, #tpu.memory_space<vmem>>, vector<16x128xf32>
    %cst_413 = arith.constant 5.000000e-01 : f32
    %606 = vector.broadcast %cst_413 : f32 to vector<16x128xf32>
    %607 = arith.mulf %605, %606 : vector<16x128xf32>
    %608 = arith.addf %607, %604 : vector<16x128xf32>
    %c0_414 = arith.constant 0 : index
    %c0_415 = arith.constant 0 : index
    %609 = vector.load %arg17[%c0_414, %c0_415] : memref<16x128xf32, #tpu.memory_space<vmem>>, vector<16x128xf32>
    %cst_416 = arith.constant 7.500000e-01 : f32
    %610 = vector.broadcast %cst_416 : f32 to vector<16x128xf32>
    %611 = arith.mulf %609, %610 : vector<16x128xf32>
    %612 = arith.addf %611, %608 : vector<16x128xf32>
    %c0_417 = arith.constant 0 : index
    %c0_418 = arith.constant 0 : index
    %613 = vector.load %arg18[%c0_417, %c0_418] : memref<16x128xf32, #tpu.memory_space<vmem>>, vector<16x128xf32>
    %cst_419 = arith.constant 2.000000e-01 : f32
    %614 = vector.broadcast %cst_419 : f32 to vector<16x128xf32>
    %615 = arith.mulf %613, %614 : vector<16x128xf32>
    %616 = arith.subf %612, %615 : vector<16x128xf32>
    %cst_420 = arith.constant 2.000000e-01 : f32
    %617 = vector.broadcast %cst_420 : f32 to vector<16x128xf32>
    %618 = arith.cmpf oge, %616, %617 : vector<16x128xf32>
    %619 = arith.extui %618 : vector<16x128xi1> to vector<16x128xi32>
    %620 = arith.sitofp %619 : vector<16x128xi32> to vector<16x128xf32>
    %cst_421 = arith.constant -2.000000e-01 : f32
    %621 = vector.broadcast %cst_421 : f32 to vector<16x128xf32>
    %622 = arith.cmpf ole, %616, %621 : vector<16x128xf32>
    %623 = arith.extui %622 : vector<16x128xi1> to vector<16x128xi32>
    %624 = arith.sitofp %623 : vector<16x128xi32> to vector<16x128xf32>
    %625 = arith.subf %620, %624 : vector<16x128xf32>
    %c0_422 = arith.constant 0 : index
    %c0_423 = arith.constant 0 : index
    %626 = vector.load %arg16[%c0_422, %c0_423] : memref<16x128xf32, #tpu.memory_space<vmem>>, vector<16x128xf32>
    tpu.vector_store %arg16[%c0_422, %c0_423], %608 {strides = array<i32>} : memref<16x128xf32, #tpu.memory_space<vmem>>, vector<16x128xf32>,
    %c0_424 = arith.constant 0 : index
    %c0_425 = arith.constant 0 : index
    %627 = vector.load %arg17[%c0_424, %c0_425] : memref<16x128xf32, #tpu.memory_space<vmem>>, vector<16x128xf32>
    tpu.vector_store %arg17[%c0_424, %c0_425], %616 {strides = array<i32>} : memref<16x128xf32, #tpu.memory_space<vmem>>, vector<16x128xf32>,
    %c0_426 = arith.constant 0 : index
    %c0_427 = arith.constant 0 : index
    %628 = vector.load %arg18[%c0_426, %c0_427] : memref<16x128xf32, #tpu.memory_space<vmem>>, vector<16x128xf32>
    tpu.vector_store %arg18[%c0_426, %c0_427], %625 {strides = array<i32>} : memref<16x128xf32, #tpu.memory_space<vmem>>, vector<16x128xf32>,
    %c0_428 = arith.constant 0 : index
    %c0_429 = arith.constant 0 : index
    %629 = vector.load %arg9[%c0_428, %c0_429] : memref<16x128xf32, #tpu.memory_space<vmem>>, vector<16x128xf32>
    %630 = arith.addf %629, %625 : vector<16x128xf32>
    %c0_430 = arith.constant 0 : index
    %c0_431 = arith.constant 0 : index
    %631 = vector.load %arg9[%c0_430, %c0_431] : memref<16x128xf32, #tpu.memory_space<vmem>>, vector<16x128xf32>
    tpu.vector_store %arg9[%c0_430, %c0_431], %630 {strides = array<i32>} : memref<16x128xf32, #tpu.memory_space<vmem>>, vector<16x128xf32>,
    %c7_i32 = arith.constant 7 : i32
    %632 = arith.index_cast %c7_i32 : i32 to index
    %c0_432 = arith.constant 0 : index
    %c0_433 = arith.constant 0 : index
    %633 = vector.load %arg2[%632, %c0_432, %c0_433] : memref<8x16x128xbf16, #tpu.memory_space<vmem>>, vector<1x16x128xbf16>
    %634 = vector.shape_cast %633 : vector<1x16x128xbf16> to vector<16x128xbf16>
    %cst_434 = arith.constant dense<0.000000e+00> : vector<16x128xf32>
    %635 = tpu.matmul %634, %3, %cst_434 {dimension_numbers = #tpu.dot_dimension_numbers<[1], [0], [0], [1], [0, 0, 1, 1], [], []>} : vector<16x128xbf16>, vector<128x128xbf16>, vector<16x128xf32> -> vector<16x128xf32>
    %636 = vector.broadcast %6 : vector<1x128xf32> to vector<16x128xf32>
    %637 = arith.addf %635, %636 : vector<16x128xf32>
    %c0_435 = arith.constant 0 : index
    %c0_436 = arith.constant 0 : index
    %638 = vector.load %arg10[%c0_435, %c0_436] : memref<16x128xf32, #tpu.memory_space<vmem>>, vector<16x128xf32>
    %cst_437 = arith.constant 5.000000e-01 : f32
    %639 = vector.broadcast %cst_437 : f32 to vector<16x128xf32>
    %640 = arith.mulf %638, %639 : vector<16x128xf32>
    %641 = arith.addf %640, %637 : vector<16x128xf32>
    %c0_438 = arith.constant 0 : index
    %c0_439 = arith.constant 0 : index
    %642 = vector.load %arg11[%c0_438, %c0_439] : memref<16x128xf32, #tpu.memory_space<vmem>>, vector<16x128xf32>
    %cst_440 = arith.constant 7.500000e-01 : f32
    %643 = vector.broadcast %cst_440 : f32 to vector<16x128xf32>
    %644 = arith.mulf %642, %643 : vector<16x128xf32>
    %645 = arith.addf %644, %641 : vector<16x128xf32>
    %c0_441 = arith.constant 0 : index
    %c0_442 = arith.constant 0 : index
    %646 = vector.load %arg12[%c0_441, %c0_442] : memref<16x128xf32, #tpu.memory_space<vmem>>, vector<16x128xf32>
    %cst_443 = arith.constant 2.000000e-01 : f32
    %647 = vector.broadcast %cst_443 : f32 to vector<16x128xf32>
    %648 = arith.mulf %646, %647 : vector<16x128xf32>
    %649 = arith.subf %645, %648 : vector<16x128xf32>
    %cst_444 = arith.constant 2.000000e-01 : f32
    %650 = vector.broadcast %cst_444 : f32 to vector<16x128xf32>
    %651 = arith.cmpf oge, %649, %650 : vector<16x128xf32>
    %652 = arith.extui %651 : vector<16x128xi1> to vector<16x128xi32>
    %653 = arith.sitofp %652 : vector<16x128xi32> to vector<16x128xf32>
    %cst_445 = arith.constant -2.000000e-01 : f32
    %654 = vector.broadcast %cst_445 : f32 to vector<16x128xf32>
    %655 = arith.cmpf ole, %649, %654 : vector<16x128xf32>
    %656 = arith.extui %655 : vector<16x128xi1> to vector<16x128xi32>
    %657 = arith.sitofp %656 : vector<16x128xi32> to vector<16x128xf32>
    %658 = arith.subf %653, %657 : vector<16x128xf32>
    %c0_446 = arith.constant 0 : index
    %c0_447 = arith.constant 0 : index
    %659 = vector.load %arg10[%c0_446, %c0_447] : memref<16x128xf32, #tpu.memory_space<vmem>>, vector<16x128xf32>
    tpu.vector_store %arg10[%c0_446, %c0_447], %641 {strides = array<i32>} : memref<16x128xf32, #tpu.memory_space<vmem>>, vector<16x128xf32>,
    %c0_448 = arith.constant 0 : index
    %c0_449 = arith.constant 0 : index
    %660 = vector.load %arg11[%c0_448, %c0_449] : memref<16x128xf32, #tpu.memory_space<vmem>>, vector<16x128xf32>
    tpu.vector_store %arg11[%c0_448, %c0_449], %649 {strides = array<i32>} : memref<16x128xf32, #tpu.memory_space<vmem>>, vector<16x128xf32>,
    %c0_450 = arith.constant 0 : index
    %c0_451 = arith.constant 0 : index
    %661 = vector.load %arg12[%c0_450, %c0_451] : memref<16x128xf32, #tpu.memory_space<vmem>>, vector<16x128xf32>
    tpu.vector_store %arg12[%c0_450, %c0_451], %658 {strides = array<i32>} : memref<16x128xf32, #tpu.memory_space<vmem>>, vector<16x128xf32>,
    %662 = arith.truncf %658 : vector<16x128xf32> to vector<16x128xbf16>
    %cst_452 = arith.constant dense<0.000000e+00> : vector<16x128xf32>
    %663 = tpu.matmul %662, %4, %cst_452 {dimension_numbers = #tpu.dot_dimension_numbers<[1], [0], [0], [1], [0, 0, 1, 1], [], []>} : vector<16x128xbf16>, vector<128x128xbf16>, vector<16x128xf32> -> vector<16x128xf32>
    %664 = vector.broadcast %7 : vector<1x128xf32> to vector<16x128xf32>
    %665 = arith.addf %663, %664 : vector<16x128xf32>
    %c0_453 = arith.constant 0 : index
    %c0_454 = arith.constant 0 : index
    %666 = vector.load %arg13[%c0_453, %c0_454] : memref<16x128xf32, #tpu.memory_space<vmem>>, vector<16x128xf32>
    %cst_455 = arith.constant 5.000000e-01 : f32
    %667 = vector.broadcast %cst_455 : f32 to vector<16x128xf32>
    %668 = arith.mulf %666, %667 : vector<16x128xf32>
    %669 = arith.addf %668, %665 : vector<16x128xf32>
    %c0_456 = arith.constant 0 : index
    %c0_457 = arith.constant 0 : index
    %670 = vector.load %arg14[%c0_456, %c0_457] : memref<16x128xf32, #tpu.memory_space<vmem>>, vector<16x128xf32>
    %cst_458 = arith.constant 7.500000e-01 : f32
    %671 = vector.broadcast %cst_458 : f32 to vector<16x128xf32>
    %672 = arith.mulf %670, %671 : vector<16x128xf32>
    %673 = arith.addf %672, %669 : vector<16x128xf32>
    %c0_459 = arith.constant 0 : index
    %c0_460 = arith.constant 0 : index
    %674 = vector.load %arg15[%c0_459, %c0_460] : memref<16x128xf32, #tpu.memory_space<vmem>>, vector<16x128xf32>
    %cst_461 = arith.constant 2.000000e-01 : f32
    %675 = vector.broadcast %cst_461 : f32 to vector<16x128xf32>
    %676 = arith.mulf %674, %675 : vector<16x128xf32>
    %677 = arith.subf %673, %676 : vector<16x128xf32>
    %cst_462 = arith.constant 2.000000e-01 : f32
    %678 = vector.broadcast %cst_462 : f32 to vector<16x128xf32>
    %679 = arith.cmpf oge, %677, %678 : vector<16x128xf32>
    %680 = arith.extui %679 : vector<16x128xi1> to vector<16x128xi32>
    %681 = arith.sitofp %680 : vector<16x128xi32> to vector<16x128xf32>
    %cst_463 = arith.constant -2.000000e-01 : f32
    %682 = vector.broadcast %cst_463 : f32 to vector<16x128xf32>
    %683 = arith.cmpf ole, %677, %682 : vector<16x128xf32>
    %684 = arith.extui %683 : vector<16x128xi1> to vector<16x128xi32>
    %685 = arith.sitofp %684 : vector<16x128xi32> to vector<16x128xf32>
    %686 = arith.subf %681, %685 : vector<16x128xf32>
    %c0_464 = arith.constant 0 : index
    %c0_465 = arith.constant 0 : index
    %687 = vector.load %arg13[%c0_464, %c0_465] : memref<16x128xf32, #tpu.memory_space<vmem>>, vector<16x128xf32>
    tpu.vector_store %arg13[%c0_464, %c0_465], %669 {strides = array<i32>} : memref<16x128xf32, #tpu.memory_space<vmem>>, vector<16x128xf32>,
    %c0_466 = arith.constant 0 : index
    %c0_467 = arith.constant 0 : index
    %688 = vector.load %arg14[%c0_466, %c0_467] : memref<16x128xf32, #tpu.memory_space<vmem>>, vector<16x128xf32>
    tpu.vector_store %arg14[%c0_466, %c0_467], %677 {strides = array<i32>} : memref<16x128xf32, #tpu.memory_space<vmem>>, vector<16x128xf32>,
    %c0_468 = arith.constant 0 : index
    %c0_469 = arith.constant 0 : index
    %689 = vector.load %arg15[%c0_468, %c0_469] : memref<16x128xf32, #tpu.memory_space<vmem>>, vector<16x128xf32>
    tpu.vector_store %arg15[%c0_468, %c0_469], %686 {strides = array<i32>} : memref<16x128xf32, #tpu.memory_space<vmem>>, vector<16x128xf32>,
    %690 = arith.truncf %686 : vector<16x128xf32> to vector<16x128xbf16>
    %cst_470 = arith.constant dense<0.000000e+00> : vector<16x128xf32>
    %691 = tpu.matmul %690, %5, %cst_470 {dimension_numbers = #tpu.dot_dimension_numbers<[1], [0], [0], [1], [0, 0, 1, 1], [], []>} : vector<16x128xbf16>, vector<128x128xbf16>, vector<16x128xf32> -> vector<16x128xf32>
    %692 = vector.broadcast %8 : vector<1x128xf32> to vector<16x128xf32>
    %693 = arith.addf %691, %692 : vector<16x128xf32>
    %c0_471 = arith.constant 0 : index
    %c0_472 = arith.constant 0 : index
    %694 = vector.load %arg16[%c0_471, %c0_472] : memref<16x128xf32, #tpu.memory_space<vmem>>, vector<16x128xf32>
    %cst_473 = arith.constant 5.000000e-01 : f32
    %695 = vector.broadcast %cst_473 : f32 to vector<16x128xf32>
    %696 = arith.mulf %694, %695 : vector<16x128xf32>
    %697 = arith.addf %696, %693 : vector<16x128xf32>
    %c0_474 = arith.constant 0 : index
    %c0_475 = arith.constant 0 : index
    %698 = vector.load %arg17[%c0_474, %c0_475] : memref<16x128xf32, #tpu.memory_space<vmem>>, vector<16x128xf32>
    %cst_476 = arith.constant 7.500000e-01 : f32
    %699 = vector.broadcast %cst_476 : f32 to vector<16x128xf32>
    %700 = arith.mulf %698, %699 : vector<16x128xf32>
    %701 = arith.addf %700, %697 : vector<16x128xf32>
    %c0_477 = arith.constant 0 : index
    %c0_478 = arith.constant 0 : index
    %702 = vector.load %arg18[%c0_477, %c0_478] : memref<16x128xf32, #tpu.memory_space<vmem>>, vector<16x128xf32>
    %cst_479 = arith.constant 2.000000e-01 : f32
    %703 = vector.broadcast %cst_479 : f32 to vector<16x128xf32>
    %704 = arith.mulf %702, %703 : vector<16x128xf32>
    %705 = arith.subf %701, %704 : vector<16x128xf32>
    %cst_480 = arith.constant 2.000000e-01 : f32
    %706 = vector.broadcast %cst_480 : f32 to vector<16x128xf32>
    %707 = arith.cmpf oge, %705, %706 : vector<16x128xf32>
    %708 = arith.extui %707 : vector<16x128xi1> to vector<16x128xi32>
    %709 = arith.sitofp %708 : vector<16x128xi32> to vector<16x128xf32>
    %cst_481 = arith.constant -2.000000e-01 : f32
    %710 = vector.broadcast %cst_481 : f32 to vector<16x128xf32>
    %711 = arith.cmpf ole, %705, %710 : vector<16x128xf32>
    %712 = arith.extui %711 : vector<16x128xi1> to vector<16x128xi32>
    %713 = arith.sitofp %712 : vector<16x128xi32> to vector<16x128xf32>
    %714 = arith.subf %709, %713 : vector<16x128xf32>
    %c0_482 = arith.constant 0 : index
    %c0_483 = arith.constant 0 : index
    %715 = vector.load %arg16[%c0_482, %c0_483] : memref<16x128xf32, #tpu.memory_space<vmem>>, vector<16x128xf32>
    tpu.vector_store %arg16[%c0_482, %c0_483], %697 {strides = array<i32>} : memref<16x128xf32, #tpu.memory_space<vmem>>, vector<16x128xf32>,
    %c0_484 = arith.constant 0 : index
    %c0_485 = arith.constant 0 : index
    %716 = vector.load %arg17[%c0_484, %c0_485] : memref<16x128xf32, #tpu.memory_space<vmem>>, vector<16x128xf32>
    tpu.vector_store %arg17[%c0_484, %c0_485], %705 {strides = array<i32>} : memref<16x128xf32, #tpu.memory_space<vmem>>, vector<16x128xf32>,
    %c0_486 = arith.constant 0 : index
    %c0_487 = arith.constant 0 : index
    %717 = vector.load %arg18[%c0_486, %c0_487] : memref<16x128xf32, #tpu.memory_space<vmem>>, vector<16x128xf32>
    tpu.vector_store %arg18[%c0_486, %c0_487], %714 {strides = array<i32>} : memref<16x128xf32, #tpu.memory_space<vmem>>, vector<16x128xf32>,
    %c0_488 = arith.constant 0 : index
    %c0_489 = arith.constant 0 : index
    %718 = vector.load %arg9[%c0_488, %c0_489] : memref<16x128xf32, #tpu.memory_space<vmem>>, vector<16x128xf32>
    %719 = arith.addf %718, %714 : vector<16x128xf32>
    %c0_490 = arith.constant 0 : index
    %c0_491 = arith.constant 0 : index
    %720 = vector.load %arg9[%c0_490, %c0_491] : memref<16x128xf32, #tpu.memory_space<vmem>>, vector<16x128xf32>
    tpu.vector_store %arg9[%c0_490, %c0_491], %719 {strides = array<i32>} : memref<16x128xf32, #tpu.memory_space<vmem>>, vector<16x128xf32>,
    %c8_i32 = arith.constant 8 : i32
    %c0_i32_492 = arith.constant 0 : i32
    %721 = arith.cmpi eq, %arg1, %c0_i32_492 : i32
    %722 = arith.extui %721 : i1 to i32
    %c0_i32_493 = arith.constant 0 : i32
    %723 = arith.cmpi ne, %722, %c0_i32_493 : i32
    scf.if %723 {
      %c0_494 = arith.constant 0 : index
      %c0_495 = arith.constant 0 : index
      %724 = vector.load %arg9[%c0_494, %c0_495] : memref<16x128xf32, #tpu.memory_space<vmem>>, vector<16x128xf32>
      %cst_496 = arith.constant 1.250000e-01 : f32
      %725 = vector.broadcast %cst_496 : f32 to vector<16x128xf32>
      %726 = arith.mulf %724, %725 : vector<16x128xf32>
      %c0_497 = arith.constant 0 : index
      %c0_498 = arith.constant 0 : index
      %727 = vector.load %arg9[%c0_497, %c0_498] : memref<16x128xf32, #tpu.memory_space<vmem>>, vector<16x128xf32>
      tpu.vector_store %arg9[%c0_497, %c0_498], %726 {strides = array<i32>} : memref<16x128xf32, #tpu.memory_space<vmem>>, vector<16x128xf32>,
    } else {
    }
    return
  }
  func.func @transform_0(%arg0: i32, %arg1: i32) -> (i32, i32, i32) {
    %c0_i32 = arith.constant 0 : i32
    %c0_i32_0 = arith.constant 0 : i32
    return %arg1, %arg0, %c0_i32 : i32, i32, i32
  }
  func.func @transform_1(%arg0: i32, %arg1: i32) -> (i32, i32) {
    %c0_i32 = arith.constant 0 : i32
    %c0_i32_0 = arith.constant 0 : i32
    %c0_i32_1 = arith.constant 0 : i32
    return %c0_i32, %c0_i32_0 : i32, i32
  }
  func.func @transform_2(%arg0: i32, %arg1: i32) -> (i32, i32) {
    %c0_i32 = arith.constant 0 : i32
    %c0_i32_0 = arith.constant 0 : i32
    %c0_i32_1 = arith.constant 0 : i32
    return %c0_i32, %c0_i32_0 : i32, i32
  }
  func.func @transform_3(%arg0: i32, %arg1: i32) -> (i32, i32) {
    %c0_i32 = arith.constant 0 : i32
    %c0_i32_0 = arith.constant 0 : i32
    %c0_i32_1 = arith.constant 0 : i32
    return %c0_i32, %c0_i32_0 : i32, i32
  }
  func.func @transform_4(%arg0: i32, %arg1: i32) -> (i32, i32) {
    %c0_i32 = arith.constant 0 : i32
    %c0_i32_0 = arith.constant 0 : i32
    %c0_i32_1 = arith.constant 0 : i32
    return %c0_i32, %c0_i32_0 : i32, i32
  }
  func.func @transform_5(%arg0: i32, %arg1: i32) -> (i32, i32) {
    %c0_i32 = arith.constant 0 : i32
    %c0_i32_0 = arith.constant 0 : i32
    %c0_i32_1 = arith.constant 0 : i32
    return %c0_i32, %c0_i32_0 : i32, i32
  }
  func.func @transform_6(%arg0: i32, %arg1: i32) -> (i32, i32) {
    %c0_i32 = arith.constant 0 : i32
    %c0_i32_0 = arith.constant 0 : i32
    %c0_i32_1 = arith.constant 0 : i32
    return %c0_i32, %c0_i32_0 : i32, i32
  }
  func.func @transform_7(%arg0: i32, %arg1: i32) -> (i32, i32) {
    %c0_i32 = arith.constant 0 : i32
    %c0_i32_0 = arith.constant 0 : i32
    return %arg0, %c0_i32 : i32, i32
  }
}

</mosaic_0001>

<llo_original>
// kernel: tpu_custom_call.1
$region0: #{tpu_custom_call.1}
  #allocation0 [shape = 'u32[]', space=smem, size = 0x4, offset = 0x4, fixed_abs, tag = 'smem constant byte address 0x4 - core index']
  #allocation1 [shape = 'u32[144,128]{1,0:T(1,128)}', space=vmem, size = 0x12000, scoped, tag = 'internal scratch']
  #allocation2 [shape = 'f32[16,128]{1,0:T(8,128)}', space=vmem, size = 0x2000, scoped, tag = 'scratch operand']
  #allocation3 [shape = 'f32[16,128]{1,0:T(8,128)}', space=vmem, size = 0x2000, scoped, tag = 'scratch operand']
  #allocation4 [shape = 'f32[16,128]{1,0:T(8,128)}', space=vmem, size = 0x2000, scoped, tag = 'scratch operand']
  #allocation5 [shape = 'f32[16,128]{1,0:T(8,128)}', space=vmem, size = 0x2000, scoped, tag = 'scratch operand']
  #allocation6 [shape = 'f32[16,128]{1,0:T(8,128)}', space=vmem, size = 0x2000, scoped, tag = 'scratch operand']
  #allocation7 [shape = 'f32[16,128]{1,0:T(8,128)}', space=vmem, size = 0x2000, scoped, tag = 'scratch operand']
  #allocation8 [shape = 'f32[16,128]{1,0:T(8,128)}', space=vmem, size = 0x2000, scoped, tag = 'scratch operand']
  #allocation9 [shape = 'f32[16,128]{1,0:T(8,128)}', space=vmem, size = 0x2000, scoped, tag = 'scratch operand']
  #allocation10 [shape = 'f32[16,128]{1,0:T(8,128)}', space=vmem, size = 0x2000, scoped, tag = 'scratch operand']
  %s0 = inlined_call_operand.hbm [shape: bf16[8,16,128], index: 0, kind: input, shape index: {}]
  %s1 = inlined_call_operand.hbm [shape: bf16[128,128], index: 1, kind: input, shape index: {}]
  %s2 = inlined_call_operand.vmem [shape: f32[1,128], index: 2, kind: input, shape index: {}]
  %s3 = inlined_call_operand.hbm [shape: bf16[128,128], index: 3, kind: input, shape index: {}]
  %s4 = inlined_call_operand.vmem [shape: f32[1,128], index: 4, kind: input, shape index: {}]
  %s5 = inlined_call_operand.hbm [shape: bf16[128,128], index: 5, kind: input, shape index: {}]
  %s6 = inlined_call_operand.vmem [shape: f32[1,128], index: 6, kind: input, shape index: {}]
  %s7 = inlined_call_operand.hbm [shape: f32[16,128], index: 7, kind: output, shape index: {}]
  %s8 = sld [smem:[#allocation0]]
  $region62: #{tpu_custom_call.1} parent=0
    _
  %s10 = ssub.s32 1, %s8
  %s11 = scalar_select 0, %s10, %s8
  $region1: #{tpu_custom_call.1} parent=0
    #allocation11 [shape = 'u8[32768]{0}', space=vmem, size = 0x8000, scoped, tag = 'input window, operand 0, single buffered']
    #allocation12 [shape = 's32[1]{0}', space=sflag, size = 0x4, scoped, tag = 'scoped memory for tpu_custom_call.1']
    #allocation13 [shape = 's32[1]{0}', space=sflag, size = 0x4, scoped, tag = 'scoped memory for tpu_custom_call.1']
    #allocation14 [shape = 'u8[32768]{0}', space=vmem, size = 0x8000, scoped, tag = 'input window, operand 1, single buffered']
    #allocation15 [shape = 's32[1]{0}', space=sflag, size = 0x4, scoped, tag = 'scoped memory for tpu_custom_call.1']
    #allocation16 [shape = 'u8[32768]{0}', space=vmem, size = 0x8000, scoped, tag = 'input window, operand 3, single buffered']
    #allocation17 [shape = 'u8[32768]{0}', space=vmem, size = 0x8000, scoped, tag = 'input window, operand 5, single buffered']
    #allocation18 [shape = 's32[1]{0}', space=sflag, size = 0x4, scoped, tag = 'scoped memory for tpu_custom_call.1']
    #allocation19 [shape = 'u8[8192]{0}', space=vmem, size = 0x2000, scoped, tag = 'output window, operand 0, single buffered']
    %12 = vsyncpa [#allocation12], 0
    %13 = vsyncpa [#allocation15], 0
    %14 = vsyncpa [#allocation18], 0
    %15 = vsyncpa [#allocation13], 0
    // Predicated region
    $region2: #{tpu_custom_call.1} parent=1 // pred_check
      _
    $region3: #{tpu_custom_call.1} parent=1 // pred_check_branch
      %17 = sbr.rel (0) target = $region5
    $region4: #{tpu_custom_call.1} parent=1 // pred_region
      %s19 = ssub.s32 1024, 1024
      %20 = vsyncadd [#allocation12], %s19
      %s21 = sshll.u32 [#allocation11], 4
      %s22 = int_to_ptr.vmem [resolvable:$true] %s21
      %27 = dma.hbm_to_vmem [thread:$0]  %s0, 1024, %s22, [#allocation12], 64, 64, 4
    $region5: #{tpu_custom_call.1} parent=1 // pred_fallthru
      _
    // Predicated region
    $region6: #{tpu_custom_call.1} parent=1 // pred_check
      _
    $region7: #{tpu_custom_call.1} parent=1 // pred_check_branch
      %29 = sbr.rel (0) target = $region9
    $region8: #{tpu_custom_call.1} parent=1 // pred_region
      %s31 = ssub.s32 1024, 1024
      %32 = vsyncadd [#allocation15], %s31
      %s33 = sshll.u32 [#allocation14], 4
      %s34 = int_to_ptr.vmem [resolvable:$true] %s33
      %39 = dma.hbm_to_vmem [thread:$0]  %s1, 1024, %s34, [#allocation15], 64, 64, 4
    $region9: #{tpu_custom_call.1} parent=1 // pred_fallthru
      _
    // Predicated region
    $region10: #{tpu_custom_call.1} parent=1 // pred_check
      _
    $region11: #{tpu_custom_call.1} parent=1 // pred_check_branch
      %41 = sbr.rel (0) target = $region13
    $region12: #{tpu_custom_call.1} parent=1 // pred_region
      _
    $region13: #{tpu_custom_call.1} parent=1 // pred_fallthru
      _
    // Predicated region
    $region14: #{tpu_custom_call.1} parent=1 // pred_check
      _
    $region15: #{tpu_custom_call.1} parent=1 // pred_check_branch
      %43 = sbr.rel (0) target = $region17
    $region16: #{tpu_custom_call.1} parent=1 // pred_region
      %s45 = ssub.s32 1024, 1024
      %46 = vsyncadd [#allocation15], %s45
      %s47 = sshll.u32 [#allocation16], 4
      %s48 = int_to_ptr.vmem [resolvable:$true] %s47
      %53 = dma.hbm_to_vmem [thread:$0]  %s3, 1024, %s48, [#allocation15], 64, 64, 4
    $region17: #{tpu_custom_call.1} parent=1 // pred_fallthru
      _
    // Predicated region
    $region18: #{tpu_custom_call.1} parent=1 // pred_check
      _
    $region19: #{tpu_custom_call.1} parent=1 // pred_check_branch
      %55 = sbr.rel (0) target = $region21
    $region20: #{tpu_custom_call.1} parent=1 // pred_region
      _
    $region21: #{tpu_custom_call.1} parent=1 // pred_fallthru
      _
    // Predicated region
    $region22: #{tpu_custom_call.1} parent=1 // pred_check
      _
    $region23: #{tpu_custom_call.1} parent=1 // pred_check_branch
      %57 = sbr.rel (0) target = $region25
    $region24: #{tpu_custom_call.1} parent=1 // pred_region
      %s59 = ssub.s32 1024, 1024
      %60 = vsyncadd [#allocation18], %s59
      %s61 = sshll.u32 [#allocation17], 4
      %s62 = int_to_ptr.vmem [resolvable:$true] %s61
      %67 = dma.hbm_to_vmem [thread:$0]  %s5, 1024, %s62, [#allocation18], 64, 64, 4
    $region25: #{tpu_custom_call.1} parent=1 // pred_fallthru
      _
    // Predicated region
    $region26: #{tpu_custom_call.1} parent=1 // pred_check
      _
    $region27: #{tpu_custom_call.1} parent=1 // pred_check_branch
      %69 = sbr.rel (0) target = $region29
    $region28: #{tpu_custom_call.1} parent=1 // pred_region
      _
    $region29: #{tpu_custom_call.1} parent=1 // pred_fallthru
      _
    // Predicated region
    $region30: #{tpu_custom_call.1} parent=1 // pred_check
      _
    $region31: #{tpu_custom_call.1} parent=1 // pred_check_branch
      %71 = sbr.rel (0) target = $region33
    $region32: #{tpu_custom_call.1} parent=1 // pred_region
      %72 = dma.done [#allocation12], 1024
    $region33: #{tpu_custom_call.1} parent=1 // pred_fallthru
      _
    // Predicated region
    $region34: #{tpu_custom_call.1} parent=1 // pred_check
      _
    $region35: #{tpu_custom_call.1} parent=1 // pred_check_branch
      %74 = sbr.rel (0) target = $region37
    $region36: #{tpu_custom_call.1} parent=1 // pred_region
      %75 = dma.done [#allocation15], 1024
    $region37: #{tpu_custom_call.1} parent=1 // pred_fallthru
      _
    // Predicated region
    $region38: #{tpu_custom_call.1} parent=1 // pred_check
      _
    $region39: #{tpu_custom_call.1} parent=1 // pred_check_branch
      %77 = sbr.rel (0) target = $region41
    $region40: #{tpu_custom_call.1} parent=1 // pred_region
      %78 = dma.done [#allocation15], 1024
    $region41: #{tpu_custom_call.1} parent=1 // pred_fallthru
      _
    // Predicated region
    $region42: #{tpu_custom_call.1} parent=1 // pred_check
      _
    $region43: #{tpu_custom_call.1} parent=1 // pred_check_branch
      %80 = sbr.rel (0) target = $region45
    $region44: #{tpu_custom_call.1} parent=1 // pred_region
      %81 = dma.done [#allocation18], 1024
    $region45: #{tpu_custom_call.1} parent=1 // pred_fallthru
      _
    %p83 = scmp.eq.s32.totalorder 0, 0
    // Predicated region
    $region46: #{tpu_custom_call.1} parent=1 // pred_check
      %p84 = pneg %p83
    $region47: #{tpu_custom_call.1} parent=1 // pred_check_branch
      %86 = sbr.rel (%p84) target = $region49
    $region48: #{tpu_custom_call.1} parent=1 // pred_region
      %87 = vst [vmem:[#allocation2] sm:$0xff] 0.0
      %88 = vst [vmem:[#allocation2 + $0x8] sm:$0xff] 0.0
      %89 = vst [vmem:[#allocation3] sm:$0xff] 0.0
      %90 = vst [vmem:[#allocation3 + $0x8] sm:$0xff] 0.0
      %91 = vst [vmem:[#allocation4] sm:$0xff] 0.0
      %92 = vst [vmem:[#allocation4 + $0x8] sm:$0xff] 0.0
      %93 = vst [vmem:[#allocation5] sm:$0xff] 0.0
      %94 = vst [vmem:[#allocation5 + $0x8] sm:$0xff] 0.0
      %95 = vst [vmem:[#allocation6] sm:$0xff] 0.0
      %96 = vst [vmem:[#allocation6 + $0x8] sm:$0xff] 0.0
      %97 = vst [vmem:[#allocation7] sm:$0xff] 0.0
      %98 = vst [vmem:[#allocation7 + $0x8] sm:$0xff] 0.0
      %99 = vst [vmem:[#allocation8] sm:$0xff] 0.0
      %100 = vst [vmem:[#allocation8 + $0x8] sm:$0xff] 0.0
      %101 = vst [vmem:[#allocation9] sm:$0xff] 0.0
      %102 = vst [vmem:[#allocation9 + $0x8] sm:$0xff] 0.0
      %103 = vst [vmem:[#allocation10] sm:$0xff] 0.0
      %104 = vst [vmem:[#allocation10 + $0x8] sm:$0xff] 0.0
      %105 = vst [vmem:[#allocation19] sm:$0xff] 0.0
      %106 = vst [vmem:[#allocation19 + $0x8] sm:$0xff] 0.0
    $region49: #{tpu_custom_call.1} parent=1 // pred_fallthru
      _
    %v107 = vld [vmem:[#allocation14] sm:$0xf]
    %v108 = vld [vmem:[#allocation14 + $0x4] sm:$0xf]
    %v109 = vld [vmem:[#allocation14 + $0x8] sm:$0xf]
    %v110 = vld [vmem:[#allocation14 + $0xc] sm:$0xf]
    %v111 = vld [vmem:[#allocation14 + $0x10] sm:$0xf]
    %v112 = vld [vmem:[#allocation14 + $0x14] sm:$0xf]
    %v113 = vld [vmem:[#allocation14 + $0x18] sm:$0xf]
    %v114 = vld [vmem:[#allocation14 + $0x1c] sm:$0xf]
    %v115 = vld [vmem:[#allocation14 + $0x20] sm:$0xf]
    %v116 = vld [vmem:[#allocation14 + $0x24] sm:$0xf]
    %v117 = vld [vmem:[#allocation14 + $0x28] sm:$0xf]
    %v118 = vld [vmem:[#allocation14 + $0x2c] sm:$0xf]
    %v119 = vld [vmem:[#allocation14 + $0x30] sm:$0xf]
    %v120 = vld [vmem:[#allocation14 + $0x34] sm:$0xf]
    %v121 = vld [vmem:[#allocation14 + $0x38] sm:$0xf]
    %v122 = vld [vmem:[#allocation14 + $0x3c] sm:$0xf]
    %v123 = vld [vmem:[#allocation16] sm:$0xf]
    %v124 = vld [vmem:[#allocation16 + $0x4] sm:$0xf]
    %v125 = vld [vmem:[#allocation16 + $0x8] sm:$0xf]
    %v126 = vld [vmem:[#allocation16 + $0xc] sm:$0xf]
    %v127 = vld [vmem:[#allocation16 + $0x10] sm:$0xf]
    %v128 = vld [vmem:[#allocation16 + $0x14] sm:$0xf]
    %v129 = vld [vmem:[#allocation16 + $0x18] sm:$0xf]
    %v130 = vld [vmem:[#allocation16 + $0x1c] sm:$0xf]
    %v131 = vld [vmem:[#allocation16 + $0x20] sm:$0xf]
    %v132 = vld [vmem:[#allocation16 + $0x24] sm:$0xf]
    %v133 = vld [vmem:[#allocation16 + $0x28] sm:$0xf]
    %v134 = vld [vmem:[#allocation16 + $0x2c] sm:$0xf]
    %v135 = vld [vmem:[#allocation16 + $0x30] sm:$0xf]
    %v136 = vld [vmem:[#allocation16 + $0x34] sm:$0xf]
    %v137 = vld [vmem:[#allocation16 + $0x38] sm:$0xf]
    %v138 = vld [vmem:[#allocation16 + $0x3c] sm:$0xf]
    %v139 = vld [vmem:[#allocation17] sm:$0xf]
    %v140 = vld [vmem:[#allocation17 + $0x4] sm:$0xf]
    %v141 = vld [vmem:[#allocation17 + $0x8] sm:$0xf]
    %v142 = vld [vmem:[#allocation17 + $0xc] sm:$0xf]
    %v143 = vld [vmem:[#allocation17 + $0x10] sm:$0xf]
    %v144 = vld [vmem:[#allocation17 + $0x14] sm:$0xf]
    %v145 = vld [vmem:[#allocation17 + $0x18] sm:$0xf]
    %v146 = vld [vmem:[#allocation17 + $0x1c] sm:$0xf]
    %v147 = vld [vmem:[#allocation17 + $0x20] sm:$0xf]
    %v148 = vld [vmem:[#allocation17 + $0x24] sm:$0xf]
    %v149 = vld [vmem:[#allocation17 + $0x28] sm:$0xf]
    %v150 = vld [vmem:[#allocation17 + $0x2c] sm:$0xf]
    %v151 = vld [vmem:[#allocation17 + $0x30] sm:$0xf]
    %v152 = vld [vmem:[#allocation17 + $0x34] sm:$0xf]
    %v153 = vld [vmem:[#allocation17 + $0x38] sm:$0xf]
    %v154 = vld [vmem:[#allocation17 + $0x3c] sm:$0xf]
    %v155 = vld [vmem:[%s2] sm:$0x1]
    %v156 = vld [vmem:[%s4] sm:$0x1]
    %v157 = vld [vmem:[%s6] sm:$0x1]
    %v158 = vld [vmem:[#allocation11] sm:$0xf]
    %v159 = vld [vmem:[#allocation11 + $0x4] sm:$0xf]
    %v161 = vlaneseq
    %v162 = vshrl.u32 %v161, 7
    %v163 = vsub.s32 0, %v162
    %v164 = vrot.slane %v155, %v163
    %v168 = vunpack.c.l.b16 %v158
    %v169 = vunpack.c.l.b16 %v159
    %v170 = vpack.c.b16 %v169, %v168
    %v188 = vunpack.c.l.b16 %v107
    %v189 = vunpack.c.l.b16 %v108
    %v190 = vunpack.c.l.b16 %v109
    %v191 = vunpack.c.l.b16 %v110
    %v192 = vunpack.c.l.b16 %v111
    %v193 = vunpack.c.l.b16 %v112
    %v194 = vunpack.c.l.b16 %v113
    %v195 = vunpack.c.l.b16 %v114
    %v196 = vunpack.c.l.b16 %v115
    %v197 = vunpack.c.l.b16 %v116
    %v198 = vunpack.c.l.b16 %v117
    %v199 = vunpack.c.l.b16 %v118
    %v200 = vunpack.c.l.b16 %v119
    %v201 = vunpack.c.l.b16 %v120
    %v202 = vunpack.c.l.b16 %v121
    %v203 = vunpack.c.l.b16 %v122
    %v204 = vpack.c.b16 %v189, %v188
    %v205 = vpack.c.b16 %v191, %v190
    %v206 = vpack.c.b16 %v193, %v192
    %v207 = vpack.c.b16 %v195, %v194
    %v208 = vpack.c.b16 %v197, %v196
    %v209 = vpack.c.b16 %v199, %v198
    %v210 = vpack.c.b16 %v201, %v200
    %v211 = vpack.c.b16 %v203, %v202
    %220 = vmatprep.subr.bf16.mxu0 0
    %221 = vmatpush1.bf16.msra.mxu0 %v204
    %222 = vmatprep.subr.bf16.mxu0 0
    %223 = vmatpush1.bf16.msra.mxu0 %v205
    %224 = vmatprep.subr.bf16.mxu0 0
    %225 = vmatpush1.bf16.msra.mxu0 %v206
    %226 = vmatprep.subr.bf16.mxu0 0
    %227 = vmatpush1.bf16.msra.mxu0 %v207
    %228 = vmatprep.subr.bf16.mxu0 0
    %229 = vmatpush1.bf16.msra.mxu0 %v208
    %230 = vmatprep.subr.bf16.mxu0 0
    %231 = vmatpush1.bf16.msra.mxu0 %v209
    %232 = vmatprep.subr.bf16.mxu0 0
    %233 = vmatpush1.bf16.msra.mxu0 %v210
    %234 = vmatprep.subr.bf16.mxu0 0
    %235 = vmatpush1.bf16.msra.mxu0 %v211
    %236 = vmatprep.subr.bf16.mxu0 0
    %237 = vmatpush1.bf16.msra.mxu0 0
    %238 = vmatprep.subr.bf16.mxu0 0
    %239 = vmatpush1.bf16.msra.mxu0 0
    %240 = vmatprep.subr.bf16.mxu0 0
    %241 = vmatpush1.bf16.msra.mxu0 0
    %242 = vmatprep.subr.bf16.mxu0 0
    %243 = vmatpush1.bf16.msra.mxu0 0
    %244 = vmatprep.subr.bf16.mxu0 0
    %245 = vmatpush1.bf16.msra.mxu0 0
    %246 = vmatprep.subr.bf16.mxu0 0
    %247 = vmatpush1.bf16.msra.mxu0 0
    %248 = vmatprep.subr.bf16.mxu0 0
    %249 = vmatpush1.bf16.msra.mxu0 0
    %250 = vmatprep.subr.bf16.mxu0 0
    %251 = vmatpush1.bf16.msra.mxu0 0
    %252 = vmatprep.mubr.bf16.mxu0 0
    %253 = vmatmul.mubr.bf16.gmra.mrb[0].mxu0 %v170
    %v254 = vpop.f32.mrb[0].mxu0
    %v255 = vadd.f32 %v164, %v254
    %v256 = vpop.f32.mrb[0].mxu0
    %v257 = vpop.f32.mrb[0].mxu0
    %v258 = vadd.f32 %v164, %v257
    %v259 = vpop.f32.mrb[0].mxu0
    %260 = vdwg.mxu0
    %v261 = vld [vmem:[#allocation2] sm:$0xff]
    %v262 = vld [vmem:[#allocation2 + $0x8] sm:$0xff]
    %v263 = vmul.f32 %v261, 0.5
    %v264 = vmul.f32 %v262, 0.5
    %v265 = vadd.f32 %v263, %v255
    %v266 = vadd.f32 %v264, %v258
    %v267 = vld [vmem:[#allocation3] sm:$0xff]
    %v268 = vld [vmem:[#allocation3 + $0x8] sm:$0xff]
    %v269 = vmul.f32 %v267, 0.75
    %v270 = vmul.f32 %v268, 0.75
    %v271 = vadd.f32 %v269, %v265
    %v272 = vadd.f32 %v270, %v266
    %v273 = vld [vmem:[#allocation4] sm:$0xff]
    %v274 = vld [vmem:[#allocation4 + $0x8] sm:$0xff]
    %v275 = vmul.f32 %v273, 0.2
    %v276 = vmul.f32 %v274, 0.2
    %v277 = vsub.f32 %v271, %v275
    %v278 = vsub.f32 %v272, %v276
    %vm279 = vcmp.ge.f32.partialorder %v277, 0.2
    %vm280 = vcmp.ge.f32.partialorder %v278, 0.2
    %v281 = vsel %vm279, 1, 0
    %v282 = vsel %vm280, 1, 0
    %v283 = vcvt.s32.f32 %v281
    %v284 = vcvt.s32.f32 %v282
    %vm285 = vcmp.le.f32.partialorder %v277, -0.2
    %vm286 = vcmp.le.f32.partialorder %v278, -0.2
    %v287 = vsel %vm285, 1, 0
    %v288 = vsel %vm286, 1, 0
    %v289 = vcvt.s32.f32 %v287
    %v290 = vcvt.s32.f32 %v288
    %v291 = vsub.f32 %v283, %v289
    %v292 = vsub.f32 %v284, %v290
    %293 = vst [vmem:[#allocation2] sm:$0xff] %v265
    %294 = vst [vmem:[#allocation2 + $0x8] sm:$0xff] %v266
    %295 = vst [vmem:[#allocation3] sm:$0xff] %v277
    %296 = vst [vmem:[#allocation3 + $0x8] sm:$0xff] %v278
    %297 = vst [vmem:[#allocation4] sm:$0xff] %v291
    %298 = vst [vmem:[#allocation4 + $0x8] sm:$0xff] %v292
    %v299 = vpack.c.bf16 %v292, %v291
    %v301 = vlaneseq
    %v302 = vshrl.u32 %v301, 7
    %v303 = vsub.s32 0, %v302
    %v304 = vrot.slane %v156, %v303
    %v322 = vunpack.c.l.b16 %v123
    %v323 = vunpack.c.l.b16 %v124
    %v324 = vunpack.c.l.b16 %v125
    %v325 = vunpack.c.l.b16 %v126
    %v326 = vunpack.c.l.b16 %v127
    %v327 = vunpack.c.l.b16 %v128
    %v328 = vunpack.c.l.b16 %v129
    %v329 = vunpack.c.l.b16 %v130
    %v330 = vunpack.c.l.b16 %v131
    %v331 = vunpack.c.l.b16 %v132
    %v332 = vunpack.c.l.b16 %v133
    %v333 = vunpack.c.l.b16 %v134
    %v334 = vunpack.c.l.b16 %v135
    %v335 = vunpack.c.l.b16 %v136
    %v336 = vunpack.c.l.b16 %v137
    %v337 = vunpack.c.l.b16 %v138
    %v338 = vpack.c.b16 %v323, %v322
    %v339 = vpack.c.b16 %v325, %v324
    %v340 = vpack.c.b16 %v327, %v326
    %v341 = vpack.c.b16 %v329, %v328
    %v342 = vpack.c.b16 %v331, %v330
    %v343 = vpack.c.b16 %v333, %v332
    %v344 = vpack.c.b16 %v335, %v334
    %v345 = vpack.c.b16 %v337, %v336
    %354 = vmatprep.subr.bf16.mxu0 0
    %355 = vmatpush1.bf16.msra.mxu0 %v338
    %356 = vmatprep.subr.bf16.mxu0 0
    %357 = vmatpush1.bf16.msra.mxu0 %v339
    %358 = vmatprep.subr.bf16.mxu0 0
    %359 = vmatpush1.bf16.msra.mxu0 %v340
    %360 = vmatprep.subr.bf16.mxu0 0
    %361 = vmatpush1.bf16.msra.mxu0 %v341
    %362 = vmatprep.subr.bf16.mxu0 0
    %363 = vmatpush1.bf16.msra.mxu0 %v342
    %364 = vmatprep.subr.bf16.mxu0 0
    %365 = vmatpush1.bf16.msra.mxu0 %v343
    %366 = vmatprep.subr.bf16.mxu0 0
    %367 = vmatpush1.bf16.msra.mxu0 %v344
    %368 = vmatprep.subr.bf16.mxu0 0
    %369 = vmatpush1.bf16.msra.mxu0 %v345
    %370 = vmatprep.subr.bf16.mxu0 0
    %371 = vmatpush1.bf16.msra.mxu0 0
    %372 = vmatprep.subr.bf16.mxu0 0
    %373 = vmatpush1.bf16.msra.mxu0 0
    %374 = vmatprep.subr.bf16.mxu0 0
    %375 = vmatpush1.bf16.msra.mxu0 0
    %376 = vmatprep.subr.bf16.mxu0 0
    %377 = vmatpush1.bf16.msra.mxu0 0
    %378 = vmatprep.subr.bf16.mxu0 0
    %379 = vmatpush1.bf16.msra.mxu0 0
    %380 = vmatprep.subr.bf16.mxu0 0
    %381 = vmatpush1.bf16.msra.mxu0 0
    %382 = vmatprep.subr.bf16.mxu0 0
    %383 = vmatpush1.bf16.msra.mxu0 0
    %384 = vmatprep.subr.bf16.mxu0 0
    %385 = vmatpush1.bf16.msra.mxu0 0
    %386 = vmatprep.mubr.bf16.mxu0 0
    %387 = vmatmul.mubr.bf16.gmra.mrb[0].mxu0 %v299
    %v388 = vpop.f32.mrb[0].mxu0
    %v389 = vadd.f32 %v304, %v388
    %v390 = vpop.f32.mrb[0].mxu0
    %v391 = vpop.f32.mrb[0].mxu0
    %v392 = vadd.f32 %v304, %v391
    %v393 = vpop.f32.mrb[0].mxu0
    %394 = vdwg.mxu0
    %v395 = vld [vmem:[#allocation5] sm:$0xff]
    %v396 = vld [vmem:[#allocation5 + $0x8] sm:$0xff]
    %v397 = vmul.f32 %v395, 0.5
    %v398 = vmul.f32 %v396, 0.5
    %v399 = vadd.f32 %v397, %v389
    %v400 = vadd.f32 %v398, %v392
    %v401 = vld [vmem:[#allocation6] sm:$0xff]
    %v402 = vld [vmem:[#allocation6 + $0x8] sm:$0xff]
    %v403 = vmul.f32 %v401, 0.75
    %v404 = vmul.f32 %v402, 0.75
    %v405 = vadd.f32 %v403, %v399
    %v406 = vadd.f32 %v404, %v400
    %v407 = vld [vmem:[#allocation7] sm:$0xff]
    %v408 = vld [vmem:[#allocation7 + $0x8] sm:$0xff]
    %v409 = vmul.f32 %v407, 0.2
    %v410 = vmul.f32 %v408, 0.2
    %v411 = vsub.f32 %v405, %v409
    %v412 = vsub.f32 %v406, %v410
    %vm413 = vcmp.ge.f32.partialorder %v411, 0.2
    %vm414 = vcmp.ge.f32.partialorder %v412, 0.2
    %v415 = vsel %vm413, 1, 0
    %v416 = vsel %vm414, 1, 0
    %v417 = vcvt.s32.f32 %v415
    %v418 = vcvt.s32.f32 %v416
    %vm419 = vcmp.le.f32.partialorder %v411, -0.2
    %vm420 = vcmp.le.f32.partialorder %v412, -0.2
    %v421 = vsel %vm419, 1, 0
    %v422 = vsel %vm420, 1, 0
    %v423 = vcvt.s32.f32 %v421
    %v424 = vcvt.s32.f32 %v422
    %v425 = vsub.f32 %v417, %v423
    %v426 = vsub.f32 %v418, %v424
    %427 = vst [vmem:[#allocation5] sm:$0xff] %v399
    %428 = vst [vmem:[#allocation5 + $0x8] sm:$0xff] %v400
    %429 = vst [vmem:[#allocation6] sm:$0xff] %v411
    %430 = vst [vmem:[#allocation6 + $0x8] sm:$0xff] %v412
    %431 = vst [vmem:[#allocation7] sm:$0xff] %v425
    %432 = vst [vmem:[#allocation7 + $0x8] sm:$0xff] %v426
    %v433 = vpack.c.bf16 %v426, %v425
    %v435 = vlaneseq
    %v436 = vshrl.u32 %v435, 7
    %v437 = vsub.s32 0, %v436
    %v438 = vrot.slane %v157, %v437
    %v456 = vunpack.c.l.b16 %v139
    %v457 = vunpack.c.l.b16 %v140
    %v458 = vunpack.c.l.b16 %v141
    %v459 = vunpack.c.l.b16 %v142
    %v460 = vunpack.c.l.b16 %v143
    %v461 = vunpack.c.l.b16 %v144
    %v462 = vunpack.c.l.b16 %v145
    %v463 = vunpack.c.l.b16 %v146
    %v464 = vunpack.c.l.b16 %v147
    %v465 = vunpack.c.l.b16 %v148
    %v466 = vunpack.c.l.b16 %v149
    %v467 = vunpack.c.l.b16 %v150
    %v468 = vunpack.c.l.b16 %v151
    %v469 = vunpack.c.l.b16 %v152
    %v470 = vunpack.c.l.b16 %v153
    %v471 = vunpack.c.l.b16 %v154
    %v472 = vpack.c.b16 %v457, %v456
    %v473 = vpack.c.b16 %v459, %v458
    %v474 = vpack.c.b16 %v461, %v460
    %v475 = vpack.c.b16 %v463, %v462
    %v476 = vpack.c.b16 %v465, %v464
    %v477 = vpack.c.b16 %v467, %v466
    %v478 = vpack.c.b16 %v469, %v468
    %v479 = vpack.c.b16 %v471, %v470
    %488 = vmatprep.subr.bf16.mxu0 0
    %489 = vmatpush1.bf16.msra.mxu0 %v472
    %490 = vmatprep.subr.bf16.mxu0 0
    %491 = vmatpush1.bf16.msra.mxu0 %v473
    %492 = vmatprep.subr.bf16.mxu0 0
    %493 = vmatpush1.bf16.msra.mxu0 %v474
    %494 = vmatprep.subr.bf16.mxu0 0
    %495 = vmatpush1.bf16.msra.mxu0 %v475
    %496 = vmatprep.subr.bf16.mxu0 0
    %497 = vmatpush1.bf16.msra.mxu0 %v476
    %498 = vmatprep.subr.bf16.mxu0 0
    %499 = vmatpush1.bf16.msra.mxu0 %v477
    %500 = vmatprep.subr.bf16.mxu0 0
    %501 = vmatpush1.bf16.msra.mxu0 %v478
    %502 = vmatprep.subr.bf16.mxu0 0
    %503 = vmatpush1.bf16.msra.mxu0 %v479
    %504 = vmatprep.subr.bf16.mxu0 0
    %505 = vmatpush1.bf16.msra.mxu0 0
    %506 = vmatprep.subr.bf16.mxu0 0
    %507 = vmatpush1.bf16.msra.mxu0 0
    %508 = vmatprep.subr.bf16.mxu0 0
    %509 = vmatpush1.bf16.msra.mxu0 0
    %510 = vmatprep.subr.bf16.mxu0 0
    %511 = vmatpush1.bf16.msra.mxu0 0
    %512 = vmatprep.subr.bf16.mxu0 0
    %513 = vmatpush1.bf16.msra.mxu0 0
    %514 = vmatprep.subr.bf16.mxu0 0
    %515 = vmatpush1.bf16.msra.mxu0 0
    %516 = vmatprep.subr.bf16.mxu0 0
    %517 = vmatpush1.bf16.msra.mxu0 0
    %518 = vmatprep.subr.bf16.mxu0 0
    %519 = vmatpush1.bf16.msra.mxu0 0
    %520 = vmatprep.mubr.bf16.mxu0 0
    %521 = vmatmul.mubr.bf16.gmra.mrb[0].mxu0 %v433
    %v522 = vpop.f32.mrb[0].mxu0
    %v523 = vadd.f32 %v438, %v522
    %v524 = vpop.f32.mrb[0].mxu0
    %v525 = vpop.f32.mrb[0].mxu0
    %v526 = vadd.f32 %v438, %v525
    %v527 = vpop.f32.mrb[0].mxu0
    %528 = vdwg.mxu0
    %v529 = vld [vmem:[#allocation8] sm:$0xff]
    %v530 = vld [vmem:[#allocation8 + $0x8] sm:$0xff]
    %v531 = vmul.f32 %v529, 0.5
    %v532 = vmul.f32 %v530, 0.5
    %v533 = vadd.f32 %v531, %v523
    %v534 = vadd.f32 %v532, %v526
    %v535 = vld [vmem:[#allocation9] sm:$0xff]
    %v536 = vld [vmem:[#allocation9 + $0x8] sm:$0xff]
    %v537 = vmul.f32 %v535, 0.75
    %v538 = vmul.f32 %v536, 0.75
    %v539 = vadd.f32 %v537, %v533
    %v540 = vadd.f32 %v538, %v534
    %v541 = vld [vmem:[#allocation10] sm:$0xff]
    %v542 = vld [vmem:[#allocation10 + $0x8] sm:$0xff]
    %v543 = vmul.f32 %v541, 0.2
    %v544 = vmul.f32 %v542, 0.2
    %v545 = vsub.f32 %v539, %v543
    %v546 = vsub.f32 %v540, %v544
    %vm547 = vcmp.ge.f32.partialorder %v545, 0.2
    %vm548 = vcmp.ge.f32.partialorder %v546, 0.2
    %v549 = vsel %vm547, 1, 0
    %v550 = vsel %vm548, 1, 0
    %v551 = vcvt.s32.f32 %v549
    %v552 = vcvt.s32.f32 %v550
    %vm553 = vcmp.le.f32.partialorder %v545, -0.2
    %vm554 = vcmp.le.f32.partialorder %v546, -0.2
    %v555 = vsel %vm553, 1, 0
    %v556 = vsel %vm554, 1, 0
    %v557 = vcvt.s32.f32 %v555
    %v558 = vcvt.s32.f32 %v556
    %v559 = vsub.f32 %v551, %v557
    %v560 = vsub.f32 %v552, %v558
    %561 = vst [vmem:[#allocation8] sm:$0xff] %v533
    %562 = vst [vmem:[#allocation8 + $0x8] sm:$0xff] %v534
    %563 = vst [vmem:[#allocation9] sm:$0xff] %v545
    %564 = vst [vmem:[#allocation9 + $0x8] sm:$0xff] %v546
    %565 = vst [vmem:[#allocation10] sm:$0xff] %v559
    %566 = vst [vmem:[#allocation10 + $0x8] sm:$0xff] %v560
    %v567 = vld [vmem:[#allocation19] sm:$0xff]
    %v568 = vld [vmem:[#allocation19 + $0x8] sm:$0xff]
    %v569 = vadd.f32 %v567, %v559
    %v570 = vadd.f32 %v568, %v560
    %571 = vst [vmem:[#allocation19] sm:$0xff] %v569
    %572 = vst [vmem:[#allocation19 + $0x8] sm:$0xff] %v570
    %s573 = scalar_lea.vmem [#allocation11], 8
    %v574 = vld [vmem:[%s573] sm:$0xf]
    %v575 = vld [vmem:[%s573 + $0x4] sm:$0xf]
    %v578 = vunpack.c.l.b16 %v574
    %v579 = vunpack.c.l.b16 %v575
    %v580 = vpack.c.b16 %v579, %v578
    %582 = vmatprep.subr.bf16.mxu0 0
    %583 = vmatpush1.bf16.msra.mxu0 %v204
    %584 = vmatprep.subr.bf16.mxu0 0
    %585 = vmatpush1.bf16.msra.mxu0 %v205
    %586 = vmatprep.subr.bf16.mxu0 0
    %587 = vmatpush1.bf16.msra.mxu0 %v206
    %588 = vmatprep.subr.bf16.mxu0 0
    %589 = vmatpush1.bf16.msra.mxu0 %v207
    %590 = vmatprep.subr.bf16.mxu0 0
    %591 = vmatpush1.bf16.msra.mxu0 %v208
    %592 = vmatprep.subr.bf16.mxu0 0
    %593 = vmatpush1.bf16.msra.mxu0 %v209
    %594 = vmatprep.subr.bf16.mxu0 0
    %595 = vmatpush1.bf16.msra.mxu0 %v210
    %596 = vmatprep.subr.bf16.mxu0 0
    %597 = vmatpush1.bf16.msra.mxu0 %v211
    %598 = vmatprep.subr.bf16.mxu0 0
    %599 = vmatpush1.bf16.msra.mxu0 0
    %600 = vmatprep.subr.bf16.mxu0 0
    %601 = vmatpush1.bf16.msra.mxu0 0
    %602 = vmatprep.subr.bf16.mxu0 0
    %603 = vmatpush1.bf16.msra.mxu0 0
    %604 = vmatprep.subr.bf16.mxu0 0
    %605 = vmatpush1.bf16.msra.mxu0 0
    %606 = vmatprep.subr.bf16.mxu0 0
    %607 = vmatpush1.bf16.msra.mxu0 0
    %608 = vmatprep.subr.bf16.mxu0 0
    %609 = vmatpush1.bf16.msra.mxu0 0
    %610 = vmatprep.subr.bf16.mxu0 0
    %611 = vmatpush1.bf16.msra.mxu0 0
    %612 = vmatprep.subr.bf16.mxu0 0
    %613 = vmatpush1.bf16.msra.mxu0 0
    %614 = vmatprep.mubr.bf16.mxu0 0
    %615 = vmatmul.mubr.bf16.gmra.mrb[0].mxu0 %v580
    %v616 = vpop.f32.mrb[0].mxu0
    %v617 = vadd.f32 %v164, %v616
    %v618 = vpop.f32.mrb[0].mxu0
    %v619 = vpop.f32.mrb[0].mxu0
    %v620 = vadd.f32 %v164, %v619
    %v621 = vpop.f32.mrb[0].mxu0
    %622 = vdwg.mxu0
    %v623 = vld [vmem:[#allocation2] sm:$0xff]
    %v624 = vld [vmem:[#allocation2 + $0x8] sm:$0xff]
    %v625 = vmul.f32 %v623, 0.5
    %v626 = vmul.f32 %v624, 0.5
    %v627 = vadd.f32 %v625, %v617
    %v628 = vadd.f32 %v626, %v620
    %v629 = vld [vmem:[#allocation3] sm:$0xff]
    %v630 = vld [vmem:[#allocation3 + $0x8] sm:$0xff]
    %v631 = vmul.f32 %v629, 0.75
    %v632 = vmul.f32 %v630, 0.75
    %v633 = vadd.f32 %v631, %v627
    %v634 = vadd.f32 %v632, %v628
    %v635 = vld [vmem:[#allocation4] sm:$0xff]
    %v636 = vld [vmem:[#allocation4 + $0x8] sm:$0xff]
    %v637 = vmul.f32 %v635, 0.2
    %v638 = vmul.f32 %v636, 0.2
    %v639 = vsub.f32 %v633, %v637
    %v640 = vsub.f32 %v634, %v638
    %vm641 = vcmp.ge.f32.partialorder %v639, 0.2
    %vm642 = vcmp.ge.f32.partialorder %v640, 0.2
    %v643 = vsel %vm641, 1, 0
    %v644 = vsel %vm642, 1, 0
    %v645 = vcvt.s32.f32 %v643
    %v646 = vcvt.s32.f32 %v644
    %vm647 = vcmp.le.f32.partialorder %v639, -0.2
    %vm648 = vcmp.le.f32.partialorder %v640, -0.2
    %v649 = vsel %vm647, 1, 0
    %v650 = vsel %vm648, 1, 0
    %v651 = vcvt.s32.f32 %v649
    %v652 = vcvt.s32.f32 %v650
    %v653 = vsub.f32 %v645, %v651
    %v654 = vsub.f32 %v646, %v652
    %655 = vst [vmem:[#allocation2] sm:$0xff] %v627
    %656 = vst [vmem:[#allocation2 + $0x8] sm:$0xff] %v628
    %657 = vst [vmem:[#allocation3] sm:$0xff] %v639
    %658 = vst [vmem:[#allocation3 + $0x8] sm:$0xff] %v640
    %659 = vst [vmem:[#allocation4] sm:$0xff] %v653
    %660 = vst [vmem:[#allocation4 + $0x8] sm:$0xff] %v654
    %v661 = vpack.c.bf16 %v654, %v653
    %662 = vmatprep.subr.bf16.mxu0 0
    %663 = vmatpush1.bf16.msra.mxu0 %v338
    %664 = vmatprep.subr.bf16.mxu0 0
    %665 = vmatpush1.bf16.msra.mxu0 %v339
    %666 = vmatprep.subr.bf16.mxu0 0
    %667 = vmatpush1.bf16.msra.mxu0 %v340
    %668 = vmatprep.subr.bf16.mxu0 0
    %669 = vmatpush1.bf16.msra.mxu0 %v341
    %670 = vmatprep.subr.bf16.mxu0 0
    %671 = vmatpush1.bf16.msra.mxu0 %v342
    %672 = vmatprep.subr.bf16.mxu0 0
    %673 = vmatpush1.bf16.msra.mxu0 %v343
    %674 = vmatprep.subr.bf16.mxu0 0
    %675 = vmatpush1.bf16.msra.mxu0 %v344
    %676 = vmatprep.subr.bf16.mxu0 0
    %677 = vmatpush1.bf16.msra.mxu0 %v345
    %678 = vmatprep.subr.bf16.mxu0 0
    %679 = vmatpush1.bf16.msra.mxu0 0
    %680 = vmatprep.subr.bf16.mxu0 0
    %681 = vmatpush1.bf16.msra.mxu0 0
    %682 = vmatprep.subr.bf16.mxu0 0
    %683 = vmatpush1.bf16.msra.mxu0 0
    %684 = vmatprep.subr.bf16.mxu0 0
    %685 = vmatpush1.bf16.msra.mxu0 0
    %686 = vmatprep.subr.bf16.mxu0 0
    %687 = vmatpush1.bf16.msra.mxu0 0
    %688 = vmatprep.subr.bf16.mxu0 0
    %689 = vmatpush1.bf16.msra.mxu0 0
    %690 = vmatprep.subr.bf16.mxu0 0
    %691 = vmatpush1.bf16.msra.mxu0 0
    %692 = vmatprep.subr.bf16.mxu0 0
    %693 = vmatpush1.bf16.msra.mxu0 0
    %694 = vmatprep.mubr.bf16.mxu0 0
    %695 = vmatmul.mubr.bf16.gmra.mrb[0].mxu0 %v661
    %v696 = vpop.f32.mrb[0].mxu0
    %v697 = vadd.f32 %v304, %v696
    %v698 = vpop.f32.mrb[0].mxu0
    %v699 = vpop.f32.mrb[0].mxu0
    %v700 = vadd.f32 %v304, %v699
    %v701 = vpop.f32.mrb[0].mxu0
    %702 = vdwg.mxu0
    %v703 = vld [vmem:[#allocation5] sm:$0xff]
    %v704 = vld [vmem:[#allocation5 + $0x8] sm:$0xff]
    %v705 = vmul.f32 %v703, 0.5
    %v706 = vmul.f32 %v704, 0.5
    %v707 = vadd.f32 %v705, %v697
    %v708 = vadd.f32 %v706, %v700
    %v709 = vld [vmem:[#allocation6] sm:$0xff]
    %v710 = vld [vmem:[#allocation6 + $0x8] sm:$0xff]
    %v711 = vmul.f32 %v709, 0.75
    %v712 = vmul.f32 %v710, 0.75
    %v713 = vadd.f32 %v711, %v707
    %v714 = vadd.f32 %v712, %v708
    %v715 = vld [vmem:[#allocation7] sm:$0xff]
    %v716 = vld [vmem:[#allocation7 + $0x8] sm:$0xff]
    %v717 = vmul.f32 %v715, 0.2
    %v718 = vmul.f32 %v716, 0.2
    %v719 = vsub.f32 %v713, %v717
    %v720 = vsub.f32 %v714, %v718
    %vm721 = vcmp.ge.f32.partialorder %v719, 0.2
    %vm722 = vcmp.ge.f32.partialorder %v720, 0.2
    %v723 = vsel %vm721, 1, 0
    %v724 = vsel %vm722, 1, 0
    %v725 = vcvt.s32.f32 %v723
    %v726 = vcvt.s32.f32 %v724
    %vm727 = vcmp.le.f32.partialorder %v719, -0.2
    %vm728 = vcmp.le.f32.partialorder %v720, -0.2
    %v729 = vsel %vm727, 1, 0
    %v730 = vsel %vm728, 1, 0
    %v731 = vcvt.s32.f32 %v729
    %v732 = vcvt.s32.f32 %v730
    %v733 = vsub.f32 %v725, %v731
    %v734 = vsub.f32 %v726, %v732
    %735 = vst [vmem:[#allocation5] sm:$0xff] %v707
    %736 = vst [vmem:[#allocation5 + $0x8] sm:$0xff] %v708
    %737 = vst [vmem:[#allocation6] sm:$0xff] %v719
    %738 = vst [vmem:[#allocation6 + $0x8] sm:$0xff] %v720
    %739 = vst [vmem:[#allocation7] sm:$0xff] %v733
    %740 = vst [vmem:[#allocation7 + $0x8] sm:$0xff] %v734
    %v741 = vpack.c.bf16 %v734, %v733
    %742 = vmatprep.subr.bf16.mxu0 0
    %743 = vmatpush1.bf16.msra.mxu0 %v472
    %744 = vmatprep.subr.bf16.mxu0 0
    %745 = vmatpush1.bf16.msra.mxu0 %v473
    %746 = vmatprep.subr.bf16.mxu0 0
    %747 = vmatpush1.bf16.msra.mxu0 %v474
    %748 = vmatprep.subr.bf16.mxu0 0
    %749 = vmatpush1.bf16.msra.mxu0 %v475
    %750 = vmatprep.subr.bf16.mxu0 0
    %751 = vmatpush1.bf16.msra.mxu0 %v476
    %752 = vmatprep.subr.bf16.mxu0 0
    %753 = vmatpush1.bf16.msra.mxu0 %v477
    %754 = vmatprep.subr.bf16.mxu0 0
    %755 = vmatpush1.bf16.msra.mxu0 %v478
    %756 = vmatprep.subr.bf16.mxu0 0
    %757 = vmatpush1.bf16.msra.mxu0 %v479
    %758 = vmatprep.subr.bf16.mxu0 0
    %759 = vmatpush1.bf16.msra.mxu0 0
    %760 = vmatprep.subr.bf16.mxu0 0
    %761 = vmatpush1.bf16.msra.mxu0 0
    %762 = vmatprep.subr.bf16.mxu0 0
    %763 = vmatpush1.bf16.msra.mxu0 0
    %764 = vmatprep.subr.bf16.mxu0 0
    %765 = vmatpush1.bf16.msra.mxu0 0
    %766 = vmatprep.subr.bf16.mxu0 0
    %767 = vmatpush1.bf16.msra.mxu0 0
    %768 = vmatprep.subr.bf16.mxu0 0
    %769 = vmatpush1.bf16.msra.mxu0 0
    %770 = vmatprep.subr.bf16.mxu0 0
    %771 = vmatpush1.bf16.msra.mxu0 0
    %772 = vmatprep.subr.bf16.mxu0 0
    %773 = vmatpush1.bf16.msra.mxu0 0
    %774 = vmatprep.mubr.bf16.mxu0 0
    %775 = vmatmul.mubr.bf16.gmra.mrb[0].mxu0 %v741
    %v776 = vpop.f32.mrb[0].mxu0
    %v777 = vadd.f32 %v438, %v776
    %v778 = vpop.f32.mrb[0].mxu0
    %v779 = vpop.f32.mrb[0].mxu0
    %v780 = vadd.f32 %v438, %v779
    %v781 = vpop.f32.mrb[0].mxu0
    %782 = vdwg.mxu0
    %v783 = vld [vmem:[#allocation8] sm:$0xff]
    %v784 = vld [vmem:[#allocation8 + $0x8] sm:$0xff]
    %v785 = vmul.f32 %v783, 0.5
    %v786 = vmul.f32 %v784, 0.5
    %v787 = vadd.f32 %v785, %v777
    %v788 = vadd.f32 %v786, %v780
    %v789 = vld [vmem:[#allocation9] sm:$0xff]
    %v790 = vld [vmem:[#allocation9 + $0x8] sm:$0xff]
    %v791 = vmul.f32 %v789, 0.75
    %v792 = vmul.f32 %v790, 0.75
    %v793 = vadd.f32 %v791, %v787
    %v794 = vadd.f32 %v792, %v788
    %v795 = vld [vmem:[#allocation10] sm:$0xff]
    %v796 = vld [vmem:[#allocation10 + $0x8] sm:$0xff]
    %v797 = vmul.f32 %v795, 0.2
    %v798 = vmul.f32 %v796, 0.2
    %v799 = vsub.f32 %v793, %v797
    %v800 = vsub.f32 %v794, %v798
    %vm801 = vcmp.ge.f32.partialorder %v799, 0.2
    %vm802 = vcmp.ge.f32.partialorder %v800, 0.2
    %v803 = vsel %vm801, 1, 0
    %v804 = vsel %vm802, 1, 0
    %v805 = vcvt.s32.f32 %v803
    %v806 = vcvt.s32.f32 %v804
    %vm807 = vcmp.le.f32.partialorder %v799, -0.2
    %vm808 = vcmp.le.f32.partialorder %v800, -0.2
    %v809 = vsel %vm807, 1, 0
    %v810 = vsel %vm808, 1, 0
    %v811 = vcvt.s32.f32 %v809
    %v812 = vcvt.s32.f32 %v810
    %v813 = vsub.f32 %v805, %v811
    %v814 = vsub.f32 %v806, %v812
    %815 = vst [vmem:[#allocation8] sm:$0xff] %v787
    %816 = vst [vmem:[#allocation8 + $0x8] sm:$0xff] %v788
    %817 = vst [vmem:[#allocation9] sm:$0xff] %v799
    %818 = vst [vmem:[#allocation9 + $0x8] sm:$0xff] %v800
    %819 = vst [vmem:[#allocation10] sm:$0xff] %v813
    %820 = vst [vmem:[#allocation10 + $0x8] sm:$0xff] %v814
    %v821 = vld [vmem:[#allocation19] sm:$0xff]
    %v822 = vld [vmem:[#allocation19 + $0x8] sm:$0xff]
    %v823 = vadd.f32 %v821, %v813
    %v824 = vadd.f32 %v822, %v814
    %825 = vst [vmem:[#allocation19] sm:$0xff] %v823
    %826 = vst [vmem:[#allocation19 + $0x8] sm:$0xff] %v824
    %s827 = scalar_lea.vmem [#allocation11], 16
    %v828 = vld [vmem:[%s827] sm:$0xf]
    %v829 = vld [vmem:[%s827 + $0x4] sm:$0xf]
    %v832 = vunpack.c.l.b16 %v828
    %v833 = vunpack.c.l.b16 %v829
    %v834 = vpack.c.b16 %v833, %v832
    %836 = vmatprep.subr.bf16.mxu0 0
    %837 = vmatpush1.bf16.msra.mxu0 %v204
    %838 = vmatprep.subr.bf16.mxu0 0
    %839 = vmatpush1.bf16.msra.mxu0 %v205
    %840 = vmatprep.subr.bf16.mxu0 0
    %841 = vmatpush1.bf16.msra.mxu0 %v206
    %842 = vmatprep.subr.bf16.mxu0 0
    %843 = vmatpush1.bf16.msra.mxu0 %v207
    %844 = vmatprep.subr.bf16.mxu0 0
    %845 = vmatpush1.bf16.msra.mxu0 %v208
    %846 = vmatprep.subr.bf16.mxu0 0
    %847 = vmatpush1.bf16.msra.mxu0 %v209
    %848 = vmatprep.subr.bf16.mxu0 0
    %849 = vmatpush1.bf16.msra.mxu0 %v210
    %850 = vmatprep.subr.bf16.mxu0 0
    %851 = vmatpush1.bf16.msra.mxu0 %v211
    %852 = vmatprep.subr.bf16.mxu0 0
    %853 = vmatpush1.bf16.msra.mxu0 0
    %854 = vmatprep.subr.bf16.mxu0 0
    %855 = vmatpush1.bf16.msra.mxu0 0
    %856 = vmatprep.subr.bf16.mxu0 0
    %857 = vmatpush1.bf16.msra.mxu0 0
    %858 = vmatprep.subr.bf16.mxu0 0
    %859 = vmatpush1.bf16.msra.mxu0 0
    %860 = vmatprep.subr.bf16.mxu0 0
    %861 = vmatpush1.bf16.msra.mxu0 0
    %862 = vmatprep.subr.bf16.mxu0 0
    %863 = vmatpush1.bf16.msra.mxu0 0
    %864 = vmatprep.subr.bf16.mxu0 0
    %865 = vmatpush1.bf16.msra.mxu0 0
    %866 = vmatprep.subr.bf16.mxu0 0
    %867 = vmatpush1.bf16.msra.mxu0 0
    %868 = vmatprep.mubr.bf16.mxu0 0
    %869 = vmatmul.mubr.bf16.gmra.mrb[0].mxu0 %v834
    %v870 = vpop.f32.mrb[0].mxu0
    %v871 = vadd.f32 %v164, %v870
    %v872 = vpop.f32.mrb[0].mxu0
    %v873 = vpop.f32.mrb[0].mxu0
    %v874 = vadd.f32 %v164, %v873
    %v875 = vpop.f32.mrb[0].mxu0
    %876 = vdwg.mxu0
    %v877 = vld [vmem:[#allocation2] sm:$0xff]
    %v878 = vld [vmem:[#allocation2 + $0x8] sm:$0xff]
    %v879 = vmul.f32 %v877, 0.5
    %v880 = vmul.f32 %v878, 0.5
    %v881 = vadd.f32 %v879, %v871
    %v882 = vadd.f32 %v880, %v874
    %v883 = vld [vmem:[#allocation3] sm:$0xff]
    %v884 = vld [vmem:[#allocation3 + $0x8] sm:$0xff]
    %v885 = vmul.f32 %v883, 0.75
    %v886 = vmul.f32 %v884, 0.75
    %v887 = vadd.f32 %v885, %v881
    %v888 = vadd.f32 %v886, %v882
    %v889 = vld [vmem:[#allocation4] sm:$0xff]
    %v890 = vld [vmem:[#allocation4 + $0x8] sm:$0xff]
    %v891 = vmul.f32 %v889, 0.2
    %v892 = vmul.f32 %v890, 0.2
    %v893 = vsub.f32 %v887, %v891
    %v894 = vsub.f32 %v888, %v892
    %vm895 = vcmp.ge.f32.partialorder %v893, 0.2
    %vm896 = vcmp.ge.f32.partialorder %v894, 0.2
    %v897 = vsel %vm895, 1, 0
    %v898 = vsel %vm896, 1, 0
    %v899 = vcvt.s32.f32 %v897
    %v900 = vcvt.s32.f32 %v898
    %vm901 = vcmp.le.f32.partialorder %v893, -0.2
    %vm902 = vcmp.le.f32.partialorder %v894, -0.2
    %v903 = vsel %vm901, 1, 0
    %v904 = vsel %vm902, 1, 0
    %v905 = vcvt.s32.f32 %v903
    %v906 = vcvt.s32.f32 %v904
    %v907 = vsub.f32 %v899, %v905
    %v908 = vsub.f32 %v900, %v906
    %909 = vst [vmem:[#allocation2] sm:$0xff] %v881
    %910 = vst [vmem:[#allocation2 + $0x8] sm:$0xff] %v882
    %911 = vst [vmem:[#allocation3] sm:$0xff] %v893
    %912 = vst [vmem:[#allocation3 + $0x8] sm:$0xff] %v894
    %913 = vst [vmem:[#allocation4] sm:$0xff] %v907
    %914 = vst [vmem:[#allocation4 + $0x8] sm:$0xff] %v908
    %v915 = vpack.c.bf16 %v908, %v907
    %916 = vmatprep.subr.bf16.mxu0 0
    %917 = vmatpush1.bf16.msra.mxu0 %v338
    %918 = vmatprep.subr.bf16.mxu0 0
    %919 = vmatpush1.bf16.msra.mxu0 %v339
    %920 = vmatprep.subr.bf16.mxu0 0
    %921 = vmatpush1.bf16.msra.mxu0 %v340
    %922 = vmatprep.subr.bf16.mxu0 0
    %923 = vmatpush1.bf16.msra.mxu0 %v341
    %924 = vmatprep.subr.bf16.mxu0 0
    %925 = vmatpush1.bf16.msra.mxu0 %v342
    %926 = vmatprep.subr.bf16.mxu0 0
    %927 = vmatpush1.bf16.msra.mxu0 %v343
    %928 = vmatprep.subr.bf16.mxu0 0
    %929 = vmatpush1.bf16.msra.mxu0 %v344
    %930 = vmatprep.subr.bf16.mxu0 0
    %931 = vmatpush1.bf16.msra.mxu0 %v345
    %932 = vmatprep.subr.bf16.mxu0 0
    %933 = vmatpush1.bf16.msra.mxu0 0
    %934 = vmatprep.subr.bf16.mxu0 0
    %935 = vmatpush1.bf16.msra.mxu0 0
    %936 = vmatprep.subr.bf16.mxu0 0
    %937 = vmatpush1.bf16.msra.mxu0 0
    %938 = vmatprep.subr.bf16.mxu0 0
    %939 = vmatpush1.bf16.msra.mxu0 0
    %940 = vmatprep.subr.bf16.mxu0 0
    %941 = vmatpush1.bf16.msra.mxu0 0
    %942 = vmatprep.subr.bf16.mxu0 0
    %943 = vmatpush1.bf16.msra.mxu0 0
    %944 = vmatprep.subr.bf16.mxu0 0
    %945 = vmatpush1.bf16.msra.mxu0 0
    %946 = vmatprep.subr.bf16.mxu0 0
    %947 = vmatpush1.bf16.msra.mxu0 0
    %948 = vmatprep.mubr.bf16.mxu0 0
    %949 = vmatmul.mubr.bf16.gmra.mrb[0].mxu0 %v915
    %v950 = vpop.f32.mrb[0].mxu0
    %v951 = vadd.f32 %v304, %v950
    %v952 = vpop.f32.mrb[0].mxu0
    %v953 = vpop.f32.mrb[0].mxu0
    %v954 = vadd.f32 %v304, %v953
    %v955 = vpop.f32.mrb[0].mxu0
    %956 = vdwg.mxu0
    %v957 = vld [vmem:[#allocation5] sm:$0xff]
    %v958 = vld [vmem:[#allocation5 + $0x8] sm:$0xff]
    %v959 = vmul.f32 %v957, 0.5
    %v960 = vmul.f32 %v958, 0.5
    %v961 = vadd.f32 %v959, %v951
    %v962 = vadd.f32 %v960, %v954
    %v963 = vld [vmem:[#allocation6] sm:$0xff]
    %v964 = vld [vmem:[#allocation6 + $0x8] sm:$0xff]
    %v965 = vmul.f32 %v963, 0.75
    %v966 = vmul.f32 %v964, 0.75
    %v967 = vadd.f32 %v965, %v961
    %v968 = vadd.f32 %v966, %v962
    %v969 = vld [vmem:[#allocation7] sm:$0xff]
    %v970 = vld [vmem:[#allocation7 + $0x8] sm:$0xff]
    %v971 = vmul.f32 %v969, 0.2
    %v972 = vmul.f32 %v970, 0.2
    %v973 = vsub.f32 %v967, %v971
    %v974 = vsub.f32 %v968, %v972
    %vm975 = vcmp.ge.f32.partialorder %v973, 0.2
    %vm976 = vcmp.ge.f32.partialorder %v974, 0.2
    %v977 = vsel %vm975, 1, 0
    %v978 = vsel %vm976, 1, 0
    %v979 = vcvt.s32.f32 %v977
    %v980 = vcvt.s32.f32 %v978
    %vm981 = vcmp.le.f32.partialorder %v973, -0.2
    %vm982 = vcmp.le.f32.partialorder %v974, -0.2
    %v983 = vsel %vm981, 1, 0
    %v984 = vsel %vm982, 1, 0
    %v985 = vcvt.s32.f32 %v983
    %v986 = vcvt.s32.f32 %v984
    %v987 = vsub.f32 %v979, %v985
    %v988 = vsub.f32 %v980, %v986
    %989 = vst [vmem:[#allocation5] sm:$0xff] %v961
    %990 = vst [vmem:[#allocation5 + $0x8] sm:$0xff] %v962
    %991 = vst [vmem:[#allocation6] sm:$0xff] %v973
    %992 = vst [vmem:[#allocation6 + $0x8] sm:$0xff] %v974
    %993 = vst [vmem:[#allocation7] sm:$0xff] %v987
    %994 = vst [vmem:[#allocation7 + $0x8] sm:$0xff] %v988
    %v995 = vpack.c.bf16 %v988, %v987
    %996 = vmatprep.subr.bf16.mxu0 0
    %997 = vmatpush1.bf16.msra.mxu0 %v472
    %998 = vmatprep.subr.bf16.mxu0 0
    %999 = vmatpush1.bf16.msra.mxu0 %v473
    %1000 = vmatprep.subr.bf16.mxu0 0
    %1001 = vmatpush1.bf16.msra.mxu0 %v474
    %1002 = vmatprep.subr.bf16.mxu0 0
    %1003 = vmatpush1.bf16.msra.mxu0 %v475
    %1004 = vmatprep.subr.bf16.mxu0 0
    %1005 = vmatpush1.bf16.msra.mxu0 %v476
    %1006 = vmatprep.subr.bf16.mxu0 0
    %1007 = vmatpush1.bf16.msra.mxu0 %v477
    %1008 = vmatprep.subr.bf16.mxu0 0
    %1009 = vmatpush1.bf16.msra.mxu0 %v478
    %1010 = vmatprep.subr.bf16.mxu0 0
    %1011 = vmatpush1.bf16.msra.mxu0 %v479
    %1012 = vmatprep.subr.bf16.mxu0 0
    %1013 = vmatpush1.bf16.msra.mxu0 0
    %1014 = vmatprep.subr.bf16.mxu0 0
    %1015 = vmatpush1.bf16.msra.mxu0 0
    %1016 = vmatprep.subr.bf16.mxu0 0
    %1017 = vmatpush1.bf16.msra.mxu0 0
    %1018 = vmatprep.subr.bf16.mxu0 0
    %1019 = vmatpush1.bf16.msra.mxu0 0
    %1020 = vmatprep.subr.bf16.mxu0 0
    %1021 = vmatpush1.bf16.msra.mxu0 0
    %1022 = vmatprep.subr.bf16.mxu0 0
    %1023 = vmatpush1.bf16.msra.mxu0 0
    %1024 = vmatprep.subr.bf16.mxu0 0
    %1025 = vmatpush1.bf16.msra.mxu0 0
    %1026 = vmatprep.subr.bf16.mxu0 0
    %1027 = vmatpush1.bf16.msra.mxu0 0
    %1028 = vmatprep.mubr.bf16.mxu0 0
    %1029 = vmatmul.mubr.bf16.gmra.mrb[0].mxu0 %v995
    %v1030 = vpop.f32.mrb[0].mxu0
    %v1031 = vadd.f32 %v438, %v1030
    %v1032 = vpop.f32.mrb[0].mxu0
    %v1033 = vpop.f32.mrb[0].mxu0
    %v1034 = vadd.f32 %v438, %v1033
    %v1035 = vpop.f32.mrb[0].mxu0
    %1036 = vdwg.mxu0
    %v1037 = vld [vmem:[#allocation8] sm:$0xff]
    %v1038 = vld [vmem:[#allocation8 + $0x8] sm:$0xff]
    %v1039 = vmul.f32 %v1037, 0.5
    %v1040 = vmul.f32 %v1038, 0.5
    %v1041 = vadd.f32 %v1039, %v1031
    %v1042 = vadd.f32 %v1040, %v1034
    %v1043 = vld [vmem:[#allocation9] sm:$0xff]
    %v1044 = vld [vmem:[#allocation9 + $0x8] sm:$0xff]
    %v1045 = vmul.f32 %v1043, 0.75
    %v1046 = vmul.f32 %v1044, 0.75
    %v1047 = vadd.f32 %v1045, %v1041
    %v1048 = vadd.f32 %v1046, %v1042
    %v1049 = vld [vmem:[#allocation10] sm:$0xff]
    %v1050 = vld [vmem:[#allocation10 + $0x8] sm:$0xff]
    %v1051 = vmul.f32 %v1049, 0.2
    %v1052 = vmul.f32 %v1050, 0.2
    %v1053 = vsub.f32 %v1047, %v1051
    %v1054 = vsub.f32 %v1048, %v1052
    %vm1055 = vcmp.ge.f32.partialorder %v1053, 0.2
    %vm1056 = vcmp.ge.f32.partialorder %v1054, 0.2
    %v1057 = vsel %vm1055, 1, 0
    %v1058 = vsel %vm1056, 1, 0
    %v1059 = vcvt.s32.f32 %v1057
    %v1060 = vcvt.s32.f32 %v1058
    %vm1061 = vcmp.le.f32.partialorder %v1053, -0.2
    %vm1062 = vcmp.le.f32.partialorder %v1054, -0.2
    %v1063 = vsel %vm1061, 1, 0
    %v1064 = vsel %vm1062, 1, 0
    %v1065 = vcvt.s32.f32 %v1063
    %v1066 = vcvt.s32.f32 %v1064
    %v1067 = vsub.f32 %v1059, %v1065
    %v1068 = vsub.f32 %v1060, %v1066
    %1069 = vst [vmem:[#allocation8] sm:$0xff] %v1041
    %1070 = vst [vmem:[#allocation8 + $0x8] sm:$0xff] %v1042
    %1071 = vst [vmem:[#allocation9] sm:$0xff] %v1053
    %1072 = vst [vmem:[#allocation9 + $0x8] sm:$0xff] %v1054
    %1073 = vst [vmem:[#allocation10] sm:$0xff] %v1067
    %1074 = vst [vmem:[#allocation10 + $0x8] sm:$0xff] %v1068
    %v1075 = vld [vmem:[#allocation19] sm:$0xff]
    %v1076 = vld [vmem:[#allocation19 + $0x8] sm:$0xff]
    %v1077 = vadd.f32 %v1075, %v1067
    %v1078 = vadd.f32 %v1076, %v1068
    %1079 = vst [vmem:[#allocation19] sm:$0xff] %v1077
    %1080 = vst [vmem:[#allocation19 + $0x8] sm:$0xff] %v1078
    %s1081 = scalar_lea.vmem [#allocation11], 24
    %v1082 = vld [vmem:[%s1081] sm:$0xf]
    %v1083 = vld [vmem:[%s1081 + $0x4] sm:$0xf]
    %v1086 = vunpack.c.l.b16 %v1082
    %v1087 = vunpack.c.l.b16 %v1083
    %v1088 = vpack.c.b16 %v1087, %v1086
    %1090 = vmatprep.subr.bf16.mxu0 0
    %1091 = vmatpush1.bf16.msra.mxu0 %v204
    %1092 = vmatprep.subr.bf16.mxu0 0
    %1093 = vmatpush1.bf16.msra.mxu0 %v205
    %1094 = vmatprep.subr.bf16.mxu0 0
    %1095 = vmatpush1.bf16.msra.mxu0 %v206
    %1096 = vmatprep.subr.bf16.mxu0 0
    %1097 = vmatpush1.bf16.msra.mxu0 %v207
    %1098 = vmatprep.subr.bf16.mxu0 0
    %1099 = vmatpush1.bf16.msra.mxu0 %v208
    %1100 = vmatprep.subr.bf16.mxu0 0
    %1101 = vmatpush1.bf16.msra.mxu0 %v209
    %1102 = vmatprep.subr.bf16.mxu0 0
    %1103 = vmatpush1.bf16.msra.mxu0 %v210
    %1104 = vmatprep.subr.bf16.mxu0 0
    %1105 = vmatpush1.bf16.msra.mxu0 %v211
    %1106 = vmatprep.subr.bf16.mxu0 0
    %1107 = vmatpush1.bf16.msra.mxu0 0
    %1108 = vmatprep.subr.bf16.mxu0 0
    %1109 = vmatpush1.bf16.msra.mxu0 0
    %1110 = vmatprep.subr.bf16.mxu0 0
    %1111 = vmatpush1.bf16.msra.mxu0 0
    %1112 = vmatprep.subr.bf16.mxu0 0
    %1113 = vmatpush1.bf16.msra.mxu0 0
    %1114 = vmatprep.subr.bf16.mxu0 0
    %1115 = vmatpush1.bf16.msra.mxu0 0
    %1116 = vmatprep.subr.bf16.mxu0 0
    %1117 = vmatpush1.bf16.msra.mxu0 0
    %1118 = vmatprep.subr.bf16.mxu0 0
    %1119 = vmatpush1.bf16.msra.mxu0 0
    %1120 = vmatprep.subr.bf16.mxu0 0
    %1121 = vmatpush1.bf16.msra.mxu0 0
    %1122 = vmatprep.mubr.bf16.mxu0 0
    %1123 = vmatmul.mubr.bf16.gmra.mrb[0].mxu0 %v1088
    %v1124 = vpop.f32.mrb[0].mxu0
    %v1125 = vadd.f32 %v164, %v1124
    %v1126 = vpop.f32.mrb[0].mxu0
    %v1127 = vpop.f32.mrb[0].mxu0
    %v1128 = vadd.f32 %v164, %v1127
    %v1129 = vpop.f32.mrb[0].mxu0
    %1130 = vdwg.mxu0
    %v1131 = vld [vmem:[#allocation2] sm:$0xff]
    %v1132 = vld [vmem:[#allocation2 + $0x8] sm:$0xff]
    %v1133 = vmul.f32 %v1131, 0.5
    %v1134 = vmul.f32 %v1132, 0.5
    %v1135 = vadd.f32 %v1133, %v1125
    %v1136 = vadd.f32 %v1134, %v1128
    %v1137 = vld [vmem:[#allocation3] sm:$0xff]
    %v1138 = vld [vmem:[#allocation3 + $0x8] sm:$0xff]
    %v1139 = vmul.f32 %v1137, 0.75
    %v1140 = vmul.f32 %v1138, 0.75
    %v1141 = vadd.f32 %v1139, %v1135
    %v1142 = vadd.f32 %v1140, %v1136
    %v1143 = vld [vmem:[#allocation4] sm:$0xff]
    %v1144 = vld [vmem:[#allocation4 + $0x8] sm:$0xff]
    %v1145 = vmul.f32 %v1143, 0.2
    %v1146 = vmul.f32 %v1144, 0.2
    %v1147 = vsub.f32 %v1141, %v1145
    %v1148 = vsub.f32 %v1142, %v1146
    %vm1149 = vcmp.ge.f32.partialorder %v1147, 0.2
    %vm1150 = vcmp.ge.f32.partialorder %v1148, 0.2
    %v1151 = vsel %vm1149, 1, 0
    %v1152 = vsel %vm1150, 1, 0
    %v1153 = vcvt.s32.f32 %v1151
    %v1154 = vcvt.s32.f32 %v1152
    %vm1155 = vcmp.le.f32.partialorder %v1147, -0.2
    %vm1156 = vcmp.le.f32.partialorder %v1148, -0.2
    %v1157 = vsel %vm1155, 1, 0
    %v1158 = vsel %vm1156, 1, 0
    %v1159 = vcvt.s32.f32 %v1157
    %v1160 = vcvt.s32.f32 %v1158
    %v1161 = vsub.f32 %v1153, %v1159
    %v1162 = vsub.f32 %v1154, %v1160
    %1163 = vst [vmem:[#allocation2] sm:$0xff] %v1135
    %1164 = vst [vmem:[#allocation2 + $0x8] sm:$0xff] %v1136
    %1165 = vst [vmem:[#allocation3] sm:$0xff] %v1147
    %1166 = vst [vmem:[#allocation3 + $0x8] sm:$0xff] %v1148
    %1167 = vst [vmem:[#allocation4] sm:$0xff] %v1161
    %1168 = vst [vmem:[#allocation4 + $0x8] sm:$0xff] %v1162
    %v1169 = vpack.c.bf16 %v1162, %v1161
    %1170 = vmatprep.subr.bf16.mxu0 0
    %1171 = vmatpush1.bf16.msra.mxu0 %v338
    %1172 = vmatprep.subr.bf16.mxu0 0
    %1173 = vmatpush1.bf16.msra.mxu0 %v339
    %1174 = vmatprep.subr.bf16.mxu0 0
    %1175 = vmatpush1.bf16.msra.mxu0 %v340
    %1176 = vmatprep.subr.bf16.mxu0 0
    %1177 = vmatpush1.bf16.msra.mxu0 %v341
    %1178 = vmatprep.subr.bf16.mxu0 0
    %1179 = vmatpush1.bf16.msra.mxu0 %v342
    %1180 = vmatprep.subr.bf16.mxu0 0
    %1181 = vmatpush1.bf16.msra.mxu0 %v343
    %1182 = vmatprep.subr.bf16.mxu0 0
    %1183 = vmatpush1.bf16.msra.mxu0 %v344
    %1184 = vmatprep.subr.bf16.mxu0 0
    %1185 = vmatpush1.bf16.msra.mxu0 %v345
    %1186 = vmatprep.subr.bf16.mxu0 0
    %1187 = vmatpush1.bf16.msra.mxu0 0
    %1188 = vmatprep.subr.bf16.mxu0 0
    %1189 = vmatpush1.bf16.msra.mxu0 0
    %1190 = vmatprep.subr.bf16.mxu0 0
    %1191 = vmatpush1.bf16.msra.mxu0 0
    %1192 = vmatprep.subr.bf16.mxu0 0
    %1193 = vmatpush1.bf16.msra.mxu0 0
    %1194 = vmatprep.subr.bf16.mxu0 0
    %1195 = vmatpush1.bf16.msra.mxu0 0
    %1196 = vmatprep.subr.bf16.mxu0 0
    %1197 = vmatpush1.bf16.msra.mxu0 0
    %1198 = vmatprep.subr.bf16.mxu0 0
    %1199 = vmatpush1.bf16.msra.mxu0 0
    %1200 = vmatprep.subr.bf16.mxu0 0
    %1201 = vmatpush1.bf16.msra.mxu0 0
    %1202 = vmatprep.mubr.bf16.mxu0 0
    %1203 = vmatmul.mubr.bf16.gmra.mrb[0].mxu0 %v1169
    %v1204 = vpop.f32.mrb[0].mxu0
    %v1205 = vadd.f32 %v304, %v1204
    %v1206 = vpop.f32.mrb[0].mxu0
    %v1207 = vpop.f32.mrb[0].mxu0
    %v1208 = vadd.f32 %v304, %v1207
    %v1209 = vpop.f32.mrb[0].mxu0
    %1210 = vdwg.mxu0
    %v1211 = vld [vmem:[#allocation5] sm:$0xff]
    %v1212 = vld [vmem:[#allocation5 + $0x8] sm:$0xff]
    %v1213 = vmul.f32 %v1211, 0.5
    %v1214 = vmul.f32 %v1212, 0.5
    %v1215 = vadd.f32 %v1213, %v1205
    %v1216 = vadd.f32 %v1214, %v1208
    %v1217 = vld [vmem:[#allocation6] sm:$0xff]
    %v1218 = vld [vmem:[#allocation6 + $0x8] sm:$0xff]
    %v1219 = vmul.f32 %v1217, 0.75
    %v1220 = vmul.f32 %v1218, 0.75
    %v1221 = vadd.f32 %v1219, %v1215
    %v1222 = vadd.f32 %v1220, %v1216
    %v1223 = vld [vmem:[#allocation7] sm:$0xff]
    %v1224 = vld [vmem:[#allocation7 + $0x8] sm:$0xff]
    %v1225 = vmul.f32 %v1223, 0.2
    %v1226 = vmul.f32 %v1224, 0.2
    %v1227 = vsub.f32 %v1221, %v1225
    %v1228 = vsub.f32 %v1222, %v1226
    %vm1229 = vcmp.ge.f32.partialorder %v1227, 0.2
    %vm1230 = vcmp.ge.f32.partialorder %v1228, 0.2
    %v1231 = vsel %vm1229, 1, 0
    %v1232 = vsel %vm1230, 1, 0
    %v1233 = vcvt.s32.f32 %v1231
    %v1234 = vcvt.s32.f32 %v1232
    %vm1235 = vcmp.le.f32.partialorder %v1227, -0.2
    %vm1236 = vcmp.le.f32.partialorder %v1228, -0.2
    %v1237 = vsel %vm1235, 1, 0
    %v1238 = vsel %vm1236, 1, 0
    %v1239 = vcvt.s32.f32 %v1237
    %v1240 = vcvt.s32.f32 %v1238
    %v1241 = vsub.f32 %v1233, %v1239
    %v1242 = vsub.f32 %v1234, %v1240
    %1243 = vst [vmem:[#allocation5] sm:$0xff] %v1215
    %1244 = vst [vmem:[#allocation5 + $0x8] sm:$0xff] %v1216
    %1245 = vst [vmem:[#allocation6] sm:$0xff] %v1227
    %1246 = vst [vmem:[#allocation6 + $0x8] sm:$0xff] %v1228
    %1247 = vst [vmem:[#allocation7] sm:$0xff] %v1241
    %1248 = vst [vmem:[#allocation7 + $0x8] sm:$0xff] %v1242
    %v1249 = vpack.c.bf16 %v1242, %v1241
    %1250 = vmatprep.subr.bf16.mxu0 0
    %1251 = vmatpush1.bf16.msra.mxu0 %v472
    %1252 = vmatprep.subr.bf16.mxu0 0
    %1253 = vmatpush1.bf16.msra.mxu0 %v473
    %1254 = vmatprep.subr.bf16.mxu0 0
    %1255 = vmatpush1.bf16.msra.mxu0 %v474
    %1256 = vmatprep.subr.bf16.mxu0 0
    %1257 = vmatpush1.bf16.msra.mxu0 %v475
    %1258 = vmatprep.subr.bf16.mxu0 0
    %1259 = vmatpush1.bf16.msra.mxu0 %v476
    %1260 = vmatprep.subr.bf16.mxu0 0
    %1261 = vmatpush1.bf16.msra.mxu0 %v477
    %1262 = vmatprep.subr.bf16.mxu0 0
    %1263 = vmatpush1.bf16.msra.mxu0 %v478
    %1264 = vmatprep.subr.bf16.mxu0 0
    %1265 = vmatpush1.bf16.msra.mxu0 %v479
    %1266 = vmatprep.subr.bf16.mxu0 0
    %1267 = vmatpush1.bf16.msra.mxu0 0
    %1268 = vmatprep.subr.bf16.mxu0 0
    %1269 = vmatpush1.bf16.msra.mxu0 0
    %1270 = vmatprep.subr.bf16.mxu0 0
    %1271 = vmatpush1.bf16.msra.mxu0 0
    %1272 = vmatprep.subr.bf16.mxu0 0
    %1273 = vmatpush1.bf16.msra.mxu0 0
    %1274 = vmatprep.subr.bf16.mxu0 0
    %1275 = vmatpush1.bf16.msra.mxu0 0
    %1276 = vmatprep.subr.bf16.mxu0 0
    %1277 = vmatpush1.bf16.msra.mxu0 0
    %1278 = vmatprep.subr.bf16.mxu0 0
    %1279 = vmatpush1.bf16.msra.mxu0 0
    %1280 = vmatprep.subr.bf16.mxu0 0
    %1281 = vmatpush1.bf16.msra.mxu0 0
    %1282 = vmatprep.mubr.bf16.mxu0 0
    %1283 = vmatmul.mubr.bf16.gmra.mrb[0].mxu0 %v1249
    %v1284 = vpop.f32.mrb[0].mxu0
    %v1285 = vadd.f32 %v438, %v1284
    %v1286 = vpop.f32.mrb[0].mxu0
    %v1287 = vpop.f32.mrb[0].mxu0
    %v1288 = vadd.f32 %v438, %v1287
    %v1289 = vpop.f32.mrb[0].mxu0
    %1290 = vdwg.mxu0
    %v1291 = vld [vmem:[#allocation8] sm:$0xff]
    %v1292 = vld [vmem:[#allocation8 + $0x8] sm:$0xff]
    %v1293 = vmul.f32 %v1291, 0.5
    %v1294 = vmul.f32 %v1292, 0.5
    %v1295 = vadd.f32 %v1293, %v1285
    %v1296 = vadd.f32 %v1294, %v1288
    %v1297 = vld [vmem:[#allocation9] sm:$0xff]
    %v1298 = vld [vmem:[#allocation9 + $0x8] sm:$0xff]
    %v1299 = vmul.f32 %v1297, 0.75
    %v1300 = vmul.f32 %v1298, 0.75
    %v1301 = vadd.f32 %v1299, %v1295
    %v1302 = vadd.f32 %v1300, %v1296
    %v1303 = vld [vmem:[#allocation10] sm:$0xff]
    %v1304 = vld [vmem:[#allocation10 + $0x8] sm:$0xff]
    %v1305 = vmul.f32 %v1303, 0.2
    %v1306 = vmul.f32 %v1304, 0.2
    %v1307 = vsub.f32 %v1301, %v1305
    %v1308 = vsub.f32 %v1302, %v1306
    %vm1309 = vcmp.ge.f32.partialorder %v1307, 0.2
    %vm1310 = vcmp.ge.f32.partialorder %v1308, 0.2
    %v1311 = vsel %vm1309, 1, 0
    %v1312 = vsel %vm1310, 1, 0
    %v1313 = vcvt.s32.f32 %v1311
    %v1314 = vcvt.s32.f32 %v1312
    %vm1315 = vcmp.le.f32.partialorder %v1307, -0.2
    %vm1316 = vcmp.le.f32.partialorder %v1308, -0.2
    %v1317 = vsel %vm1315, 1, 0
    %v1318 = vsel %vm1316, 1, 0
    %v1319 = vcvt.s32.f32 %v1317
    %v1320 = vcvt.s32.f32 %v1318
    %v1321 = vsub.f32 %v1313, %v1319
    %v1322 = vsub.f32 %v1314, %v1320
    %1323 = vst [vmem:[#allocation8] sm:$0xff] %v1295
    %1324 = vst [vmem:[#allocation8 + $0x8] sm:$0xff] %v1296
    %1325 = vst [vmem:[#allocation9] sm:$0xff] %v1307
    %1326 = vst [vmem:[#allocation9 + $0x8] sm:$0xff] %v1308
    %1327 = vst [vmem:[#allocation10] sm:$0xff] %v1321
    %1328 = vst [vmem:[#allocation10 + $0x8] sm:$0xff] %v1322
    %v1329 = vld [vmem:[#allocation19] sm:$0xff]
    %v1330 = vld [vmem:[#allocation19 + $0x8] sm:$0xff]
    %v1331 = vadd.f32 %v1329, %v1321
    %v1332 = vadd.f32 %v1330, %v1322
    %1333 = vst [vmem:[#allocation19] sm:$0xff] %v1331
    %1334 = vst [vmem:[#allocation19 + $0x8] sm:$0xff] %v1332
    %s1335 = scalar_lea.vmem [#allocation11], 32
    %v1336 = vld [vmem:[%s1335] sm:$0xf]
    %v1337 = vld [vmem:[%s1335 + $0x4] sm:$0xf]
    %v1340 = vunpack.c.l.b16 %v1336
    %v1341 = vunpack.c.l.b16 %v1337
    %v1342 = vpack.c.b16 %v1341, %v1340
    %1344 = vmatprep.subr.bf16.mxu0 0
    %1345 = vmatpush1.bf16.msra.mxu0 %v204
    %1346 = vmatprep.subr.bf16.mxu0 0
    %1347 = vmatpush1.bf16.msra.mxu0 %v205
    %1348 = vmatprep.subr.bf16.mxu0 0
    %1349 = vmatpush1.bf16.msra.mxu0 %v206
    %1350 = vmatprep.subr.bf16.mxu0 0
    %1351 = vmatpush1.bf16.msra.mxu0 %v207
    %1352 = vmatprep.subr.bf16.mxu0 0
    %1353 = vmatpush1.bf16.msra.mxu0 %v208
    %1354 = vmatprep.subr.bf16.mxu0 0
    %1355 = vmatpush1.bf16.msra.mxu0 %v209
    %1356 = vmatprep.subr.bf16.mxu0 0
    %1357 = vmatpush1.bf16.msra.mxu0 %v210
    %1358 = vmatprep.subr.bf16.mxu0 0
    %1359 = vmatpush1.bf16.msra.mxu0 %v211
    %1360 = vmatprep.subr.bf16.mxu0 0
    %1361 = vmatpush1.bf16.msra.mxu0 0
    %1362 = vmatprep.subr.bf16.mxu0 0
    %1363 = vmatpush1.bf16.msra.mxu0 0
    %1364 = vmatprep.subr.bf16.mxu0 0
    %1365 = vmatpush1.bf16.msra.mxu0 0
    %1366 = vmatprep.subr.bf16.mxu0 0
    %1367 = vmatpush1.bf16.msra.mxu0 0
    %1368 = vmatprep.subr.bf16.mxu0 0
    %1369 = vmatpush1.bf16.msra.mxu0 0
    %1370 = vmatprep.subr.bf16.mxu0 0
    %1371 = vmatpush1.bf16.msra.mxu0 0
    %1372 = vmatprep.subr.bf16.mxu0 0
    %1373 = vmatpush1.bf16.msra.mxu0 0
    %1374 = vmatprep.subr.bf16.mxu0 0
    %1375 = vmatpush1.bf16.msra.mxu0 0
    %1376 = vmatprep.mubr.bf16.mxu0 0
    %1377 = vmatmul.mubr.bf16.gmra.mrb[0].mxu0 %v1342
    %v1378 = vpop.f32.mrb[0].mxu0
    %v1379 = vadd.f32 %v164, %v1378
    %v1380 = vpop.f32.mrb[0].mxu0
    %v1381 = vpop.f32.mrb[0].mxu0
    %v1382 = vadd.f32 %v164, %v1381
    %v1383 = vpop.f32.mrb[0].mxu0
    %1384 = vdwg.mxu0
    %v1385 = vld [vmem:[#allocation2] sm:$0xff]
    %v1386 = vld [vmem:[#allocation2 + $0x8] sm:$0xff]
    %v1387 = vmul.f32 %v1385, 0.5
    %v1388 = vmul.f32 %v1386, 0.5
    %v1389 = vadd.f32 %v1387, %v1379
    %v1390 = vadd.f32 %v1388, %v1382
    %v1391 = vld [vmem:[#allocation3] sm:$0xff]
    %v1392 = vld [vmem:[#allocation3 + $0x8] sm:$0xff]
    %v1393 = vmul.f32 %v1391, 0.75
    %v1394 = vmul.f32 %v1392, 0.75
    %v1395 = vadd.f32 %v1393, %v1389
    %v1396 = vadd.f32 %v1394, %v1390
    %v1397 = vld [vmem:[#allocation4] sm:$0xff]
    %v1398 = vld [vmem:[#allocation4 + $0x8] sm:$0xff]
    %v1399 = vmul.f32 %v1397, 0.2
    %v1400 = vmul.f32 %v1398, 0.2
    %v1401 = vsub.f32 %v1395, %v1399
    %v1402 = vsub.f32 %v1396, %v1400
    %vm1403 = vcmp.ge.f32.partialorder %v1401, 0.2
    %vm1404 = vcmp.ge.f32.partialorder %v1402, 0.2
    %v1405 = vsel %vm1403, 1, 0
    %v1406 = vsel %vm1404, 1, 0
    %v1407 = vcvt.s32.f32 %v1405
    %v1408 = vcvt.s32.f32 %v1406
    %vm1409 = vcmp.le.f32.partialorder %v1401, -0.2
    %vm1410 = vcmp.le.f32.partialorder %v1402, -0.2
    %v1411 = vsel %vm1409, 1, 0
    %v1412 = vsel %vm1410, 1, 0
    %v1413 = vcvt.s32.f32 %v1411
    %v1414 = vcvt.s32.f32 %v1412
    %v1415 = vsub.f32 %v1407, %v1413
    %v1416 = vsub.f32 %v1408, %v1414
    %1417 = vst [vmem:[#allocation2] sm:$0xff] %v1389
    %1418 = vst [vmem:[#allocation2 + $0x8] sm:$0xff] %v1390
    %1419 = vst [vmem:[#allocation3] sm:$0xff] %v1401
    %1420 = vst [vmem:[#allocation3 + $0x8] sm:$0xff] %v1402
    %1421 = vst [vmem:[#allocation4] sm:$0xff] %v1415
    %1422 = vst [vmem:[#allocation4 + $0x8] sm:$0xff] %v1416
    %v1423 = vpack.c.bf16 %v1416, %v1415
    %1424 = vmatprep.subr.bf16.mxu0 0
    %1425 = vmatpush1.bf16.msra.mxu0 %v338
    %1426 = vmatprep.subr.bf16.mxu0 0
    %1427 = vmatpush1.bf16.msra.mxu0 %v339
    %1428 = vmatprep.subr.bf16.mxu0 0
    %1429 = vmatpush1.bf16.msra.mxu0 %v340
    %1430 = vmatprep.subr.bf16.mxu0 0
    %1431 = vmatpush1.bf16.msra.mxu0 %v341
    %1432 = vmatprep.subr.bf16.mxu0 0
    %1433 = vmatpush1.bf16.msra.mxu0 %v342
    %1434 = vmatprep.subr.bf16.mxu0 0
    %1435 = vmatpush1.bf16.msra.mxu0 %v343
    %1436 = vmatprep.subr.bf16.mxu0 0
    %1437 = vmatpush1.bf16.msra.mxu0 %v344
    %1438 = vmatprep.subr.bf16.mxu0 0
    %1439 = vmatpush1.bf16.msra.mxu0 %v345
    %1440 = vmatprep.subr.bf16.mxu0 0
    %1441 = vmatpush1.bf16.msra.mxu0 0
    %1442 = vmatprep.subr.bf16.mxu0 0
    %1443 = vmatpush1.bf16.msra.mxu0 0
    %1444 = vmatprep.subr.bf16.mxu0 0
    %1445 = vmatpush1.bf16.msra.mxu0 0
    %1446 = vmatprep.subr.bf16.mxu0 0
    %1447 = vmatpush1.bf16.msra.mxu0 0
    %1448 = vmatprep.subr.bf16.mxu0 0
    %1449 = vmatpush1.bf16.msra.mxu0 0
    %1450 = vmatprep.subr.bf16.mxu0 0
    %1451 = vmatpush1.bf16.msra.mxu0 0
    %1452 = vmatprep.subr.bf16.mxu0 0
    %1453 = vmatpush1.bf16.msra.mxu0 0
    %1454 = vmatprep.subr.bf16.mxu0 0
    %1455 = vmatpush1.bf16.msra.mxu0 0
    %1456 = vmatprep.mubr.bf16.mxu0 0
    %1457 = vmatmul.mubr.bf16.gmra.mrb[0].mxu0 %v1423
    %v1458 = vpop.f32.mrb[0].mxu0
    %v1459 = vadd.f32 %v304, %v1458
    %v1460 = vpop.f32.mrb[0].mxu0
    %v1461 = vpop.f32.mrb[0].mxu0
    %v1462 = vadd.f32 %v304, %v1461
    %v1463 = vpop.f32.mrb[0].mxu0
    %1464 = vdwg.mxu0
    %v1465 = vld [vmem:[#allocation5] sm:$0xff]
    %v1466 = vld [vmem:[#allocation5 + $0x8] sm:$0xff]
    %v1467 = vmul.f32 %v1465, 0.5
    %v1468 = vmul.f32 %v1466, 0.5
    %v1469 = vadd.f32 %v1467, %v1459
    %v1470 = vadd.f32 %v1468, %v1462
    %v1471 = vld [vmem:[#allocation6] sm:$0xff]
    %v1472 = vld [vmem:[#allocation6 + $0x8] sm:$0xff]
    %v1473 = vmul.f32 %v1471, 0.75
    %v1474 = vmul.f32 %v1472, 0.75
    %v1475 = vadd.f32 %v1473, %v1469
    %v1476 = vadd.f32 %v1474, %v1470
    %v1477 = vld [vmem:[#allocation7] sm:$0xff]
    %v1478 = vld [vmem:[#allocation7 + $0x8] sm:$0xff]
    %v1479 = vmul.f32 %v1477, 0.2
    %v1480 = vmul.f32 %v1478, 0.2
    %v1481 = vsub.f32 %v1475, %v1479
    %v1482 = vsub.f32 %v1476, %v1480
    %vm1483 = vcmp.ge.f32.partialorder %v1481, 0.2
    %vm1484 = vcmp.ge.f32.partialorder %v1482, 0.2
    %v1485 = vsel %vm1483, 1, 0
    %v1486 = vsel %vm1484, 1, 0
    %v1487 = vcvt.s32.f32 %v1485
    %v1488 = vcvt.s32.f32 %v1486
    %vm1489 = vcmp.le.f32.partialorder %v1481, -0.2
    %vm1490 = vcmp.le.f32.partialorder %v1482, -0.2
    %v1491 = vsel %vm1489, 1, 0
    %v1492 = vsel %vm1490, 1, 0
    %v1493 = vcvt.s32.f32 %v1491
    %v1494 = vcvt.s32.f32 %v1492
    %v1495 = vsub.f32 %v1487, %v1493
    %v1496 = vsub.f32 %v1488, %v1494
    %1497 = vst [vmem:[#allocation5] sm:$0xff] %v1469
    %1498 = vst [vmem:[#allocation5 + $0x8] sm:$0xff] %v1470
    %1499 = vst [vmem:[#allocation6] sm:$0xff] %v1481
    %1500 = vst [vmem:[#allocation6 + $0x8] sm:$0xff] %v1482
    %1501 = vst [vmem:[#allocation7] sm:$0xff] %v1495
    %1502 = vst [vmem:[#allocation7 + $0x8] sm:$0xff] %v1496
    %v1503 = vpack.c.bf16 %v1496, %v1495
    %1504 = vmatprep.subr.bf16.mxu0 0
    %1505 = vmatpush1.bf16.msra.mxu0 %v472
    %1506 = vmatprep.subr.bf16.mxu0 0
    %1507 = vmatpush1.bf16.msra.mxu0 %v473
    %1508 = vmatprep.subr.bf16.mxu0 0
    %1509 = vmatpush1.bf16.msra.mxu0 %v474
    %1510 = vmatprep.subr.bf16.mxu0 0
    %1511 = vmatpush1.bf16.msra.mxu0 %v475
    %1512 = vmatprep.subr.bf16.mxu0 0
    %1513 = vmatpush1.bf16.msra.mxu0 %v476
    %1514 = vmatprep.subr.bf16.mxu0 0
    %1515 = vmatpush1.bf16.msra.mxu0 %v477
    %1516 = vmatprep.subr.bf16.mxu0 0
    %1517 = vmatpush1.bf16.msra.mxu0 %v478
    %1518 = vmatprep.subr.bf16.mxu0 0
    %1519 = vmatpush1.bf16.msra.mxu0 %v479
    %1520 = vmatprep.subr.bf16.mxu0 0
    %1521 = vmatpush1.bf16.msra.mxu0 0
    %1522 = vmatprep.subr.bf16.mxu0 0
    %1523 = vmatpush1.bf16.msra.mxu0 0
    %1524 = vmatprep.subr.bf16.mxu0 0
    %1525 = vmatpush1.bf16.msra.mxu0 0
    %1526 = vmatprep.subr.bf16.mxu0 0
    %1527 = vmatpush1.bf16.msra.mxu0 0
    %1528 = vmatprep.subr.bf16.mxu0 0
    %1529 = vmatpush1.bf16.msra.mxu0 0
    %1530 = vmatprep.subr.bf16.mxu0 0
    %1531 = vmatpush1.bf16.msra.mxu0 0
    %1532 = vmatprep.subr.bf16.mxu0 0
    %1533 = vmatpush1.bf16.msra.mxu0 0
    %1534 = vmatprep.subr.bf16.mxu0 0
    %1535 = vmatpush1.bf16.msra.mxu0 0
    %1536 = vmatprep.mubr.bf16.mxu0 0
    %1537 = vmatmul.mubr.bf16.gmra.mrb[0].mxu0 %v1503
    %v1538 = vpop.f32.mrb[0].mxu0
    %v1539 = vadd.f32 %v438, %v1538
    %v1540 = vpop.f32.mrb[0].mxu0
    %v1541 = vpop.f32.mrb[0].mxu0
    %v1542 = vadd.f32 %v438, %v1541
    %v1543 = vpop.f32.mrb[0].mxu0
    %1544 = vdwg.mxu0
    %v1545 = vld [vmem:[#allocation8] sm:$0xff]
    %v1546 = vld [vmem:[#allocation8 + $0x8] sm:$0xff]
    %v1547 = vmul.f32 %v1545, 0.5
    %v1548 = vmul.f32 %v1546, 0.5
    %v1549 = vadd.f32 %v1547, %v1539
    %v1550 = vadd.f32 %v1548, %v1542
    %v1551 = vld [vmem:[#allocation9] sm:$0xff]
    %v1552 = vld [vmem:[#allocation9 + $0x8] sm:$0xff]
    %v1553 = vmul.f32 %v1551, 0.75
    %v1554 = vmul.f32 %v1552, 0.75
    %v1555 = vadd.f32 %v1553, %v1549
    %v1556 = vadd.f32 %v1554, %v1550
    %v1557 = vld [vmem:[#allocation10] sm:$0xff]
    %v1558 = vld [vmem:[#allocation10 + $0x8] sm:$0xff]
    %v1559 = vmul.f32 %v1557, 0.2
    %v1560 = vmul.f32 %v1558, 0.2
    %v1561 = vsub.f32 %v1555, %v1559
    %v1562 = vsub.f32 %v1556, %v1560
    %vm1563 = vcmp.ge.f32.partialorder %v1561, 0.2
    %vm1564 = vcmp.ge.f32.partialorder %v1562, 0.2
    %v1565 = vsel %vm1563, 1, 0
    %v1566 = vsel %vm1564, 1, 0
    %v1567 = vcvt.s32.f32 %v1565
    %v1568 = vcvt.s32.f32 %v1566
    %vm1569 = vcmp.le.f32.partialorder %v1561, -0.2
    %vm1570 = vcmp.le.f32.partialorder %v1562, -0.2
    %v1571 = vsel %vm1569, 1, 0
    %v1572 = vsel %vm1570, 1, 0
    %v1573 = vcvt.s32.f32 %v1571
    %v1574 = vcvt.s32.f32 %v1572
    %v1575 = vsub.f32 %v1567, %v1573
    %v1576 = vsub.f32 %v1568, %v1574
    %1577 = vst [vmem:[#allocation8] sm:$0xff] %v1549
    %1578 = vst [vmem:[#allocation8 + $0x8] sm:$0xff] %v1550
    %1579 = vst [vmem:[#allocation9] sm:$0xff] %v1561
    %1580 = vst [vmem:[#allocation9 + $0x8] sm:$0xff] %v1562
    %1581 = vst [vmem:[#allocation10] sm:$0xff] %v1575
    %1582 = vst [vmem:[#allocation10 + $0x8] sm:$0xff] %v1576
    %v1583 = vld [vmem:[#allocation19] sm:$0xff]
    %v1584 = vld [vmem:[#allocation19 + $0x8] sm:$0xff]
    %v1585 = vadd.f32 %v1583, %v1575
    %v1586 = vadd.f32 %v1584, %v1576
    %1587 = vst [vmem:[#allocation19] sm:$0xff] %v1585
    %1588 = vst [vmem:[#allocation19 + $0x8] sm:$0xff] %v1586
    %s1589 = scalar_lea.vmem [#allocation11], 40
    %v1590 = vld [vmem:[%s1589] sm:$0xf]
    %v1591 = vld [vmem:[%s1589 + $0x4] sm:$0xf]
    %v1594 = vunpack.c.l.b16 %v1590
    %v1595 = vunpack.c.l.b16 %v1591
    %v1596 = vpack.c.b16 %v1595, %v1594
    %1598 = vmatprep.subr.bf16.mxu0 0
    %1599 = vmatpush1.bf16.msra.mxu0 %v204
    %1600 = vmatprep.subr.bf16.mxu0 0
    %1601 = vmatpush1.bf16.msra.mxu0 %v205
    %1602 = vmatprep.subr.bf16.mxu0 0
    %1603 = vmatpush1.bf16.msra.mxu0 %v206
    %1604 = vmatprep.subr.bf16.mxu0 0
    %1605 = vmatpush1.bf16.msra.mxu0 %v207
    %1606 = vmatprep.subr.bf16.mxu0 0
    %1607 = vmatpush1.bf16.msra.mxu0 %v208
    %1608 = vmatprep.subr.bf16.mxu0 0
    %1609 = vmatpush1.bf16.msra.mxu0 %v209
    %1610 = vmatprep.subr.bf16.mxu0 0
    %1611 = vmatpush1.bf16.msra.mxu0 %v210
    %1612 = vmatprep.subr.bf16.mxu0 0
    %1613 = vmatpush1.bf16.msra.mxu0 %v211
    %1614 = vmatprep.subr.bf16.mxu0 0
    %1615 = vmatpush1.bf16.msra.mxu0 0
    %1616 = vmatprep.subr.bf16.mxu0 0
    %1617 = vmatpush1.bf16.msra.mxu0 0
    %1618 = vmatprep.subr.bf16.mxu0 0
    %1619 = vmatpush1.bf16.msra.mxu0 0
    %1620 = vmatprep.subr.bf16.mxu0 0
    %1621 = vmatpush1.bf16.msra.mxu0 0
    %1622 = vmatprep.subr.bf16.mxu0 0
    %1623 = vmatpush1.bf16.msra.mxu0 0
    %1624 = vmatprep.subr.bf16.mxu0 0
    %1625 = vmatpush1.bf16.msra.mxu0 0
    %1626 = vmatprep.subr.bf16.mxu0 0
    %1627 = vmatpush1.bf16.msra.mxu0 0
    %1628 = vmatprep.subr.bf16.mxu0 0
    %1629 = vmatpush1.bf16.msra.mxu0 0
    %1630 = vmatprep.mubr.bf16.mxu0 0
    %1631 = vmatmul.mubr.bf16.gmra.mrb[0].mxu0 %v1596
    %v1632 = vpop.f32.mrb[0].mxu0
    %v1633 = vadd.f32 %v164, %v1632
    %v1634 = vpop.f32.mrb[0].mxu0
    %v1635 = vpop.f32.mrb[0].mxu0
    %v1636 = vadd.f32 %v164, %v1635
    %v1637 = vpop.f32.mrb[0].mxu0
    %1638 = vdwg.mxu0
    %v1639 = vld [vmem:[#allocation2] sm:$0xff]
    %v1640 = vld [vmem:[#allocation2 + $0x8] sm:$0xff]
    %v1641 = vmul.f32 %v1639, 0.5
    %v1642 = vmul.f32 %v1640, 0.5
    %v1643 = vadd.f32 %v1641, %v1633
    %v1644 = vadd.f32 %v1642, %v1636
    %v1645 = vld [vmem:[#allocation3] sm:$0xff]
    %v1646 = vld [vmem:[#allocation3 + $0x8] sm:$0xff]
    %v1647 = vmul.f32 %v1645, 0.75
    %v1648 = vmul.f32 %v1646, 0.75
    %v1649 = vadd.f32 %v1647, %v1643
    %v1650 = vadd.f32 %v1648, %v1644
    %v1651 = vld [vmem:[#allocation4] sm:$0xff]
    %v1652 = vld [vmem:[#allocation4 + $0x8] sm:$0xff]
    %v1653 = vmul.f32 %v1651, 0.2
    %v1654 = vmul.f32 %v1652, 0.2
    %v1655 = vsub.f32 %v1649, %v1653
    %v1656 = vsub.f32 %v1650, %v1654
    %vm1657 = vcmp.ge.f32.partialorder %v1655, 0.2
    %vm1658 = vcmp.ge.f32.partialorder %v1656, 0.2
    %v1659 = vsel %vm1657, 1, 0
    %v1660 = vsel %vm1658, 1, 0
    %v1661 = vcvt.s32.f32 %v1659
    %v1662 = vcvt.s32.f32 %v1660
    %vm1663 = vcmp.le.f32.partialorder %v1655, -0.2
    %vm1664 = vcmp.le.f32.partialorder %v1656, -0.2
    %v1665 = vsel %vm1663, 1, 0
    %v1666 = vsel %vm1664, 1, 0
    %v1667 = vcvt.s32.f32 %v1665
    %v1668 = vcvt.s32.f32 %v1666
    %v1669 = vsub.f32 %v1661, %v1667
    %v1670 = vsub.f32 %v1662, %v1668
    %1671 = vst [vmem:[#allocation2] sm:$0xff] %v1643
    %1672 = vst [vmem:[#allocation2 + $0x8] sm:$0xff] %v1644
    %1673 = vst [vmem:[#allocation3] sm:$0xff] %v1655
    %1674 = vst [vmem:[#allocation3 + $0x8] sm:$0xff] %v1656
    %1675 = vst [vmem:[#allocation4] sm:$0xff] %v1669
    %1676 = vst [vmem:[#allocation4 + $0x8] sm:$0xff] %v1670
    %v1677 = vpack.c.bf16 %v1670, %v1669
    %1678 = vmatprep.subr.bf16.mxu0 0
    %1679 = vmatpush1.bf16.msra.mxu0 %v338
    %1680 = vmatprep.subr.bf16.mxu0 0
    %1681 = vmatpush1.bf16.msra.mxu0 %v339
    %1682 = vmatprep.subr.bf16.mxu0 0
    %1683 = vmatpush1.bf16.msra.mxu0 %v340
    %1684 = vmatprep.subr.bf16.mxu0 0
    %1685 = vmatpush1.bf16.msra.mxu0 %v341
    %1686 = vmatprep.subr.bf16.mxu0 0
    %1687 = vmatpush1.bf16.msra.mxu0 %v342
    %1688 = vmatprep.subr.bf16.mxu0 0
    %1689 = vmatpush1.bf16.msra.mxu0 %v343
    %1690 = vmatprep.subr.bf16.mxu0 0
    %1691 = vmatpush1.bf16.msra.mxu0 %v344
    %1692 = vmatprep.subr.bf16.mxu0 0
    %1693 = vmatpush1.bf16.msra.mxu0 %v345
    %1694 = vmatprep.subr.bf16.mxu0 0
    %1695 = vmatpush1.bf16.msra.mxu0 0
    %1696 = vmatprep.subr.bf16.mxu0 0
    %1697 = vmatpush1.bf16.msra.mxu0 0
    %1698 = vmatprep.subr.bf16.mxu0 0
    %1699 = vmatpush1.bf16.msra.mxu0 0
    %1700 = vmatprep.subr.bf16.mxu0 0
    %1701 = vmatpush1.bf16.msra.mxu0 0
    %1702 = vmatprep.subr.bf16.mxu0 0
    %1703 = vmatpush1.bf16.msra.mxu0 0
    %1704 = vmatprep.subr.bf16.mxu0 0
    %1705 = vmatpush1.bf16.msra.mxu0 0
    %1706 = vmatprep.subr.bf16.mxu0 0
    %1707 = vmatpush1.bf16.msra.mxu0 0
    %1708 = vmatprep.subr.bf16.mxu0 0
    %1709 = vmatpush1.bf16.msra.mxu0 0
    %1710 = vmatprep.mubr.bf16.mxu0 0
    %1711 = vmatmul.mubr.bf16.gmra.mrb[0].mxu0 %v1677
    %v1712 = vpop.f32.mrb[0].mxu0
    %v1713 = vadd.f32 %v304, %v1712
    %v1714 = vpop.f32.mrb[0].mxu0
    %v1715 = vpop.f32.mrb[0].mxu0
    %v1716 = vadd.f32 %v304, %v1715
    %v1717 = vpop.f32.mrb[0].mxu0
    %1718 = vdwg.mxu0
    %v1719 = vld [vmem:[#allocation5] sm:$0xff]
    %v1720 = vld [vmem:[#allocation5 + $0x8] sm:$0xff]
    %v1721 = vmul.f32 %v1719, 0.5
    %v1722 = vmul.f32 %v1720, 0.5
    %v1723 = vadd.f32 %v1721, %v1713
    %v1724 = vadd.f32 %v1722, %v1716
    %v1725 = vld [vmem:[#allocation6] sm:$0xff]
    %v1726 = vld [vmem:[#allocation6 + $0x8] sm:$0xff]
    %v1727 = vmul.f32 %v1725, 0.75
    %v1728 = vmul.f32 %v1726, 0.75
    %v1729 = vadd.f32 %v1727, %v1723
    %v1730 = vadd.f32 %v1728, %v1724
    %v1731 = vld [vmem:[#allocation7] sm:$0xff]
    %v1732 = vld [vmem:[#allocation7 + $0x8] sm:$0xff]
    %v1733 = vmul.f32 %v1731, 0.2
    %v1734 = vmul.f32 %v1732, 0.2
    %v1735 = vsub.f32 %v1729, %v1733
    %v1736 = vsub.f32 %v1730, %v1734
    %vm1737 = vcmp.ge.f32.partialorder %v1735, 0.2
    %vm1738 = vcmp.ge.f32.partialorder %v1736, 0.2
    %v1739 = vsel %vm1737, 1, 0
    %v1740 = vsel %vm1738, 1, 0
    %v1741 = vcvt.s32.f32 %v1739
    %v1742 = vcvt.s32.f32 %v1740
    %vm1743 = vcmp.le.f32.partialorder %v1735, -0.2
    %vm1744 = vcmp.le.f32.partialorder %v1736, -0.2
    %v1745 = vsel %vm1743, 1, 0
    %v1746 = vsel %vm1744, 1, 0
    %v1747 = vcvt.s32.f32 %v1745
    %v1748 = vcvt.s32.f32 %v1746
    %v1749 = vsub.f32 %v1741, %v1747
    %v1750 = vsub.f32 %v1742, %v1748
    %1751 = vst [vmem:[#allocation5] sm:$0xff] %v1723
    %1752 = vst [vmem:[#allocation5 + $0x8] sm:$0xff] %v1724
    %1753 = vst [vmem:[#allocation6] sm:$0xff] %v1735
    %1754 = vst [vmem:[#allocation6 + $0x8] sm:$0xff] %v1736
    %1755 = vst [vmem:[#allocation7] sm:$0xff] %v1749
    %1756 = vst [vmem:[#allocation7 + $0x8] sm:$0xff] %v1750
    %v1757 = vpack.c.bf16 %v1750, %v1749
    %1758 = vmatprep.subr.bf16.mxu0 0
    %1759 = vmatpush1.bf16.msra.mxu0 %v472
    %1760 = vmatprep.subr.bf16.mxu0 0
    %1761 = vmatpush1.bf16.msra.mxu0 %v473
    %1762 = vmatprep.subr.bf16.mxu0 0
    %1763 = vmatpush1.bf16.msra.mxu0 %v474
    %1764 = vmatprep.subr.bf16.mxu0 0
    %1765 = vmatpush1.bf16.msra.mxu0 %v475
    %1766 = vmatprep.subr.bf16.mxu0 0
    %1767 = vmatpush1.bf16.msra.mxu0 %v476
    %1768 = vmatprep.subr.bf16.mxu0 0
    %1769 = vmatpush1.bf16.msra.mxu0 %v477
    %1770 = vmatprep.subr.bf16.mxu0 0
    %1771 = vmatpush1.bf16.msra.mxu0 %v478
    %1772 = vmatprep.subr.bf16.mxu0 0
    %1773 = vmatpush1.bf16.msra.mxu0 %v479
    %1774 = vmatprep.subr.bf16.mxu0 0
    %1775 = vmatpush1.bf16.msra.mxu0 0
    %1776 = vmatprep.subr.bf16.mxu0 0
    %1777 = vmatpush1.bf16.msra.mxu0 0
    %1778 = vmatprep.subr.bf16.mxu0 0
    %1779 = vmatpush1.bf16.msra.mxu0 0
    %1780 = vmatprep.subr.bf16.mxu0 0
    %1781 = vmatpush1.bf16.msra.mxu0 0
    %1782 = vmatprep.subr.bf16.mxu0 0
    %1783 = vmatpush1.bf16.msra.mxu0 0
    %1784 = vmatprep.subr.bf16.mxu0 0
    %1785 = vmatpush1.bf16.msra.mxu0 0
    %1786 = vmatprep.subr.bf16.mxu0 0
    %1787 = vmatpush1.bf16.msra.mxu0 0
    %1788 = vmatprep.subr.bf16.mxu0 0
    %1789 = vmatpush1.bf16.msra.mxu0 0
    %1790 = vmatprep.mubr.bf16.mxu0 0
    %1791 = vmatmul.mubr.bf16.gmra.mrb[0].mxu0 %v1757
    %v1792 = vpop.f32.mrb[0].mxu0
    %v1793 = vadd.f32 %v438, %v1792
    %v1794 = vpop.f32.mrb[0].mxu0
    %v1795 = vpop.f32.mrb[0].mxu0
    %v1796 = vadd.f32 %v438, %v1795
    %v1797 = vpop.f32.mrb[0].mxu0
    %1798 = vdwg.mxu0
    %v1799 = vld [vmem:[#allocation8] sm:$0xff]
    %v1800 = vld [vmem:[#allocation8 + $0x8] sm:$0xff]
    %v1801 = vmul.f32 %v1799, 0.5
    %v1802 = vmul.f32 %v1800, 0.5
    %v1803 = vadd.f32 %v1801, %v1793
    %v1804 = vadd.f32 %v1802, %v1796
    %v1805 = vld [vmem:[#allocation9] sm:$0xff]
    %v1806 = vld [vmem:[#allocation9 + $0x8] sm:$0xff]
    %v1807 = vmul.f32 %v1805, 0.75
    %v1808 = vmul.f32 %v1806, 0.75
    %v1809 = vadd.f32 %v1807, %v1803
    %v1810 = vadd.f32 %v1808, %v1804
    %v1811 = vld [vmem:[#allocation10] sm:$0xff]
    %v1812 = vld [vmem:[#allocation10 + $0x8] sm:$0xff]
    %v1813 = vmul.f32 %v1811, 0.2
    %v1814 = vmul.f32 %v1812, 0.2
    %v1815 = vsub.f32 %v1809, %v1813
    %v1816 = vsub.f32 %v1810, %v1814
    %vm1817 = vcmp.ge.f32.partialorder %v1815, 0.2
    %vm1818 = vcmp.ge.f32.partialorder %v1816, 0.2
    %v1819 = vsel %vm1817, 1, 0
    %v1820 = vsel %vm1818, 1, 0
    %v1821 = vcvt.s32.f32 %v1819
    %v1822 = vcvt.s32.f32 %v1820
    %vm1823 = vcmp.le.f32.partialorder %v1815, -0.2
    %vm1824 = vcmp.le.f32.partialorder %v1816, -0.2
    %v1825 = vsel %vm1823, 1, 0
    %v1826 = vsel %vm1824, 1, 0
    %v1827 = vcvt.s32.f32 %v1825
    %v1828 = vcvt.s32.f32 %v1826
    %v1829 = vsub.f32 %v1821, %v1827
    %v1830 = vsub.f32 %v1822, %v1828
    %1831 = vst [vmem:[#allocation8] sm:$0xff] %v1803
    %1832 = vst [vmem:[#allocation8 + $0x8] sm:$0xff] %v1804
    %1833 = vst [vmem:[#allocation9] sm:$0xff] %v1815
    %1834 = vst [vmem:[#allocation9 + $0x8] sm:$0xff] %v1816
    %1835 = vst [vmem:[#allocation10] sm:$0xff] %v1829
    %1836 = vst [vmem:[#allocation10 + $0x8] sm:$0xff] %v1830
    %v1837 = vld [vmem:[#allocation19] sm:$0xff]
    %v1838 = vld [vmem:[#allocation19 + $0x8] sm:$0xff]
    %v1839 = vadd.f32 %v1837, %v1829
    %v1840 = vadd.f32 %v1838, %v1830
    %1841 = vst [vmem:[#allocation19] sm:$0xff] %v1839
    %1842 = vst [vmem:[#allocation19 + $0x8] sm:$0xff] %v1840
    %s1843 = scalar_lea.vmem [#allocation11], 48
    %v1844 = vld [vmem:[%s1843] sm:$0xf]
    %v1845 = vld [vmem:[%s1843 + $0x4] sm:$0xf]
    %v1848 = vunpack.c.l.b16 %v1844
    %v1849 = vunpack.c.l.b16 %v1845
    %v1850 = vpack.c.b16 %v1849, %v1848
    %1852 = vmatprep.subr.bf16.mxu0 0
    %1853 = vmatpush1.bf16.msra.mxu0 %v204
    %1854 = vmatprep.subr.bf16.mxu0 0
    %1855 = vmatpush1.bf16.msra.mxu0 %v205
    %1856 = vmatprep.subr.bf16.mxu0 0
    %1857 = vmatpush1.bf16.msra.mxu0 %v206
    %1858 = vmatprep.subr.bf16.mxu0 0
    %1859 = vmatpush1.bf16.msra.mxu0 %v207
    %1860 = vmatprep.subr.bf16.mxu0 0
    %1861 = vmatpush1.bf16.msra.mxu0 %v208
    %1862 = vmatprep.subr.bf16.mxu0 0
    %1863 = vmatpush1.bf16.msra.mxu0 %v209
    %1864 = vmatprep.subr.bf16.mxu0 0
    %1865 = vmatpush1.bf16.msra.mxu0 %v210
    %1866 = vmatprep.subr.bf16.mxu0 0
    %1867 = vmatpush1.bf16.msra.mxu0 %v211
    %1868 = vmatprep.subr.bf16.mxu0 0
    %1869 = vmatpush1.bf16.msra.mxu0 0
    %1870 = vmatprep.subr.bf16.mxu0 0
    %1871 = vmatpush1.bf16.msra.mxu0 0
    %1872 = vmatprep.subr.bf16.mxu0 0
    %1873 = vmatpush1.bf16.msra.mxu0 0
    %1874 = vmatprep.subr.bf16.mxu0 0
    %1875 = vmatpush1.bf16.msra.mxu0 0
    %1876 = vmatprep.subr.bf16.mxu0 0
    %1877 = vmatpush1.bf16.msra.mxu0 0
    %1878 = vmatprep.subr.bf16.mxu0 0
    %1879 = vmatpush1.bf16.msra.mxu0 0
    %1880 = vmatprep.subr.bf16.mxu0 0
    %1881 = vmatpush1.bf16.msra.mxu0 0
    %1882 = vmatprep.subr.bf16.mxu0 0
    %1883 = vmatpush1.bf16.msra.mxu0 0
    %1884 = vmatprep.mubr.bf16.mxu0 0
    %1885 = vmatmul.mubr.bf16.gmra.mrb[0].mxu0 %v1850
    %v1886 = vpop.f32.mrb[0].mxu0
    %v1887 = vadd.f32 %v164, %v1886
    %v1888 = vpop.f32.mrb[0].mxu0
    %v1889 = vpop.f32.mrb[0].mxu0
    %v1890 = vadd.f32 %v164, %v1889
    %v1891 = vpop.f32.mrb[0].mxu0
    %1892 = vdwg.mxu0
    %v1893 = vld [vmem:[#allocation2] sm:$0xff]
    %v1894 = vld [vmem:[#allocation2 + $0x8] sm:$0xff]
    %v1895 = vmul.f32 %v1893, 0.5
    %v1896 = vmul.f32 %v1894, 0.5
    %v1897 = vadd.f32 %v1895, %v1887
    %v1898 = vadd.f32 %v1896, %v1890
    %v1899 = vld [vmem:[#allocation3] sm:$0xff]
    %v1900 = vld [vmem:[#allocation3 + $0x8] sm:$0xff]
    %v1901 = vmul.f32 %v1899, 0.75
    %v1902 = vmul.f32 %v1900, 0.75
    %v1903 = vadd.f32 %v1901, %v1897
    %v1904 = vadd.f32 %v1902, %v1898
    %v1905 = vld [vmem:[#allocation4] sm:$0xff]
    %v1906 = vld [vmem:[#allocation4 + $0x8] sm:$0xff]
    %v1907 = vmul.f32 %v1905, 0.2
    %v1908 = vmul.f32 %v1906, 0.2
    %v1909 = vsub.f32 %v1903, %v1907
    %v1910 = vsub.f32 %v1904, %v1908
    %vm1911 = vcmp.ge.f32.partialorder %v1909, 0.2
    %vm1912 = vcmp.ge.f32.partialorder %v1910, 0.2
    %v1913 = vsel %vm1911, 1, 0
    %v1914 = vsel %vm1912, 1, 0
    %v1915 = vcvt.s32.f32 %v1913
    %v1916 = vcvt.s32.f32 %v1914
    %vm1917 = vcmp.le.f32.partialorder %v1909, -0.2
    %vm1918 = vcmp.le.f32.partialorder %v1910, -0.2
    %v1919 = vsel %vm1917, 1, 0
    %v1920 = vsel %vm1918, 1, 0
    %v1921 = vcvt.s32.f32 %v1919
    %v1922 = vcvt.s32.f32 %v1920
    %v1923 = vsub.f32 %v1915, %v1921
    %v1924 = vsub.f32 %v1916, %v1922
    %1925 = vst [vmem:[#allocation2] sm:$0xff] %v1897
    %1926 = vst [vmem:[#allocation2 + $0x8] sm:$0xff] %v1898
    %1927 = vst [vmem:[#allocation3] sm:$0xff] %v1909
    %1928 = vst [vmem:[#allocation3 + $0x8] sm:$0xff] %v1910
    %1929 = vst [vmem:[#allocation4] sm:$0xff] %v1923
    %1930 = vst [vmem:[#allocation4 + $0x8] sm:$0xff] %v1924
    %v1931 = vpack.c.bf16 %v1924, %v1923
    %1932 = vmatprep.subr.bf16.mxu0 0
    %1933 = vmatpush1.bf16.msra.mxu0 %v338
    %1934 = vmatprep.subr.bf16.mxu0 0
    %1935 = vmatpush1.bf16.msra.mxu0 %v339
    %1936 = vmatprep.subr.bf16.mxu0 0
    %1937 = vmatpush1.bf16.msra.mxu0 %v340
    %1938 = vmatprep.subr.bf16.mxu0 0
    %1939 = vmatpush1.bf16.msra.mxu0 %v341
    %1940 = vmatprep.subr.bf16.mxu0 0
    %1941 = vmatpush1.bf16.msra.mxu0 %v342
    %1942 = vmatprep.subr.bf16.mxu0 0
    %1943 = vmatpush1.bf16.msra.mxu0 %v343
    %1944 = vmatprep.subr.bf16.mxu0 0
    %1945 = vmatpush1.bf16.msra.mxu0 %v344
    %1946 = vmatprep.subr.bf16.mxu0 0
    %1947 = vmatpush1.bf16.msra.mxu0 %v345
    %1948 = vmatprep.subr.bf16.mxu0 0
    %1949 = vmatpush1.bf16.msra.mxu0 0
    %1950 = vmatprep.subr.bf16.mxu0 0
    %1951 = vmatpush1.bf16.msra.mxu0 0
    %1952 = vmatprep.subr.bf16.mxu0 0
    %1953 = vmatpush1.bf16.msra.mxu0 0
    %1954 = vmatprep.subr.bf16.mxu0 0
    %1955 = vmatpush1.bf16.msra.mxu0 0
    %1956 = vmatprep.subr.bf16.mxu0 0
    %1957 = vmatpush1.bf16.msra.mxu0 0
    %1958 = vmatprep.subr.bf16.mxu0 0
    %1959 = vmatpush1.bf16.msra.mxu0 0
    %1960 = vmatprep.subr.bf16.mxu0 0
    %1961 = vmatpush1.bf16.msra.mxu0 0
    %1962 = vmatprep.subr.bf16.mxu0 0
    %1963 = vmatpush1.bf16.msra.mxu0 0
    %1964 = vmatprep.mubr.bf16.mxu0 0
    %1965 = vmatmul.mubr.bf16.gmra.mrb[0].mxu0 %v1931
    %v1966 = vpop.f32.mrb[0].mxu0
    %v1967 = vadd.f32 %v304, %v1966
    %v1968 = vpop.f32.mrb[0].mxu0
    %v1969 = vpop.f32.mrb[0].mxu0
    %v1970 = vadd.f32 %v304, %v1969
    %v1971 = vpop.f32.mrb[0].mxu0
    %1972 = vdwg.mxu0
    %v1973 = vld [vmem:[#allocation5] sm:$0xff]
    %v1974 = vld [vmem:[#allocation5 + $0x8] sm:$0xff]
    %v1975 = vmul.f32 %v1973, 0.5
    %v1976 = vmul.f32 %v1974, 0.5
    %v1977 = vadd.f32 %v1975, %v1967
    %v1978 = vadd.f32 %v1976, %v1970
    %v1979 = vld [vmem:[#allocation6] sm:$0xff]
    %v1980 = vld [vmem:[#allocation6 + $0x8] sm:$0xff]
    %v1981 = vmul.f32 %v1979, 0.75
    %v1982 = vmul.f32 %v1980, 0.75
    %v1983 = vadd.f32 %v1981, %v1977
    %v1984 = vadd.f32 %v1982, %v1978
    %v1985 = vld [vmem:[#allocation7] sm:$0xff]
    %v1986 = vld [vmem:[#allocation7 + $0x8] sm:$0xff]
    %v1987 = vmul.f32 %v1985, 0.2
    %v1988 = vmul.f32 %v1986, 0.2
    %v1989 = vsub.f32 %v1983, %v1987
    %v1990 = vsub.f32 %v1984, %v1988
    %vm1991 = vcmp.ge.f32.partialorder %v1989, 0.2
    %vm1992 = vcmp.ge.f32.partialorder %v1990, 0.2
    %v1993 = vsel %vm1991, 1, 0
    %v1994 = vsel %vm1992, 1, 0
    %v1995 = vcvt.s32.f32 %v1993
    %v1996 = vcvt.s32.f32 %v1994
    %vm1997 = vcmp.le.f32.partialorder %v1989, -0.2
    %vm1998 = vcmp.le.f32.partialorder %v1990, -0.2
    %v1999 = vsel %vm1997, 1, 0
    %v2000 = vsel %vm1998, 1, 0
    %v2001 = vcvt.s32.f32 %v1999
    %v2002 = vcvt.s32.f32 %v2000
    %v2003 = vsub.f32 %v1995, %v2001
    %v2004 = vsub.f32 %v1996, %v2002
    %2005 = vst [vmem:[#allocation5] sm:$0xff] %v1977
    %2006 = vst [vmem:[#allocation5 + $0x8] sm:$0xff] %v1978
    %2007 = vst [vmem:[#allocation6] sm:$0xff] %v1989
    %2008 = vst [vmem:[#allocation6 + $0x8] sm:$0xff] %v1990
    %2009 = vst [vmem:[#allocation7] sm:$0xff] %v2003
    %2010 = vst [vmem:[#allocation7 + $0x8] sm:$0xff] %v2004
    %v2011 = vpack.c.bf16 %v2004, %v2003
    %2012 = vmatprep.subr.bf16.mxu0 0
    %2013 = vmatpush1.bf16.msra.mxu0 %v472
    %2014 = vmatprep.subr.bf16.mxu0 0
    %2015 = vmatpush1.bf16.msra.mxu0 %v473
    %2016 = vmatprep.subr.bf16.mxu0 0
    %2017 = vmatpush1.bf16.msra.mxu0 %v474
    %2018 = vmatprep.subr.bf16.mxu0 0
    %2019 = vmatpush1.bf16.msra.mxu0 %v475
    %2020 = vmatprep.subr.bf16.mxu0 0
    %2021 = vmatpush1.bf16.msra.mxu0 %v476
    %2022 = vmatprep.subr.bf16.mxu0 0
    %2023 = vmatpush1.bf16.msra.mxu0 %v477
    %2024 = vmatprep.subr.bf16.mxu0 0
    %2025 = vmatpush1.bf16.msra.mxu0 %v478
    %2026 = vmatprep.subr.bf16.mxu0 0
    %2027 = vmatpush1.bf16.msra.mxu0 %v479
    %2028 = vmatprep.subr.bf16.mxu0 0
    %2029 = vmatpush1.bf16.msra.mxu0 0
    %2030 = vmatprep.subr.bf16.mxu0 0
    %2031 = vmatpush1.bf16.msra.mxu0 0
    %2032 = vmatprep.subr.bf16.mxu0 0
    %2033 = vmatpush1.bf16.msra.mxu0 0
    %2034 = vmatprep.subr.bf16.mxu0 0
    %2035 = vmatpush1.bf16.msra.mxu0 0
    %2036 = vmatprep.subr.bf16.mxu0 0
    %2037 = vmatpush1.bf16.msra.mxu0 0
    %2038 = vmatprep.subr.bf16.mxu0 0
    %2039 = vmatpush1.bf16.msra.mxu0 0
    %2040 = vmatprep.subr.bf16.mxu0 0
    %2041 = vmatpush1.bf16.msra.mxu0 0
    %2042 = vmatprep.subr.bf16.mxu0 0
    %2043 = vmatpush1.bf16.msra.mxu0 0
    %2044 = vmatprep.mubr.bf16.mxu0 0
    %2045 = vmatmul.mubr.bf16.gmra.mrb[0].mxu0 %v2011
    %v2046 = vpop.f32.mrb[0].mxu0
    %v2047 = vadd.f32 %v438, %v2046
    %v2048 = vpop.f32.mrb[0].mxu0
    %v2049 = vpop.f32.mrb[0].mxu0
    %v2050 = vadd.f32 %v438, %v2049
    %v2051 = vpop.f32.mrb[0].mxu0
    %2052 = vdwg.mxu0
    %v2053 = vld [vmem:[#allocation8] sm:$0xff]
    %v2054 = vld [vmem:[#allocation8 + $0x8] sm:$0xff]
    %v2055 = vmul.f32 %v2053, 0.5
    %v2056 = vmul.f32 %v2054, 0.5
    %v2057 = vadd.f32 %v2055, %v2047
    %v2058 = vadd.f32 %v2056, %v2050
    %v2059 = vld [vmem:[#allocation9] sm:$0xff]
    %v2060 = vld [vmem:[#allocation9 + $0x8] sm:$0xff]
    %v2061 = vmul.f32 %v2059, 0.75
    %v2062 = vmul.f32 %v2060, 0.75
    %v2063 = vadd.f32 %v2061, %v2057
    %v2064 = vadd.f32 %v2062, %v2058
    %v2065 = vld [vmem:[#allocation10] sm:$0xff]
    %v2066 = vld [vmem:[#allocation10 + $0x8] sm:$0xff]
    %v2067 = vmul.f32 %v2065, 0.2
    %v2068 = vmul.f32 %v2066, 0.2
    %v2069 = vsub.f32 %v2063, %v2067
    %v2070 = vsub.f32 %v2064, %v2068
    %vm2071 = vcmp.ge.f32.partialorder %v2069, 0.2
    %vm2072 = vcmp.ge.f32.partialorder %v2070, 0.2
    %v2073 = vsel %vm2071, 1, 0
    %v2074 = vsel %vm2072, 1, 0
    %v2075 = vcvt.s32.f32 %v2073
    %v2076 = vcvt.s32.f32 %v2074
    %vm2077 = vcmp.le.f32.partialorder %v2069, -0.2
    %vm2078 = vcmp.le.f32.partialorder %v2070, -0.2
    %v2079 = vsel %vm2077, 1, 0
    %v2080 = vsel %vm2078, 1, 0
    %v2081 = vcvt.s32.f32 %v2079
    %v2082 = vcvt.s32.f32 %v2080
    %v2083 = vsub.f32 %v2075, %v2081
    %v2084 = vsub.f32 %v2076, %v2082
    %2085 = vst [vmem:[#allocation8] sm:$0xff] %v2057
    %2086 = vst [vmem:[#allocation8 + $0x8] sm:$0xff] %v2058
    %2087 = vst [vmem:[#allocation9] sm:$0xff] %v2069
    %2088 = vst [vmem:[#allocation9 + $0x8] sm:$0xff] %v2070
    %2089 = vst [vmem:[#allocation10] sm:$0xff] %v2083
    %2090 = vst [vmem:[#allocation10 + $0x8] sm:$0xff] %v2084
    %v2091 = vld [vmem:[#allocation19] sm:$0xff]
    %v2092 = vld [vmem:[#allocation19 + $0x8] sm:$0xff]
    %v2093 = vadd.f32 %v2091, %v2083
    %v2094 = vadd.f32 %v2092, %v2084
    %2095 = vst [vmem:[#allocation19] sm:$0xff] %v2093
    %2096 = vst [vmem:[#allocation19 + $0x8] sm:$0xff] %v2094
    %s2097 = scalar_lea.vmem [#allocation11], 56
    %v2098 = vld [vmem:[%s2097] sm:$0xf]
    %v2099 = vld [vmem:[%s2097 + $0x4] sm:$0xf]
    %v2102 = vunpack.c.l.b16 %v2098
    %v2103 = vunpack.c.l.b16 %v2099
    %v2104 = vpack.c.b16 %v2103, %v2102
    %2106 = vmatprep.subr.bf16.mxu0 0
    %2107 = vmatpush1.bf16.msra.mxu0 %v204
    %2108 = vmatprep.subr.bf16.mxu0 0
    %2109 = vmatpush1.bf16.msra.mxu0 %v205
    %2110 = vmatprep.subr.bf16.mxu0 0
    %2111 = vmatpush1.bf16.msra.mxu0 %v206
    %2112 = vmatprep.subr.bf16.mxu0 0
    %2113 = vmatpush1.bf16.msra.mxu0 %v207
    %2114 = vmatprep.subr.bf16.mxu0 0
    %2115 = vmatpush1.bf16.msra.mxu0 %v208
    %2116 = vmatprep.subr.bf16.mxu0 0
    %2117 = vmatpush1.bf16.msra.mxu0 %v209
    %2118 = vmatprep.subr.bf16.mxu0 0
    %2119 = vmatpush1.bf16.msra.mxu0 %v210
    %2120 = vmatprep.subr.bf16.mxu0 0
    %2121 = vmatpush1.bf16.msra.mxu0 %v211
    %2122 = vmatprep.subr.bf16.mxu0 0
    %2123 = vmatpush1.bf16.msra.mxu0 0
    %2124 = vmatprep.subr.bf16.mxu0 0
    %2125 = vmatpush1.bf16.msra.mxu0 0
    %2126 = vmatprep.subr.bf16.mxu0 0
    %2127 = vmatpush1.bf16.msra.mxu0 0
    %2128 = vmatprep.subr.bf16.mxu0 0
    %2129 = vmatpush1.bf16.msra.mxu0 0
    %2130 = vmatprep.subr.bf16.mxu0 0
    %2131 = vmatpush1.bf16.msra.mxu0 0
    %2132 = vmatprep.subr.bf16.mxu0 0
    %2133 = vmatpush1.bf16.msra.mxu0 0
    %2134 = vmatprep.subr.bf16.mxu0 0
    %2135 = vmatpush1.bf16.msra.mxu0 0
    %2136 = vmatprep.subr.bf16.mxu0 0
    %2137 = vmatpush1.bf16.msra.mxu0 0
    %2138 = vmatprep.mubr.bf16.mxu0 0
    %2139 = vmatmul.mubr.bf16.gmra.mrb[0].mxu0 %v2104
    %v2140 = vpop.f32.mrb[0].mxu0
    %v2141 = vadd.f32 %v164, %v2140
    %v2142 = vpop.f32.mrb[0].mxu0
    %v2143 = vpop.f32.mrb[0].mxu0
    %v2144 = vadd.f32 %v164, %v2143
    %v2145 = vpop.f32.mrb[0].mxu0
    %2146 = vdwg.mxu0
    %v2147 = vld [vmem:[#allocation2] sm:$0xff]
    %v2148 = vld [vmem:[#allocation2 + $0x8] sm:$0xff]
    %v2149 = vmul.f32 %v2147, 0.5
    %v2150 = vmul.f32 %v2148, 0.5
    %v2151 = vadd.f32 %v2149, %v2141
    %v2152 = vadd.f32 %v2150, %v2144
    %v2153 = vld [vmem:[#allocation3] sm:$0xff]
    %v2154 = vld [vmem:[#allocation3 + $0x8] sm:$0xff]
    %v2155 = vmul.f32 %v2153, 0.75
    %v2156 = vmul.f32 %v2154, 0.75
    %v2157 = vadd.f32 %v2155, %v2151
    %v2158 = vadd.f32 %v2156, %v2152
    %v2159 = vld [vmem:[#allocation4] sm:$0xff]
    %v2160 = vld [vmem:[#allocation4 + $0x8] sm:$0xff]
    %v2161 = vmul.f32 %v2159, 0.2
    %v2162 = vmul.f32 %v2160, 0.2
    %v2163 = vsub.f32 %v2157, %v2161
    %v2164 = vsub.f32 %v2158, %v2162
    %vm2165 = vcmp.ge.f32.partialorder %v2163, 0.2
    %vm2166 = vcmp.ge.f32.partialorder %v2164, 0.2
    %v2167 = vsel %vm2165, 1, 0
    %v2168 = vsel %vm2166, 1, 0
    %v2169 = vcvt.s32.f32 %v2167
    %v2170 = vcvt.s32.f32 %v2168
    %vm2171 = vcmp.le.f32.partialorder %v2163, -0.2
    %vm2172 = vcmp.le.f32.partialorder %v2164, -0.2
    %v2173 = vsel %vm2171, 1, 0
    %v2174 = vsel %vm2172, 1, 0
    %v2175 = vcvt.s32.f32 %v2173
    %v2176 = vcvt.s32.f32 %v2174
    %v2177 = vsub.f32 %v2169, %v2175
    %v2178 = vsub.f32 %v2170, %v2176
    %2179 = vst [vmem:[#allocation2] sm:$0xff] %v2151
    %2180 = vst [vmem:[#allocation2 + $0x8] sm:$0xff] %v2152
    %2181 = vst [vmem:[#allocation3] sm:$0xff] %v2163
    %2182 = vst [vmem:[#allocation3 + $0x8] sm:$0xff] %v2164
    %2183 = vst [vmem:[#allocation4] sm:$0xff] %v2177
    %2184 = vst [vmem:[#allocation4 + $0x8] sm:$0xff] %v2178
    %v2185 = vpack.c.bf16 %v2178, %v2177
    %2186 = vmatprep.subr.bf16.mxu0 0
    %2187 = vmatpush1.bf16.msra.mxu0 %v338
    %2188 = vmatprep.subr.bf16.mxu0 0
    %2189 = vmatpush1.bf16.msra.mxu0 %v339
    %2190 = vmatprep.subr.bf16.mxu0 0
    %2191 = vmatpush1.bf16.msra.mxu0 %v340
    %2192 = vmatprep.subr.bf16.mxu0 0
    %2193 = vmatpush1.bf16.msra.mxu0 %v341
    %2194 = vmatprep.subr.bf16.mxu0 0
    %2195 = vmatpush1.bf16.msra.mxu0 %v342
    %2196 = vmatprep.subr.bf16.mxu0 0
    %2197 = vmatpush1.bf16.msra.mxu0 %v343
    %2198 = vmatprep.subr.bf16.mxu0 0
    %2199 = vmatpush1.bf16.msra.mxu0 %v344
    %2200 = vmatprep.subr.bf16.mxu0 0
    %2201 = vmatpush1.bf16.msra.mxu0 %v345
    %2202 = vmatprep.subr.bf16.mxu0 0
    %2203 = vmatpush1.bf16.msra.mxu0 0
    %2204 = vmatprep.subr.bf16.mxu0 0
    %2205 = vmatpush1.bf16.msra.mxu0 0
    %2206 = vmatprep.subr.bf16.mxu0 0
    %2207 = vmatpush1.bf16.msra.mxu0 0
    %2208 = vmatprep.subr.bf16.mxu0 0
    %2209 = vmatpush1.bf16.msra.mxu0 0
    %2210 = vmatprep.subr.bf16.mxu0 0
    %2211 = vmatpush1.bf16.msra.mxu0 0
    %2212 = vmatprep.subr.bf16.mxu0 0
    %2213 = vmatpush1.bf16.msra.mxu0 0
    %2214 = vmatprep.subr.bf16.mxu0 0
    %2215 = vmatpush1.bf16.msra.mxu0 0
    %2216 = vmatprep.subr.bf16.mxu0 0
    %2217 = vmatpush1.bf16.msra.mxu0 0
    %2218 = vmatprep.mubr.bf16.mxu0 0
    %2219 = vmatmul.mubr.bf16.gmra.mrb[0].mxu0 %v2185
    %v2220 = vpop.f32.mrb[0].mxu0
    %v2221 = vadd.f32 %v304, %v2220
    %v2222 = vpop.f32.mrb[0].mxu0
    %v2223 = vpop.f32.mrb[0].mxu0
    %v2224 = vadd.f32 %v304, %v2223
    %v2225 = vpop.f32.mrb[0].mxu0
    %2226 = vdwg.mxu0
    %v2227 = vld [vmem:[#allocation5] sm:$0xff]
    %v2228 = vld [vmem:[#allocation5 + $0x8] sm:$0xff]
    %v2229 = vmul.f32 %v2227, 0.5
    %v2230 = vmul.f32 %v2228, 0.5
    %v2231 = vadd.f32 %v2229, %v2221
    %v2232 = vadd.f32 %v2230, %v2224
    %v2233 = vld [vmem:[#allocation6] sm:$0xff]
    %v2234 = vld [vmem:[#allocation6 + $0x8] sm:$0xff]
    %v2235 = vmul.f32 %v2233, 0.75
    %v2236 = vmul.f32 %v2234, 0.75
    %v2237 = vadd.f32 %v2235, %v2231
    %v2238 = vadd.f32 %v2236, %v2232
    %v2239 = vld [vmem:[#allocation7] sm:$0xff]
    %v2240 = vld [vmem:[#allocation7 + $0x8] sm:$0xff]
    %v2241 = vmul.f32 %v2239, 0.2
    %v2242 = vmul.f32 %v2240, 0.2
    %v2243 = vsub.f32 %v2237, %v2241
    %v2244 = vsub.f32 %v2238, %v2242
    %vm2245 = vcmp.ge.f32.partialorder %v2243, 0.2
    %vm2246 = vcmp.ge.f32.partialorder %v2244, 0.2
    %v2247 = vsel %vm2245, 1, 0
    %v2248 = vsel %vm2246, 1, 0
    %v2249 = vcvt.s32.f32 %v2247
    %v2250 = vcvt.s32.f32 %v2248
    %vm2251 = vcmp.le.f32.partialorder %v2243, -0.2
    %vm2252 = vcmp.le.f32.partialorder %v2244, -0.2
    %v2253 = vsel %vm2251, 1, 0
    %v2254 = vsel %vm2252, 1, 0
    %v2255 = vcvt.s32.f32 %v2253
    %v2256 = vcvt.s32.f32 %v2254
    %v2257 = vsub.f32 %v2249, %v2255
    %v2258 = vsub.f32 %v2250, %v2256
    %2259 = vst [vmem:[#allocation5] sm:$0xff] %v2231
    %2260 = vst [vmem:[#allocation5 + $0x8] sm:$0xff] %v2232
    %2261 = vst [vmem:[#allocation6] sm:$0xff] %v2243
    %2262 = vst [vmem:[#allocation6 + $0x8] sm:$0xff] %v2244
    %2263 = vst [vmem:[#allocation7] sm:$0xff] %v2257
    %2264 = vst [vmem:[#allocation7 + $0x8] sm:$0xff] %v2258
    %v2265 = vpack.c.bf16 %v2258, %v2257
    %2266 = vmatprep.subr.bf16.mxu0 0
    %2267 = vmatpush1.bf16.msra.mxu0 %v472
    %2268 = vmatprep.subr.bf16.mxu0 0
    %2269 = vmatpush1.bf16.msra.mxu0 %v473
    %2270 = vmatprep.subr.bf16.mxu0 0
    %2271 = vmatpush1.bf16.msra.mxu0 %v474
    %2272 = vmatprep.subr.bf16.mxu0 0
    %2273 = vmatpush1.bf16.msra.mxu0 %v475
    %2274 = vmatprep.subr.bf16.mxu0 0
    %2275 = vmatpush1.bf16.msra.mxu0 %v476
    %2276 = vmatprep.subr.bf16.mxu0 0
    %2277 = vmatpush1.bf16.msra.mxu0 %v477
    %2278 = vmatprep.subr.bf16.mxu0 0
    %2279 = vmatpush1.bf16.msra.mxu0 %v478
    %2280 = vmatprep.subr.bf16.mxu0 0
    %2281 = vmatpush1.bf16.msra.mxu0 %v479
    %2282 = vmatprep.subr.bf16.mxu0 0
    %2283 = vmatpush1.bf16.msra.mxu0 0
    %2284 = vmatprep.subr.bf16.mxu0 0
    %2285 = vmatpush1.bf16.msra.mxu0 0
    %2286 = vmatprep.subr.bf16.mxu0 0
    %2287 = vmatpush1.bf16.msra.mxu0 0
    %2288 = vmatprep.subr.bf16.mxu0 0
    %2289 = vmatpush1.bf16.msra.mxu0 0
    %2290 = vmatprep.subr.bf16.mxu0 0
    %2291 = vmatpush1.bf16.msra.mxu0 0
    %2292 = vmatprep.subr.bf16.mxu0 0
    %2293 = vmatpush1.bf16.msra.mxu0 0
    %2294 = vmatprep.subr.bf16.mxu0 0
    %2295 = vmatpush1.bf16.msra.mxu0 0
    %2296 = vmatprep.subr.bf16.mxu0 0
    %2297 = vmatpush1.bf16.msra.mxu0 0
    %2298 = vmatprep.mubr.bf16.mxu0 0
    %2299 = vmatmul.mubr.bf16.gmra.mrb[0].mxu0 %v2265
    %v2300 = vpop.f32.mrb[0].mxu0
    %v2301 = vadd.f32 %v438, %v2300
    %v2302 = vpop.f32.mrb[0].mxu0
    %v2303 = vpop.f32.mrb[0].mxu0
    %v2304 = vadd.f32 %v438, %v2303
    %v2305 = vpop.f32.mrb[0].mxu0
    %2306 = vdwg.mxu0
    %v2307 = vld [vmem:[#allocation8] sm:$0xff]
    %v2308 = vld [vmem:[#allocation8 + $0x8] sm:$0xff]
    %v2309 = vmul.f32 %v2307, 0.5
    %v2310 = vmul.f32 %v2308, 0.5
    %v2311 = vadd.f32 %v2309, %v2301
    %v2312 = vadd.f32 %v2310, %v2304
    %v2313 = vld [vmem:[#allocation9] sm:$0xff]
    %v2314 = vld [vmem:[#allocation9 + $0x8] sm:$0xff]
    %v2315 = vmul.f32 %v2313, 0.75
    %v2316 = vmul.f32 %v2314, 0.75
    %v2317 = vadd.f32 %v2315, %v2311
    %v2318 = vadd.f32 %v2316, %v2312
    %v2319 = vld [vmem:[#allocation10] sm:$0xff]
    %v2320 = vld [vmem:[#allocation10 + $0x8] sm:$0xff]
    %v2321 = vmul.f32 %v2319, 0.2
    %v2322 = vmul.f32 %v2320, 0.2
    %v2323 = vsub.f32 %v2317, %v2321
    %v2324 = vsub.f32 %v2318, %v2322
    %vm2325 = vcmp.ge.f32.partialorder %v2323, 0.2
    %vm2326 = vcmp.ge.f32.partialorder %v2324, 0.2
    %v2327 = vsel %vm2325, 1, 0
    %v2328 = vsel %vm2326, 1, 0
    %v2329 = vcvt.s32.f32 %v2327
    %v2330 = vcvt.s32.f32 %v2328
    %vm2331 = vcmp.le.f32.partialorder %v2323, -0.2
    %vm2332 = vcmp.le.f32.partialorder %v2324, -0.2
    %v2333 = vsel %vm2331, 1, 0
    %v2334 = vsel %vm2332, 1, 0
    %v2335 = vcvt.s32.f32 %v2333
    %v2336 = vcvt.s32.f32 %v2334
    %v2337 = vsub.f32 %v2329, %v2335
    %v2338 = vsub.f32 %v2330, %v2336
    %2339 = vst [vmem:[#allocation8] sm:$0xff] %v2311
    %2340 = vst [vmem:[#allocation8 + $0x8] sm:$0xff] %v2312
    %2341 = vst [vmem:[#allocation9] sm:$0xff] %v2323
    %2342 = vst [vmem:[#allocation9 + $0x8] sm:$0xff] %v2324
    %2343 = vst [vmem:[#allocation10] sm:$0xff] %v2337
    %2344 = vst [vmem:[#allocation10 + $0x8] sm:$0xff] %v2338
    %v2345 = vld [vmem:[#allocation19] sm:$0xff]
    %v2346 = vld [vmem:[#allocation19 + $0x8] sm:$0xff]
    %v2347 = vadd.f32 %v2345, %v2337
    %v2348 = vadd.f32 %v2346, %v2338
    %2349 = vst [vmem:[#allocation19] sm:$0xff] %v2347
    %2350 = vst [vmem:[#allocation19 + $0x8] sm:$0xff] %v2348
    // Predicated region
    $region50: #{tpu_custom_call.1} parent=1 // pred_check
      %p2351 = pneg %p83
    $region51: #{tpu_custom_call.1} parent=1 // pred_check_branch
      %2353 = sbr.rel (%p2351) target = $region53
    $region52: #{tpu_custom_call.1} parent=1 // pred_region
      %v2354 = vld [vmem:[#allocation19] sm:$0xff]
      %v2355 = vld [vmem:[#allocation19 + $0x8] sm:$0xff]
      %v2356 = vmul.f32 %v2354, 0.125
      %v2357 = vmul.f32 %v2355, 0.125
      %2358 = vst [vmem:[#allocation19] sm:$0xff] %v2356
      %2359 = vst [vmem:[#allocation19 + $0x8] sm:$0xff] %v2357
    $region53: #{tpu_custom_call.1} parent=1 // pred_fallthru
      _
    // Predicated region
    $region54: #{tpu_custom_call.1} parent=1 // pred_check
      _
    $region55: #{tpu_custom_call.1} parent=1 // pred_check_branch
      %2361 = sbr.rel (0) target = $region57
    $region56: #{tpu_custom_call.1} parent=1 // pred_region
      %s2363 = ssub.s32 256, 256
      %2364 = vsyncadd [#allocation13], %s2363
      %s2365 = sshll.u32 [#allocation19], 4
      %s2366 = int_to_ptr.vmem [resolvable:$true] %s2365
      %2371 = dma.vmem_to_hbm [thread:$0]  %s2366, 256, %s7, [#allocation13], 128, 128, 8
    $region57: #{tpu_custom_call.1} parent=1 // pred_fallthru
      _
    // Predicated region
    $region58: #{tpu_custom_call.1} parent=1 // pred_check
      _
    $region59: #{tpu_custom_call.1} parent=1 // pred_check_branch
      %2373 = sbr.rel (0) target = $region61
    $region60: #{tpu_custom_call.1} parent=1 // pred_region
      %2374 = dma.done [#allocation13], 256
    $region61: #{tpu_custom_call.1} parent=1 // pred_fallthru
      _
    %2375 = vsyncpa [#allocation12], 1
    %2376 = vsyncpa [#allocation15], 1
    %2377 = vsyncpa [#allocation18], 1
    %2378 = vsyncpa [#allocation13], 1

// kernel: tpu_custom_call.1
$region0: #{tpu_custom_call.1}
  #allocation0 [shape = 'u32[]', space=smem, size = 0x4, offset = 0x4, fixed_abs, tag = 'smem constant byte address 0x4 - core index']
  #allocation1 [shape = 'u32[144,128]{1,0:T(1,128)}', space=vmem, size = 0x12000, scoped, tag = 'internal scratch']
  #allocation2 [shape = 'f32[16,128]{1,0:T(8,128)}', space=vmem, size = 0x2000, scoped, tag = 'scratch operand']
  #allocation3 [shape = 'f32[16,128]{1,0:T(8,128)}', space=vmem, size = 0x2000, scoped, tag = 'scratch operand']
  #allocation4 [shape = 'f32[16,128]{1,0:T(8,128)}', space=vmem, size = 0x2000, scoped, tag = 'scratch operand']
  #allocation5 [shape = 'f32[16,128]{1,0:T(8,128)}', space=vmem, size = 0x2000, scoped, tag = 'scratch operand']
  #allocation6 [shape = 'f32[16,128]{1,0:T(8,128)}', space=vmem, size = 0x2000, scoped, tag = 'scratch operand']
  #allocation7 [shape = 'f32[16,128]{1,0:T(8,128)}', space=vmem, size = 0x2000, scoped, tag = 'scratch operand']
  #allocation8 [shape = 'f32[16,128]{1,0:T(8,128)}', space=vmem, size = 0x2000, scoped, tag = 'scratch operand']
  #allocation9 [shape = 'f32[16,128]{1,0:T(8,128)}', space=vmem, size = 0x2000, scoped, tag = 'scratch operand']
  #allocation10 [shape = 'f32[16,128]{1,0:T(8,128)}', space=vmem, size = 0x2000, scoped, tag = 'scratch operand']
  %s0 = inlined_call_operand.hbm [shape: bf16[8,16,128], index: 0, kind: input, shape index: {}]
  %s1 = inlined_call_operand.hbm [shape: bf16[128,128], index: 1, kind: input, shape index: {}]
  %s2 = inlined_call_operand.vmem [shape: f32[1,128], index: 2, kind: input, shape index: {}]
  %s3 = inlined_call_operand.hbm [shape: bf16[128,128], index: 3, kind: input, shape index: {}]
  %s4 = inlined_call_operand.vmem [shape: f32[1,128], index: 4, kind: input, shape index: {}]
  %s5 = inlined_call_operand.hbm [shape: bf16[128,128], index: 5, kind: input, shape index: {}]
  %s6 = inlined_call_operand.vmem [shape: f32[1,128], index: 6, kind: input, shape index: {}]
  %s7 = inlined_call_operand.hbm [shape: f32[16,128], index: 7, kind: output, shape index: {}]
  %s8 = sld [smem:[#allocation0]]
  $region62: #{tpu_custom_call.1} parent=0
    _
  %s10 = ssub.s32 1, %s8
  %s11 = scalar_select 0, %s10, %s8
  $region1: #{tpu_custom_call.1} parent=0
    #allocation11 [shape = 'u8[32768]{0}', space=vmem, size = 0x8000, scoped, tag = 'input window, operand 0, single buffered']
    #allocation12 [shape = 's32[1]{0}', space=sflag, size = 0x4, scoped, tag = 'scoped memory for tpu_custom_call.1']
    #allocation13 [shape = 's32[1]{0}', space=sflag, size = 0x4, scoped, tag = 'scoped memory for tpu_custom_call.1']
    #allocation14 [shape = 'u8[32768]{0}', space=vmem, size = 0x8000, scoped, tag = 'input window, operand 1, single buffered']
    #allocation15 [shape = 's32[1]{0}', space=sflag, size = 0x4, scoped, tag = 'scoped memory for tpu_custom_call.1']
    #allocation16 [shape = 'u8[32768]{0}', space=vmem, size = 0x8000, scoped, tag = 'input window, operand 3, single buffered']
    #allocation17 [shape = 'u8[32768]{0}', space=vmem, size = 0x8000, scoped, tag = 'input window, operand 5, single buffered']
    #allocation18 [shape = 's32[1]{0}', space=sflag, size = 0x4, scoped, tag = 'scoped memory for tpu_custom_call.1']
    #allocation19 [shape = 'u8[8192]{0}', space=vmem, size = 0x2000, scoped, tag = 'output window, operand 0, single buffered']
    %12 = vsyncpa [#allocation12], 0
    %13 = vsyncpa [#allocation15], 0
    %14 = vsyncpa [#allocation18], 0
    %15 = vsyncpa [#allocation13], 0
    // Predicated region
    $region2: #{tpu_custom_call.1} parent=1 // pred_check
      _
    $region3: #{tpu_custom_call.1} parent=1 // pred_check_branch
      %17 = sbr.rel (0) target = $region5
    $region4: #{tpu_custom_call.1} parent=1 // pred_region
      %s19 = ssub.s32 1024, 1024
      %20 = vsyncadd [#allocation12], %s19
      %s21 = sshll.u32 [#allocation11], 4
      %s22 = int_to_ptr.vmem [resolvable:$true] %s21
      %27 = dma.hbm_to_vmem [thread:$0]  %s0, 1024, %s22, [#allocation12], 64, 64, 4
    $region5: #{tpu_custom_call.1} parent=1 // pred_fallthru
      _
    // Predicated region
    $region6: #{tpu_custom_call.1} parent=1 // pred_check
      _
    $region7: #{tpu_custom_call.1} parent=1 // pred_check_branch
      %29 = sbr.rel (0) target = $region9
    $region8: #{tpu_custom_call.1} parent=1 // pred_region
      %s31 = ssub.s32 1024, 1024
      %32 = vsyncadd [#allocation15], %s31
      %s33 = sshll.u32 [#allocation14], 4
      %s34 = int_to_ptr.vmem [resolvable:$true] %s33
      %39 = dma.hbm_to_vmem [thread:$0]  %s1, 1024, %s34, [#allocation15], 64, 64, 4
    $region9: #{tpu_custom_call.1} parent=1 // pred_fallthru
      _
    // Predicated region
    $region10: #{tpu_custom_call.1} parent=1 // pred_check
      _
    $region11: #{tpu_custom_call.1} parent=1 // pred_check_branch
      %41 = sbr.rel (0) target = $region13
    $region12: #{tpu_custom_call.1} parent=1 // pred_region
      _
    $region13: #{tpu_custom_call.1} parent=1 // pred_fallthru
      _
    // Predicated region
    $region14: #{tpu_custom_call.1} parent=1 // pred_check
      _
    $region15: #{tpu_custom_call.1} parent=1 // pred_check_branch
      %43 = sbr.rel (0) target = $region17
    $region16: #{tpu_custom_call.1} parent=1 // pred_region
      %s45 = ssub.s32 1024, 1024
      %46 = vsyncadd [#allocation15], %s45
      %s47 = sshll.u32 [#allocation16], 4
      %s48 = int_to_ptr.vmem [resolvable:$true] %s47
      %53 = dma.hbm_to_vmem [thread:$0]  %s3, 1024, %s48, [#allocation15], 64, 64, 4
    $region17: #{tpu_custom_call.1} parent=1 // pred_fallthru
      _
    // Predicated region
    $region18: #{tpu_custom_call.1} parent=1 // pred_check
      _
    $region19: #{tpu_custom_call.1} parent=1 // pred_check_branch
      %55 = sbr.rel (0) target = $region21
    $region20: #{tpu_custom_call.1} parent=1 // pred_region
      _
    $region21: #{tpu_custom_call.1} parent=1 // pred_fallthru
      _
    // Predicated region
    $region22: #{tpu_custom_call.1} parent=1 // pred_check
      _
    $region23: #{tpu_custom_call.1} parent=1 // pred_check_branch
      %57 = sbr.rel (0) target = $region25
    $region24: #{tpu_custom_call.1} parent=1 // pred_region
      %s59 = ssub.s32 1024, 1024
      %60 = vsyncadd [#allocation18], %s59
      %s61 = sshll.u32 [#allocation17], 4
      %s62 = int_to_ptr.vmem [resolvable:$true] %s61
      %67 = dma.hbm_to_vmem [thread:$0]  %s5, 1024, %s62, [#allocation18], 64, 64, 4
    $region25: #{tpu_custom_call.1} parent=1 // pred_fallthru
      _
    // Predicated region
    $region26: #{tpu_custom_call.1} parent=1 // pred_check
      _
    $region27: #{tpu_custom_call.1} parent=1 // pred_check_branch
      %69 = sbr.rel (0) target = $region29
    $region28: #{tpu_custom_call.1} parent=1 // pred_region
      _
    $region29: #{tpu_custom_call.1} parent=1 // pred_fallthru
      _
    // Predicated region
    $region30: #{tpu_custom_call.1} parent=1 // pred_check
      _
    $region31: #{tpu_custom_call.1} parent=1 // pred_check_branch
      %71 = sbr.rel (0) target = $region33
    $region32: #{tpu_custom_call.1} parent=1 // pred_region
      %72 = dma.done [#allocation12], 1024
    $region33: #{tpu_custom_call.1} parent=1 // pred_fallthru
      _
    // Predicated region
    $region34: #{tpu_custom_call.1} parent=1 // pred_check
      _
    $region35: #{tpu_custom_call.1} parent=1 // pred_check_branch
      %74 = sbr.rel (0) target = $region37
    $region36: #{tpu_custom_call.1} parent=1 // pred_region
      %75 = dma.done [#allocation15], 1024
    $region37: #{tpu_custom_call.1} parent=1 // pred_fallthru
      _
    // Predicated region
    $region38: #{tpu_custom_call.1} parent=1 // pred_check
      _
    $region39: #{tpu_custom_call.1} parent=1 // pred_check_branch
      %77 = sbr.rel (0) target = $region41
    $region40: #{tpu_custom_call.1} parent=1 // pred_region
      %78 = dma.done [#allocation15], 1024
    $region41: #{tpu_custom_call.1} parent=1 // pred_fallthru
      _
    // Predicated region
    $region42: #{tpu_custom_call.1} parent=1 // pred_check
      _
    $region43: #{tpu_custom_call.1} parent=1 // pred_check_branch
      %80 = sbr.rel (0) target = $region45
    $region44: #{tpu_custom_call.1} parent=1 // pred_region
      %81 = dma.done [#allocation18], 1024
    $region45: #{tpu_custom_call.1} parent=1 // pred_fallthru
      _
    %p83 = scmp.eq.s32.totalorder 0, 0
    // Predicated region
    $region46: #{tpu_custom_call.1} parent=1 // pred_check
      %p84 = pneg %p83
    $region47: #{tpu_custom_call.1} parent=1 // pred_check_branch
      %86 = sbr.rel (%p84) target = $region49
    $region48: #{tpu_custom_call.1} parent=1 // pred_region
      %87 = vst [vmem:[#allocation2] sm:$0xff] 0.0
      %88 = vst [vmem:[#allocation2 + $0x8] sm:$0xff] 0.0
      %89 = vst [vmem:[#allocation3] sm:$0xff] 0.0
      %90 = vst [vmem:[#allocation3 + $0x8] sm:$0xff] 0.0
      %91 = vst [vmem:[#allocation4] sm:$0xff] 0.0
      %92 = vst [vmem:[#allocation4 + $0x8] sm:$0xff] 0.0
      %93 = vst [vmem:[#allocation5] sm:$0xff] 0.0
      %94 = vst [vmem:[#allocation5 + $0x8] sm:$0xff] 0.0
      %95 = vst [vmem:[#allocation6] sm:$0xff] 0.0
      %96 = vst [vmem:[#allocation6 + $0x8] sm:$0xff] 0.0
      %97 = vst [vmem:[#allocation7] sm:$0xff] 0.0
      %98 = vst [vmem:[#allocation7 + $0x8] sm:$0xff] 0.0
      %99 = vst [vmem:[#allocation8] sm:$0xff] 0.0
      %100 = vst [vmem:[#allocation8 + $0x8] sm:$0xff] 0.0
      %101 = vst [vmem:[#allocation9] sm:$0xff] 0.0
      %102 = vst [vmem:[#allocation9 + $0x8] sm:$0xff] 0.0
      %103 = vst [vmem:[#allocation10] sm:$0xff] 0.0
      %104 = vst [vmem:[#allocation10 + $0x8] sm:$0xff] 0.0
      %105 = vst [vmem:[#allocation19] sm:$0xff] 0.0
      %106 = vst [vmem:[#allocation19 + $0x8] sm:$0xff] 0.0
    $region49: #{tpu_custom_call.1} parent=1 // pred_fallthru
      _
    %v107 = vld [vmem:[#allocation14] sm:$0xf]
    %v108 = vld [vmem:[#allocation14 + $0x4] sm:$0xf]
    %v109 = vld [vmem:[#allocation14 + $0x8] sm:$0xf]
    %v110 = vld [vmem:[#allocation14 + $0xc] sm:$0xf]
    %v111 = vld [vmem:[#allocation14 + $0x10] sm:$0xf]
    %v112 = vld [vmem:[#allocation14 + $0x14] sm:$0xf]
    %v113 = vld [vmem:[#allocation14 + $0x18] sm:$0xf]
    %v114 = vld [vmem:[#allocation14 + $0x1c] sm:$0xf]
    %v115 = vld [vmem:[#allocation14 + $0x20] sm:$0xf]
    %v116 = vld [vmem:[#allocation14 + $0x24] sm:$0xf]
    %v117 = vld [vmem:[#allocation14 + $0x28] sm:$0xf]
    %v118 = vld [vmem:[#allocation14 + $0x2c] sm:$0xf]
    %v119 = vld [vmem:[#allocation14 + $0x30] sm:$0xf]
    %v120 = vld [vmem:[#allocation14 + $0x34] sm:$0xf]
    %v121 = vld [vmem:[#allocation14 + $0x38] sm:$0xf]
    %v122 = vld [vmem:[#allocation14 + $0x3c] sm:$0xf]
    %v123 = vld [vmem:[#allocation16] sm:$0xf]
    %v124 = vld [vmem:[#allocation16 + $0x4] sm:$0xf]
    %v125 = vld [vmem:[#allocation16 + $0x8] sm:$0xf]
    %v126 = vld [vmem:[#allocation16 + $0xc] sm:$0xf]
    %v127 = vld [vmem:[#allocation16 + $0x10] sm:$0xf]
    %v128 = vld [vmem:[#allocation16 + $0x14] sm:$0xf]
    %v129 = vld [vmem:[#allocation16 + $0x18] sm:$0xf]
    %v130 = vld [vmem:[#allocation16 + $0x1c] sm:$0xf]
    %v131 = vld [vmem:[#allocation16 + $0x20] sm:$0xf]
    %v132 = vld [vmem:[#allocation16 + $0x24] sm:$0xf]
    %v133 = vld [vmem:[#allocation16 + $0x28] sm:$0xf]
    %v134 = vld [vmem:[#allocation16 + $0x2c] sm:$0xf]
    %v135 = vld [vmem:[#allocation16 + $0x30] sm:$0xf]
    %v136 = vld [vmem:[#allocation16 + $0x34] sm:$0xf]
    %v137 = vld [vmem:[#allocation16 + $0x38] sm:$0xf]
    %v138 = vld [vmem:[#allocation16 + $0x3c] sm:$0xf]
    %v139 = vld [vmem:[#allocation17] sm:$0xf]
    %v140 = vld [vmem:[#allocation17 + $0x4] sm:$0xf]
    %v141 = vld [vmem:[#allocation17 + $0x8] sm:$0xf]
    %v142 = vld [vmem:[#allocation17 + $0xc] sm:$0xf]
    %v143 = vld [vmem:[#allocation17 + $0x10] sm:$0xf]
    %v144 = vld [vmem:[#allocation17 + $0x14] sm:$0xf]
    %v145 = vld [vmem:[#allocation17 + $0x18] sm:$0xf]
    %v146 = vld [vmem:[#allocation17 + $0x1c] sm:$0xf]
    %v147 = vld [vmem:[#allocation17 + $0x20] sm:$0xf]
    %v148 = vld [vmem:[#allocation17 + $0x24] sm:$0xf]
    %v149 = vld [vmem:[#allocation17 + $0x28] sm:$0xf]
    %v150 = vld [vmem:[#allocation17 + $0x2c] sm:$0xf]
    %v151 = vld [vmem:[#allocation17 + $0x30] sm:$0xf]
    %v152 = vld [vmem:[#allocation17 + $0x34] sm:$0xf]
    %v153 = vld [vmem:[#allocation17 + $0x38] sm:$0xf]
    %v154 = vld [vmem:[#allocation17 + $0x3c] sm:$0xf]
    %v155 = vld [vmem:[%s2] sm:$0x1]
    %v156 = vld [vmem:[%s4] sm:$0x1]
    %v157 = vld [vmem:[%s6] sm:$0x1]
    %v158 = vld [vmem:[#allocation11] sm:$0xf]
    %v159 = vld [vmem:[#allocation11 + $0x4] sm:$0xf]
    %v161 = vlaneseq
    %v162 = vshrl.u32 %v161, 7
    %v163 = vsub.s32 0, %v162
    %v164 = vrot.slane %v155, %v163
    %v168 = vunpack.c.l.b16 %v158
    %v169 = vunpack.c.l.b16 %v159
    %v170 = vpack.c.b16 %v169, %v168
    %v188 = vunpack.c.l.b16 %v107
    %v189 = vunpack.c.l.b16 %v108
    %v190 = vunpack.c.l.b16 %v109
    %v191 = vunpack.c.l.b16 %v110
    %v192 = vunpack.c.l.b16 %v111
    %v193 = vunpack.c.l.b16 %v112
    %v194 = vunpack.c.l.b16 %v113
    %v195 = vunpack.c.l.b16 %v114
    %v196 = vunpack.c.l.b16 %v115
    %v197 = vunpack.c.l.b16 %v116
    %v198 = vunpack.c.l.b16 %v117
    %v199 = vunpack.c.l.b16 %v118
    %v200 = vunpack.c.l.b16 %v119
    %v201 = vunpack.c.l.b16 %v120
    %v202 = vunpack.c.l.b16 %v121
    %v203 = vunpack.c.l.b16 %v122
    %v204 = vpack.c.b16 %v189, %v188
    %v205 = vpack.c.b16 %v191, %v190
    %v206 = vpack.c.b16 %v193, %v192
    %v207 = vpack.c.b16 %v195, %v194
    %v208 = vpack.c.b16 %v197, %v196
    %v209 = vpack.c.b16 %v199, %v198
    %v210 = vpack.c.b16 %v201, %v200
    %v211 = vpack.c.b16 %v203, %v202
    %220 = vmatprep.subr.bf16.mxu0 0
    %221 = vmatpush1.bf16.msra.mxu0 %v204
    %222 = vmatprep.subr.bf16.mxu0 0
    %223 = vmatpush1.bf16.msra.mxu0 %v205
    %224 = vmatprep.subr.bf16.mxu0 0
    %225 = vmatpush1.bf16.msra.mxu0 %v206
    %226 = vmatprep.subr.bf16.mxu0 0
    %227 = vmatpush1.bf16.msra.mxu0 %v207
    %228 = vmatprep.subr.bf16.mxu0 0
    %229 = vmatpush1.bf16.msra.mxu0 %v208
    %230 = vmatprep.subr.bf16.mxu0 0
    %231 = vmatpush1.bf16.msra.mxu0 %v209
    %232 = vmatprep.subr.bf16.mxu0 0
    %233 = vmatpush1.bf16.msra.mxu0 %v210
    %234 = vmatprep.subr.bf16.mxu0 0
    %235 = vmatpush1.bf16.msra.mxu0 %v211
    %236 = vmatprep.subr.bf16.mxu0 0
    %237 = vmatpush1.bf16.msra.mxu0 0
    %238 = vmatprep.subr.bf16.mxu0 0
    %239 = vmatpush1.bf16.msra.mxu0 0
    %240 = vmatprep.subr.bf16.mxu0 0
    %241 = vmatpush1.bf16.msra.mxu0 0
    %242 = vmatprep.subr.bf16.mxu0 0
    %243 = vmatpush1.bf16.msra.mxu0 0
    %244 = vmatprep.subr.bf16.mxu0 0
    %245 = vmatpush1.bf16.msra.mxu0 0
    %246 = vmatprep.subr.bf16.mxu0 0
    %247 = vmatpush1.bf16.msra.mxu0 0
    %248 = vmatprep.subr.bf16.mxu0 0
    %249 = vmatpush1.bf16.msra.mxu0 0
    %250 = vmatprep.subr.bf16.mxu0 0
    %251 = vmatpush1.bf16.msra.mxu0 0
    %252 = vmatprep.mubr.bf16.mxu0 0
    %253 = vmatmul.mubr.bf16.gmra.mrb[0].mxu0 %v170
    %v254 = vpop.f32.mrb[0].mxu0
    %v255 = vadd.f32 %v164, %v254
    %v256 = vpop.f32.mrb[0].mxu0
    %v257 = vpop.f32.mrb[0].mxu0
    %v258 = vadd.f32 %v164, %v257
    %v259 = vpop.f32.mrb[0].mxu0
    %260 = vdwg.mxu0
    %v261 = vld [vmem:[#allocation2] sm:$0xff]
    %v262 = vld [vmem:[#allocation2 + $0x8] sm:$0xff]
    %v263 = vmul.f32 %v261, 0.5
    %v264 = vmul.f32 %v262, 0.5
    %v265 = vadd.f32 %v263, %v255
    %v266 = vadd.f32 %v264, %v258
    %v267 = vld [vmem:[#allocation3] sm:$0xff]
    %v268 = vld [vmem:[#allocation3 + $0x8] sm:$0xff]
    %v269 = vmul.f32 %v267, 0.75
    %v270 = vmul.f32 %v268, 0.75
    %v271 = vadd.f32 %v269, %v265
    %v272 = vadd.f32 %v270, %v266
    %v273 = vld [vmem:[#allocation4] sm:$0xff]
    %v274 = vld [vmem:[#allocation4 + $0x8] sm:$0xff]
    %v275 = vmul.f32 %v273, 0.2
    %v276 = vmul.f32 %v274, 0.2
    %v277 = vsub.f32 %v271, %v275
    %v278 = vsub.f32 %v272, %v276
    %vm279 = vcmp.ge.f32.partialorder %v277, 0.2
    %vm280 = vcmp.ge.f32.partialorder %v278, 0.2
    %v281 = vsel %vm279, 1, 0
    %v282 = vsel %vm280, 1, 0
    %v283 = vcvt.s32.f32 %v281
    %v284 = vcvt.s32.f32 %v282
    %vm285 = vcmp.le.f32.partialorder %v277, -0.2
    %vm286 = vcmp.le.f32.partialorder %v278, -0.2
    %v287 = vsel %vm285, 1, 0
    %v288 = vsel %vm286, 1, 0
    %v289 = vcvt.s32.f32 %v287
    %v290 = vcvt.s32.f32 %v288
    %v291 = vsub.f32 %v283, %v289
    %v292 = vsub.f32 %v284, %v290
    %293 = vst [vmem:[#allocation2] sm:$0xff] %v265
    %294 = vst [vmem:[#allocation2 + $0x8] sm:$0xff] %v266
    %295 = vst [vmem:[#allocation3] sm:$0xff] %v277
    %296 = vst [vmem:[#allocation3 + $0x8] sm:$0xff] %v278
    %297 = vst [vmem:[#allocation4] sm:$0xff] %v291
    %298 = vst [vmem:[#allocation4 + $0x8] sm:$0xff] %v292
    %v299 = vpack.c.bf16 %v292, %v291
    %v301 = vlaneseq
    %v302 = vshrl.u32 %v301, 7
    %v303 = vsub.s32 0, %v302
    %v304 = vrot.slane %v156, %v303
    %v322 = vunpack.c.l.b16 %v123
    %v323 = vunpack.c.l.b16 %v124
    %v324 = vunpack.c.l.b16 %v125
    %v325 = vunpack.c.l.b16 %v126
    %v326 = vunpack.c.l.b16 %v127
    %v327 = vunpack.c.l.b16 %v128
    %v328 = vunpack.c.l.b16 %v129
    %v329 = vunpack.c.l.b16 %v130
    %v330 = vunpack.c.l.b16 %v131
    %v331 = vunpack.c.l.b16 %v132
    %v332 = vunpack.c.l.b16 %v133
    %v333 = vunpack.c.l.b16 %v134
    %v334 = vunpack.c.l.b16 %v135
    %v335 = vunpack.c.l.b16 %v136
    %v336 = vunpack.c.l.b16 %v137
    %v337 = vunpack.c.l.b16 %v138
    %v338 = vpack.c.b16 %v323, %v322
    %v339 = vpack.c.b16 %v325, %v324
    %v340 = vpack.c.b16 %v327, %v326
    %v341 = vpack.c.b16 %v329, %v328
    %v342 = vpack.c.b16 %v331, %v330
    %v343 = vpack.c.b16 %v333, %v332
    %v344 = vpack.c.b16 %v335, %v334
    %v345 = vpack.c.b16 %v337, %v336
    %354 = vmatprep.subr.bf16.mxu0 0
    %355 = vmatpush1.bf16.msra.mxu0 %v338
    %356 = vmatprep.subr.bf16.mxu0 0
    %357 = vmatpush1.bf16.msra.mxu0 %v339
    %358 = vmatprep.subr.bf16.mxu0 0
    %359 = vmatpush1.bf16.msra.mxu0 %v340
    %360 = vmatprep.subr.bf16.mxu0 0
    %361 = vmatpush1.bf16.msra.mxu0 %v341
    %362 = vmatprep.subr.bf16.mxu0 0
    %363 = vmatpush1.bf16.msra.mxu0 %v342
    %364 = vmatprep.subr.bf16.mxu0 0
    %365 = vmatpush1.bf16.msra.mxu0 %v343
    %366 = vmatprep.subr.bf16.mxu0 0
    %367 = vmatpush1.bf16.msra.mxu0 %v344
    %368 = vmatprep.subr.bf16.mxu0 0
    %369 = vmatpush1.bf16.msra.mxu0 %v345
    %370 = vmatprep.subr.bf16.mxu0 0
    %371 = vmatpush1.bf16.msra.mxu0 0
    %372 = vmatprep.subr.bf16.mxu0 0
    %373 = vmatpush1.bf16.msra.mxu0 0
    %374 = vmatprep.subr.bf16.mxu0 0
    %375 = vmatpush1.bf16.msra.mxu0 0
    %376 = vmatprep.subr.bf16.mxu0 0
    %377 = vmatpush1.bf16.msra.mxu0 0
    %378 = vmatprep.subr.bf16.mxu0 0
    %379 = vmatpush1.bf16.msra.mxu0 0
    %380 = vmatprep.subr.bf16.mxu0 0
    %381 = vmatpush1.bf16.msra.mxu0 0
    %382 = vmatprep.subr.bf16.mxu0 0
    %383 = vmatpush1.bf16.msra.mxu0 0
    %384 = vmatprep.subr.bf16.mxu0 0
    %385 = vmatpush1.bf16.msra.mxu0 0
    %386 = vmatprep.mubr.bf16.mxu0 0
    %387 = vmatmul.mubr.bf16.gmra.mrb[0].mxu0 %v299
    %v388 = vpop.f32.mrb[0].mxu0
    %v389 = vadd.f32 %v304, %v388
    %v390 = vpop.f32.mrb[0].mxu0
    %v391 = vpop.f32.mrb[0].mxu0
    %v392 = vadd.f32 %v304, %v391
    %v393 = vpop.f32.mrb[0].mxu0
    %394 = vdwg.mxu0
    %v395 = vld [vmem:[#allocation5] sm:$0xff]
    %v396 = vld [vmem:[#allocation5 + $0x8] sm:$0xff]
    %v397 = vmul.f32 %v395, 0.5
    %v398 = vmul.f32 %v396, 0.5
    %v399 = vadd.f32 %v397, %v389
    %v400 = vadd.f32 %v398, %v392
    %v401 = vld [vmem:[#allocation6] sm:$0xff]
    %v402 = vld [vmem:[#allocation6 + $0x8] sm:$0xff]
    %v403 = vmul.f32 %v401, 0.75
    %v404 = vmul.f32 %v402, 0.75
    %v405 = vadd.f32 %v403, %v399
    %v406 = vadd.f32 %v404, %v400
    %v407 = vld [vmem:[#allocation7] sm:$0xff]
    %v408 = vld [vmem:[#allocation7 + $0x8] sm:$0xff]
    %v409 = vmul.f32 %v407, 0.2
    %v410 = vmul.f32 %v408, 0.2
    %v411 = vsub.f32 %v405, %v409
    %v412 = vsub.f32 %v406, %v410
    %vm413 = vcmp.ge.f32.partialorder %v411, 0.2
    %vm414 = vcmp.ge.f32.partialorder %v412, 0.2
    %v415 = vsel %vm413, 1, 0
    %v416 = vsel %vm414, 1, 0
    %v417 = vcvt.s32.f32 %v415
    %v418 = vcvt.s32.f32 %v416
    %vm419 = vcmp.le.f32.partialorder %v411, -0.2
    %vm420 = vcmp.le.f32.partialorder %v412, -0.2
    %v421 = vsel %vm419, 1, 0
    %v422 = vsel %vm420, 1, 0
    %v423 = vcvt.s32.f32 %v421
    %v424 = vcvt.s32.f32 %v422
    %v425 = vsub.f32 %v417, %v423
    %v426 = vsub.f32 %v418, %v424
    %427 = vst [vmem:[#allocation5] sm:$0xff] %v399
    %428 = vst [vmem:[#allocation5 + $0x8] sm:$0xff] %v400
    %429 = vst [vmem:[#allocation6] sm:$0xff] %v411
    %430 = vst [vmem:[#allocation6 + $0x8] sm:$0xff] %v412
    %431 = vst [vmem:[#allocation7] sm:$0xff] %v425
    %432 = vst [vmem:[#allocation7 + $0x8] sm:$0xff] %v426
    %v433 = vpack.c.bf16 %v426, %v425
    %v435 = vlaneseq
    %v436 = vshrl.u32 %v435, 7
    %v437 = vsub.s32 0, %v436
    %v438 = vrot.slane %v157, %v437
    %v456 = vunpack.c.l.b16 %v139
    %v457 = vunpack.c.l.b16 %v140
    %v458 = vunpack.c.l.b16 %v141
    %v459 = vunpack.c.l.b16 %v142
    %v460 = vunpack.c.l.b16 %v143
    %v461 = vunpack.c.l.b16 %v144
    %v462 = vunpack.c.l.b16 %v145
    %v463 = vunpack.c.l.b16 %v146
    %v464 = vunpack.c.l.b16 %v147
    %v465 = vunpack.c.l.b16 %v148
    %v466 = vunpack.c.l.b16 %v149
    %v467 = vunpack.c.l.b16 %v150
    %v468 = vunpack.c.l.b16 %v151
    %v469 = vunpack.c.l.b16 %v152
    %v470 = vunpack.c.l.b16 %v153
    %v471 = vunpack.c.l.b16 %v154
    %v472 = vpack.c.b16 %v457, %v456
    %v473 = vpack.c.b16 %v459, %v458
    %v474 = vpack.c.b16 %v461, %v460
    %v475 = vpack.c.b16 %v463, %v462
    %v476 = vpack.c.b16 %v465, %v464
    %v477 = vpack.c.b16 %v467, %v466
    %v478 = vpack.c.b16 %v469, %v468
    %v479 = vpack.c.b16 %v471, %v470
    %488 = vmatprep.subr.bf16.mxu0 0
    %489 = vmatpush1.bf16.msra.mxu0 %v472
    %490 = vmatprep.subr.bf16.mxu0 0
    %491 = vmatpush1.bf16.msra.mxu0 %v473
    %492 = vmatprep.subr.bf16.mxu0 0
    %493 = vmatpush1.bf16.msra.mxu0 %v474
    %494 = vmatprep.subr.bf16.mxu0 0
    %495 = vmatpush1.bf16.msra.mxu0 %v475
    %496 = vmatprep.subr.bf16.mxu0 0
    %497 = vmatpush1.bf16.msra.mxu0 %v476
    %498 = vmatprep.subr.bf16.mxu0 0
    %499 = vmatpush1.bf16.msra.mxu0 %v477
    %500 = vmatprep.subr.bf16.mxu0 0
    %501 = vmatpush1.bf16.msra.mxu0 %v478
    %502 = vmatprep.subr.bf16.mxu0 0
    %503 = vmatpush1.bf16.msra.mxu0 %v479
    %504 = vmatprep.subr.bf16.mxu0 0
    %505 = vmatpush1.bf16.msra.mxu0 0
    %506 = vmatprep.subr.bf16.mxu0 0
    %507 = vmatpush1.bf16.msra.mxu0 0
    %508 = vmatprep.subr.bf16.mxu0 0
    %509 = vmatpush1.bf16.msra.mxu0 0
    %510 = vmatprep.subr.bf16.mxu0 0
    %511 = vmatpush1.bf16.msra.mxu0 0
    %512 = vmatprep.subr.bf16.mxu0 0
    %513 = vmatpush1.bf16.msra.mxu0 0
    %514 = vmatprep.subr.bf16.mxu0 0
    %515 = vmatpush1.bf16.msra.mxu0 0
    %516 = vmatprep.subr.bf16.mxu0 0
    %517 = vmatpush1.bf16.msra.mxu0 0
    %518 = vmatprep.subr.bf16.mxu0 0
    %519 = vmatpush1.bf16.msra.mxu0 0
    %520 = vmatprep.mubr.bf16.mxu0 0
    %521 = vmatmul.mubr.bf16.gmra.mrb[0].mxu0 %v433
    %v522 = vpop.f32.mrb[0].mxu0
    %v523 = vadd.f32 %v438, %v522
    %v524 = vpop.f32.mrb[0].mxu0
    %v525 = vpop.f32.mrb[0].mxu0
    %v526 = vadd.f32 %v438, %v525
    %v527 = vpop.f32.mrb[0].mxu0
    %528 = vdwg.mxu0
    %v529 = vld [vmem:[#allocation8] sm:$0xff]
    %v530 = vld [vmem:[#allocation8 + $0x8] sm:$0xff]
    %v531 = vmul.f32 %v529, 0.5
    %v532 = vmul.f32 %v530, 0.5
    %v533 = vadd.f32 %v531, %v523
    %v534 = vadd.f32 %v532, %v526
    %v535 = vld [vmem:[#allocation9] sm:$0xff]
    %v536 = vld [vmem:[#allocation9 + $0x8] sm:$0xff]
    %v537 = vmul.f32 %v535, 0.75
    %v538 = vmul.f32 %v536, 0.75
    %v539 = vadd.f32 %v537, %v533
    %v540 = vadd.f32 %v538, %v534
    %v541 = vld [vmem:[#allocation10] sm:$0xff]
    %v542 = vld [vmem:[#allocation10 + $0x8] sm:$0xff]
    %v543 = vmul.f32 %v541, 0.2
    %v544 = vmul.f32 %v542, 0.2
    %v545 = vsub.f32 %v539, %v543
    %v546 = vsub.f32 %v540, %v544
    %vm547 = vcmp.ge.f32.partialorder %v545, 0.2
    %vm548 = vcmp.ge.f32.partialorder %v546, 0.2
    %v549 = vsel %vm547, 1, 0
    %v550 = vsel %vm548, 1, 0
    %v551 = vcvt.s32.f32 %v549
    %v552 = vcvt.s32.f32 %v550
    %vm553 = vcmp.le.f32.partialorder %v545, -0.2
    %vm554 = vcmp.le.f32.partialorder %v546, -0.2
    %v555 = vsel %vm553, 1, 0
    %v556 = vsel %vm554, 1, 0
    %v557 = vcvt.s32.f32 %v555
    %v558 = vcvt.s32.f32 %v556
    %v559 = vsub.f32 %v551, %v557
    %v560 = vsub.f32 %v552, %v558
    %561 = vst [vmem:[#allocation8] sm:$0xff] %v533
    %562 = vst [vmem:[#allocation8 + $0x8] sm:$0xff] %v534
    %563 = vst [vmem:[#allocation9] sm:$0xff] %v545
    %564 = vst [vmem:[#allocation9 + $0x8] sm:$0xff] %v546
    %565 = vst [vmem:[#allocation10] sm:$0xff] %v559
    %566 = vst [vmem:[#allocation10 + $0x8] sm:$0xff] %v560
    %v567 = vld [vmem:[#allocation19] sm:$0xff]
    %v568 = vld [vmem:[#allocation19 + $0x8] sm:$0xff]
    %v569 = vadd.f32 %v567, %v559
    %v570 = vadd.f32 %v568, %v560
    %571 = vst [vmem:[#allocation19] sm:$0xff] %v569
    %572 = vst [vmem:[#allocation19 + $0x8] sm:$0xff] %v570
    %s573 = scalar_lea.vmem [#allocation11], 8
    %v574 = vld [vmem:[%s573] sm:$0xf]
    %v575 = vld [vmem:[%s573 + $0x4] sm:$0xf]
    %v578 = vunpack.c.l.b16 %v574
    %v579 = vunpack.c.l.b16 %v575
    %v580 = vpack.c.b16 %v579, %v578
    %582 = vmatprep.subr.bf16.mxu0 0
    %583 = vmatpush1.bf16.msra.mxu0 %v204
    %584 = vmatprep.subr.bf16.mxu0 0
    %585 = vmatpush1.bf16.msra.mxu0 %v205
    %586 = vmatprep.subr.bf16.mxu0 0
    %587 = vmatpush1.bf16.msra.mxu0 %v206
    %588 = vmatprep.subr.bf16.mxu0 0
    %589 = vmatpush1.bf16.msra.mxu0 %v207
    %590 = vmatprep.subr.bf16.mxu0 0
    %591 = vmatpush1.bf16.msra.mxu0 %v208
    %592 = vmatprep.subr.bf16.mxu0 0
    %593 = vmatpush1.bf16.msra.mxu0 %v209
    %594 = vmatprep.subr.bf16.mxu0 0
    %595 = vmatpush1.bf16.msra.mxu0 %v210
    %596 = vmatprep.subr.bf16.mxu0 0
    %597 = vmatpush1.bf16.msra.mxu0 %v211
    %598 = vmatprep.subr.bf16.mxu0 0
    %599 = vmatpush1.bf16.msra.mxu0 0
    %600 = vmatprep.subr.bf16.mxu0 0
    %601 = vmatpush1.bf16.msra.mxu0 0
    %602 = vmatprep.subr.bf16.mxu0 0
    %603 = vmatpush1.bf16.msra.mxu0 0
    %604 = vmatprep.subr.bf16.mxu0 0
    %605 = vmatpush1.bf16.msra.mxu0 0
    %606 = vmatprep.subr.bf16.mxu0 0
    %607 = vmatpush1.bf16.msra.mxu0 0
    %608 = vmatprep.subr.bf16.mxu0 0
    %609 = vmatpush1.bf16.msra.mxu0 0
    %610 = vmatprep.subr.bf16.mxu0 0
    %611 = vmatpush1.bf16.msra.mxu0 0
    %612 = vmatprep.subr.bf16.mxu0 0
    %613 = vmatpush1.bf16.msra.mxu0 0
    %614 = vmatprep.mubr.bf16.mxu0 0
    %615 = vmatmul.mubr.bf16.gmra.mrb[0].mxu0 %v580
    %v616 = vpop.f32.mrb[0].mxu0
    %v617 = vadd.f32 %v164, %v616
    %v618 = vpop.f32.mrb[0].mxu0
    %v619 = vpop.f32.mrb[0].mxu0
    %v620 = vadd.f32 %v164, %v619
    %v621 = vpop.f32.mrb[0].mxu0
    %622 = vdwg.mxu0
    %v623 = vld [vmem:[#allocation2] sm:$0xff]
    %v624 = vld [vmem:[#allocation2 + $0x8] sm:$0xff]
    %v625 = vmul.f32 %v623, 0.5
    %v626 = vmul.f32 %v624, 0.5
    %v627 = vadd.f32 %v625, %v617
    %v628 = vadd.f32 %v626, %v620
    %v629 = vld [vmem:[#allocation3] sm:$0xff]
    %v630 = vld [vmem:[#allocation3 + $0x8] sm:$0xff]
    %v631 = vmul.f32 %v629, 0.75
    %v632 = vmul.f32 %v630, 0.75
    %v633 = vadd.f32 %v631, %v627
    %v634 = vadd.f32 %v632, %v628
    %v635 = vld [vmem:[#allocation4] sm:$0xff]
    %v636 = vld [vmem:[#allocation4 + $0x8] sm:$0xff]
    %v637 = vmul.f32 %v635, 0.2
    %v638 = vmul.f32 %v636, 0.2
    %v639 = vsub.f32 %v633, %v637
    %v640 = vsub.f32 %v634, %v638
    %vm641 = vcmp.ge.f32.partialorder %v639, 0.2
    %vm642 = vcmp.ge.f32.partialorder %v640, 0.2
    %v643 = vsel %vm641, 1, 0
    %v644 = vsel %vm642, 1, 0
    %v645 = vcvt.s32.f32 %v643
    %v646 = vcvt.s32.f32 %v644
    %vm647 = vcmp.le.f32.partialorder %v639, -0.2
    %vm648 = vcmp.le.f32.partialorder %v640, -0.2
    %v649 = vsel %vm647, 1, 0
    %v650 = vsel %vm648, 1, 0
    %v651 = vcvt.s32.f32 %v649
    %v652 = vcvt.s32.f32 %v650
    %v653 = vsub.f32 %v645, %v651
    %v654 = vsub.f32 %v646, %v652
    %655 = vst [vmem:[#allocation2] sm:$0xff] %v627
    %656 = vst [vmem:[#allocation2 + $0x8] sm:$0xff] %v628
    %657 = vst [vmem:[#allocation3] sm:$0xff] %v639
    %658 = vst [vmem:[#allocation3 + $0x8] sm:$0xff] %v640
    %659 = vst [vmem:[#allocation4] sm:$0xff] %v653
    %660 = vst [vmem:[#allocation4 + $0x8] sm:$0xff] %v654
    %v661 = vpack.c.bf16 %v654, %v653
    %662 = vmatprep.subr.bf16.mxu0 0
    %663 = vmatpush1.bf16.msra.mxu0 %v338
    %664 = vmatprep.subr.bf16.mxu0 0
    %665 = vmatpush1.bf16.msra.mxu0 %v339
    %666 = vmatprep.subr.bf16.mxu0 0
    %667 = vmatpush1.bf16.msra.mxu0 %v340
    %668 = vmatprep.subr.bf16.mxu0 0
    %669 = vmatpush1.bf16.msra.mxu0 %v341
    %670 = vmatprep.subr.bf16.mxu0 0
    %671 = vmatpush1.bf16.msra.mxu0 %v342
    %672 = vmatprep.subr.bf16.mxu0 0
    %673 = vmatpush1.bf16.msra.mxu0 %v343
    %674 = vmatprep.subr.bf16.mxu0 0
    %675 = vmatpush1.bf16.msra.mxu0 %v344
    %676 = vmatprep.subr.bf16.mxu0 0
    %677 = vmatpush1.bf16.msra.mxu0 %v345
    %678 = vmatprep.subr.bf16.mxu0 0
    %679 = vmatpush1.bf16.msra.mxu0 0
    %680 = vmatprep.subr.bf16.mxu0 0
    %681 = vmatpush1.bf16.msra.mxu0 0
    %682 = vmatprep.subr.bf16.mxu0 0
    %683 = vmatpush1.bf16.msra.mxu0 0
    %684 = vmatprep.subr.bf16.mxu0 0
    %685 = vmatpush1.bf16.msra.mxu0 0
    %686 = vmatprep.subr.bf16.mxu0 0
    %687 = vmatpush1.bf16.msra.mxu0 0
    %688 = vmatprep.subr.bf16.mxu0 0
    %689 = vmatpush1.bf16.msra.mxu0 0
    %690 = vmatprep.subr.bf16.mxu0 0
    %691 = vmatpush1.bf16.msra.mxu0 0
    %692 = vmatprep.subr.bf16.mxu0 0
    %693 = vmatpush1.bf16.msra.mxu0 0
    %694 = vmatprep.mubr.bf16.mxu0 0
    %695 = vmatmul.mubr.bf16.gmra.mrb[0].mxu0 %v661
    %v696 = vpop.f32.mrb[0].mxu0
    %v697 = vadd.f32 %v304, %v696
    %v698 = vpop.f32.mrb[0].mxu0
    %v699 = vpop.f32.mrb[0].mxu0
    %v700 = vadd.f32 %v304, %v699
    %v701 = vpop.f32.mrb[0].mxu0
    %702 = vdwg.mxu0
    %v703 = vld [vmem:[#allocation5] sm:$0xff]
    %v704 = vld [vmem:[#allocation5 + $0x8] sm:$0xff]
    %v705 = vmul.f32 %v703, 0.5
    %v706 = vmul.f32 %v704, 0.5
    %v707 = vadd.f32 %v705, %v697
    %v708 = vadd.f32 %v706, %v700
    %v709 = vld [vmem:[#allocation6] sm:$0xff]
    %v710 = vld [vmem:[#allocation6 + $0x8] sm:$0xff]
    %v711 = vmul.f32 %v709, 0.75
    %v712 = vmul.f32 %v710, 0.75
    %v713 = vadd.f32 %v711, %v707
    %v714 = vadd.f32 %v712, %v708
    %v715 = vld [vmem:[#allocation7] sm:$0xff]
    %v716 = vld [vmem:[#allocation7 + $0x8] sm:$0xff]
    %v717 = vmul.f32 %v715, 0.2
    %v718 = vmul.f32 %v716, 0.2
    %v719 = vsub.f32 %v713, %v717
    %v720 = vsub.f32 %v714, %v718
    %vm721 = vcmp.ge.f32.partialorder %v719, 0.2
    %vm722 = vcmp.ge.f32.partialorder %v720, 0.2
    %v723 = vsel %vm721, 1, 0
    %v724 = vsel %vm722, 1, 0
    %v725 = vcvt.s32.f32 %v723
    %v726 = vcvt.s32.f32 %v724
    %vm727 = vcmp.le.f32.partialorder %v719, -0.2
    %vm728 = vcmp.le.f32.partialorder %v720, -0.2
    %v729 = vsel %vm727, 1, 0
    %v730 = vsel %vm728, 1, 0
    %v731 = vcvt.s32.f32 %v729
    %v732 = vcvt.s32.f32 %v730
    %v733 = vsub.f32 %v725, %v731
    %v734 = vsub.f32 %v726, %v732
    %735 = vst [vmem:[#allocation5] sm:$0xff] %v707
    %736 = vst [vmem:[#allocation5 + $0x8] sm:$0xff] %v708
    %737 = vst [vmem:[#allocation6] sm:$0xff] %v719
    %738 = vst [vmem:[#allocation6 + $0x8] sm:$0xff] %v720
    %739 = vst [vmem:[#allocation7] sm:$0xff] %v733
    %740 = vst [vmem:[#allocation7 + $0x8] sm:$0xff] %v734
    %v741 = vpack.c.bf16 %v734, %v733
    %742 = vmatprep.subr.bf16.mxu0 0
    %743 = vmatpush1.bf16.msra.mxu0 %v472
    %744 = vmatprep.subr.bf16.mxu0 0
    %745 = vmatpush1.bf16.msra.mxu0 %v473
    %746 = vmatprep.subr.bf16.mxu0 0
    %747 = vmatpush1.bf16.msra.mxu0 %v474
    %748 = vmatprep.subr.bf16.mxu0 0
    %749 = vmatpush1.bf16.msra.mxu0 %v475
    %750 = vmatprep.subr.bf16.mxu0 0
    %751 = vmatpush1.bf16.msra.mxu0 %v476
    %752 = vmatprep.subr.bf16.mxu0 0
    %753 = vmatpush1.bf16.msra.mxu0 %v477
    %754 = vmatprep.subr.bf16.mxu0 0
    %755 = vmatpush1.bf16.msra.mxu0 %v478
    %756 = vmatprep.subr.bf16.mxu0 0
    %757 = vmatpush1.bf16.msra.mxu0 %v479
    %758 = vmatprep.subr.bf16.mxu0 0
    %759 = vmatpush1.bf16.msra.mxu0 0
    %760 = vmatprep.subr.bf16.mxu0 0
    %761 = vmatpush1.bf16.msra.mxu0 0
    %762 = vmatprep.subr.bf16.mxu0 0
    %763 = vmatpush1.bf16.msra.mxu0 0
    %764 = vmatprep.subr.bf16.mxu0 0
    %765 = vmatpush1.bf16.msra.mxu0 0
    %766 = vmatprep.subr.bf16.mxu0 0
    %767 = vmatpush1.bf16.msra.mxu0 0
    %768 = vmatprep.subr.bf16.mxu0 0
    %769 = vmatpush1.bf16.msra.mxu0 0
    %770 = vmatprep.subr.bf16.mxu0 0
    %771 = vmatpush1.bf16.msra.mxu0 0
    %772 = vmatprep.subr.bf16.mxu0 0
    %773 = vmatpush1.bf16.msra.mxu0 0
    %774 = vmatprep.mubr.bf16.mxu0 0
    %775 = vmatmul.mubr.bf16.gmra.mrb[0].mxu0 %v741
    %v776 = vpop.f32.mrb[0].mxu0
    %v777 = vadd.f32 %v438, %v776
    %v778 = vpop.f32.mrb[0].mxu0
    %v779 = vpop.f32.mrb[0].mxu0
    %v780 = vadd.f32 %v438, %v779
    %v781 = vpop.f32.mrb[0].mxu0
    %782 = vdwg.mxu0
    %v783 = vld [vmem:[#allocation8] sm:$0xff]
    %v784 = vld [vmem:[#allocation8 + $0x8] sm:$0xff]
    %v785 = vmul.f32 %v783, 0.5
    %v786 = vmul.f32 %v784, 0.5
    %v787 = vadd.f32 %v785, %v777
    %v788 = vadd.f32 %v786, %v780
    %v789 = vld [vmem:[#allocation9] sm:$0xff]
    %v790 = vld [vmem:[#allocation9 + $0x8] sm:$0xff]
    %v791 = vmul.f32 %v789, 0.75
    %v792 = vmul.f32 %v790, 0.75
    %v793 = vadd.f32 %v791, %v787
    %v794 = vadd.f32 %v792, %v788
    %v795 = vld [vmem:[#allocation10] sm:$0xff]
    %v796 = vld [vmem:[#allocation10 + $0x8] sm:$0xff]
    %v797 = vmul.f32 %v795, 0.2
    %v798 = vmul.f32 %v796, 0.2
    %v799 = vsub.f32 %v793, %v797
    %v800 = vsub.f32 %v794, %v798
    %vm801 = vcmp.ge.f32.partialorder %v799, 0.2
    %vm802 = vcmp.ge.f32.partialorder %v800, 0.2
    %v803 = vsel %vm801, 1, 0
    %v804 = vsel %vm802, 1, 0
    %v805 = vcvt.s32.f32 %v803
    %v806 = vcvt.s32.f32 %v804
    %vm807 = vcmp.le.f32.partialorder %v799, -0.2
    %vm808 = vcmp.le.f32.partialorder %v800, -0.2
    %v809 = vsel %vm807, 1, 0
    %v810 = vsel %vm808, 1, 0
    %v811 = vcvt.s32.f32 %v809
    %v812 = vcvt.s32.f32 %v810
    %v813 = vsub.f32 %v805, %v811
    %v814 = vsub.f32 %v806, %v812
    %815 = vst [vmem:[#allocation8] sm:$0xff] %v787
    %816 = vst [vmem:[#allocation8 + $0x8] sm:$0xff] %v788
    %817 = vst [vmem:[#allocation9] sm:$0xff] %v799
    %818 = vst [vmem:[#allocation9 + $0x8] sm:$0xff] %v800
    %819 = vst [vmem:[#allocation10] sm:$0xff] %v813
    %820 = vst [vmem:[#allocation10 + $0x8] sm:$0xff] %v814
    %v821 = vld [vmem:[#allocation19] sm:$0xff]
    %v822 = vld [vmem:[#allocation19 + $0x8] sm:$0xff]
    %v823 = vadd.f32 %v821, %v813
    %v824 = vadd.f32 %v822, %v814
    %825 = vst [vmem:[#allocation19] sm:$0xff] %v823
    %826 = vst [vmem:[#allocation19 + $0x8] sm:$0xff] %v824
    %s827 = scalar_lea.vmem [#allocation11], 16
    %v828 = vld [vmem:[%s827] sm:$0xf]
    %v829 = vld [vmem:[%s827 + $0x4] sm:$0xf]
    %v832 = vunpack.c.l.b16 %v828
    %v833 = vunpack.c.l.b16 %v829
    %v834 = vpack.c.b16 %v833, %v832
    %836 = vmatprep.subr.bf16.mxu0 0
    %837 = vmatpush1.bf16.msra.mxu0 %v204
    %838 = vmatprep.subr.bf16.mxu0 0
    %839 = vmatpush1.bf16.msra.mxu0 %v205
    %840 = vmatprep.subr.bf16.mxu0 0
    %841 = vmatpush1.bf16.msra.mxu0 %v206
    %842 = vmatprep.subr.bf16.mxu0 0
    %843 = vmatpush1.bf16.msra.mxu0 %v207
    %844 = vmatprep.subr.bf16.mxu0 0
    %845 = vmatpush1.bf16.msra.mxu0 %v208
    %846 = vmatprep.subr.bf16.mxu0 0
    %847 = vmatpush1.bf16.msra.mxu0 %v209
    %848 = vmatprep.subr.bf16.mxu0 0
    %849 = vmatpush1.bf16.msra.mxu0 %v210
    %850 = vmatprep.subr.bf16.mxu0 0
    %851 = vmatpush1.bf16.msra.mxu0 %v211
    %852 = vmatprep.subr.bf16.mxu0 0
    %853 = vmatpush1.bf16.msra.mxu0 0
    %854 = vmatprep.subr.bf16.mxu0 0
    %855 = vmatpush1.bf16.msra.mxu0 0
    %856 = vmatprep.subr.bf16.mxu0 0
    %857 = vmatpush1.bf16.msra.mxu0 0
    %858 = vmatprep.subr.bf16.mxu0 0
    %859 = vmatpush1.bf16.msra.mxu0 0
    %860 = vmatprep.subr.bf16.mxu0 0
    %861 = vmatpush1.bf16.msra.mxu0 0
    %862 = vmatprep.subr.bf16.mxu0 0
    %863 = vmatpush1.bf16.msra.mxu0 0
    %864 = vmatprep.subr.bf16.mxu0 0
    %865 = vmatpush1.bf16.msra.mxu0 0
    %866 = vmatprep.subr.bf16.mxu0 0
    %867 = vmatpush1.bf16.msra.mxu0 0
    %868 = vmatprep.mubr.bf16.mxu0 0
    %869 = vmatmul.mubr.bf16.gmra.mrb[0].mxu0 %v834
    %v870 = vpop.f32.mrb[0].mxu0
    %v871 = vadd.f32 %v164, %v870
    %v872 = vpop.f32.mrb[0].mxu0
    %v873 = vpop.f32.mrb[0].mxu0
    %v874 = vadd.f32 %v164, %v873
    %v875 = vpop.f32.mrb[0].mxu0
    %876 = vdwg.mxu0
    %v877 = vld [vmem:[#allocation2] sm:$0xff]
    %v878 = vld [vmem:[#allocation2 + $0x8] sm:$0xff]
    %v879 = vmul.f32 %v877, 0.5
    %v880 = vmul.f32 %v878, 0.5
    %v881 = vadd.f32 %v879, %v871
    %v882 = vadd.f32 %v880, %v874
    %v883 = vld [vmem:[#allocation3] sm:$0xff]
    %v884 = vld [vmem:[#allocation3 + $0x8] sm:$0xff]
    %v885 = vmul.f32 %v883, 0.75
    %v886 = vmul.f32 %v884, 0.75
    %v887 = vadd.f32 %v885, %v881
    %v888 = vadd.f32 %v886, %v882
    %v889 = vld [vmem:[#allocation4] sm:$0xff]
    %v890 = vld [vmem:[#allocation4 + $0x8] sm:$0xff]
    %v891 = vmul.f32 %v889, 0.2
    %v892 = vmul.f32 %v890, 0.2
    %v893 = vsub.f32 %v887, %v891
    %v894 = vsub.f32 %v888, %v892
    %vm895 = vcmp.ge.f32.partialorder %v893, 0.2
    %vm896 = vcmp.ge.f32.partialorder %v894, 0.2
    %v897 = vsel %vm895, 1, 0
    %v898 = vsel %vm896, 1, 0
    %v899 = vcvt.s32.f32 %v897
    %v900 = vcvt.s32.f32 %v898
    %vm901 = vcmp.le.f32.partialorder %v893, -0.2
    %vm902 = vcmp.le.f32.partialorder %v894, -0.2
    %v903 = vsel %vm901, 1, 0
    %v904 = vsel %vm902, 1, 0
    %v905 = vcvt.s32.f32 %v903
    %v906 = vcvt.s32.f32 %v904
    %v907 = vsub.f32 %v899, %v905
    %v908 = vsub.f32 %v900, %v906
    %909 = vst [vmem:[#allocation2] sm:$0xff] %v881
    %910 = vst [vmem:[#allocation2 + $0x8] sm:$0xff] %v882
    %911 = vst [vmem:[#allocation3] sm:$0xff] %v893
    %912 = vst [vmem:[#allocation3 + $0x8] sm:$0xff] %v894
    %913 = vst [vmem:[#allocation4] sm:$0xff] %v907
    %914 = vst [vmem:[#allocation4 + $0x8] sm:$0xff] %v908
    %v915 = vpack.c.bf16 %v908, %v907
    %916 = vmatprep.subr.bf16.mxu0 0
    %917 = vmatpush1.bf16.msra.mxu0 %v338
    %918 = vmatprep.subr.bf16.mxu0 0
    %919 = vmatpush1.bf16.msra.mxu0 %v339
    %920 = vmatprep.subr.bf16.mxu0 0
    %921 = vmatpush1.bf16.msra.mxu0 %v340
    %922 = vmatprep.subr.bf16.mxu0 0
    %923 = vmatpush1.bf16.msra.mxu0 %v341
    %924 = vmatprep.subr.bf16.mxu0 0
    %925 = vmatpush1.bf16.msra.mxu0 %v342
    %926 = vmatprep.subr.bf16.mxu0 0
    %927 = vmatpush1.bf16.msra.mxu0 %v343
    %928 = vmatprep.subr.bf16.mxu0 0
    %929 = vmatpush1.bf16.msra.mxu0 %v344
    %930 = vmatprep.subr.bf16.mxu0 0
    %931 = vmatpush1.bf16.msra.mxu0 %v345
    %932 = vmatprep.subr.bf16.mxu0 0
    %933 = vmatpush1.bf16.msra.mxu0 0
    %934 = vmatprep.subr.bf16.mxu0 0
    %935 = vmatpush1.bf16.msra.mxu0 0
    %936 = vmatprep.subr.bf16.mxu0 0
    %937 = vmatpush1.bf16.msra.mxu0 0
    %938 = vmatprep.subr.bf16.mxu0 0
    %939 = vmatpush1.bf16.msra.mxu0 0
    %940 = vmatprep.subr.bf16.mxu0 0
    %941 = vmatpush1.bf16.msra.mxu0 0
    %942 = vmatprep.subr.bf16.mxu0 0
    %943 = vmatpush1.bf16.msra.mxu0 0
    %944 = vmatprep.subr.bf16.mxu0 0
    %945 = vmatpush1.bf16.msra.mxu0 0
    %946 = vmatprep.subr.bf16.mxu0 0
    %947 = vmatpush1.bf16.msra.mxu0 0
    %948 = vmatprep.mubr.bf16.mxu0 0
    %949 = vmatmul.mubr.bf16.gmra.mrb[0].mxu0 %v915
    %v950 = vpop.f32.mrb[0].mxu0
    %v951 = vadd.f32 %v304, %v950
    %v952 = vpop.f32.mrb[0].mxu0
    %v953 = vpop.f32.mrb[0].mxu0
    %v954 = vadd.f32 %v304, %v953
    %v955 = vpop.f32.mrb[0].mxu0
    %956 = vdwg.mxu0
    %v957 = vld [vmem:[#allocation5] sm:$0xff]
    %v958 = vld [vmem:[#allocation5 + $0x8] sm:$0xff]
    %v959 = vmul.f32 %v957, 0.5
    %v960 = vmul.f32 %v958, 0.5
    %v961 = vadd.f32 %v959, %v951
    %v962 = vadd.f32 %v960, %v954
    %v963 = vld [vmem:[#allocation6] sm:$0xff]
    %v964 = vld [vmem:[#allocation6 + $0x8] sm:$0xff]
    %v965 = vmul.f32 %v963, 0.75
    %v966 = vmul.f32 %v964, 0.75
    %v967 = vadd.f32 %v965, %v961
    %v968 = vadd.f32 %v966, %v962
    %v969 = vld [vmem:[#allocation7] sm:$0xff]
    %v970 = vld [vmem:[#allocation7 + $0x8] sm:$0xff]
    %v971 = vmul.f32 %v969, 0.2
    %v972 = vmul.f32 %v970, 0.2
    %v973 = vsub.f32 %v967, %v971
    %v974 = vsub.f32 %v968, %v972
    %vm975 = vcmp.ge.f32.partialorder %v973, 0.2
    %vm976 = vcmp.ge.f32.partialorder %v974, 0.2
    %v977 = vsel %vm975, 1, 0
    %v978 = vsel %vm976, 1, 0
    %v979 = vcvt.s32.f32 %v977
    %v980 = vcvt.s32.f32 %v978
    %vm981 = vcmp.le.f32.partialorder %v973, -0.2
    %vm982 = vcmp.le.f32.partialorder %v974, -0.2
    %v983 = vsel %vm981, 1, 0
    %v984 = vsel %vm982, 1, 0
    %v985 = vcvt.s32.f32 %v983
    %v986 = vcvt.s32.f32 %v984
    %v987 = vsub.f32 %v979, %v985
    %v988 = vsub.f32 %v980, %v986
    %989 = vst [vmem:[#allocation5] sm:$0xff] %v961
    %990 = vst [vmem:[#allocation5 + $0x8] sm:$0xff] %v962
    %991 = vst [vmem:[#allocation6] sm:$0xff] %v973
    %992 = vst [vmem:[#allocation6 + $0x8] sm:$0xff] %v974
    %993 = vst [vmem:[#allocation7] sm:$0xff] %v987
    %994 = vst [vmem:[#allocation7 + $0x8] sm:$0xff] %v988
    %v995 = vpack.c.bf16 %v988, %v987
    %996 = vmatprep.subr.bf16.mxu0 0
    %997 = vmatpush1.bf16.msra.mxu0 %v472
    %998 = vmatprep.subr.bf16.mxu0 0
    %999 = vmatpush1.bf16.msra.mxu0 %v473
    %1000 = vmatprep.subr.bf16.mxu0 0
    %1001 = vmatpush1.bf16.msra.mxu0 %v474
    %1002 = vmatprep.subr.bf16.mxu0 0
    %1003 = vmatpush1.bf16.msra.mxu0 %v475
    %1004 = vmatprep.subr.bf16.mxu0 0
    %1005 = vmatpush1.bf16.msra.mxu0 %v476
    %1006 = vmatprep.subr.bf16.mxu0 0
    %1007 = vmatpush1.bf16.msra.mxu0 %v477
    %1008 = vmatprep.subr.bf16.mxu0 0
    %1009 = vmatpush1.bf16.msra.mxu0 %v478
    %1010 = vmatprep.subr.bf16.mxu0 0
    %1011 = vmatpush1.bf16.msra.mxu0 %v479
    %1012 = vmatprep.subr.bf16.mxu0 0
    %1013 = vmatpush1.bf16.msra.mxu0 0
    %1014 = vmatprep.subr.bf16.mxu0 0
    %1015 = vmatpush1.bf16.msra.mxu0 0
    %1016 = vmatprep.subr.bf16.mxu0 0
    %1017 = vmatpush1.bf16.msra.mxu0 0
    %1018 = vmatprep.subr.bf16.mxu0 0
    %1019 = vmatpush1.bf16.msra.mxu0 0
    %1020 = vmatprep.subr.bf16.mxu0 0
    %1021 = vmatpush1.bf16.msra.mxu0 0
    %1022 = vmatprep.subr.bf16.mxu0 0
    %1023 = vmatpush1.bf16.msra.mxu0 0
    %1024 = vmatprep.subr.bf16.mxu0 0
    %1025 = vmatpush1.bf16.msra.mxu0 0
    %1026 = vmatprep.subr.bf16.mxu0 0
    %1027 = vmatpush1.bf16.msra.mxu0 0
    %1028 = vmatprep.mubr.bf16.mxu0 0
    %1029 = vmatmul.mubr.bf16.gmra.mrb[0].mxu0 %v995
    %v1030 = vpop.f32.mrb[0].mxu0
    %v1031 = vadd.f32 %v438, %v1030
    %v1032 = vpop.f32.mrb[0].mxu0
    %v1033 = vpop.f32.mrb[0].mxu0
    %v1034 = vadd.f32 %v438, %v1033
    %v1035 = vpop.f32.mrb[0].mxu0
    %1036 = vdwg.mxu0
    %v1037 = vld [vmem:[#allocation8] sm:$0xff]
    %v1038 = vld [vmem:[#allocation8 + $0x8] sm:$0xff]
    %v1039 = vmul.f32 %v1037, 0.5
    %v1040 = vmul.f32 %v1038, 0.5
    %v1041 = vadd.f32 %v1039, %v1031
    %v1042 = vadd.f32 %v1040, %v1034
    %v1043 = vld [vmem:[#allocation9] sm:$0xff]
    %v1044 = vld [vmem:[#allocation9 + $0x8] sm:$0xff]
    %v1045 = vmul.f32 %v1043, 0.75
    %v1046 = vmul.f32 %v1044, 0.75
    %v1047 = vadd.f32 %v1045, %v1041
    %v1048 = vadd.f32 %v1046, %v1042
    %v1049 = vld [vmem:[#allocation10] sm:$0xff]
    %v1050 = vld [vmem:[#allocation10 + $0x8] sm:$0xff]
    %v1051 = vmul.f32 %v1049, 0.2
    %v1052 = vmul.f32 %v1050, 0.2
    %v1053 = vsub.f32 %v1047, %v1051
    %v1054 = vsub.f32 %v1048, %v1052
    %vm1055 = vcmp.ge.f32.partialorder %v1053, 0.2
    %vm1056 = vcmp.ge.f32.partialorder %v1054, 0.2
    %v1057 = vsel %vm1055, 1, 0
    %v1058 = vsel %vm1056, 1, 0
    %v1059 = vcvt.s32.f32 %v1057
    %v1060 = vcvt.s32.f32 %v1058
    %vm1061 = vcmp.le.f32.partialorder %v1053, -0.2
    %vm1062 = vcmp.le.f32.partialorder %v1054, -0.2
    %v1063 = vsel %vm1061, 1, 0
    %v1064 = vsel %vm1062, 1, 0
    %v1065 = vcvt.s32.f32 %v1063
    %v1066 = vcvt.s32.f32 %v1064
    %v1067 = vsub.f32 %v1059, %v1065
    %v1068 = vsub.f32 %v1060, %v1066
    %1069 = vst [vmem:[#allocation8] sm:$0xff] %v1041
    %1070 = vst [vmem:[#allocation8 + $0x8] sm:$0xff] %v1042
    %1071 = vst [vmem:[#allocation9] sm:$0xff] %v1053
    %1072 = vst [vmem:[#allocation9 + $0x8] sm:$0xff] %v1054
    %1073 = vst [vmem:[#allocation10] sm:$0xff] %v1067
    %1074 = vst [vmem:[#allocation10 + $0x8] sm:$0xff] %v1068
    %v1075 = vld [vmem:[#allocation19] sm:$0xff]
    %v1076 = vld [vmem:[#allocation19 + $0x8] sm:$0xff]
    %v1077 = vadd.f32 %v1075, %v1067
    %v1078 = vadd.f32 %v1076, %v1068
    %1079 = vst [vmem:[#allocation19] sm:$0xff] %v1077
    %1080 = vst [vmem:[#allocation19 + $0x8] sm:$0xff] %v1078
    %s1081 = scalar_lea.vmem [#allocation11], 24
    %v1082 = vld [vmem:[%s1081] sm:$0xf]
    %v1083 = vld [vmem:[%s1081 + $0x4] sm:$0xf]
    %v1086 = vunpack.c.l.b16 %v1082
    %v1087 = vunpack.c.l.b16 %v1083
    %v1088 = vpack.c.b16 %v1087, %v1086
    %1090 = vmatprep.subr.bf16.mxu0 0
    %1091 = vmatpush1.bf16.msra.mxu0 %v204
    %1092 = vmatprep.subr.bf16.mxu0 0
    %1093 = vmatpush1.bf16.msra.mxu0 %v205
    %1094 = vmatprep.subr.bf16.mxu0 0
    %1095 = vmatpush1.bf16.msra.mxu0 %v206
    %1096 = vmatprep.subr.bf16.mxu0 0
    %1097 = vmatpush1.bf16.msra.mxu0 %v207
    %1098 = vmatprep.subr.bf16.mxu0 0
    %1099 = vmatpush1.bf16.msra.mxu0 %v208
    %1100 = vmatprep.subr.bf16.mxu0 0
    %1101 = vmatpush1.bf16.msra.mxu0 %v209
    %1102 = vmatprep.subr.bf16.mxu0 0
    %1103 = vmatpush1.bf16.msra.mxu0 %v210
    %1104 = vmatprep.subr.bf16.mxu0 0
    %1105 = vmatpush1.bf16.msra.mxu0 %v211
    %1106 = vmatprep.subr.bf16.mxu0 0
    %1107 = vmatpush1.bf16.msra.mxu0 0
    %1108 = vmatprep.subr.bf16.mxu0 0
    %1109 = vmatpush1.bf16.msra.mxu0 0
    %1110 = vmatprep.subr.bf16.mxu0 0
    %1111 = vmatpush1.bf16.msra.mxu0 0
    %1112 = vmatprep.subr.bf16.mxu0 0
    %1113 = vmatpush1.bf16.msra.mxu0 0
    %1114 = vmatprep.subr.bf16.mxu0 0
    %1115 = vmatpush1.bf16.msra.mxu0 0
    %1116 = vmatprep.subr.bf16.mxu0 0
    %1117 = vmatpush1.bf16.msra.mxu0 0
    %1118 = vmatprep.subr.bf16.mxu0 0
    %1119 = vmatpush1.bf16.msra.mxu0 0
    %1120 = vmatprep.subr.bf16.mxu0 0
    %1121 = vmatpush1.bf16.msra.mxu0 0
    %1122 = vmatprep.mubr.bf16.mxu0 0
    %1123 = vmatmul.mubr.bf16.gmra.mrb[0].mxu0 %v1088
    %v1124 = vpop.f32.mrb[0].mxu0
    %v1125 = vadd.f32 %v164, %v1124
    %v1126 = vpop.f32.mrb[0].mxu0
    %v1127 = vpop.f32.mrb[0].mxu0
    %v1128 = vadd.f32 %v164, %v1127
    %v1129 = vpop.f32.mrb[0].mxu0
    %1130 = vdwg.mxu0
    %v1131 = vld [vmem:[#allocation2] sm:$0xff]
    %v1132 = vld [vmem:[#allocation2 + $0x8] sm:$0xff]
    %v1133 = vmul.f32 %v1131, 0.5
    %v1134 = vmul.f32 %v1132, 0.5
    %v1135 = vadd.f32 %v1133, %v1125
    %v1136 = vadd.f32 %v1134, %v1128
    %v1137 = vld [vmem:[#allocation3] sm:$0xff]
    %v1138 = vld [vmem:[#allocation3 + $0x8] sm:$0xff]
    %v1139 = vmul.f32 %v1137, 0.75
    %v1140 = vmul.f32 %v1138, 0.75
    %v1141 = vadd.f32 %v1139, %v1135
    %v1142 = vadd.f32 %v1140, %v1136
    %v1143 = vld [vmem:[#allocation4] sm:$0xff]
    %v1144 = vld [vmem:[#allocation4 + $0x8] sm:$0xff]
    %v1145 = vmul.f32 %v1143, 0.2
    %v1146 = vmul.f32 %v1144, 0.2
    %v1147 = vsub.f32 %v1141, %v1145
    %v1148 = vsub.f32 %v1142, %v1146
    %vm1149 = vcmp.ge.f32.partialorder %v1147, 0.2
    %vm1150 = vcmp.ge.f32.partialorder %v1148, 0.2
    %v1151 = vsel %vm1149, 1, 0
    %v1152 = vsel %vm1150, 1, 0
    %v1153 = vcvt.s32.f32 %v1151
    %v1154 = vcvt.s32.f32 %v1152
    %vm1155 = vcmp.le.f32.partialorder %v1147, -0.2
    %vm1156 = vcmp.le.f32.partialorder %v1148, -0.2
    %v1157 = vsel %vm1155, 1, 0
    %v1158 = vsel %vm1156, 1, 0
    %v1159 = vcvt.s32.f32 %v1157
    %v1160 = vcvt.s32.f32 %v1158
    %v1161 = vsub.f32 %v1153, %v1159
    %v1162 = vsub.f32 %v1154, %v1160
    %1163 = vst [vmem:[#allocation2] sm:$0xff] %v1135
    %1164 = vst [vmem:[#allocation2 + $0x8] sm:$0xff] %v1136
    %1165 = vst [vmem:[#allocation3] sm:$0xff] %v1147
    %1166 = vst [vmem:[#allocation3 + $0x8] sm:$0xff] %v1148
    %1167 = vst [vmem:[#allocation4] sm:$0xff] %v1161
    %1168 = vst [vmem:[#allocation4 + $0x8] sm:$0xff] %v1162
    %v1169 = vpack.c.bf16 %v1162, %v1161
    %1170 = vmatprep.subr.bf16.mxu0 0
    %1171 = vmatpush1.bf16.msra.mxu0 %v338
    %1172 = vmatprep.subr.bf16.mxu0 0
    %1173 = vmatpush1.bf16.msra.mxu0 %v339
    %1174 = vmatprep.subr.bf16.mxu0 0
    %1175 = vmatpush1.bf16.msra.mxu0 %v340
    %1176 = vmatprep.subr.bf16.mxu0 0
    %1177 = vmatpush1.bf16.msra.mxu0 %v341
    %1178 = vmatprep.subr.bf16.mxu0 0
    %1179 = vmatpush1.bf16.msra.mxu0 %v342
    %1180 = vmatprep.subr.bf16.mxu0 0
    %1181 = vmatpush1.bf16.msra.mxu0 %v343
    %1182 = vmatprep.subr.bf16.mxu0 0
    %1183 = vmatpush1.bf16.msra.mxu0 %v344
    %1184 = vmatprep.subr.bf16.mxu0 0
    %1185 = vmatpush1.bf16.msra.mxu0 %v345
    %1186 = vmatprep.subr.bf16.mxu0 0
    %1187 = vmatpush1.bf16.msra.mxu0 0
    %1188 = vmatprep.subr.bf16.mxu0 0
    %1189 = vmatpush1.bf16.msra.mxu0 0
    %1190 = vmatprep.subr.bf16.mxu0 0
    %1191 = vmatpush1.bf16.msra.mxu0 0
    %1192 = vmatprep.subr.bf16.mxu0 0
    %1193 = vmatpush1.bf16.msra.mxu0 0
    %1194 = vmatprep.subr.bf16.mxu0 0
    %1195 = vmatpush1.bf16.msra.mxu0 0
    %1196 = vmatprep.subr.bf16.mxu0 0
    %1197 = vmatpush1.bf16.msra.mxu0 0
    %1198 = vmatprep.subr.bf16.mxu0 0
    %1199 = vmatpush1.bf16.msra.mxu0 0
    %1200 = vmatprep.subr.bf16.mxu0 0
    %1201 = vmatpush1.bf16.msra.mxu0 0
    %1202 = vmatprep.mubr.bf16.mxu0 0
    %1203 = vmatmul.mubr.bf16.gmra.mrb[0].mxu0 %v1169
    %v1204 = vpop.f32.mrb[0].mxu0
    %v1205 = vadd.f32 %v304, %v1204
    %v1206 = vpop.f32.mrb[0].mxu0
    %v1207 = vpop.f32.mrb[0].mxu0
    %v1208 = vadd.f32 %v304, %v1207
    %v1209 = vpop.f32.mrb[0].mxu0
    %1210 = vdwg.mxu0
    %v1211 = vld [vmem:[#allocation5] sm:$0xff]
    %v1212 = vld [vmem:[#allocation5 + $0x8] sm:$0xff]
    %v1213 = vmul.f32 %v1211, 0.5
    %v1214 = vmul.f32 %v1212, 0.5
    %v1215 = vadd.f32 %v1213, %v1205
    %v1216 = vadd.f32 %v1214, %v1208
    %v1217 = vld [vmem:[#allocation6] sm:$0xff]
    %v1218 = vld [vmem:[#allocation6 + $0x8] sm:$0xff]
    %v1219 = vmul.f32 %v1217, 0.75
    %v1220 = vmul.f32 %v1218, 0.75
    %v1221 = vadd.f32 %v1219, %v1215
    %v1222 = vadd.f32 %v1220, %v1216
    %v1223 = vld [vmem:[#allocation7] sm:$0xff]
    %v1224 = vld [vmem:[#allocation7 + $0x8] sm:$0xff]
    %v1225 = vmul.f32 %v1223, 0.2
    %v1226 = vmul.f32 %v1224, 0.2
    %v1227 = vsub.f32 %v1221, %v1225
    %v1228 = vsub.f32 %v1222, %v1226
    %vm1229 = vcmp.ge.f32.partialorder %v1227, 0.2
    %vm1230 = vcmp.ge.f32.partialorder %v1228, 0.2
    %v1231 = vsel %vm1229, 1, 0
    %v1232 = vsel %vm1230, 1, 0
    %v1233 = vcvt.s32.f32 %v1231
    %v1234 = vcvt.s32.f32 %v1232
    %vm1235 = vcmp.le.f32.partialorder %v1227, -0.2
    %vm1236 = vcmp.le.f32.partialorder %v1228, -0.2
    %v1237 = vsel %vm1235, 1, 0
    %v1238 = vsel %vm1236, 1, 0
    %v1239 = vcvt.s32.f32 %v1237
    %v1240 = vcvt.s32.f32 %v1238
    %v1241 = vsub.f32 %v1233, %v1239
    %v1242 = vsub.f32 %v1234, %v1240
    %1243 = vst [vmem:[#allocation5] sm:$0xff] %v1215
    %1244 = vst [vmem:[#allocation5 + $0x8] sm:$0xff] %v1216
    %1245 = vst [vmem:[#allocation6] sm:$0xff] %v1227
    %1246 = vst [vmem:[#allocation6 + $0x8] sm:$0xff] %v1228
    %1247 = vst [vmem:[#allocation7] sm:$0xff] %v1241
    %1248 = vst [vmem:[#allocation7 + $0x8] sm:$0xff] %v1242
    %v1249 = vpack.c.bf16 %v1242, %v1241
    %1250 = vmatprep.subr.bf16.mxu0 0
    %1251 = vmatpush1.bf16.msra.mxu0 %v472
    %1252 = vmatprep.subr.bf16.mxu0 0
    %1253 = vmatpush1.bf16.msra.mxu0 %v473
    %1254 = vmatprep.subr.bf16.mxu0 0
    %1255 = vmatpush1.bf16.msra.mxu0 %v474
    %1256 = vmatprep.subr.bf16.mxu0 0
    %1257 = vmatpush1.bf16.msra.mxu0 %v475
    %1258 = vmatprep.subr.bf16.mxu0 0
    %1259 = vmatpush1.bf16.msra.mxu0 %v476
    %1260 = vmatprep.subr.bf16.mxu0 0
    %1261 = vmatpush1.bf16.msra.mxu0 %v477
    %1262 = vmatprep.subr.bf16.mxu0 0
    %1263 = vmatpush1.bf16.msra.mxu0 %v478
    %1264 = vmatprep.subr.bf16.mxu0 0
    %1265 = vmatpush1.bf16.msra.mxu0 %v479
    %1266 = vmatprep.subr.bf16.mxu0 0
    %1267 = vmatpush1.bf16.msra.mxu0 0
    %1268 = vmatprep.subr.bf16.mxu0 0
    %1269 = vmatpush1.bf16.msra.mxu0 0
    %1270 = vmatprep.subr.bf16.mxu0 0
    %1271 = vmatpush1.bf16.msra.mxu0 0
    %1272 = vmatprep.subr.bf16.mxu0 0
    %1273 = vmatpush1.bf16.msra.mxu0 0
    %1274 = vmatprep.subr.bf16.mxu0 0
    %1275 = vmatpush1.bf16.msra.mxu0 0
    %1276 = vmatprep.subr.bf16.mxu0 0
    %1277 = vmatpush1.bf16.msra.mxu0 0
    %1278 = vmatprep.subr.bf16.mxu0 0
    %1279 = vmatpush1.bf16.msra.mxu0 0
    %1280 = vmatprep.subr.bf16.mxu0 0
    %1281 = vmatpush1.bf16.msra.mxu0 0
    %1282 = vmatprep.mubr.bf16.mxu0 0
    %1283 = vmatmul.mubr.bf16.gmra.mrb[0].mxu0 %v1249
    %v1284 = vpop.f32.mrb[0].mxu0
    %v1285 = vadd.f32 %v438, %v1284
    %v1286 = vpop.f32.mrb[0].mxu0
    %v1287 = vpop.f32.mrb[0].mxu0
    %v1288 = vadd.f32 %v438, %v1287
    %v1289 = vpop.f32.mrb[0].mxu0
    %1290 = vdwg.mxu0
    %v1291 = vld [vmem:[#allocation8] sm:$0xff]
    %v1292 = vld [vmem:[#allocation8 + $0x8] sm:$0xff]
    %v1293 = vmul.f32 %v1291, 0.5
    %v1294 = vmul.f32 %v1292, 0.5
    %v1295 = vadd.f32 %v1293, %v1285
    %v1296 = vadd.f32 %v1294, %v1288
    %v1297 = vld [vmem:[#allocation9] sm:$0xff]
    %v1298 = vld [vmem:[#allocation9 + $0x8] sm:$0xff]
    %v1299 = vmul.f32 %v1297, 0.75
    %v1300 = vmul.f32 %v1298, 0.75
    %v1301 = vadd.f32 %v1299, %v1295
    %v1302 = vadd.f32 %v1300, %v1296
    %v1303 = vld [vmem:[#allocation10] sm:$0xff]
    %v1304 = vld [vmem:[#allocation10 + $0x8] sm:$0xff]
    %v1305 = vmul.f32 %v1303, 0.2
    %v1306 = vmul.f32 %v1304, 0.2
    %v1307 = vsub.f32 %v1301, %v1305
    %v1308 = vsub.f32 %v1302, %v1306
    %vm1309 = vcmp.ge.f32.partialorder %v1307, 0.2
    %vm1310 = vcmp.ge.f32.partialorder %v1308, 0.2
    %v1311 = vsel %vm1309, 1, 0
    %v1312 = vsel %vm1310, 1, 0
    %v1313 = vcvt.s32.f32 %v1311
    %v1314 = vcvt.s32.f32 %v1312
    %vm1315 = vcmp.le.f32.partialorder %v1307, -0.2
    %vm1316 = vcmp.le.f32.partialorder %v1308, -0.2
    %v1317 = vsel %vm1315, 1, 0
    %v1318 = vsel %vm1316, 1, 0
    %v1319 = vcvt.s32.f32 %v1317
    %v1320 = vcvt.s32.f32 %v1318
    %v1321 = vsub.f32 %v1313, %v1319
    %v1322 = vsub.f32 %v1314, %v1320
    %1323 = vst [vmem:[#allocation8] sm:$0xff] %v1295
    %1324 = vst [vmem:[#allocation8 + $0x8] sm:$0xff] %v1296
    %1325 = vst [vmem:[#allocation9] sm:$0xff] %v1307
    %1326 = vst [vmem:[#allocation9 + $0x8] sm:$0xff] %v1308
    %1327 = vst [vmem:[#allocation10] sm:$0xff] %v1321
    %1328 = vst [vmem:[#allocation10 + $0x8] sm:$0xff] %v1322
    %v1329 = vld [vmem:[#allocation19] sm:$0xff]
    %v1330 = vld [vmem:[#allocation19 + $0x8] sm:$0xff]
    %v1331 = vadd.f32 %v1329, %v1321
    %v1332 = vadd.f32 %v1330, %v1322
    %1333 = vst [vmem:[#allocation19] sm:$0xff] %v1331
    %1334 = vst [vmem:[#allocation19 + $0x8] sm:$0xff] %v1332
    %s1335 = scalar_lea.vmem [#allocation11], 32
    %v1336 = vld [vmem:[%s1335] sm:$0xf]
    %v1337 = vld [vmem:[%s1335 + $0x4] sm:$0xf]
    %v1340 = vunpack.c.l.b16 %v1336
    %v1341 = vunpack.c.l.b16 %v1337
    %v1342 = vpack.c.b16 %v1341, %v1340
    %1344 = vmatprep.subr.bf16.mxu0 0
    %1345 = vmatpush1.bf16.msra.mxu0 %v204
    %1346 = vmatprep.subr.bf16.mxu0 0
    %1347 = vmatpush1.bf16.msra.mxu0 %v205
    %1348 = vmatprep.subr.bf16.mxu0 0
    %1349 = vmatpush1.bf16.msra.mxu0 %v206
    %1350 = vmatprep.subr.bf16.mxu0 0
    %1351 = vmatpush1.bf16.msra.mxu0 %v207
    %1352 = vmatprep.subr.bf16.mxu0 0
    %1353 = vmatpush1.bf16.msra.mxu0 %v208
    %1354 = vmatprep.subr.bf16.mxu0 0
    %1355 = vmatpush1.bf16.msra.mxu0 %v209
    %1356 = vmatprep.subr.bf16.mxu0 0
    %1357 = vmatpush1.bf16.msra.mxu0 %v210
    %1358 = vmatprep.subr.bf16.mxu0 0
    %1359 = vmatpush1.bf16.msra.mxu0 %v211
    %1360 = vmatprep.subr.bf16.mxu0 0
    %1361 = vmatpush1.bf16.msra.mxu0 0
    %1362 = vmatprep.subr.bf16.mxu0 0
    %1363 = vmatpush1.bf16.msra.mxu0 0
    %1364 = vmatprep.subr.bf16.mxu0 0
    %1365 = vmatpush1.bf16.msra.mxu0 0
    %1366 = vmatprep.subr.bf16.mxu0 0
    %1367 = vmatpush1.bf16.msra.mxu0 0
    %1368 = vmatprep.subr.bf16.mxu0 0
    %1369 = vmatpush1.bf16.msra.mxu0 0
    %1370 = vmatprep.subr.bf16.mxu0 0
    %1371 = vmatpush1.bf16.msra.mxu0 0
    %1372 = vmatprep.subr.bf16.mxu0 0
    %1373 = vmatpush1.bf16.msra.mxu0 0
    %1374 = vmatprep.subr.bf16.mxu0 0
    %1375 = vmatpush1.bf16.msra.mxu0 0
    %1376 = vmatprep.mubr.bf16.mxu0 0
    %1377 = vmatmul.mubr.bf16.gmra.mrb[0].mxu0 %v1342
    %v1378 = vpop.f32.mrb[0].mxu0
    %v1379 = vadd.f32 %v164, %v1378
    %v1380 = vpop.f32.mrb[0].mxu0
    %v1381 = vpop.f32.mrb[0].mxu0
    %v1382 = vadd.f32 %v164, %v1381
    %v1383 = vpop.f32.mrb[0].mxu0
    %1384 = vdwg.mxu0
    %v1385 = vld [vmem:[#allocation2] sm:$0xff]
    %v1386 = vld [vmem:[#allocation2 + $0x8] sm:$0xff]
    %v1387 = vmul.f32 %v1385, 0.5
    %v1388 = vmul.f32 %v1386, 0.5
    %v1389 = vadd.f32 %v1387, %v1379
    %v1390 = vadd.f32 %v1388, %v1382
    %v1391 = vld [vmem:[#allocation3] sm:$0xff]
    %v1392 = vld [vmem:[#allocation3 + $0x8] sm:$0xff]
    %v1393 = vmul.f32 %v1391, 0.75
    %v1394 = vmul.f32 %v1392, 0.75
    %v1395 = vadd.f32 %v1393, %v1389
    %v1396 = vadd.f32 %v1394, %v1390
    %v1397 = vld [vmem:[#allocation4] sm:$0xff]
    %v1398 = vld [vmem:[#allocation4 + $0x8] sm:$0xff]
    %v1399 = vmul.f32 %v1397, 0.2
    %v1400 = vmul.f32 %v1398, 0.2
    %v1401 = vsub.f32 %v1395, %v1399
    %v1402 = vsub.f32 %v1396, %v1400
    %vm1403 = vcmp.ge.f32.partialorder %v1401, 0.2
    %vm1404 = vcmp.ge.f32.partialorder %v1402, 0.2
    %v1405 = vsel %vm1403, 1, 0
    %v1406 = vsel %vm1404, 1, 0
    %v1407 = vcvt.s32.f32 %v1405
    %v1408 = vcvt.s32.f32 %v1406
    %vm1409 = vcmp.le.f32.partialorder %v1401, -0.2
    %vm1410 = vcmp.le.f32.partialorder %v1402, -0.2
    %v1411 = vsel %vm1409, 1, 0
    %v1412 = vsel %vm1410, 1, 0
    %v1413 = vcvt.s32.f32 %v1411
    %v1414 = vcvt.s32.f32 %v1412
    %v1415 = vsub.f32 %v1407, %v1413
    %v1416 = vsub.f32 %v1408, %v1414
    %1417 = vst [vmem:[#allocation2] sm:$0xff] %v1389
    %1418 = vst [vmem:[#allocation2 + $0x8] sm:$0xff] %v1390
    %1419 = vst [vmem:[#allocation3] sm:$0xff] %v1401
    %1420 = vst [vmem:[#allocation3 + $0x8] sm:$0xff] %v1402
    %1421 = vst [vmem:[#allocation4] sm:$0xff] %v1415
    %1422 = vst [vmem:[#allocation4 + $0x8] sm:$0xff] %v1416
    %v1423 = vpack.c.bf16 %v1416, %v1415
    %1424 = vmatprep.subr.bf16.mxu0 0
    %1425 = vmatpush1.bf16.msra.mxu0 %v338
    %1426 = vmatprep.subr.bf16.mxu0 0
    %1427 = vmatpush1.bf16.msra.mxu0 %v339
    %1428 = vmatprep.subr.bf16.mxu0 0
    %1429 = vmatpush1.bf16.msra.mxu0 %v340
    %1430 = vmatprep.subr.bf16.mxu0 0
    %1431 = vmatpush1.bf16.msra.mxu0 %v341
    %1432 = vmatprep.subr.bf16.mxu0 0
    %1433 = vmatpush1.bf16.msra.mxu0 %v342
    %1434 = vmatprep.subr.bf16.mxu0 0
    %1435 = vmatpush1.bf16.msra.mxu0 %v343
    %1436 = vmatprep.subr.bf16.mxu0 0
    %1437 = vmatpush1.bf16.msra.mxu0 %v344
    %1438 = vmatprep.subr.bf16.mxu0 0
    %1439 = vmatpush1.bf16.msra.mxu0 %v345
    %1440 = vmatprep.subr.bf16.mxu0 0
    %1441 = vmatpush1.bf16.msra.mxu0 0
    %1442 = vmatprep.subr.bf16.mxu0 0
    %1443 = vmatpush1.bf16.msra.mxu0 0
    %1444 = vmatprep.subr.bf16.mxu0 0
    %1445 = vmatpush1.bf16.msra.mxu0 0
    %1446 = vmatprep.subr.bf16.mxu0 0
    %1447 = vmatpush1.bf16.msra.mxu0 0
    %1448 = vmatprep.subr.bf16.mxu0 0
    %1449 = vmatpush1.bf16.msra.mxu0 0
    %1450 = vmatprep.subr.bf16.mxu0 0
    %1451 = vmatpush1.bf16.msra.mxu0 0
    %1452 = vmatprep.subr.bf16.mxu0 0
    %1453 = vmatpush1.bf16.msra.mxu0 0
    %1454 = vmatprep.subr.bf16.mxu0 0
    %1455 = vmatpush1.bf16.msra.mxu0 0
    %1456 = vmatprep.mubr.bf16.mxu0 0
    %1457 = vmatmul.mubr.bf16.gmra.mrb[0].mxu0 %v1423
    %v1458 = vpop.f32.mrb[0].mxu0
    %v1459 = vadd.f32 %v304, %v1458
    %v1460 = vpop.f32.mrb[0].mxu0
    %v1461 = vpop.f32.mrb[0].mxu0
    %v1462 = vadd.f32 %v304, %v1461
    %v1463 = vpop.f32.mrb[0].mxu0
    %1464 = vdwg.mxu0
    %v1465 = vld [vmem:[#allocation5] sm:$0xff]
    %v1466 = vld [vmem:[#allocation5 + $0x8] sm:$0xff]
    %v1467 = vmul.f32 %v1465, 0.5
    %v1468 = vmul.f32 %v1466, 0.5
    %v1469 = vadd.f32 %v1467, %v1459
    %v1470 = vadd.f32 %v1468, %v1462
    %v1471 = vld [vmem:[#allocation6] sm:$0xff]
    %v1472 = vld [vmem:[#allocation6 + $0x8] sm:$0xff]
    %v1473 = vmul.f32 %v1471, 0.75
    %v1474 = vmul.f32 %v1472, 0.75
    %v1475 = vadd.f32 %v1473, %v1469
    %v1476 = vadd.f32 %v1474, %v1470
    %v1477 = vld [vmem:[#allocation7] sm:$0xff]
    %v1478 = vld [vmem:[#allocation7 + $0x8] sm:$0xff]
    %v1479 = vmul.f32 %v1477, 0.2
    %v1480 = vmul.f32 %v1478, 0.2
    %v1481 = vsub.f32 %v1475, %v1479
    %v1482 = vsub.f32 %v1476, %v1480
    %vm1483 = vcmp.ge.f32.partialorder %v1481, 0.2
    %vm1484 = vcmp.ge.f32.partialorder %v1482, 0.2
    %v1485 = vsel %vm1483, 1, 0
    %v1486 = vsel %vm1484, 1, 0
    %v1487 = vcvt.s32.f32 %v1485
    %v1488 = vcvt.s32.f32 %v1486
    %vm1489 = vcmp.le.f32.partialorder %v1481, -0.2
    %vm1490 = vcmp.le.f32.partialorder %v1482, -0.2
    %v1491 = vsel %vm1489, 1, 0
    %v1492 = vsel %vm1490, 1, 0
    %v1493 = vcvt.s32.f32 %v1491
    %v1494 = vcvt.s32.f32 %v1492
    %v1495 = vsub.f32 %v1487, %v1493
    %v1496 = vsub.f32 %v1488, %v1494
    %1497 = vst [vmem:[#allocation5] sm:$0xff] %v1469
    %1498 = vst [vmem:[#allocation5 + $0x8] sm:$0xff] %v1470
    %1499 = vst [vmem:[#allocation6] sm:$0xff] %v1481
    %1500 = vst [vmem:[#allocation6 + $0x8] sm:$0xff] %v1482
    %1501 = vst [vmem:[#allocation7] sm:$0xff] %v1495
    %1502 = vst [vmem:[#allocation7 + $0x8] sm:$0xff] %v1496
    %v1503 = vpack.c.bf16 %v1496, %v1495
    %1504 = vmatprep.subr.bf16.mxu0 0
    %1505 = vmatpush1.bf16.msra.mxu0 %v472
    %1506 = vmatprep.subr.bf16.mxu0 0
    %1507 = vmatpush1.bf16.msra.mxu0 %v473
    %1508 = vmatprep.subr.bf16.mxu0 0
    %1509 = vmatpush1.bf16.msra.mxu0 %v474
    %1510 = vmatprep.subr.bf16.mxu0 0
    %1511 = vmatpush1.bf16.msra.mxu0 %v475
    %1512 = vmatprep.subr.bf16.mxu0 0
    %1513 = vmatpush1.bf16.msra.mxu0 %v476
    %1514 = vmatprep.subr.bf16.mxu0 0
    %1515 = vmatpush1.bf16.msra.mxu0 %v477
    %1516 = vmatprep.subr.bf16.mxu0 0
    %1517 = vmatpush1.bf16.msra.mxu0 %v478
    %1518 = vmatprep.subr.bf16.mxu0 0
    %1519 = vmatpush1.bf16.msra.mxu0 %v479
    %1520 = vmatprep.subr.bf16.mxu0 0
    %1521 = vmatpush1.bf16.msra.mxu0 0
    %1522 = vmatprep.subr.bf16.mxu0 0
    %1523 = vmatpush1.bf16.msra.mxu0 0
    %1524 = vmatprep.subr.bf16.mxu0 0
    %1525 = vmatpush1.bf16.msra.mxu0 0
    %1526 = vmatprep.subr.bf16.mxu0 0
    %1527 = vmatpush1.bf16.msra.mxu0 0
    %1528 = vmatprep.subr.bf16.mxu0 0
    %1529 = vmatpush1.bf16.msra.mxu0 0
    %1530 = vmatprep.subr.bf16.mxu0 0
    %1531 = vmatpush1.bf16.msra.mxu0 0
    %1532 = vmatprep.subr.bf16.mxu0 0
    %1533 = vmatpush1.bf16.msra.mxu0 0
    %1534 = vmatprep.subr.bf16.mxu0 0
    %1535 = vmatpush1.bf16.msra.mxu0 0
    %1536 = vmatprep.mubr.bf16.mxu0 0
    %1537 = vmatmul.mubr.bf16.gmra.mrb[0].mxu0 %v1503
    %v1538 = vpop.f32.mrb[0].mxu0
    %v1539 = vadd.f32 %v438, %v1538
    %v1540 = vpop.f32.mrb[0].mxu0
    %v1541 = vpop.f32.mrb[0].mxu0
    %v1542 = vadd.f32 %v438, %v1541
    %v1543 = vpop.f32.mrb[0].mxu0
    %1544 = vdwg.mxu0
    %v1545 = vld [vmem:[#allocation8] sm:$0xff]
    %v1546 = vld [vmem:[#allocation8 + $0x8] sm:$0xff]
    %v1547 = vmul.f32 %v1545, 0.5
    %v1548 = vmul.f32 %v1546, 0.5
    %v1549 = vadd.f32 %v1547, %v1539
    %v1550 = vadd.f32 %v1548, %v1542
    %v1551 = vld [vmem:[#allocation9] sm:$0xff]
    %v1552 = vld [vmem:[#allocation9 + $0x8] sm:$0xff]
    %v1553 = vmul.f32 %v1551, 0.75
    %v1554 = vmul.f32 %v1552, 0.75
    %v1555 = vadd.f32 %v1553, %v1549
    %v1556 = vadd.f32 %v1554, %v1550
    %v1557 = vld [vmem:[#allocation10] sm:$0xff]
    %v1558 = vld [vmem:[#allocation10 + $0x8] sm:$0xff]
    %v1559 = vmul.f32 %v1557, 0.2
    %v1560 = vmul.f32 %v1558, 0.2
    %v1561 = vsub.f32 %v1555, %v1559
    %v1562 = vsub.f32 %v1556, %v1560
    %vm1563 = vcmp.ge.f32.partialorder %v1561, 0.2
    %vm1564 = vcmp.ge.f32.partialorder %v1562, 0.2
    %v1565 = vsel %vm1563, 1, 0
    %v1566 = vsel %vm1564, 1, 0
    %v1567 = vcvt.s32.f32 %v1565
    %v1568 = vcvt.s32.f32 %v1566
    %vm1569 = vcmp.le.f32.partialorder %v1561, -0.2
    %vm1570 = vcmp.le.f32.partialorder %v1562, -0.2
    %v1571 = vsel %vm1569, 1, 0
    %v1572 = vsel %vm1570, 1, 0
    %v1573 = vcvt.s32.f32 %v1571
    %v1574 = vcvt.s32.f32 %v1572
    %v1575 = vsub.f32 %v1567, %v1573
    %v1576 = vsub.f32 %v1568, %v1574
    %1577 = vst [vmem:[#allocation8] sm:$0xff] %v1549
    %1578 = vst [vmem:[#allocation8 + $0x8] sm:$0xff] %v1550
    %1579 = vst [vmem:[#allocation9] sm:$0xff] %v1561
    %1580 = vst [vmem:[#allocation9 + $0x8] sm:$0xff] %v1562
    %1581 = vst [vmem:[#allocation10] sm:$0xff] %v1575
    %1582 = vst [vmem:[#allocation10 + $0x8] sm:$0xff] %v1576
    %v1583 = vld [vmem:[#allocation19] sm:$0xff]
    %v1584 = vld [vmem:[#allocation19 + $0x8] sm:$0xff]
    %v1585 = vadd.f32 %v1583, %v1575
    %v1586 = vadd.f32 %v1584, %v1576
    %1587 = vst [vmem:[#allocation19] sm:$0xff] %v1585
    %1588 = vst [vmem:[#allocation19 + $0x8] sm:$0xff] %v1586
    %s1589 = scalar_lea.vmem [#allocation11], 40
    %v1590 = vld [vmem:[%s1589] sm:$0xf]
    %v1591 = vld [vmem:[%s1589 + $0x4] sm:$0xf]
    %v1594 = vunpack.c.l.b16 %v1590
    %v1595 = vunpack.c.l.b16 %v1591
    %v1596 = vpack.c.b16 %v1595, %v1594
    %1598 = vmatprep.subr.bf16.mxu0 0
    %1599 = vmatpush1.bf16.msra.mxu0 %v204
    %1600 = vmatprep.subr.bf16.mxu0 0
    %1601 = vmatpush1.bf16.msra.mxu0 %v205
    %1602 = vmatprep.subr.bf16.mxu0 0
    %1603 = vmatpush1.bf16.msra.mxu0 %v206
    %1604 = vmatprep.subr.bf16.mxu0 0
    %1605 = vmatpush1.bf16.msra.mxu0 %v207
    %1606 = vmatprep.subr.bf16.mxu0 0
    %1607 = vmatpush1.bf16.msra.mxu0 %v208
    %1608 = vmatprep.subr.bf16.mxu0 0
    %1609 = vmatpush1.bf16.msra.mxu0 %v209
    %1610 = vmatprep.subr.bf16.mxu0 0
    %1611 = vmatpush1.bf16.msra.mxu0 %v210
    %1612 = vmatprep.subr.bf16.mxu0 0
    %1613 = vmatpush1.bf16.msra.mxu0 %v211
    %1614 = vmatprep.subr.bf16.mxu0 0
    %1615 = vmatpush1.bf16.msra.mxu0 0
    %1616 = vmatprep.subr.bf16.mxu0 0
    %1617 = vmatpush1.bf16.msra.mxu0 0
    %1618 = vmatprep.subr.bf16.mxu0 0
    %1619 = vmatpush1.bf16.msra.mxu0 0
    %1620 = vmatprep.subr.bf16.mxu0 0
    %1621 = vmatpush1.bf16.msra.mxu0 0
    %1622 = vmatprep.subr.bf16.mxu0 0
    %1623 = vmatpush1.bf16.msra.mxu0 0
    %1624 = vmatprep.subr.bf16.mxu0 0
    %1625 = vmatpush1.bf16.msra.mxu0 0
    %1626 = vmatprep.subr.bf16.mxu0 0
    %1627 = vmatpush1.bf16.msra.mxu0 0
    %1628 = vmatprep.subr.bf16.mxu0 0
    %1629 = vmatpush1.bf16.msra.mxu0 0
    %1630 = vmatprep.mubr.bf16.mxu0 0
    %1631 = vmatmul.mubr.bf16.gmra.mrb[0].mxu0 %v1596
    %v1632 = vpop.f32.mrb[0].mxu0
    %v1633 = vadd.f32 %v164, %v1632
    %v1634 = vpop.f32.mrb[0].mxu0
    %v1635 = vpop.f32.mrb[0].mxu0
    %v1636 = vadd.f32 %v164, %v1635
    %v1637 = vpop.f32.mrb[0].mxu0
    %1638 = vdwg.mxu0
    %v1639 = vld [vmem:[#allocation2] sm:$0xff]
    %v1640 = vld [vmem:[#allocation2 + $0x8] sm:$0xff]
    %v1641 = vmul.f32 %v1639, 0.5
    %v1642 = vmul.f32 %v1640, 0.5
    %v1643 = vadd.f32 %v1641, %v1633
    %v1644 = vadd.f32 %v1642, %v1636
    %v1645 = vld [vmem:[#allocation3] sm:$0xff]
    %v1646 = vld [vmem:[#allocation3 + $0x8] sm:$0xff]
    %v1647 = vmul.f32 %v1645, 0.75
    %v1648 = vmul.f32 %v1646, 0.75
    %v1649 = vadd.f32 %v1647, %v1643
    %v1650 = vadd.f32 %v1648, %v1644
    %v1651 = vld [vmem:[#allocation4] sm:$0xff]
    %v1652 = vld [vmem:[#allocation4 + $0x8] sm:$0xff]
    %v1653 = vmul.f32 %v1651, 0.2
    %v1654 = vmul.f32 %v1652, 0.2
    %v1655 = vsub.f32 %v1649, %v1653
    %v1656 = vsub.f32 %v1650, %v1654
    %vm1657 = vcmp.ge.f32.partialorder %v1655, 0.2
    %vm1658 = vcmp.ge.f32.partialorder %v1656, 0.2
    %v1659 = vsel %vm1657, 1, 0
    %v1660 = vsel %vm1658, 1, 0
    %v1661 = vcvt.s32.f32 %v1659
    %v1662 = vcvt.s32.f32 %v1660
    %vm1663 = vcmp.le.f32.partialorder %v1655, -0.2
    %vm1664 = vcmp.le.f32.partialorder %v1656, -0.2
    %v1665 = vsel %vm1663, 1, 0
    %v1666 = vsel %vm1664, 1, 0
    %v1667 = vcvt.s32.f32 %v1665
    %v1668 = vcvt.s32.f32 %v1666
    %v1669 = vsub.f32 %v1661, %v1667
    %v1670 = vsub.f32 %v1662, %v1668
    %1671 = vst [vmem:[#allocation2] sm:$0xff] %v1643
    %1672 = vst [vmem:[#allocation2 + $0x8] sm:$0xff] %v1644
    %1673 = vst [vmem:[#allocation3] sm:$0xff] %v1655
    %1674 = vst [vmem:[#allocation3 + $0x8] sm:$0xff] %v1656
    %1675 = vst [vmem:[#allocation4] sm:$0xff] %v1669
    %1676 = vst [vmem:[#allocation4 + $0x8] sm:$0xff] %v1670
    %v1677 = vpack.c.bf16 %v1670, %v1669
    %1678 = vmatprep.subr.bf16.mxu0 0
    %1679 = vmatpush1.bf16.msra.mxu0 %v338
    %1680 = vmatprep.subr.bf16.mxu0 0
    %1681 = vmatpush1.bf16.msra.mxu0 %v339
    %1682 = vmatprep.subr.bf16.mxu0 0
    %1683 = vmatpush1.bf16.msra.mxu0 %v340
    %1684 = vmatprep.subr.bf16.mxu0 0
    %1685 = vmatpush1.bf16.msra.mxu0 %v341
    %1686 = vmatprep.subr.bf16.mxu0 0
    %1687 = vmatpush1.bf16.msra.mxu0 %v342
    %1688 = vmatprep.subr.bf16.mxu0 0
    %1689 = vmatpush1.bf16.msra.mxu0 %v343
    %1690 = vmatprep.subr.bf16.mxu0 0
    %1691 = vmatpush1.bf16.msra.mxu0 %v344
    %1692 = vmatprep.subr.bf16.mxu0 0
    %1693 = vmatpush1.bf16.msra.mxu0 %v345
    %1694 = vmatprep.subr.bf16.mxu0 0
    %1695 = vmatpush1.bf16.msra.mxu0 0
    %1696 = vmatprep.subr.bf16.mxu0 0
    %1697 = vmatpush1.bf16.msra.mxu0 0
    %1698 = vmatprep.subr.bf16.mxu0 0
    %1699 = vmatpush1.bf16.msra.mxu0 0
    %1700 = vmatprep.subr.bf16.mxu0 0
    %1701 = vmatpush1.bf16.msra.mxu0 0
    %1702 = vmatprep.subr.bf16.mxu0 0
    %1703 = vmatpush1.bf16.msra.mxu0 0
    %1704 = vmatprep.subr.bf16.mxu0 0
    %1705 = vmatpush1.bf16.msra.mxu0 0
    %1706 = vmatprep.subr.bf16.mxu0 0
    %1707 = vmatpush1.bf16.msra.mxu0 0
    %1708 = vmatprep.subr.bf16.mxu0 0
    %1709 = vmatpush1.bf16.msra.mxu0 0
    %1710 = vmatprep.mubr.bf16.mxu0 0
    %1711 = vmatmul.mubr.bf16.gmra.mrb[0].mxu0 %v1677
    %v1712 = vpop.f32.mrb[0].mxu0
    %v1713 = vadd.f32 %v304, %v1712
    %v1714 = vpop.f32.mrb[0].mxu0
    %v1715 = vpop.f32.mrb[0].mxu0
    %v1716 = vadd.f32 %v304, %v1715
    %v1717 = vpop.f32.mrb[0].mxu0
    %1718 = vdwg.mxu0
    %v1719 = vld [vmem:[#allocation5] sm:$0xff]
    %v1720 = vld [vmem:[#allocation5 + $0x8] sm:$0xff]
    %v1721 = vmul.f32 %v1719, 0.5
    %v1722 = vmul.f32 %v1720, 0.5
    %v1723 = vadd.f32 %v1721, %v1713
    %v1724 = vadd.f32 %v1722, %v1716
    %v1725 = vld [vmem:[#allocation6] sm:$0xff]
    %v1726 = vld [vmem:[#allocation6 + $0x8] sm:$0xff]
    %v1727 = vmul.f32 %v1725, 0.75
    %v1728 = vmul.f32 %v1726, 0.75
    %v1729 = vadd.f32 %v1727, %v1723
    %v1730 = vadd.f32 %v1728, %v1724
    %v1731 = vld [vmem:[#allocation7] sm:$0xff]
    %v1732 = vld [vmem:[#allocation7 + $0x8] sm:$0xff]
    %v1733 = vmul.f32 %v1731, 0.2
    %v1734 = vmul.f32 %v1732, 0.2
    %v1735 = vsub.f32 %v1729, %v1733
    %v1736 = vsub.f32 %v1730, %v1734
    %vm1737 = vcmp.ge.f32.partialorder %v1735, 0.2
    %vm1738 = vcmp.ge.f32.partialorder %v1736, 0.2
    %v1739 = vsel %vm1737, 1, 0
    %v1740 = vsel %vm1738, 1, 0
    %v1741 = vcvt.s32.f32 %v1739
    %v1742 = vcvt.s32.f32 %v1740
    %vm1743 = vcmp.le.f32.partialorder %v1735, -0.2
    %vm1744 = vcmp.le.f32.partialorder %v1736, -0.2
    %v1745 = vsel %vm1743, 1, 0
    %v1746 = vsel %vm1744, 1, 0
    %v1747 = vcvt.s32.f32 %v1745
    %v1748 = vcvt.s32.f32 %v1746
    %v1749 = vsub.f32 %v1741, %v1747
    %v1750 = vsub.f32 %v1742, %v1748
    %1751 = vst [vmem:[#allocation5] sm:$0xff] %v1723
    %1752 = vst [vmem:[#allocation5 + $0x8] sm:$0xff] %v1724
    %1753 = vst [vmem:[#allocation6] sm:$0xff] %v1735
    %1754 = vst [vmem:[#allocation6 + $0x8] sm:$0xff] %v1736
    %1755 = vst [vmem:[#allocation7] sm:$0xff] %v1749
    %1756 = vst [vmem:[#allocation7 + $0x8] sm:$0xff] %v1750
    %v1757 = vpack.c.bf16 %v1750, %v1749
    %1758 = vmatprep.subr.bf16.mxu0 0
    %1759 = vmatpush1.bf16.msra.mxu0 %v472
    %1760 = vmatprep.subr.bf16.mxu0 0
    %1761 = vmatpush1.bf16.msra.mxu0 %v473
    %1762 = vmatprep.subr.bf16.mxu0 0
    %1763 = vmatpush1.bf16.msra.mxu0 %v474
    %1764 = vmatprep.subr.bf16.mxu0 0
    %1765 = vmatpush1.bf16.msra.mxu0 %v475
    %1766 = vmatprep.subr.bf16.mxu0 0
    %1767 = vmatpush1.bf16.msra.mxu0 %v476
    %1768 = vmatprep.subr.bf16.mxu0 0
    %1769 = vmatpush1.bf16.msra.mxu0 %v477
    %1770 = vmatprep.subr.bf16.mxu0 0
    %1771 = vmatpush1.bf16.msra.mxu0 %v478
    %1772 = vmatprep.subr.bf16.mxu0 0
    %1773 = vmatpush1.bf16.msra.mxu0 %v479
    %1774 = vmatprep.subr.bf16.mxu0 0
    %1775 = vmatpush1.bf16.msra.mxu0 0
    %1776 = vmatprep.subr.bf16.mxu0 0
    %1777 = vmatpush1.bf16.msra.mxu0 0
    %1778 = vmatprep.subr.bf16.mxu0 0
    %1779 = vmatpush1.bf16.msra.mxu0 0
    %1780 = vmatprep.subr.bf16.mxu0 0
    %1781 = vmatpush1.bf16.msra.mxu0 0
    %1782 = vmatprep.subr.bf16.mxu0 0
    %1783 = vmatpush1.bf16.msra.mxu0 0
    %1784 = vmatprep.subr.bf16.mxu0 0
    %1785 = vmatpush1.bf16.msra.mxu0 0
    %1786 = vmatprep.subr.bf16.mxu0 0
    %1787 = vmatpush1.bf16.msra.mxu0 0
    %1788 = vmatprep.subr.bf16.mxu0 0
    %1789 = vmatpush1.bf16.msra.mxu0 0
    %1790 = vmatprep.mubr.bf16.mxu0 0
    %1791 = vmatmul.mubr.bf16.gmra.mrb[0].mxu0 %v1757
    %v1792 = vpop.f32.mrb[0].mxu0
    %v1793 = vadd.f32 %v438, %v1792
    %v1794 = vpop.f32.mrb[0].mxu0
    %v1795 = vpop.f32.mrb[0].mxu0
    %v1796 = vadd.f32 %v438, %v1795
    %v1797 = vpop.f32.mrb[0].mxu0
    %1798 = vdwg.mxu0
    %v1799 = vld [vmem:[#allocation8] sm:$0xff]
    %v1800 = vld [vmem:[#allocation8 + $0x8] sm:$0xff]
    %v1801 = vmul.f32 %v1799, 0.5
    %v1802 = vmul.f32 %v1800, 0.5
    %v1803 = vadd.f32 %v1801, %v1793
    %v1804 = vadd.f32 %v1802, %v1796
    %v1805 = vld [vmem:[#allocation9] sm:$0xff]
    %v1806 = vld [vmem:[#allocation9 + $0x8] sm:$0xff]
    %v1807 = vmul.f32 %v1805, 0.75
    %v1808 = vmul.f32 %v1806, 0.75
    %v1809 = vadd.f32 %v1807, %v1803
    %v1810 = vadd.f32 %v1808, %v1804
    %v1811 = vld [vmem:[#allocation10] sm:$0xff]
    %v1812 = vld [vmem:[#allocation10 + $0x8] sm:$0xff]
    %v1813 = vmul.f32 %v1811, 0.2
    %v1814 = vmul.f32 %v1812, 0.2
    %v1815 = vsub.f32 %v1809, %v1813
    %v1816 = vsub.f32 %v1810, %v1814
    %vm1817 = vcmp.ge.f32.partialorder %v1815, 0.2
    %vm1818 = vcmp.ge.f32.partialorder %v1816, 0.2
    %v1819 = vsel %vm1817, 1, 0
    %v1820 = vsel %vm1818, 1, 0
    %v1821 = vcvt.s32.f32 %v1819
    %v1822 = vcvt.s32.f32 %v1820
    %vm1823 = vcmp.le.f32.partialorder %v1815, -0.2
    %vm1824 = vcmp.le.f32.partialorder %v1816, -0.2
    %v1825 = vsel %vm1823, 1, 0
    %v1826 = vsel %vm1824, 1, 0
    %v1827 = vcvt.s32.f32 %v1825
    %v1828 = vcvt.s32.f32 %v1826
    %v1829 = vsub.f32 %v1821, %v1827
    %v1830 = vsub.f32 %v1822, %v1828
    %1831 = vst [vmem:[#allocation8] sm:$0xff] %v1803
    %1832 = vst [vmem:[#allocation8 + $0x8] sm:$0xff] %v1804
    %1833 = vst [vmem:[#allocation9] sm:$0xff] %v1815
    %1834 = vst [vmem:[#allocation9 + $0x8] sm:$0xff] %v1816
    %1835 = vst [vmem:[#allocation10] sm:$0xff] %v1829
    %1836 = vst [vmem:[#allocation10 + $0x8] sm:$0xff] %v1830
    %v1837 = vld [vmem:[#allocation19] sm:$0xff]
    %v1838 = vld [vmem:[#allocation19 + $0x8] sm:$0xff]
    %v1839 = vadd.f32 %v1837, %v1829
    %v1840 = vadd.f32 %v1838, %v1830
    %1841 = vst [vmem:[#allocation19] sm:$0xff] %v1839
    %1842 = vst [vmem:[#allocation19 + $0x8] sm:$0xff] %v1840
    %s1843 = scalar_lea.vmem [#allocation11], 48
    %v1844 = vld [vmem:[%s1843] sm:$0xf]
    %v1845 = vld [vmem:[%s1843 + $0x4] sm:$0xf]
    %v1848 = vunpack.c.l.b16 %v1844
    %v1849 = vunpack.c.l.b16 %v1845
    %v1850 = vpack.c.b16 %v1849, %v1848
    %1852 = vmatprep.subr.bf16.mxu0 0
    %1853 = vmatpush1.bf16.msra.mxu0 %v204
    %1854 = vmatprep.subr.bf16.mxu0 0
    %1855 = vmatpush1.bf16.msra.mxu0 %v205
    %1856 = vmatprep.subr.bf16.mxu0 0
    %1857 = vmatpush1.bf16.msra.mxu0 %v206
    %1858 = vmatprep.subr.bf16.mxu0 0
    %1859 = vmatpush1.bf16.msra.mxu0 %v207
    %1860 = vmatprep.subr.bf16.mxu0 0
    %1861 = vmatpush1.bf16.msra.mxu0 %v208
    %1862 = vmatprep.subr.bf16.mxu0 0
    %1863 = vmatpush1.bf16.msra.mxu0 %v209
    %1864 = vmatprep.subr.bf16.mxu0 0
    %1865 = vmatpush1.bf16.msra.mxu0 %v210
    %1866 = vmatprep.subr.bf16.mxu0 0
    %1867 = vmatpush1.bf16.msra.mxu0 %v211
    %1868 = vmatprep.subr.bf16.mxu0 0
    %1869 = vmatpush1.bf16.msra.mxu0 0
    %1870 = vmatprep.subr.bf16.mxu0 0
    %1871 = vmatpush1.bf16.msra.mxu0 0
    %1872 = vmatprep.subr.bf16.mxu0 0
    %1873 = vmatpush1.bf16.msra.mxu0 0
    %1874 = vmatprep.subr.bf16.mxu0 0
    %1875 = vmatpush1.bf16.msra.mxu0 0
    %1876 = vmatprep.subr.bf16.mxu0 0
    %1877 = vmatpush1.bf16.msra.mxu0 0
    %1878 = vmatprep.subr.bf16.mxu0 0
    %1879 = vmatpush1.bf16.msra.mxu0 0
    %1880 = vmatprep.subr.bf16.mxu0 0
    %1881 = vmatpush1.bf16.msra.mxu0 0
    %1882 = vmatprep.subr.bf16.mxu0 0
    %1883 = vmatpush1.bf16.msra.mxu0 0
    %1884 = vmatprep.mubr.bf16.mxu0 0
    %1885 = vmatmul.mubr.bf16.gmra.mrb[0].mxu0 %v1850
    %v1886 = vpop.f32.mrb[0].mxu0
    %v1887 = vadd.f32 %v164, %v1886
    %v1888 = vpop.f32.mrb[0].mxu0
    %v1889 = vpop.f32.mrb[0].mxu0
    %v1890 = vadd.f32 %v164, %v1889
    %v1891 = vpop.f32.mrb[0].mxu0
    %1892 = vdwg.mxu0
    %v1893 = vld [vmem:[#allocation2] sm:$0xff]
    %v1894 = vld [vmem:[#allocation2 + $0x8] sm:$0xff]
    %v1895 = vmul.f32 %v1893, 0.5
    %v1896 = vmul.f32 %v1894, 0.5
    %v1897 = vadd.f32 %v1895, %v1887
    %v1898 = vadd.f32 %v1896, %v1890
    %v1899 = vld [vmem:[#allocation3] sm:$0xff]
    %v1900 = vld [vmem:[#allocation3 + $0x8] sm:$0xff]
    %v1901 = vmul.f32 %v1899, 0.75
    %v1902 = vmul.f32 %v1900, 0.75
    %v1903 = vadd.f32 %v1901, %v1897
    %v1904 = vadd.f32 %v1902, %v1898
    %v1905 = vld [vmem:[#allocation4] sm:$0xff]
    %v1906 = vld [vmem:[#allocation4 + $0x8] sm:$0xff]
    %v1907 = vmul.f32 %v1905, 0.2
    %v1908 = vmul.f32 %v1906, 0.2
    %v1909 = vsub.f32 %v1903, %v1907
    %v1910 = vsub.f32 %v1904, %v1908
    %vm1911 = vcmp.ge.f32.partialorder %v1909, 0.2
    %vm1912 = vcmp.ge.f32.partialorder %v1910, 0.2
    %v1913 = vsel %vm1911, 1, 0
    %v1914 = vsel %vm1912, 1, 0
    %v1915 = vcvt.s32.f32 %v1913
    %v1916 = vcvt.s32.f32 %v1914
    %vm1917 = vcmp.le.f32.partialorder %v1909, -0.2
    %vm1918 = vcmp.le.f32.partialorder %v1910, -0.2
    %v1919 = vsel %vm1917, 1, 0
    %v1920 = vsel %vm1918, 1, 0
    %v1921 = vcvt.s32.f32 %v1919
    %v1922 = vcvt.s32.f32 %v1920
    %v1923 = vsub.f32 %v1915, %v1921
    %v1924 = vsub.f32 %v1916, %v1922
    %1925 = vst [vmem:[#allocation2] sm:$0xff] %v1897
    %1926 = vst [vmem:[#allocation2 + $0x8] sm:$0xff] %v1898
    %1927 = vst [vmem:[#allocation3] sm:$0xff] %v1909
    %1928 = vst [vmem:[#allocation3 + $0x8] sm:$0xff] %v1910
    %1929 = vst [vmem:[#allocation4] sm:$0xff] %v1923
    %1930 = vst [vmem:[#allocation4 + $0x8] sm:$0xff] %v1924
    %v1931 = vpack.c.bf16 %v1924, %v1923
    %1932 = vmatprep.subr.bf16.mxu0 0
    %1933 = vmatpush1.bf16.msra.mxu0 %v338
    %1934 = vmatprep.subr.bf16.mxu0 0
    %1935 = vmatpush1.bf16.msra.mxu0 %v339
    %1936 = vmatprep.subr.bf16.mxu0 0
    %1937 = vmatpush1.bf16.msra.mxu0 %v340
    %1938 = vmatprep.subr.bf16.mxu0 0
    %1939 = vmatpush1.bf16.msra.mxu0 %v341
    %1940 = vmatprep.subr.bf16.mxu0 0
    %1941 = vmatpush1.bf16.msra.mxu0 %v342
    %1942 = vmatprep.subr.bf16.mxu0 0
    %1943 = vmatpush1.bf16.msra.mxu0 %v343
    %1944 = vmatprep.subr.bf16.mxu0 0
    %1945 = vmatpush1.bf16.msra.mxu0 %v344
    %1946 = vmatprep.subr.bf16.mxu0 0
    %1947 = vmatpush1.bf16.msra.mxu0 %v345
    %1948 = vmatprep.subr.bf16.mxu0 0
    %1949 = vmatpush1.bf16.msra.mxu0 0
    %1950 = vmatprep.subr.bf16.mxu0 0
    %1951 = vmatpush1.bf16.msra.mxu0 0
    %1952 = vmatprep.subr.bf16.mxu0 0
    %1953 = vmatpush1.bf16.msra.mxu0 0
    %1954 = vmatprep.subr.bf16.mxu0 0
    %1955 = vmatpush1.bf16.msra.mxu0 0
    %1956 = vmatprep.subr.bf16.mxu0 0
    %1957 = vmatpush1.bf16.msra.mxu0 0
    %1958 = vmatprep.subr.bf16.mxu0 0
    %1959 = vmatpush1.bf16.msra.mxu0 0
    %1960 = vmatprep.subr.bf16.mxu0 0
    %1961 = vmatpush1.bf16.msra.mxu0 0
    %1962 = vmatprep.subr.bf16.mxu0 0
    %1963 = vmatpush1.bf16.msra.mxu0 0
    %1964 = vmatprep.mubr.bf16.mxu0 0
    %1965 = vmatmul.mubr.bf16.gmra.mrb[0].mxu0 %v1931
    %v1966 = vpop.f32.mrb[0].mxu0
    %v1967 = vadd.f32 %v304, %v1966
    %v1968 = vpop.f32.mrb[0].mxu0
    %v1969 = vpop.f32.mrb[0].mxu0
    %v1970 = vadd.f32 %v304, %v1969
    %v1971 = vpop.f32.mrb[0].mxu0
    %1972 = vdwg.mxu0
    %v1973 = vld [vmem:[#allocation5] sm:$0xff]
    %v1974 = vld [vmem:[#allocation5 + $0x8] sm:$0xff]
    %v1975 = vmul.f32 %v1973, 0.5
    %v1976 = vmul.f32 %v1974, 0.5
    %v1977 = vadd.f32 %v1975, %v1967
    %v1978 = vadd.f32 %v1976, %v1970
    %v1979 = vld [vmem:[#allocation6] sm:$0xff]
    %v1980 = vld [vmem:[#allocation6 + $0x8] sm:$0xff]
    %v1981 = vmul.f32 %v1979, 0.75
    %v1982 = vmul.f32 %v1980, 0.75
    %v1983 = vadd.f32 %v1981, %v1977
    %v1984 = vadd.f32 %v1982, %v1978
    %v1985 = vld [vmem:[#allocation7] sm:$0xff]
    %v1986 = vld [vmem:[#allocation7 + $0x8] sm:$0xff]
    %v1987 = vmul.f32 %v1985, 0.2
    %v1988 = vmul.f32 %v1986, 0.2
    %v1989 = vsub.f32 %v1983, %v1987
    %v1990 = vsub.f32 %v1984, %v1988
    %vm1991 = vcmp.ge.f32.partialorder %v1989, 0.2
    %vm1992 = vcmp.ge.f32.partialorder %v1990, 0.2
    %v1993 = vsel %vm1991, 1, 0
    %v1994 = vsel %vm1992, 1, 0
    %v1995 = vcvt.s32.f32 %v1993
    %v1996 = vcvt.s32.f32 %v1994
    %vm1997 = vcmp.le.f32.partialorder %v1989, -0.2
    %vm1998 = vcmp.le.f32.partialorder %v1990, -0.2
    %v1999 = vsel %vm1997, 1, 0
    %v2000 = vsel %vm1998, 1, 0
    %v2001 = vcvt.s32.f32 %v1999
    %v2002 = vcvt.s32.f32 %v2000
    %v2003 = vsub.f32 %v1995, %v2001
    %v2004 = vsub.f32 %v1996, %v2002
    %2005 = vst [vmem:[#allocation5] sm:$0xff] %v1977
    %2006 = vst [vmem:[#allocation5 + $0x8] sm:$0xff] %v1978
    %2007 = vst [vmem:[#allocation6] sm:$0xff] %v1989
    %2008 = vst [vmem:[#allocation6 + $0x8] sm:$0xff] %v1990
    %2009 = vst [vmem:[#allocation7] sm:$0xff] %v2003
    %2010 = vst [vmem:[#allocation7 + $0x8] sm:$0xff] %v2004
    %v2011 = vpack.c.bf16 %v2004, %v2003
    %2012 = vmatprep.subr.bf16.mxu0 0
    %2013 = vmatpush1.bf16.msra.mxu0 %v472
    %2014 = vmatprep.subr.bf16.mxu0 0
    %2015 = vmatpush1.bf16.msra.mxu0 %v473
    %2016 = vmatprep.subr.bf16.mxu0 0
    %2017 = vmatpush1.bf16.msra.mxu0 %v474
    %2018 = vmatprep.subr.bf16.mxu0 0
    %2019 = vmatpush1.bf16.msra.mxu0 %v475
    %2020 = vmatprep.subr.bf16.mxu0 0
    %2021 = vmatpush1.bf16.msra.mxu0 %v476
    %2022 = vmatprep.subr.bf16.mxu0 0
    %2023 = vmatpush1.bf16.msra.mxu0 %v477
    %2024 = vmatprep.subr.bf16.mxu0 0
    %2025 = vmatpush1.bf16.msra.mxu0 %v478
    %2026 = vmatprep.subr.bf16.mxu0 0
    %2027 = vmatpush1.bf16.msra.mxu0 %v479
    %2028 = vmatprep.subr.bf16.mxu0 0
    %2029 = vmatpush1.bf16.msra.mxu0 0
    %2030 = vmatprep.subr.bf16.mxu0 0
    %2031 = vmatpush1.bf16.msra.mxu0 0
    %2032 = vmatprep.subr.bf16.mxu0 0
    %2033 = vmatpush1.bf16.msra.mxu0 0
    %2034 = vmatprep.subr.bf16.mxu0 0
    %2035 = vmatpush1.bf16.msra.mxu0 0
    %2036 = vmatprep.subr.bf16.mxu0 0
    %2037 = vmatpush1.bf16.msra.mxu0 0
    %2038 = vmatprep.subr.bf16.mxu0 0
    %2039 = vmatpush1.bf16.msra.mxu0 0
    %2040 = vmatprep.subr.bf16.mxu0 0
    %2041 = vmatpush1.bf16.msra.mxu0 0
    %2042 = vmatprep.subr.bf16.mxu0 0
    %2043 = vmatpush1.bf16.msra.mxu0 0
    %2044 = vmatprep.mubr.bf16.mxu0 0
    %2045 = vmatmul.mubr.bf16.gmra.mrb[0].mxu0 %v2011
    %v2046 = vpop.f32.mrb[0].mxu0
    %v2047 = vadd.f32 %v438, %v2046
    %v2048 = vpop.f32.mrb[0].mxu0
    %v2049 = vpop.f32.mrb[0].mxu0
    %v2050 = vadd.f32 %v438, %v2049
    %v2051 = vpop.f32.mrb[0].mxu0
    %2052 = vdwg.mxu0
    %v2053 = vld [vmem:[#allocation8] sm:$0xff]
    %v2054 = vld [vmem:[#allocation8 + $0x8] sm:$0xff]
    %v2055 = vmul.f32 %v2053, 0.5
    %v2056 = vmul.f32 %v2054, 0.5
    %v2057 = vadd.f32 %v2055, %v2047
    %v2058 = vadd.f32 %v2056, %v2050
    %v2059 = vld [vmem:[#allocation9] sm:$0xff]
    %v2060 = vld [vmem:[#allocation9 + $0x8] sm:$0xff]
    %v2061 = vmul.f32 %v2059, 0.75
    %v2062 = vmul.f32 %v2060, 0.75
    %v2063 = vadd.f32 %v2061, %v2057
    %v2064 = vadd.f32 %v2062, %v2058
    %v2065 = vld [vmem:[#allocation10] sm:$0xff]
    %v2066 = vld [vmem:[#allocation10 + $0x8] sm:$0xff]
    %v2067 = vmul.f32 %v2065, 0.2
    %v2068 = vmul.f32 %v2066, 0.2
    %v2069 = vsub.f32 %v2063, %v2067
    %v2070 = vsub.f32 %v2064, %v2068
    %vm2071 = vcmp.ge.f32.partialorder %v2069, 0.2
    %vm2072 = vcmp.ge.f32.partialorder %v2070, 0.2
    %v2073 = vsel %vm2071, 1, 0
    %v2074 = vsel %vm2072, 1, 0
    %v2075 = vcvt.s32.f32 %v2073
    %v2076 = vcvt.s32.f32 %v2074
    %vm2077 = vcmp.le.f32.partialorder %v2069, -0.2
    %vm2078 = vcmp.le.f32.partialorder %v2070, -0.2
    %v2079 = vsel %vm2077, 1, 0
    %v2080 = vsel %vm2078, 1, 0
    %v2081 = vcvt.s32.f32 %v2079
    %v2082 = vcvt.s32.f32 %v2080
    %v2083 = vsub.f32 %v2075, %v2081
    %v2084 = vsub.f32 %v2076, %v2082
    %2085 = vst [vmem:[#allocation8] sm:$0xff] %v2057
    %2086 = vst [vmem:[#allocation8 + $0x8] sm:$0xff] %v2058
    %2087 = vst [vmem:[#allocation9] sm:$0xff] %v2069
    %2088 = vst [vmem:[#allocation9 + $0x8] sm:$0xff] %v2070
    %2089 = vst [vmem:[#allocation10] sm:$0xff] %v2083
    %2090 = vst [vmem:[#allocation10 + $0x8] sm:$0xff] %v2084
    %v2091 = vld [vmem:[#allocation19] sm:$0xff]
    %v2092 = vld [vmem:[#allocation19 + $0x8] sm:$0xff]
    %v2093 = vadd.f32 %v2091, %v2083
    %v2094 = vadd.f32 %v2092, %v2084
    %2095 = vst [vmem:[#allocation19] sm:$0xff] %v2093
    %2096 = vst [vmem:[#allocation19 + $0x8] sm:$0xff] %v2094
    %s2097 = scalar_lea.vmem [#allocation11], 56
    %v2098 = vld [vmem:[%s2097] sm:$0xf]
    %v2099 = vld [vmem:[%s2097 + $0x4] sm:$0xf]
    %v2102 = vunpack.c.l.b16 %v2098
    %v2103 = vunpack.c.l.b16 %v2099
    %v2104 = vpack.c.b16 %v2103, %v2102
    %2106 = vmatprep.subr.bf16.mxu0 0
    %2107 = vmatpush1.bf16.msra.mxu0 %v204
    %2108 = vmatprep.subr.bf16.mxu0 0
    %2109 = vmatpush1.bf16.msra.mxu0 %v205
    %2110 = vmatprep.subr.bf16.mxu0 0
    %2111 = vmatpush1.bf16.msra.mxu0 %v206
    %2112 = vmatprep.subr.bf16.mxu0 0
    %2113 = vmatpush1.bf16.msra.mxu0 %v207
    %2114 = vmatprep.subr.bf16.mxu0 0
    %2115 = vmatpush1.bf16.msra.mxu0 %v208
    %2116 = vmatprep.subr.bf16.mxu0 0
    %2117 = vmatpush1.bf16.msra.mxu0 %v209
    %2118 = vmatprep.subr.bf16.mxu0 0
    %2119 = vmatpush1.bf16.msra.mxu0 %v210
    %2120 = vmatprep.subr.bf16.mxu0 0
    %2121 = vmatpush1.bf16.msra.mxu0 %v211
    %2122 = vmatprep.subr.bf16.mxu0 0
    %2123 = vmatpush1.bf16.msra.mxu0 0
    %2124 = vmatprep.subr.bf16.mxu0 0
    %2125 = vmatpush1.bf16.msra.mxu0 0
    %2126 = vmatprep.subr.bf16.mxu0 0
    %2127 = vmatpush1.bf16.msra.mxu0 0
    %2128 = vmatprep.subr.bf16.mxu0 0
    %2129 = vmatpush1.bf16.msra.mxu0 0
    %2130 = vmatprep.subr.bf16.mxu0 0
    %2131 = vmatpush1.bf16.msra.mxu0 0
    %2132 = vmatprep.subr.bf16.mxu0 0
    %2133 = vmatpush1.bf16.msra.mxu0 0
    %2134 = vmatprep.subr.bf16.mxu0 0
    %2135 = vmatpush1.bf16.msra.mxu0 0
    %2136 = vmatprep.subr.bf16.mxu0 0
    %2137 = vmatpush1.bf16.msra.mxu0 0
    %2138 = vmatprep.mubr.bf16.mxu0 0
    %2139 = vmatmul.mubr.bf16.gmra.mrb[0].mxu0 %v2104
    %v2140 = vpop.f32.mrb[0].mxu0
    %v2141 = vadd.f32 %v164, %v2140
    %v2142 = vpop.f32.mrb[0].mxu0
    %v2143 = vpop.f32.mrb[0].mxu0
    %v2144 = vadd.f32 %v164, %v2143
    %v2145 = vpop.f32.mrb[0].mxu0
    %2146 = vdwg.mxu0
    %v2147 = vld [vmem:[#allocation2] sm:$0xff]
    %v2148 = vld [vmem:[#allocation2 + $0x8] sm:$0xff]
    %v2149 = vmul.f32 %v2147, 0.5
    %v2150 = vmul.f32 %v2148, 0.5
    %v2151 = vadd.f32 %v2149, %v2141
    %v2152 = vadd.f32 %v2150, %v2144
    %v2153 = vld [vmem:[#allocation3] sm:$0xff]
    %v2154 = vld [vmem:[#allocation3 + $0x8] sm:$0xff]
    %v2155 = vmul.f32 %v2153, 0.75
    %v2156 = vmul.f32 %v2154, 0.75
    %v2157 = vadd.f32 %v2155, %v2151
    %v2158 = vadd.f32 %v2156, %v2152
    %v2159 = vld [vmem:[#allocation4] sm:$0xff]
    %v2160 = vld [vmem:[#allocation4 + $0x8] sm:$0xff]
    %v2161 = vmul.f32 %v2159, 0.2
    %v2162 = vmul.f32 %v2160, 0.2
    %v2163 = vsub.f32 %v2157, %v2161
    %v2164 = vsub.f32 %v2158, %v2162
    %vm2165 = vcmp.ge.f32.partialorder %v2163, 0.2
    %vm2166 = vcmp.ge.f32.partialorder %v2164, 0.2
    %v2167 = vsel %vm2165, 1, 0
    %v2168 = vsel %vm2166, 1, 0
    %v2169 = vcvt.s32.f32 %v2167
    %v2170 = vcvt.s32.f32 %v2168
    %vm2171 = vcmp.le.f32.partialorder %v2163, -0.2
    %vm2172 = vcmp.le.f32.partialorder %v2164, -0.2
    %v2173 = vsel %vm2171, 1, 0
    %v2174 = vsel %vm2172, 1, 0
    %v2175 = vcvt.s32.f32 %v2173
    %v2176 = vcvt.s32.f32 %v2174
    %v2177 = vsub.f32 %v2169, %v2175
    %v2178 = vsub.f32 %v2170, %v2176
    %2179 = vst [vmem:[#allocation2] sm:$0xff] %v2151
    %2180 = vst [vmem:[#allocation2 + $0x8] sm:$0xff] %v2152
    %2181 = vst [vmem:[#allocation3] sm:$0xff] %v2163
    %2182 = vst [vmem:[#allocation3 + $0x8] sm:$0xff] %v2164
    %2183 = vst [vmem:[#allocation4] sm:$0xff] %v2177
    %2184 = vst [vmem:[#allocation4 + $0x8] sm:$0xff] %v2178
    %v2185 = vpack.c.bf16 %v2178, %v2177
    %2186 = vmatprep.subr.bf16.mxu0 0
    %2187 = vmatpush1.bf16.msra.mxu0 %v338
    %2188 = vmatprep.subr.bf16.mxu0 0
    %2189 = vmatpush1.bf16.msra.mxu0 %v339
    %2190 = vmatprep.subr.bf16.mxu0 0
    %2191 = vmatpush1.bf16.msra.mxu0 %v340
    %2192 = vmatprep.subr.bf16.mxu0 0
    %2193 = vmatpush1.bf16.msra.mxu0 %v341
    %2194 = vmatprep.subr.bf16.mxu0 0
    %2195 = vmatpush1.bf16.msra.mxu0 %v342
    %2196 = vmatprep.subr.bf16.mxu0 0
    %2197 = vmatpush1.bf16.msra.mxu0 %v343
    %2198 = vmatprep.subr.bf16.mxu0 0
    %2199 = vmatpush1.bf16.msra.mxu0 %v344
    %2200 = vmatprep.subr.bf16.mxu0 0
    %2201 = vmatpush1.bf16.msra.mxu0 %v345
    %2202 = vmatprep.subr.bf16.mxu0 0
    %2203 = vmatpush1.bf16.msra.mxu0 0
    %2204 = vmatprep.subr.bf16.mxu0 0
    %2205 = vmatpush1.bf16.msra.mxu0 0
    %2206 = vmatprep.subr.bf16.mxu0 0
    %2207 = vmatpush1.bf16.msra.mxu0 0
    %2208 = vmatprep.subr.bf16.mxu0 0
    %2209 = vmatpush1.bf16.msra.mxu0 0
    %2210 = vmatprep.subr.bf16.mxu0 0
    %2211 = vmatpush1.bf16.msra.mxu0 0
    %2212 = vmatprep.subr.bf16.mxu0 0
    %2213 = vmatpush1.bf16.msra.mxu0 0
    %2214 = vmatprep.subr.bf16.mxu0 0
    %2215 = vmatpush1.bf16.msra.mxu0 0
    %2216 = vmatprep.subr.bf16.mxu0 0
    %2217 = vmatpush1.bf16.msra.mxu0 0
    %2218 = vmatprep.mubr.bf16.mxu0 0
    %2219 = vmatmul.mubr.bf16.gmra.mrb[0].mxu0 %v2185
    %v2220 = vpop.f32.mrb[0].mxu0
    %v2221 = vadd.f32 %v304, %v2220
    %v2222 = vpop.f32.mrb[0].mxu0
    %v2223 = vpop.f32.mrb[0].mxu0
    %v2224 = vadd.f32 %v304, %v2223
    %v2225 = vpop.f32.mrb[0].mxu0
    %2226 = vdwg.mxu0
    %v2227 = vld [vmem:[#allocation5] sm:$0xff]
    %v2228 = vld [vmem:[#allocation5 + $0x8] sm:$0xff]
    %v2229 = vmul.f32 %v2227, 0.5
    %v2230 = vmul.f32 %v2228, 0.5
    %v2231 = vadd.f32 %v2229, %v2221
    %v2232 = vadd.f32 %v2230, %v2224
    %v2233 = vld [vmem:[#allocation6] sm:$0xff]
    %v2234 = vld [vmem:[#allocation6 + $0x8] sm:$0xff]
    %v2235 = vmul.f32 %v2233, 0.75
    %v2236 = vmul.f32 %v2234, 0.75
    %v2237 = vadd.f32 %v2235, %v2231
    %v2238 = vadd.f32 %v2236, %v2232
    %v2239 = vld [vmem:[#allocation7] sm:$0xff]
    %v2240 = vld [vmem:[#allocation7 + $0x8] sm:$0xff]
    %v2241 = vmul.f32 %v2239, 0.2
    %v2242 = vmul.f32 %v2240, 0.2
    %v2243 = vsub.f32 %v2237, %v2241
    %v2244 = vsub.f32 %v2238, %v2242
    %vm2245 = vcmp.ge.f32.partialorder %v2243, 0.2
    %vm2246 = vcmp.ge.f32.partialorder %v2244, 0.2
    %v2247 = vsel %vm2245, 1, 0
    %v2248 = vsel %vm2246, 1, 0
    %v2249 = vcvt.s32.f32 %v2247
    %v2250 = vcvt.s32.f32 %v2248
    %vm2251 = vcmp.le.f32.partialorder %v2243, -0.2
    %vm2252 = vcmp.le.f32.partialorder %v2244, -0.2
    %v2253 = vsel %vm2251, 1, 0
    %v2254 = vsel %vm2252, 1, 0
    %v2255 = vcvt.s32.f32 %v2253
    %v2256 = vcvt.s32.f32 %v2254
    %v2257 = vsub.f32 %v2249, %v2255
    %v2258 = vsub.f32 %v2250, %v2256
    %2259 = vst [vmem:[#allocation5] sm:$0xff] %v2231
    %2260 = vst [vmem:[#allocation5 + $0x8] sm:$0xff] %v2232
    %2261 = vst [vmem:[#allocation6] sm:$0xff] %v2243
    %2262 = vst [vmem:[#allocation6 + $0x8] sm:$0xff] %v2244
    %2263 = vst [vmem:[#allocation7] sm:$0xff] %v2257
    %2264 = vst [vmem:[#allocation7 + $0x8] sm:$0xff] %v2258
    %v2265 = vpack.c.bf16 %v2258, %v2257
    %2266 = vmatprep.subr.bf16.mxu0 0
    %2267 = vmatpush1.bf16.msra.mxu0 %v472
    %2268 = vmatprep.subr.bf16.mxu0 0
    %2269 = vmatpush1.bf16.msra.mxu0 %v473
    %2270 = vmatprep.subr.bf16.mxu0 0
    %2271 = vmatpush1.bf16.msra.mxu0 %v474
    %2272 = vmatprep.subr.bf16.mxu0 0
    %2273 = vmatpush1.bf16.msra.mxu0 %v475
    %2274 = vmatprep.subr.bf16.mxu0 0
    %2275 = vmatpush1.bf16.msra.mxu0 %v476
    %2276 = vmatprep.subr.bf16.mxu0 0
    %2277 = vmatpush1.bf16.msra.mxu0 %v477
    %2278 = vmatprep.subr.bf16.mxu0 0
    %2279 = vmatpush1.bf16.msra.mxu0 %v478
    %2280 = vmatprep.subr.bf16.mxu0 0
    %2281 = vmatpush1.bf16.msra.mxu0 %v479
    %2282 = vmatprep.subr.bf16.mxu0 0
    %2283 = vmatpush1.bf16.msra.mxu0 0
    %2284 = vmatprep.subr.bf16.mxu0 0
    %2285 = vmatpush1.bf16.msra.mxu0 0
    %2286 = vmatprep.subr.bf16.mxu0 0
    %2287 = vmatpush1.bf16.msra.mxu0 0
    %2288 = vmatprep.subr.bf16.mxu0 0
    %2289 = vmatpush1.bf16.msra.mxu0 0
    %2290 = vmatprep.subr.bf16.mxu0 0
    %2291 = vmatpush1.bf16.msra.mxu0 0
    %2292 = vmatprep.subr.bf16.mxu0 0
    %2293 = vmatpush1.bf16.msra.mxu0 0
    %2294 = vmatprep.subr.bf16.mxu0 0
    %2295 = vmatpush1.bf16.msra.mxu0 0
    %2296 = vmatprep.subr.bf16.mxu0 0
    %2297 = vmatpush1.bf16.msra.mxu0 0
    %2298 = vmatprep.mubr.bf16.mxu0 0
    %2299 = vmatmul.mubr.bf16.gmra.mrb[0].mxu0 %v2265
    %v2300 = vpop.f32.mrb[0].mxu0
    %v2301 = vadd.f32 %v438, %v2300
    %v2302 = vpop.f32.mrb[0].mxu0
    %v2303 = vpop.f32.mrb[0].mxu0
    %v2304 = vadd.f32 %v438, %v2303
    %v2305 = vpop.f32.mrb[0].mxu0
    %2306 = vdwg.mxu0
    %v2307 = vld [vmem:[#allocation8] sm:$0xff]
    %v2308 = vld [vmem:[#allocation8 + $0x8] sm:$0xff]
    %v2309 = vmul.f32 %v2307, 0.5
    %v2310 = vmul.f32 %v2308, 0.5
    %v2311 = vadd.f32 %v2309, %v2301
    %v2312 = vadd.f32 %v2310, %v2304
    %v2313 = vld [vmem:[#allocation9] sm:$0xff]
    %v2314 = vld [vmem:[#allocation9 + $0x8] sm:$0xff]
    %v2315 = vmul.f32 %v2313, 0.75
    %v2316 = vmul.f32 %v2314, 0.75
    %v2317 = vadd.f32 %v2315, %v2311
    %v2318 = vadd.f32 %v2316, %v2312
    %v2319 = vld [vmem:[#allocation10] sm:$0xff]
    %v2320 = vld [vmem:[#allocation10 + $0x8] sm:$0xff]
    %v2321 = vmul.f32 %v2319, 0.2
    %v2322 = vmul.f32 %v2320, 0.2
    %v2323 = vsub.f32 %v2317, %v2321
    %v2324 = vsub.f32 %v2318, %v2322
    %vm2325 = vcmp.ge.f32.partialorder %v2323, 0.2
    %vm2326 = vcmp.ge.f32.partialorder %v2324, 0.2
    %v2327 = vsel %vm2325, 1, 0
    %v2328 = vsel %vm2326, 1, 0
    %v2329 = vcvt.s32.f32 %v2327
    %v2330 = vcvt.s32.f32 %v2328
    %vm2331 = vcmp.le.f32.partialorder %v2323, -0.2
    %vm2332 = vcmp.le.f32.partialorder %v2324, -0.2
    %v2333 = vsel %vm2331, 1, 0
    %v2334 = vsel %vm2332, 1, 0
    %v2335 = vcvt.s32.f32 %v2333
    %v2336 = vcvt.s32.f32 %v2334
    %v2337 = vsub.f32 %v2329, %v2335
    %v2338 = vsub.f32 %v2330, %v2336
    %2339 = vst [vmem:[#allocation8] sm:$0xff] %v2311
    %2340 = vst [vmem:[#allocation8 + $0x8] sm:$0xff] %v2312
    %2341 = vst [vmem:[#allocation9] sm:$0xff] %v2323
    %2342 = vst [vmem:[#allocation9 + $0x8] sm:$0xff] %v2324
    %2343 = vst [vmem:[#allocation10] sm:$0xff] %v2337
    %2344 = vst [vmem:[#allocation10 + $0x8] sm:$0xff] %v2338
    %v2345 = vld [vmem:[#allocation19] sm:$0xff]
    %v2346 = vld [vmem:[#allocation19 + $0x8] sm:$0xff]
    %v2347 = vadd.f32 %v2345, %v2337
    %v2348 = vadd.f32 %v2346, %v2338
    %2349 = vst [vmem:[#allocation19] sm:$0xff] %v2347
    %2350 = vst [vmem:[#allocation19 + $0x8] sm:$0xff] %v2348
    // Predicated region
    $region50: #{tpu_custom_call.1} parent=1 // pred_check
      %p2351 = pneg %p83
    $region51: #{tpu_custom_call.1} parent=1 // pred_check_branch
      %2353 = sbr.rel (%p2351) target = $region53
    $region52: #{tpu_custom_call.1} parent=1 // pred_region
      %v2354 = vld [vmem:[#allocation19] sm:$0xff]
      %v2355 = vld [vmem:[#allocation19 + $0x8] sm:$0xff]
      %v2356 = vmul.f32 %v2354, 0.125
      %v2357 = vmul.f32 %v2355, 0.125
      %2358 = vst [vmem:[#allocation19] sm:$0xff] %v2356
      %2359 = vst [vmem:[#allocation19 + $0x8] sm:$0xff] %v2357
    $region53: #{tpu_custom_call.1} parent=1 // pred_fallthru
      _
    // Predicated region
    $region54: #{tpu_custom_call.1} parent=1 // pred_check
      _
    $region55: #{tpu_custom_call.1} parent=1 // pred_check_branch
      %2361 = sbr.rel (0) target = $region57
    $region56: #{tpu_custom_call.1} parent=1 // pred_region
      %s2363 = ssub.s32 256, 256
      %2364 = vsyncadd [#allocation13], %s2363
      %s2365 = sshll.u32 [#allocation19], 4
      %s2366 = int_to_ptr.vmem [resolvable:$true] %s2365
      %2371 = dma.vmem_to_hbm [thread:$0]  %s2366, 256, %s7, [#allocation13], 128, 128, 8
    $region57: #{tpu_custom_call.1} parent=1 // pred_fallthru
      _
    // Predicated region
    $region58: #{tpu_custom_call.1} parent=1 // pred_check
      _
    $region59: #{tpu_custom_call.1} parent=1 // pred_check_branch
      %2373 = sbr.rel (0) target = $region61
    $region60: #{tpu_custom_call.1} parent=1 // pred_region
      %2374 = dma.done [#allocation13], 256
    $region61: #{tpu_custom_call.1} parent=1 // pred_fallthru
      _
    %2375 = vsyncpa [#allocation12], 1
    %2376 = vsyncpa [#allocation15], 1
    %2377 = vsyncpa [#allocation18], 1
    %2378 = vsyncpa [#allocation13], 1

</llo_original>
